<compile_context>
chip_gen: v5e
topology: v5e:2x2
jax: 0.10.0
libtpu: 0.0.40
codegen_flags: <defaults>
</compile_context>

<pallas_src>
import math
import functools
import numpy as np

import jax
import jax.numpy as jnp
from jax import lax
from jax.experimental import pallas as pl
from jax.experimental.pallas import tpu as pltpu

BN_EPS = 1e-5
LANES = 128
VMEM_LIMIT = 32 * 1024 * 1024  # fits every generation's scoped-VMEM budget


def _rup(v, m):
    return ((v + m - 1) // m) * m


def _pad_lanes(a, cp):
    pad = cp - a.shape[-1]
    if pad == 0:
        return a
    widths = [(0, 0)] * (a.ndim - 1) + [(0, pad)]
    return jnp.pad(a, widths)


# ---------------------------------------------------------------------------
# Kernel 1: tiled per-channel sum / sum-of-squares (BatchNorm-1 statistics).
# Grid: (num_row_tiles,) reduction axis; output blocks pinned at (0, 0).
# ---------------------------------------------------------------------------
def bn_stats_kernel(x_ref, sum_ref, sq_ref):
    @pl.when(pl.program_id(0) == 0)
    def _init():
        sum_ref[...] = jnp.zeros_like(sum_ref)
        sq_ref[...] = jnp.zeros_like(sq_ref)

    x = x_ref[...].astype(jnp.float32)
    sum_ref[...] += jnp.sum(x, axis=0, keepdims=True)
    sq_ref[...] += jnp.sum(x * x, axis=0, keepdims=True)


def bn_sums(x2d, cp):
    """Per-channel sum / sumsq over rows of x2d (bf16 ok; zero rows harmless)."""
    m = x2d.shape[0]
    m8 = _rup(m, 8)
    tm = min(1024, m8)
    mp = _rup(m8, tm)
    if mp != m:
        x2d = jnp.pad(x2d, ((0, mp - m), (0, 0)))
    return pl.pallas_call(
        bn_stats_kernel,
        grid=(mp // tm,),
        in_specs=[pl.BlockSpec((tm, cp), lambda i: (i, 0))],
        out_specs=[pl.BlockSpec((1, cp), lambda i: (0, 0)),
                   pl.BlockSpec((1, cp), lambda i: (0, 0))],
        out_shape=[jax.ShapeDtypeStruct((1, cp), jnp.float32),
                   jax.ShapeDtypeStruct((1, cp), jnp.float32)],
        compiler_params=pltpu.CompilerParams(
            dimension_semantics=("arbitrary",),
            vmem_limit_bytes=VMEM_LIMIT),
    )(x2d)


def scale_shift_from_sums(s, q, gamma, beta, count, cp):
    """Training-mode BN affine: x*scale + shift == gamma*(x-mean)*rsqrt(var+eps)+beta."""
    # TODO(synk): one-pass E[x^2]-E[x]^2 may lose precision for very large
    # counts; fine at WRN sizes / test tolerance.
    mean = s / float(count)
    var = jnp.maximum(q / float(count) - mean * mean, 0.0)   # biased (training) var
    g = _pad_lanes(gamma.reshape(1, -1).astype(jnp.float32), cp)
    b = _pad_lanes(beta.reshape(1, -1).astype(jnp.float32), cp)
    scale = g * lax.rsqrt(var + BN_EPS)
    shift = b - mean * scale
    return scale, shift


def _valid_range(off, s, size, extent):
    """Phase coordinates r in [0, extent) whose padded coord off+s*r lies in [1, size]."""
    lo = 0 if off >= 1 else -((1 - off) // -s)     # ceil((1-off)/s)
    hi = min(extent - 1, (size - off) // s)
    return lo, hi


# ---------------------------------------------------------------------------
# Kernel 2 (conv1): hoisted BN1 affine + ReLU -> 3x3/stride conv (9 taps on the
# MXU, explicit VMEM accumulator) -> fused BN2 sum/sumsq epilogue.
# Grid: (Cout_tiles, batch) -> weight tile stays resident across images.
# ---------------------------------------------------------------------------
def make_conv1_kernel(*, s, h_in, w_in, h_out, w_out, ph_h, ph_w, c_in, tn):
    taps = [(dy, dx) for dy in range(3) for dx in range(3)]

    def kernel(ph_ref, w_ref, sc_ref, sh_ref, o_ref, sum_ref, sq_ref,
               hbuf, acc_ref):
        @pl.when(pl.program_id(1) == 0)
        def _init():
            sum_ref[...] = jnp.zeros_like(sum_ref)
            sq_ref[...] = jnp.zeros_like(sq_ref)

        # --- hoisted BN1 affine + ReLU, applied ONCE per grid step ----------
        # Only the valid interior rectangle of each stride phase is touched;
        # the zero-padding ring / alignment rows stay exactly zero.
        scale = sc_ref[...].reshape(1, 1, c_in)
        shift = sh_ref[...].reshape(1, 1, c_in)
        hbuf[...] = jnp.zeros_like(hbuf)
        for p in range(s * s):
            py, px = p // s, p % s
            r0, r1 = _valid_range(py, s, h_in, ph_h)
            c0, c1 = _valid_range(px, s, w_in, ph_w)
            if r1 >= r0 and c1 >= c0:
                sub = ph_ref[p, r0:r1 + 1, c0:c1 + 1, :].astype(jnp.float32)
                hbuf[p, r0:r1 + 1, c0:c1 + 1, :] = jnp.maximum(
                    sub * scale + shift, 0.0).astype(jnp.bfloat16)

        # --- 9-tap 3x3 conv accumulated on the MXU (f32 VMEM accumulator) ---
        acc_ref[...] = jnp.zeros_like(acc_ref)
        for t, (dy, dx) in enumerate(taps):
            p = (dy % s) * s + (dx % s)            # stride phase of this tap
            oy, ox = dy // s, dx // s              # offset inside that phase
            a = hbuf[p, oy:oy + h_out, ox:ox + w_out, :].reshape(
                h_out * w_out, c_in)
            acc_ref[...] += jnp.dot(a, w_ref[t],
                                    preferred_element_type=jnp.float32)

        res = acc_ref[...]

        # --- fused BN2 statistics epilogue (pinned (1, tn) outputs) ---------
        sum_ref[...] += jnp.sum(res, axis=0, keepdims=True)
        sq_ref[...] += jnp.sum(res * res, axis=0, keepdims=True)

        # bf16 output, already in conv2's (unpadded) input layout.
        o_ref[...] = res.reshape(1, h_out, w_out, tn).astype(o_ref.dtype)

    return kernel


def conv1_call(phases, w_taps, scale, shift, *, s, h_in, w_in, h_out, w_out,
               c_in, c_out, tn):
    n_img = phases.shape[0] // (s * s)
    ph_h, ph_w = phases.shape[1], phases.shape[2]
    n_j = c_out // tn
    kernel = make_conv1_kernel(s=s, h_in=h_in, w_in=w_in, h_out=h_out,
                               w_out=w_out, ph_h=ph_h, ph_w=ph_w,
                               c_in=c_in, tn=tn)
    return pl.pallas_call(
        kernel,
        grid=(n_j, n_img),
        in_specs=[
            pl.BlockSpec((s * s, ph_h, ph_w, c_in), lambda j, n: (n, 0, 0, 0)),
            pl.BlockSpec((9, c_in, tn), lambda j, n: (0, 0, j)),   # resident over n
            pl.BlockSpec((1, c_in), lambda j, n: (0, 0)),
            pl.BlockSpec((1, c_in), lambda j, n: (0, 0)),
        ],
        out_specs=[
            pl.BlockSpec((1, h_out, w_out, tn), lambda j, n: (n, 0, 0, j)),
            pl.BlockSpec((1, tn), lambda j, n: (0, j)),            # pinned over n
            pl.BlockSpec((1, tn), lambda j, n: (0, j)),
        ],
        out_shape=[
            jax.ShapeDtypeStruct((n_img, h_out, w_out, c_out), jnp.bfloat16),
            jax.ShapeDtypeStruct((1, c_out), jnp.float32),
            jax.ShapeDtypeStruct((1, c_out), jnp.float32),
        ],
        scratch_shapes=[
            pltpu.VMEM((s * s, ph_h, ph_w, c_in), jnp.bfloat16),   # hoisted act
            pltpu.VMEM((h_out * w_out, tn), jnp.float32),          # accumulator
        ],
        compiler_params=pltpu.CompilerParams(
            dimension_semantics=("parallel", "arbitrary"),
            vmem_limit_bytes=VMEM_LIMIT),
    )(phases, w_taps, scale, shift)


# ---------------------------------------------------------------------------
# Kernel 3 (conv2): hoisted BN2 affine + ReLU (into a zero-ring-padded bf16
# scratch) -> 3x3/1 conv -> fused residual add or 1x1 strided shortcut conv.
# Grid: (Cout_tiles, batch), both "parallel".
# ---------------------------------------------------------------------------
def make_conv2_kernel(*, h_out, w_out, c_in, tn, mode):
    taps = [(dy, dx) for dy in range(3) for dx in range(3)]

    def kernel(*refs):
        if mode == "identity":
            (c1_ref, w_ref, sc_ref, sh_ref, res_ref, o_ref,
             hbuf, acc_ref) = refs
        else:  # conv_shortcut
            (c1_ref, w_ref, sc_ref, sh_ref, xs_ref, sc1_ref, sh1_ref,
             wsc_ref, o_ref, hbuf, acc_ref) = refs

        # --- hoisted BN2 affine + ReLU, zero ring built for free in scratch --
        scale = sc_ref[...].reshape(1, 1, c_in)
        shift = sh_ref[...].reshape(1, 1, c_in)
        hbuf[...] = jnp.zeros_like(hbuf)
        act = jnp.maximum(c1_ref[0].astype(jnp.float32) * scale + shift, 0.0)
        hbuf[1:1 + h_out, 1:1 + w_out, :] = act.astype(jnp.bfloat16)

        # --- 9-tap 3x3/1 conv on the MXU -------------------------------------
        acc_ref[...] = jnp.zeros_like(acc_ref)
        for t, (dy, dx) in enumerate(taps):
            a = hbuf[dy:dy + h_out, dx:dx + w_out, :].reshape(
                h_out * w_out, c_in)
            acc_ref[...] += jnp.dot(a, w_ref[t],
                                    preferred_element_type=jnp.float32)

        acc = acc_ref[...]
        if mode == "identity":
            acc = acc + res_ref[...].reshape(h_out * w_out, tn).astype(jnp.float32)
        else:
            cs = xs_ref.shape[-1]
            xs = xs_ref[...].reshape(h_out * w_out, cs).astype(jnp.float32)
            hs = jnp.maximum(xs * sc1_ref[...] + sh1_ref[...], 0.0)  # BN1+ReLU
            acc = acc + jnp.dot(hs.astype(jnp.bfloat16), wsc_ref[...],
                                preferred_element_type=jnp.float32)

        o_ref[...] = acc.reshape(1, h_out, w_out, tn)

    return kernel


def conv2_call(c1, w_taps, scale2, shift2, *, h_out, w_out, c_in, c_out, tn,
               mode, extra):
    n_img = c1.shape[0]
    n_j = c_out // tn
    kernel = make_conv2_kernel(h_out=h_out, w_out=w_out, c_in=c_in, tn=tn,
                               mode=mode)
    in_specs = [
        pl.BlockSpec((1, h_out, w_out, c_in), lambda j, n: (n, 0, 0, 0)),
        pl.BlockSpec((9, c_in, tn), lambda j, n: (0, 0, j)),       # resident over n
        pl.BlockSpec((1, c_in), lambda j, n: (0, 0)),
        pl.BlockSpec((1, c_in), lambda j, n: (0, 0)),
    ]
    args = [c1, w_taps, scale2, shift2]

    if mode == "identity":
        (res,) = extra
        in_specs.append(pl.BlockSpec((1, h_out, w_out, tn),
                                     lambda j, n: (n, 0, 0, j)))
        args.append(res)
    else:
        xs, sc1, sh1, wsc = extra
        cs = xs.shape[-1]
        in_specs += [
            pl.BlockSpec((1, h_out, w_out, cs), lambda j, n: (n, 0, 0, 0)),
            pl.BlockSpec((1, cs), lambda j, n: (0, 0)),
            pl.BlockSpec((1, cs), lambda j, n: (0, 0)),
            pl.BlockSpec((cs, tn), lambda j, n: (0, j)),
        ]
        args += [xs, sc1, sh1, wsc]

    return pl.pallas_call(
        kernel,
        grid=(n_j, n_img),
        in_specs=in_specs,
        out_specs=pl.BlockSpec((1, h_out, w_out, tn), lambda j, n: (n, 0, 0, j)),
        out_shape=jax.ShapeDtypeStruct((n_img, h_out, w_out, c_out), jnp.float32),
        scratch_shapes=[
            pltpu.VMEM((h_out + 2, w_out + 2, c_in), jnp.bfloat16),
            pltpu.VMEM((h_out * w_out, tn), jnp.float32),
        ],
        compiler_params=pltpu.CompilerParams(
            dimension_semantics=("parallel", "parallel"),
            vmem_limit_bytes=VMEM_LIMIT),
    )(*args)


# ---------------------------------------------------------------------------
# JAX glue (layout only: lane pad, stride-phase split, weight reshape).
# ---------------------------------------------------------------------------
def _spatial_phases(x_bf, s):
    """Zero-pad spatially by 1, split into s*s stride phases (already bf16)."""
    n, h, w, c = x_bf.shape
    xp = jnp.pad(x_bf, ((0, 0), (1, 1), (1, 1), (0, 0)))
    hp, wp = h + 2, w + 2
    hq, wq = _rup(hp, s), _rup(wp, s)
    if (hq, wq) != (hp, wp):
        xp = jnp.pad(xp, ((0, 0), (0, hq - hp), (0, wq - wp), (0, 0)))
    phases = [xp[:, py::s, px::s, :] for py in range(s) for px in range(s)]
    ph = jnp.stack(phases, axis=1)               # (N, s*s, hq//s, wq//s, C)
    return ph.reshape(n * s * s, hq // s, wq // s, c)


def _conv_w_taps(w, c_in_p, c_out_p):
    """Torch conv weight (Cout, Cin, kh, kw) -> (kh*kw, Cin_p, Cout_p) bf16."""
    c_out, c_in, kh, kw = w.shape
    wt = jnp.transpose(w, (2, 3, 1, 0)).reshape(kh * kw, c_in, c_out)
    wt = jnp.pad(wt, ((0, 0), (0, c_in_p - c_in), (0, c_out_p - c_out)))
    return wt.astype(jnp.bfloat16)


@functools.partial(jax.jit, static_argnames=("stride", "equal_in_out"))
def basic_block_forward(x_nchw, params, stride, equal_in_out):
    n, c_in, h, w = x_nchw.shape
    c_out = params["w1"].shape[0]
    c_in_p, c_out_p = _rup(c_in, LANES), _rup(c_out, LANES)
    # 256-wide output tile fills the v6e/v7x 2x256 MXU when possible; 128 is
    # native on v5e and is the fallback (also used at the small test sizes).
    tn = 256 if c_out_p % 256 == 0 else LANES

    h_out = (h - 1) // stride + 1
    w_out = (w - 1) // stride + 1

    # Single bf16 NHWC lane-padded copy of the input, shared by the conv1
    # phases, the identity residual, and the strided shortcut input.
    x_bf = _pad_lanes(jnp.transpose(x_nchw, (0, 2, 3, 1)), c_in_p).astype(jnp.bfloat16)

    # conv1 input layout (zero-padded, stride-phase-decomposed).
    ph1 = _spatial_phases(x_bf, stride)

    # BN1 statistics from the exact bf16 data the conv kernel normalizes.
    s1, q1 = bn_sums(ph1.reshape(-1, c_in_p), c_in_p)
    scale1, shift1 = scale_shift_from_sums(s1, q1, params["gamma1"],
                                           params["beta1"], n * h * w, c_in_p)

    # conv1: fused BN1+ReLU -> 3x3/stride conv, BN2 sums fused in epilogue.
    w1t = _conv_w_taps(params["w1"], c_in_p, c_out_p)
    c1, s2, q2 = conv1_call(ph1, w1t, scale1, shift1, s=stride, h_in=h,
                            w_in=w, h_out=h_out, w_out=w_out, c_in=c_in_p,
                            c_out=c_out_p, tn=tn)

    scale2, shift2 = scale_shift_from_sums(s2, q2, params["gamma2"],
                                           params["beta2"],
                                           n * h_out * w_out, c_out_p)

    # TODO(synk): dropout for droprate > 0 (training) is not implemented.

    # conv2: fused BN2+ReLU -> 3x3/1 conv + residual / strided 1x1 shortcut.
    w2t = _conv_w_taps(params["w2"], c_out_p, c_out_p)
    if equal_in_out:
        out = conv2_call(c1, w2t, scale2, shift2, h_out=h_out, w_out=w_out,
                         c_in=c_out_p, c_out=c_out_p, tn=tn,
                         mode="identity", extra=(x_bf,))
    else:
        xs = x_bf[:, ::stride, ::stride, :]                    # (N,Ho,Wo,Cin_p)
        wsc = _conv_w_taps(params["wsc"], c_in_p, c_out_p)[0]  # (Cin_p,Cout_p)
        out = conv2_call(c1, w2t, scale2, shift2, h_out=h_out, w_out=w_out,
                         c_in=c_out_p, c_out=c_out_p, tn=tn,
                         mode="conv_shortcut", extra=(xs, scale1, shift1, wsc))

    out = out[..., :c_out]
    return jnp.transpose(out, (0, 3, 1, 2))                    # back to NCHW


# ---------------------------------------------------------------------------
# Pure-JAX reference (f32, HIGHEST precision) for the correctness check.
# ---------------------------------------------------------------------------
def reference_forward(x_nchw, params, stride, equal_in_out):
    x = jnp.transpose(x_nchw, (0, 2, 3, 1)).astype(jnp.float32)

    def bn_relu_ref(t, g, b):
        m = jnp.mean(t, axis=(0, 1, 2), keepdims=True)
        v = jnp.mean((t - m) ** 2, axis=(0, 1, 2), keepdims=True)
        y = (t - m) * lax.rsqrt(v + BN_EPS) * g.reshape(1, 1, 1, -1) + b.reshape(1, 1, 1, -1)
        return jnp.maximum(y, 0.0)

    def conv_ref(t, w, s, p):
        wh = jnp.transpose(w, (2, 3, 1, 0))  # HWIO
        return lax.conv_general_dilated(
            t, wh, (s, s), [(p, p), (p, p)],
            dimension_numbers=("NHWC", "HWIO", "NHWC"),
            precision=lax.Precision.HIGHEST)

    h1 = bn_relu_ref(x, params["gamma1"], params["beta1"])
    c1 = conv_ref(h1, params["w1"], stride, 1)
    h2 = bn_relu_ref(c1, params["gamma2"], params["beta2"])
    sc = x if equal_in_out else conv_ref(h1, params["wsc"], stride, 0)
    out = conv_ref(h2, params["w2"], 1, 1) + sc
    return jnp.transpose(out, (0, 3, 1, 2))


def _make_params(key, in_planes, out_planes):
    ks = jax.random.split(key, 7)
    return {
        "gamma1": 1.0 + 0.1 * jax.random.normal(ks[0], (in_planes,), jnp.float32),
        "beta1": 0.1 * jax.random.normal(ks[1], (in_planes,), jnp.float32),
        "w1": jax.random.normal(ks[2], (out_planes, in_planes, 3, 3), jnp.float32)
              * math.sqrt(2.0 / (9 * out_planes)),
        "gamma2": 1.0 + 0.1 * jax.random.normal(ks[3], (out_planes,), jnp.float32),
        "beta2": 0.1 * jax.random.normal(ks[4], (out_planes,), jnp.float32),
        "w2": jax.random.normal(ks[5], (out_planes, out_planes, 3, 3), jnp.float32)
              * math.sqrt(2.0 / (9 * out_planes)),
        "wsc": jax.random.normal(ks[6], (out_planes, in_planes, 1, 1), jnp.float32)
               * math.sqrt(2.0 / out_planes),
    }


if __name__ == "__main__":
    key = jax.random.PRNGKey(0)
    k1, k2, k3, k4 = jax.random.split(key, 4)

    # Case 1: conv-shortcut branch (in_planes != out_planes, stride 2).
    x1 = jax.random.normal(k1, (2, 4, 16, 16), jnp.float32)
    p1 = _make_params(k2, 4, 8)
    out1 = jax.block_until_ready(
        basic_block_forward(x1, p1, stride=2, equal_in_out=False))
    assert out1.shape == (2, 8, 8, 8), out1.shape
    ref1 = reference_forward(x1, p1, 2, False)
    np.testing.assert_allclose(np.asarray(out1), np.asarray(ref1),
                               rtol=2e-2, atol=2e-2)

    # Case 2: identity branch (in_planes == out_planes, stride 1).
    x2 = jax.random.normal(k3, (2, 8, 8, 8), jnp.float32)
    p2 = _make_params(k4, 8, 8)
    out2 = jax.block_until_ready(
        basic_block_forward(x2, p2, stride=1, equal_in_out=True))
    assert out2.shape == (2, 8, 8, 8), out2.shape
    ref2 = reference_forward(x2, p2, 1, True)
    np.testing.assert_allclose(np.asarray(out2), np.asarray(ref2),
                               rtol=2e-2, atol=2e-2)

    print("KERNEL_OK")
</pallas_src>

<mosaic_0001>
module attributes {stable_mosaic.version = 11 : i64} {
  func.func @bn_stats_kernel(%arg0: i32, %arg1: memref<648x128xbf16, #tpu.memory_space<vmem>>, %arg2: memref<1x128xf32, #tpu.memory_space<vmem>>, %arg3: memref<1x128xf32, #tpu.memory_space<vmem>>) attributes {dimension_semantics = [#tpu.dimension_semantics<arbitrary>], iteration_bounds = array<i64: 1>, scalar_prefetch = 0 : i64, scratch_operands = 0 : i64, tpu.core_type = #tpu.core_type<tc>, window_params = [{transform_indices = @transform_0, window_bounds = array<i64: 648, 128>}, {pipeline_mode = #tpu.pipeline_mode<synchronous>, transform_indices = @transform_1, window_bounds = array<i64: 1, 128>}, {pipeline_mode = #tpu.pipeline_mode<synchronous>, transform_indices = @transform_2, window_bounds = array<i64: 1, 128>}]} {
    %c0_i32 = arith.constant 0 : i32
    %0 = arith.cmpi eq, %arg0, %c0_i32 : i32
    %1 = arith.extui %0 : i1 to i32
    %c0_i32_0 = arith.constant 0 : i32
    %2 = arith.cmpi ne, %1, %c0_i32_0 : i32
    scf.if %2 {
      %cst_11 = arith.constant 0.000000e+00 : f32
      %16 = vector.broadcast %cst_11 : f32 to vector<1x128xf32>
      %c0_12 = arith.constant 0 : index
      %c0_13 = arith.constant 0 : index
      %17 = vector.load %arg2[%c0_12, %c0_13] : memref<1x128xf32, #tpu.memory_space<vmem>>, vector<1x128xf32>
      tpu.vector_store %arg2[%c0_12, %c0_13], %16 {strides = array<i32>} : memref<1x128xf32, #tpu.memory_space<vmem>>, vector<1x128xf32>,
      %cst_14 = arith.constant 0.000000e+00 : f32
      %18 = vector.broadcast %cst_14 : f32 to vector<1x128xf32>
      %c0_15 = arith.constant 0 : index
      %c0_16 = arith.constant 0 : index
      %19 = vector.load %arg3[%c0_15, %c0_16] : memref<1x128xf32, #tpu.memory_space<vmem>>, vector<1x128xf32>
      tpu.vector_store %arg3[%c0_15, %c0_16], %18 {strides = array<i32>} : memref<1x128xf32, #tpu.memory_space<vmem>>, vector<1x128xf32>,
    } else {
    }
    %c0 = arith.constant 0 : index
    %c0_1 = arith.constant 0 : index
    %3 = vector.load %arg1[%c0, %c0_1] : memref<648x128xbf16, #tpu.memory_space<vmem>>, vector<648x128xbf16>
    %4 = arith.extf %3 : vector<648x128xbf16> to vector<648x128xf32>
    %c0_2 = arith.constant 0 : index
    %c0_3 = arith.constant 0 : index
    %5 = vector.load %arg2[%c0_2, %c0_3] : memref<1x128xf32, #tpu.memory_space<vmem>>, vector<1x128xf32>
    %cst = arith.constant dense<0.000000e+00> : vector<128xf32>
    %6 = vector.multi_reduction <add>, %4, %cst [0] : vector<648x128xf32> to vector<128xf32>
    %7 = vector.shape_cast %6 : vector<128xf32> to vector<1x128xf32>
    %8 = arith.addf %5, %7 : vector<1x128xf32>
    %c0_4 = arith.constant 0 : index
    %c0_5 = arith.constant 0 : index
    %9 = vector.load %arg2[%c0_4, %c0_5] : memref<1x128xf32, #tpu.memory_space<vmem>>, vector<1x128xf32>
    tpu.vector_store %arg2[%c0_4, %c0_5], %8 {strides = array<i32>} : memref<1x128xf32, #tpu.memory_space<vmem>>, vector<1x128xf32>,
    %c0_6 = arith.constant 0 : index
    %c0_7 = arith.constant 0 : index
    %10 = vector.load %arg3[%c0_6, %c0_7] : memref<1x128xf32, #tpu.memory_space<vmem>>, vector<1x128xf32>
    %11 = arith.mulf %4, %4 : vector<648x128xf32>
    %cst_8 = arith.constant dense<0.000000e+00> : vector<128xf32>
    %12 = vector.multi_reduction <add>, %11, %cst_8 [0] : vector<648x128xf32> to vector<128xf32>
    %13 = vector.shape_cast %12 : vector<128xf32> to vector<1x128xf32>
    %14 = arith.addf %10, %13 : vector<1x128xf32>
    %c0_9 = arith.constant 0 : index
    %c0_10 = arith.constant 0 : index
    %15 = vector.load %arg3[%c0_9, %c0_10] : memref<1x128xf32, #tpu.memory_space<vmem>>, vector<1x128xf32>
    tpu.vector_store %arg3[%c0_9, %c0_10], %14 {strides = array<i32>} : memref<1x128xf32, #tpu.memory_space<vmem>>, vector<1x128xf32>,
    return
  }
  func.func @transform_0(%arg0: i32) -> (i32, i32) {
    %c0_i32 = arith.constant 0 : i32
    %c0_i32_0 = arith.constant 0 : i32
    return %arg0, %c0_i32 : i32, i32
  }
  func.func @transform_1(%arg0: i32) -> (i32, i32) {
    %c0_i32 = arith.constant 0 : i32
    %c0_i32_0 = arith.constant 0 : i32
    %c0_i32_1 = arith.constant 0 : i32
    return %c0_i32, %c0_i32_0 : i32, i32
  }
  func.func @transform_2(%arg0: i32) -> (i32, i32) {
    %c0_i32 = arith.constant 0 : i32
    %c0_i32_0 = arith.constant 0 : i32
    %c0_i32_1 = arith.constant 0 : i32
    return %c0_i32, %c0_i32_0 : i32, i32
  }
}

module attributes {stable_mosaic.version = 11 : i64} {
  func.func @kernel(%arg0: i32, %arg1: i32, %arg2: memref<4x9x9x128xbf16, #tpu.memory_space<vmem>>, %arg3: memref<9x128x128xbf16, #tpu.memory_space<vmem>>, %arg4: memref<1x128xf32, #tpu.memory_space<vmem>>, %arg5: memref<1x128xf32, #tpu.memory_space<vmem>>, %arg6: memref<1x8x8x128xbf16, #tpu.memory_space<vmem>>, %arg7: memref<1x128xf32, #tpu.memory_space<vmem>>, %arg8: memref<1x128xf32, #tpu.memory_space<vmem>>, %arg9: memref<4x9x9x128xbf16, #tpu.memory_space<vmem>>, %arg10: memref<64x128xf32, #tpu.memory_space<vmem>>) attributes {dimension_semantics = [#tpu.dimension_semantics<parallel>, #tpu.dimension_semantics<arbitrary>], iteration_bounds = array<i64: 1, 2>, scalar_prefetch = 0 : i64, scratch_operands = 2 : i64, tpu.core_type = #tpu.core_type<tc>, window_params = [{transform_indices = @transform_0, window_bounds = array<i64: 4, 9, 9, 128>}, {transform_indices = @transform_1, window_bounds = array<i64: 9, 128, 128>}, {pipeline_mode = #tpu.pipeline_mode<synchronous>, transform_indices = @transform_2, window_bounds = array<i64: 1, 128>}, {pipeline_mode = #tpu.pipeline_mode<synchronous>, transform_indices = @transform_3, window_bounds = array<i64: 1, 128>}, {transform_indices = @transform_4, window_bounds = array<i64: 1, 8, 8, 128>}, {transform_indices = @transform_5, window_bounds = array<i64: 1, 128>}, {transform_indices = @transform_6, window_bounds = array<i64: 1, 128>}]} {
    %c0_i32 = arith.constant 0 : i32
    %0 = arith.cmpi eq, %arg1, %c0_i32 : i32
    %1 = arith.extui %0 : i1 to i32
    %c0_i32_0 = arith.constant 0 : i32
    %2 = arith.cmpi ne, %1, %c0_i32_0 : i32
    scf.if %2 {
      %cst_163 = arith.constant 0.000000e+00 : f32
      %159 = vector.broadcast %cst_163 : f32 to vector<1x128xf32>
      %c0_164 = arith.constant 0 : index
      %c0_165 = arith.constant 0 : index
      %160 = vector.load %arg7[%c0_164, %c0_165] : memref<1x128xf32, #tpu.memory_space<vmem>>, vector<1x128xf32>
      tpu.vector_store %arg7[%c0_164, %c0_165], %159 {strides = array<i32>} : memref<1x128xf32, #tpu.memory_space<vmem>>, vector<1x128xf32>,
      %cst_166 = arith.constant 0.000000e+00 : f32
      %161 = vector.broadcast %cst_166 : f32 to vector<1x128xf32>
      %c0_167 = arith.constant 0 : index
      %c0_168 = arith.constant 0 : index
      %162 = vector.load %arg8[%c0_167, %c0_168] : memref<1x128xf32, #tpu.memory_space<vmem>>, vector<1x128xf32>
      tpu.vector_store %arg8[%c0_167, %c0_168], %161 {strides = array<i32>} : memref<1x128xf32, #tpu.memory_space<vmem>>, vector<1x128xf32>,
    } else {
    }
    %c0 = arith.constant 0 : index
    %c0_1 = arith.constant 0 : index
    %3 = vector.load %arg4[%c0, %c0_1] : memref<1x128xf32, #tpu.memory_space<vmem>>, vector<1x128xf32>
    %4 = vector.shape_cast %3 : vector<1x128xf32> to vector<1x1x128xf32>
    %c0_2 = arith.constant 0 : index
    %c0_3 = arith.constant 0 : index
    %5 = vector.load %arg5[%c0_2, %c0_3] : memref<1x128xf32, #tpu.memory_space<vmem>>, vector<1x128xf32>
    %6 = vector.shape_cast %5 : vector<1x128xf32> to vector<1x1x128xf32>
    %cst = arith.constant 0.000000e+00 : bf16
    %7 = vector.broadcast %cst : bf16 to vector<4x9x9x128xbf16>
    %c0_4 = arith.constant 0 : index
    %c0_5 = arith.constant 0 : index
    %c0_6 = arith.constant 0 : index
    %c0_7 = arith.constant 0 : index
    %8 = vector.load %arg9[%c0_4, %c0_5, %c0_6, %c0_7] : memref<4x9x9x128xbf16, #tpu.memory_space<vmem>>, vector<4x9x9x128xbf16>
    tpu.vector_store %arg9[%c0_4, %c0_5, %c0_6, %c0_7], %7 {strides = array<i32>} : memref<4x9x9x128xbf16, #tpu.memory_space<vmem>>, vector<4x9x9x128xbf16>,
    %c0_8 = arith.constant 0 : index
    %c1 = arith.constant 1 : index
    %c1_9 = arith.constant 1 : index
    %c0_10 = arith.constant 0 : index
    %9 = vector.load %arg2[%c0_8, %c1, %c1_9, %c0_10] : memref<4x9x9x128xbf16, #tpu.memory_space<vmem>>, vector<1x8x8x128xbf16>
    %10 = vector.shape_cast %9 : vector<1x8x8x128xbf16> to vector<8x8x128xbf16>
    %11 = arith.extf %10 : vector<8x8x128xbf16> to vector<8x8x128xf32>
    %12 = vector.broadcast %4 : vector<1x1x128xf32> to vector<8x8x128xf32>
    %13 = arith.mulf %11, %12 : vector<8x8x128xf32>
    %14 = vector.broadcast %6 : vector<1x1x128xf32> to vector<8x8x128xf32>
    %15 = arith.addf %13, %14 : vector<8x8x128xf32>
    %cst_11 = arith.constant 0.000000e+00 : f32
    %16 = vector.broadcast %cst_11 : f32 to vector<8x8x128xf32>
    %17 = arith.maximumf %15, %16 : vector<8x8x128xf32>
    %18 = arith.truncf %17 : vector<8x8x128xf32> to vector<8x8x128xbf16>
    %c0_12 = arith.constant 0 : index
    %c1_13 = arith.constant 1 : index
    %c1_14 = arith.constant 1 : index
    %c0_15 = arith.constant 0 : index
    %19 = vector.load %arg9[%c0_12, %c1_13, %c1_14, %c0_15] : memref<4x9x9x128xbf16, #tpu.memory_space<vmem>>, vector<1x8x8x128xbf16>
    %20 = vector.shape_cast %19 : vector<1x8x8x128xbf16> to vector<8x8x128xbf16>
    %21 = vector.shape_cast %18 : vector<8x8x128xbf16> to vector<1x8x8x128xbf16>
    tpu.vector_store %arg9[%c0_12, %c1_13, %c1_14, %c0_15], %21 {strides = array<i32>} : memref<4x9x9x128xbf16, #tpu.memory_space<vmem>>, vector<1x8x8x128xbf16>,
    %c1_16 = arith.constant 1 : index
    %c1_17 = arith.constant 1 : index
    %c0_18 = arith.constant 0 : index
    %c0_19 = arith.constant 0 : index
    %22 = vector.load %arg2[%c1_16, %c1_17, %c0_18, %c0_19] : memref<4x9x9x128xbf16, #tpu.memory_space<vmem>>, vector<1x8x8x128xbf16>
    %23 = vector.shape_cast %22 : vector<1x8x8x128xbf16> to vector<8x8x128xbf16>
    %24 = arith.extf %23 : vector<8x8x128xbf16> to vector<8x8x128xf32>
    %25 = vector.broadcast %4 : vector<1x1x128xf32> to vector<8x8x128xf32>
    %26 = arith.mulf %24, %25 : vector<8x8x128xf32>
    %27 = vector.broadcast %6 : vector<1x1x128xf32> to vector<8x8x128xf32>
    %28 = arith.addf %26, %27 : vector<8x8x128xf32>
    %cst_20 = arith.constant 0.000000e+00 : f32
    %29 = vector.broadcast %cst_20 : f32 to vector<8x8x128xf32>
    %30 = arith.maximumf %28, %29 : vector<8x8x128xf32>
    %31 = arith.truncf %30 : vector<8x8x128xf32> to vector<8x8x128xbf16>
    %c1_21 = arith.constant 1 : index
    %c1_22 = arith.constant 1 : index
    %c0_23 = arith.constant 0 : index
    %c0_24 = arith.constant 0 : index
    %32 = vector.load %arg9[%c1_21, %c1_22, %c0_23, %c0_24] : memref<4x9x9x128xbf16, #tpu.memory_space<vmem>>, vector<1x8x8x128xbf16>
    %33 = vector.shape_cast %32 : vector<1x8x8x128xbf16> to vector<8x8x128xbf16>
    %34 = vector.shape_cast %31 : vector<8x8x128xbf16> to vector<1x8x8x128xbf16>
    tpu.vector_store %arg9[%c1_21, %c1_22, %c0_23, %c0_24], %34 {strides = array<i32>} : memref<4x9x9x128xbf16, #tpu.memory_space<vmem>>, vector<1x8x8x128xbf16>,
    %c2 = arith.constant 2 : index
    %c0_25 = arith.constant 0 : index
    %c1_26 = arith.constant 1 : index
    %c0_27 = arith.constant 0 : index
    %35 = vector.load %arg2[%c2, %c0_25, %c1_26, %c0_27] : memref<4x9x9x128xbf16, #tpu.memory_space<vmem>>, vector<1x8x8x128xbf16>
    %36 = vector.shape_cast %35 : vector<1x8x8x128xbf16> to vector<8x8x128xbf16>
    %37 = arith.extf %36 : vector<8x8x128xbf16> to vector<8x8x128xf32>
    %38 = vector.broadcast %4 : vector<1x1x128xf32> to vector<8x8x128xf32>
    %39 = arith.mulf %37, %38 : vector<8x8x128xf32>
    %40 = vector.broadcast %6 : vector<1x1x128xf32> to vector<8x8x128xf32>
    %41 = arith.addf %39, %40 : vector<8x8x128xf32>
    %cst_28 = arith.constant 0.000000e+00 : f32
    %42 = vector.broadcast %cst_28 : f32 to vector<8x8x128xf32>
    %43 = arith.maximumf %41, %42 : vector<8x8x128xf32>
    %44 = arith.truncf %43 : vector<8x8x128xf32> to vector<8x8x128xbf16>
    %c2_29 = arith.constant 2 : index
    %c0_30 = arith.constant 0 : index
    %c1_31 = arith.constant 1 : index
    %c0_32 = arith.constant 0 : index
    %45 = vector.load %arg9[%c2_29, %c0_30, %c1_31, %c0_32] : memref<4x9x9x128xbf16, #tpu.memory_space<vmem>>, vector<1x8x8x128xbf16>
    %46 = vector.shape_cast %45 : vector<1x8x8x128xbf16> to vector<8x8x128xbf16>
    %47 = vector.shape_cast %44 : vector<8x8x128xbf16> to vector<1x8x8x128xbf16>
    tpu.vector_store %arg9[%c2_29, %c0_30, %c1_31, %c0_32], %47 {strides = array<i32>} : memref<4x9x9x128xbf16, #tpu.memory_space<vmem>>, vector<1x8x8x128xbf16>,
    %c3 = arith.constant 3 : index
    %c0_33 = arith.constant 0 : index
    %c0_34 = arith.constant 0 : index
    %c0_35 = arith.constant 0 : index
    %48 = vector.load %arg2[%c3, %c0_33, %c0_34, %c0_35] : memref<4x9x9x128xbf16, #tpu.memory_space<vmem>>, vector<1x8x8x128xbf16>
    %49 = vector.shape_cast %48 : vector<1x8x8x128xbf16> to vector<8x8x128xbf16>
    %50 = arith.extf %49 : vector<8x8x128xbf16> to vector<8x8x128xf32>
    %51 = vector.broadcast %4 : vector<1x1x128xf32> to vector<8x8x128xf32>
    %52 = arith.mulf %50, %51 : vector<8x8x128xf32>
    %53 = vector.broadcast %6 : vector<1x1x128xf32> to vector<8x8x128xf32>
    %54 = arith.addf %52, %53 : vector<8x8x128xf32>
    %cst_36 = arith.constant 0.000000e+00 : f32
    %55 = vector.broadcast %cst_36 : f32 to vector<8x8x128xf32>
    %56 = arith.maximumf %54, %55 : vector<8x8x128xf32>
    %57 = arith.truncf %56 : vector<8x8x128xf32> to vector<8x8x128xbf16>
    %c3_37 = arith.constant 3 : index
    %c0_38 = arith.constant 0 : index
    %c0_39 = arith.constant 0 : index
    %c0_40 = arith.constant 0 : index
    %58 = vector.load %arg9[%c3_37, %c0_38, %c0_39, %c0_40] : memref<4x9x9x128xbf16, #tpu.memory_space<vmem>>, vector<1x8x8x128xbf16>
    %59 = vector.shape_cast %58 : vector<1x8x8x128xbf16> to vector<8x8x128xbf16>
    %60 = vector.shape_cast %57 : vector<8x8x128xbf16> to vector<1x8x8x128xbf16>
    tpu.vector_store %arg9[%c3_37, %c0_38, %c0_39, %c0_40], %60 {strides = array<i32>} : memref<4x9x9x128xbf16, #tpu.memory_space<vmem>>, vector<1x8x8x128xbf16>,
    %cst_41 = arith.constant 0.000000e+00 : f32
    %61 = vector.broadcast %cst_41 : f32 to vector<64x128xf32>
    %c0_42 = arith.constant 0 : index
    %c0_43 = arith.constant 0 : index
    %62 = vector.load %arg10[%c0_42, %c0_43] : memref<64x128xf32, #tpu.memory_space<vmem>>, vector<64x128xf32>
    tpu.vector_store %arg10[%c0_42, %c0_43], %61 {strides = array<i32>} : memref<64x128xf32, #tpu.memory_space<vmem>>, vector<64x128xf32>,
    %c0_44 = arith.constant 0 : index
    %c0_45 = arith.constant 0 : index
    %c0_46 = arith.constant 0 : index
    %c0_47 = arith.constant 0 : index
    %63 = vector.load %arg9[%c0_44, %c0_45, %c0_46, %c0_47] : memref<4x9x9x128xbf16, #tpu.memory_space<vmem>>, vector<1x8x8x128xbf16>
    %64 = vector.shape_cast %63 : vector<1x8x8x128xbf16> to vector<8x8x128xbf16>
    %65 = vector.shape_cast %64 : vector<8x8x128xbf16> to vector<64x128xbf16>
    %c0_48 = arith.constant 0 : index
    %c0_49 = arith.constant 0 : index
    %66 = vector.load %arg10[%c0_48, %c0_49] : memref<64x128xf32, #tpu.memory_space<vmem>>, vector<64x128xf32>
    %c0_50 = arith.constant 0 : index
    %c0_51 = arith.constant 0 : index
    %c0_52 = arith.constant 0 : index
    %67 = vector.load %arg3[%c0_50, %c0_51, %c0_52] : memref<9x128x128xbf16, #tpu.memory_space<vmem>>, vector<1x128x128xbf16>
    %68 = vector.shape_cast %67 : vector<1x128x128xbf16> to vector<128x128xbf16>
    %cst_53 = arith.constant dense<0.000000e+00> : vector<64x128xf32>
    %69 = tpu.matmul %65, %68, %cst_53 {dimension_numbers = #tpu.dot_dimension_numbers<[1], [0], [0], [1], [0, 0, 1, 1], [], []>} : vector<64x128xbf16>, vector<128x128xbf16>, vector<64x128xf32> -> vector<64x128xf32>
    %70 = arith.addf %66, %69 : vector<64x128xf32>
    %c0_54 = arith.constant 0 : index
    %c0_55 = arith.constant 0 : index
    %71 = vector.load %arg10[%c0_54, %c0_55] : memref<64x128xf32, #tpu.memory_space<vmem>>, vector<64x128xf32>
    tpu.vector_store %arg10[%c0_54, %c0_55], %70 {strides = array<i32>} : memref<64x128xf32, #tpu.memory_space<vmem>>, vector<64x128xf32>,
    %c1_56 = arith.constant 1 : index
    %c0_57 = arith.constant 0 : index
    %c0_58 = arith.constant 0 : index
    %c0_59 = arith.constant 0 : index
    %72 = vector.load %arg9[%c1_56, %c0_57, %c0_58, %c0_59] : memref<4x9x9x128xbf16, #tpu.memory_space<vmem>>, vector<1x8x8x128xbf16>
    %73 = vector.shape_cast %72 : vector<1x8x8x128xbf16> to vector<8x8x128xbf16>
    %74 = vector.shape_cast %73 : vector<8x8x128xbf16> to vector<64x128xbf16>
    %c0_60 = arith.constant 0 : index
    %c0_61 = arith.constant 0 : index
    %75 = vector.load %arg10[%c0_60, %c0_61] : memref<64x128xf32, #tpu.memory_space<vmem>>, vector<64x128xf32>
    %c1_62 = arith.constant 1 : index
    %c0_63 = arith.constant 0 : index
    %c0_64 = arith.constant 0 : index
    %76 = vector.load %arg3[%c1_62, %c0_63, %c0_64] : memref<9x128x128xbf16, #tpu.memory_space<vmem>>, vector<1x128x128xbf16>
    %77 = vector.shape_cast %76 : vector<1x128x128xbf16> to vector<128x128xbf16>
    %cst_65 = arith.constant dense<0.000000e+00> : vector<64x128xf32>
    %78 = tpu.matmul %74, %77, %cst_65 {dimension_numbers = #tpu.dot_dimension_numbers<[1], [0], [0], [1], [0, 0, 1, 1], [], []>} : vector<64x128xbf16>, vector<128x128xbf16>, vector<64x128xf32> -> vector<64x128xf32>
    %79 = arith.addf %75, %78 : vector<64x128xf32>
    %c0_66 = arith.constant 0 : index
    %c0_67 = arith.constant 0 : index
    %80 = vector.load %arg10[%c0_66, %c0_67] : memref<64x128xf32, #tpu.memory_space<vmem>>, vector<64x128xf32>
    tpu.vector_store %arg10[%c0_66, %c0_67], %79 {strides = array<i32>} : memref<64x128xf32, #tpu.memory_space<vmem>>, vector<64x128xf32>,
    %c0_68 = arith.constant 0 : index
    %c0_69 = arith.constant 0 : index
    %c1_70 = arith.constant 1 : index
    %c0_71 = arith.constant 0 : index
    %81 = vector.load %arg9[%c0_68, %c0_69, %c1_70, %c0_71] : memref<4x9x9x128xbf16, #tpu.memory_space<vmem>>, vector<1x8x8x128xbf16>
    %82 = vector.shape_cast %81 : vector<1x8x8x128xbf16> to vector<8x8x128xbf16>
    %83 = vector.shape_cast %82 : vector<8x8x128xbf16> to vector<64x128xbf16>
    %c0_72 = arith.constant 0 : index
    %c0_73 = arith.constant 0 : index
    %84 = vector.load %arg10[%c0_72, %c0_73] : memref<64x128xf32, #tpu.memory_space<vmem>>, vector<64x128xf32>
    %c2_74 = arith.constant 2 : index
    %c0_75 = arith.constant 0 : index
    %c0_76 = arith.constant 0 : index
    %85 = vector.load %arg3[%c2_74, %c0_75, %c0_76] : memref<9x128x128xbf16, #tpu.memory_space<vmem>>, vector<1x128x128xbf16>
    %86 = vector.shape_cast %85 : vector<1x128x128xbf16> to vector<128x128xbf16>
    %cst_77 = arith.constant dense<0.000000e+00> : vector<64x128xf32>
    %87 = tpu.matmul %83, %86, %cst_77 {dimension_numbers = #tpu.dot_dimension_numbers<[1], [0], [0], [1], [0, 0, 1, 1], [], []>} : vector<64x128xbf16>, vector<128x128xbf16>, vector<64x128xf32> -> vector<64x128xf32>
    %88 = arith.addf %84, %87 : vector<64x128xf32>
    %c0_78 = arith.constant 0 : index
    %c0_79 = arith.constant 0 : index
    %89 = vector.load %arg10[%c0_78, %c0_79] : memref<64x128xf32, #tpu.memory_space<vmem>>, vector<64x128xf32>
    tpu.vector_store %arg10[%c0_78, %c0_79], %88 {strides = array<i32>} : memref<64x128xf32, #tpu.memory_space<vmem>>, vector<64x128xf32>,
    %c2_80 = arith.constant 2 : index
    %c0_81 = arith.constant 0 : index
    %c0_82 = arith.constant 0 : index
    %c0_83 = arith.constant 0 : index
    %90 = vector.load %arg9[%c2_80, %c0_81, %c0_82, %c0_83] : memref<4x9x9x128xbf16, #tpu.memory_space<vmem>>, vector<1x8x8x128xbf16>
    %91 = vector.shape_cast %90 : vector<1x8x8x128xbf16> to vector<8x8x128xbf16>
    %92 = vector.shape_cast %91 : vector<8x8x128xbf16> to vector<64x128xbf16>
    %c0_84 = arith.constant 0 : index
    %c0_85 = arith.constant 0 : index
    %93 = vector.load %arg10[%c0_84, %c0_85] : memref<64x128xf32, #tpu.memory_space<vmem>>, vector<64x128xf32>
    %c3_86 = arith.constant 3 : index
    %c0_87 = arith.constant 0 : index
    %c0_88 = arith.constant 0 : index
    %94 = vector.load %arg3[%c3_86, %c0_87, %c0_88] : memref<9x128x128xbf16, #tpu.memory_space<vmem>>, vector<1x128x128xbf16>
    %95 = vector.shape_cast %94 : vector<1x128x128xbf16> to vector<128x128xbf16>
    %cst_89 = arith.constant dense<0.000000e+00> : vector<64x128xf32>
    %96 = tpu.matmul %92, %95, %cst_89 {dimension_numbers = #tpu.dot_dimension_numbers<[1], [0], [0], [1], [0, 0, 1, 1], [], []>} : vector<64x128xbf16>, vector<128x128xbf16>, vector<64x128xf32> -> vector<64x128xf32>
    %97 = arith.addf %93, %96 : vector<64x128xf32>
    %c0_90 = arith.constant 0 : index
    %c0_91 = arith.constant 0 : index
    %98 = vector.load %arg10[%c0_90, %c0_91] : memref<64x128xf32, #tpu.memory_space<vmem>>, vector<64x128xf32>
    tpu.vector_store %arg10[%c0_90, %c0_91], %97 {strides = array<i32>} : memref<64x128xf32, #tpu.memory_space<vmem>>, vector<64x128xf32>,
    %c3_92 = arith.constant 3 : index
    %c0_93 = arith.constant 0 : index
    %c0_94 = arith.constant 0 : index
    %c0_95 = arith.constant 0 : index
    %99 = vector.load %arg9[%c3_92, %c0_93, %c0_94, %c0_95] : memref<4x9x9x128xbf16, #tpu.memory_space<vmem>>, vector<1x8x8x128xbf16>
    %100 = vector.shape_cast %99 : vector<1x8x8x128xbf16> to vector<8x8x128xbf16>
    %101 = vector.shape_cast %100 : vector<8x8x128xbf16> to vector<64x128xbf16>
    %c0_96 = arith.constant 0 : index
    %c0_97 = arith.constant 0 : index
    %102 = vector.load %arg10[%c0_96, %c0_97] : memref<64x128xf32, #tpu.memory_space<vmem>>, vector<64x128xf32>
    %c4 = arith.constant 4 : index
    %c0_98 = arith.constant 0 : index
    %c0_99 = arith.constant 0 : index
    %103 = vector.load %arg3[%c4, %c0_98, %c0_99] : memref<9x128x128xbf16, #tpu.memory_space<vmem>>, vector<1x128x128xbf16>
    %104 = vector.shape_cast %103 : vector<1x128x128xbf16> to vector<128x128xbf16>
    %cst_100 = arith.constant dense<0.000000e+00> : vector<64x128xf32>
    %105 = tpu.matmul %101, %104, %cst_100 {dimension_numbers = #tpu.dot_dimension_numbers<[1], [0], [0], [1], [0, 0, 1, 1], [], []>} : vector<64x128xbf16>, vector<128x128xbf16>, vector<64x128xf32> -> vector<64x128xf32>
    %106 = arith.addf %102, %105 : vector<64x128xf32>
    %c0_101 = arith.constant 0 : index
    %c0_102 = arith.constant 0 : index
    %107 = vector.load %arg10[%c0_101, %c0_102] : memref<64x128xf32, #tpu.memory_space<vmem>>, vector<64x128xf32>
    tpu.vector_store %arg10[%c0_101, %c0_102], %106 {strides = array<i32>} : memref<64x128xf32, #tpu.memory_space<vmem>>, vector<64x128xf32>,
    %c2_103 = arith.constant 2 : index
    %c0_104 = arith.constant 0 : index
    %c1_105 = arith.constant 1 : index
    %c0_106 = arith.constant 0 : index
    %108 = vector.load %arg9[%c2_103, %c0_104, %c1_105, %c0_106] : memref<4x9x9x128xbf16, #tpu.memory_space<vmem>>, vector<1x8x8x128xbf16>
    %109 = vector.shape_cast %108 : vector<1x8x8x128xbf16> to vector<8x8x128xbf16>
    %110 = vector.shape_cast %109 : vector<8x8x128xbf16> to vector<64x128xbf16>
    %c0_107 = arith.constant 0 : index
    %c0_108 = arith.constant 0 : index
    %111 = vector.load %arg10[%c0_107, %c0_108] : memref<64x128xf32, #tpu.memory_space<vmem>>, vector<64x128xf32>
    %c5 = arith.constant 5 : index
    %c0_109 = arith.constant 0 : index
    %c0_110 = arith.constant 0 : index
    %112 = vector.load %arg3[%c5, %c0_109, %c0_110] : memref<9x128x128xbf16, #tpu.memory_space<vmem>>, vector<1x128x128xbf16>
    %113 = vector.shape_cast %112 : vector<1x128x128xbf16> to vector<128x128xbf16>
    %cst_111 = arith.constant dense<0.000000e+00> : vector<64x128xf32>
    %114 = tpu.matmul %110, %113, %cst_111 {dimension_numbers = #tpu.dot_dimension_numbers<[1], [0], [0], [1], [0, 0, 1, 1], [], []>} : vector<64x128xbf16>, vector<128x128xbf16>, vector<64x128xf32> -> vector<64x128xf32>
    %115 = arith.addf %111, %114 : vector<64x128xf32>
    %c0_112 = arith.constant 0 : index
    %c0_113 = arith.constant 0 : index
    %116 = vector.load %arg10[%c0_112, %c0_113] : memref<64x128xf32, #tpu.memory_space<vmem>>, vector<64x128xf32>
    tpu.vector_store %arg10[%c0_112, %c0_113], %115 {strides = array<i32>} : memref<64x128xf32, #tpu.memory_space<vmem>>, vector<64x128xf32>,
    %c0_114 = arith.constant 0 : index
    %c1_115 = arith.constant 1 : index
    %c0_116 = arith.constant 0 : index
    %c0_117 = arith.constant 0 : index
    %117 = vector.load %arg9[%c0_114, %c1_115, %c0_116, %c0_117] : memref<4x9x9x128xbf16, #tpu.memory_space<vmem>>, vector<1x8x8x128xbf16>
    %118 = vector.shape_cast %117 : vector<1x8x8x128xbf16> to vector<8x8x128xbf16>
    %119 = vector.shape_cast %118 : vector<8x8x128xbf16> to vector<64x128xbf16>
    %c0_118 = arith.constant 0 : index
    %c0_119 = arith.constant 0 : index
    %120 = vector.load %arg10[%c0_118, %c0_119] : memref<64x128xf32, #tpu.memory_space<vmem>>, vector<64x128xf32>
    %c6 = arith.constant 6 : index
    %c0_120 = arith.constant 0 : index
    %c0_121 = arith.constant 0 : index
    %121 = vector.load %arg3[%c6, %c0_120, %c0_121] : memref<9x128x128xbf16, #tpu.memory_space<vmem>>, vector<1x128x128xbf16>
    %122 = vector.shape_cast %121 : vector<1x128x128xbf16> to vector<128x128xbf16>
    %cst_122 = arith.constant dense<0.000000e+00> : vector<64x128xf32>
    %123 = tpu.matmul %119, %122, %cst_122 {dimension_numbers = #tpu.dot_dimension_numbers<[1], [0], [0], [1], [0, 0, 1, 1], [], []>} : vector<64x128xbf16>, vector<128x128xbf16>, vector<64x128xf32> -> vector<64x128xf32>
    %124 = arith.addf %120, %123 : vector<64x128xf32>
    %c0_123 = arith.constant 0 : index
    %c0_124 = arith.constant 0 : index
    %125 = vector.load %arg10[%c0_123, %c0_124] : memref<64x128xf32, #tpu.memory_space<vmem>>, vector<64x128xf32>
    tpu.vector_store %arg10[%c0_123, %c0_124], %124 {strides = array<i32>} : memref<64x128xf32, #tpu.memory_space<vmem>>, vector<64x128xf32>,
    %c1_125 = arith.constant 1 : index
    %c1_126 = arith.constant 1 : index
    %c0_127 = arith.constant 0 : index
    %c0_128 = arith.constant 0 : index
    %126 = vector.load %arg9[%c1_125, %c1_126, %c0_127, %c0_128] : memref<4x9x9x128xbf16, #tpu.memory_space<vmem>>, vector<1x8x8x128xbf16>
    %127 = vector.shape_cast %126 : vector<1x8x8x128xbf16> to vector<8x8x128xbf16>
    %128 = vector.shape_cast %127 : vector<8x8x128xbf16> to vector<64x128xbf16>
    %c0_129 = arith.constant 0 : index
    %c0_130 = arith.constant 0 : index
    %129 = vector.load %arg10[%c0_129, %c0_130] : memref<64x128xf32, #tpu.memory_space<vmem>>, vector<64x128xf32>
    %c7 = arith.constant 7 : index
    %c0_131 = arith.constant 0 : index
    %c0_132 = arith.constant 0 : index
    %130 = vector.load %arg3[%c7, %c0_131, %c0_132] : memref<9x128x128xbf16, #tpu.memory_space<vmem>>, vector<1x128x128xbf16>
    %131 = vector.shape_cast %130 : vector<1x128x128xbf16> to vector<128x128xbf16>
    %cst_133 = arith.constant dense<0.000000e+00> : vector<64x128xf32>
    %132 = tpu.matmul %128, %131, %cst_133 {dimension_numbers = #tpu.dot_dimension_numbers<[1], [0], [0], [1], [0, 0, 1, 1], [], []>} : vector<64x128xbf16>, vector<128x128xbf16>, vector<64x128xf32> -> vector<64x128xf32>
    %133 = arith.addf %129, %132 : vector<64x128xf32>
    %c0_134 = arith.constant 0 : index
    %c0_135 = arith.constant 0 : index
    %134 = vector.load %arg10[%c0_134, %c0_135] : memref<64x128xf32, #tpu.memory_space<vmem>>, vector<64x128xf32>
    tpu.vector_store %arg10[%c0_134, %c0_135], %133 {strides = array<i32>} : memref<64x128xf32, #tpu.memory_space<vmem>>, vector<64x128xf32>,
    %c0_136 = arith.constant 0 : index
    %c1_137 = arith.constant 1 : index
    %c1_138 = arith.constant 1 : index
    %c0_139 = arith.constant 0 : index
    %135 = vector.load %arg9[%c0_136, %c1_137, %c1_138, %c0_139] : memref<4x9x9x128xbf16, #tpu.memory_space<vmem>>, vector<1x8x8x128xbf16>
    %136 = vector.shape_cast %135 : vector<1x8x8x128xbf16> to vector<8x8x128xbf16>
    %137 = vector.shape_cast %136 : vector<8x8x128xbf16> to vector<64x128xbf16>
    %c0_140 = arith.constant 0 : index
    %c0_141 = arith.constant 0 : index
    %138 = vector.load %arg10[%c0_140, %c0_141] : memref<64x128xf32, #tpu.memory_space<vmem>>, vector<64x128xf32>
    %c8 = arith.constant 8 : index
    %c0_142 = arith.constant 0 : index
    %c0_143 = arith.constant 0 : index
    %139 = vector.load %arg3[%c8, %c0_142, %c0_143] : memref<9x128x128xbf16, #tpu.memory_space<vmem>>, vector<1x128x128xbf16>
    %140 = vector.shape_cast %139 : vector<1x128x128xbf16> to vector<128x128xbf16>
    %cst_144 = arith.constant dense<0.000000e+00> : vector<64x128xf32>
    %141 = tpu.matmul %137, %140, %cst_144 {dimension_numbers = #tpu.dot_dimension_numbers<[1], [0], [0], [1], [0, 0, 1, 1], [], []>} : vector<64x128xbf16>, vector<128x128xbf16>, vector<64x128xf32> -> vector<64x128xf32>
    %142 = arith.addf %138, %141 : vector<64x128xf32>
    %c0_145 = arith.constant 0 : index
    %c0_146 = arith.constant 0 : index
    %143 = vector.load %arg10[%c0_145, %c0_146] : memref<64x128xf32, #tpu.memory_space<vmem>>, vector<64x128xf32>
    tpu.vector_store %arg10[%c0_145, %c0_146], %142 {strides = array<i32>} : memref<64x128xf32, #tpu.memory_space<vmem>>, vector<64x128xf32>,
    %c0_147 = arith.constant 0 : index
    %c0_148 = arith.constant 0 : index
    %144 = vector.load %arg10[%c0_147, %c0_148] : memref<64x128xf32, #tpu.memory_space<vmem>>, vector<64x128xf32>
    %c0_149 = arith.constant 0 : index
    %c0_150 = arith.constant 0 : index
    %145 = vector.load %arg7[%c0_149, %c0_150] : memref<1x128xf32, #tpu.memory_space<vmem>>, vector<1x128xf32>
    %cst_151 = arith.constant dense<0.000000e+00> : vector<128xf32>
    %146 = vector.multi_reduction <add>, %144, %cst_151 [0] : vector<64x128xf32> to vector<128xf32>
    %147 = vector.shape_cast %146 : vector<128xf32> to vector<1x128xf32>
    %148 = arith.addf %145, %147 : vector<1x128xf32>
    %c0_152 = arith.constant 0 : index
    %c0_153 = arith.constant 0 : index
    %149 = vector.load %arg7[%c0_152, %c0_153] : memref<1x128xf32, #tpu.memory_space<vmem>>, vector<1x128xf32>
    tpu.vector_store %arg7[%c0_152, %c0_153], %148 {strides = array<i32>} : memref<1x128xf32, #tpu.memory_space<vmem>>, vector<1x128xf32>,
    %c0_154 = arith.constant 0 : index
    %c0_155 = arith.constant 0 : index
    %150 = vector.load %arg8[%c0_154, %c0_155] : memref<1x128xf32, #tpu.memory_space<vmem>>, vector<1x128xf32>
    %151 = arith.mulf %144, %144 : vector<64x128xf32>
    %cst_156 = arith.constant dense<0.000000e+00> : vector<128xf32>
    %152 = vector.multi_reduction <add>, %151, %cst_156 [0] : vector<64x128xf32> to vector<128xf32>
    %153 = vector.shape_cast %152 : vector<128xf32> to vector<1x128xf32>
    %154 = arith.addf %150, %153 : vector<1x128xf32>
    %c0_157 = arith.constant 0 : index
    %c0_158 = arith.constant 0 : index
    %155 = vector.load %arg8[%c0_157, %c0_158] : memref<1x128xf32, #tpu.memory_space<vmem>>, vector<1x128xf32>
    tpu.vector_store %arg8[%c0_157, %c0_158], %154 {strides = array<i32>} : memref<1x128xf32, #tpu.memory_space<vmem>>, vector<1x128xf32>,
    %156 = vector.shape_cast %144 : vector<64x128xf32> to vector<1x8x8x128xf32>
    %157 = arith.truncf %156 : vector<1x8x8x128xf32> to vector<1x8x8x128xbf16>
    %c0_159 = arith.constant 0 : index
    %c0_160 = arith.constant 0 : index
    %c0_161 = arith.constant 0 : index
    %c0_162 = arith.constant 0 : index
    %158 = vector.load %arg6[%c0_159, %c0_160, %c0_161, %c0_162] : memref<1x8x8x128xbf16, #tpu.memory_space<vmem>>, vector<1x8x8x128xbf16>
    tpu.vector_store %arg6[%c0_159, %c0_160, %c0_161, %c0_162], %157 {strides = array<i32>} : memref<1x8x8x128xbf16, #tpu.memory_space<vmem>>, vector<1x8x8x128xbf16>,
    return
  }
  func.func @transform_0(%arg0: i32, %arg1: i32) -> (i32, i32, i32, i32) {
    %c0_i32 = arith.constant 0 : i32
    %c0_i32_0 = arith.constant 0 : i32
    %c0_i32_1 = arith.constant 0 : i32
    %c0_i32_2 = arith.constant 0 : i32
    return %arg1, %c0_i32, %c0_i32_0, %c0_i32_1 : i32, i32, i32, i32
  }
  func.func @transform_1(%arg0: i32, %arg1: i32) -> (i32, i32, i32) {
    %c0_i32 = arith.constant 0 : i32
    %c0_i32_0 = arith.constant 0 : i32
    %c0_i32_1 = arith.constant 0 : i32
    return %c0_i32, %c0_i32_0, %arg0 : i32, i32, i32
  }
  func.func @transform_2(%arg0: i32, %arg1: i32) -> (i32, i32) {
    %c0_i32 = arith.constant 0 : i32
    %c0_i32_0 = arith.constant 0 : i32
    %c0_i32_1 = arith.constant 0 : i32
    return %c0_i32, %c0_i32_0 : i32, i32
  }
  func.func @transform_3(%arg0: i32, %arg1: i32) -> (i32, i32) {
    %c0_i32 = arith.constant 0 : i32
    %c0_i32_0 = arith.constant 0 : i32
    %c0_i32_1 = arith.constant 0 : i32
    return %c0_i32, %c0_i32_0 : i32, i32
  }
  func.func @transform_4(%arg0: i32, %arg1: i32) -> (i32, i32, i32, i32) {
    %c0_i32 = arith.constant 0 : i32
    %c0_i32_0 = arith.constant 0 : i32
    %c0_i32_1 = arith.constant 0 : i32
    return %arg1, %c0_i32, %c0_i32_0, %arg0 : i32, i32, i32, i32
  }
  func.func @transform_5(%arg0: i32, %arg1: i32) -> (i32, i32) {
    %c0_i32 = arith.constant 0 : i32
    %c0_i32_0 = arith.constant 0 : i32
    return %c0_i32, %arg0 : i32, i32
  }
  func.func @transform_6(%arg0: i32, %arg1: i32) -> (i32, i32) {
    %c0_i32 = arith.constant 0 : i32
    %c0_i32_0 = arith.constant 0 : i32
    return %c0_i32, %arg0 : i32, i32
  }
}

module attributes {stable_mosaic.version = 11 : i64} {
  func.func @kernel(%arg0: i32, %arg1: i32, %arg2: memref<1x8x8x128xbf16, #tpu.memory_space<vmem>>, %arg3: memref<9x128x128xbf16, #tpu.memory_space<vmem>>, %arg4: memref<1x128xf32, #tpu.memory_space<vmem>>, %arg5: memref<1x128xf32, #tpu.memory_space<vmem>>, %arg6: memref<1x8x8x128xbf16, #tpu.memory_space<vmem>>, %arg7: memref<1x128xf32, #tpu.memory_space<vmem>>, %arg8: memref<1x128xf32, #tpu.memory_space<vmem>>, %arg9: memref<128x128xbf16, #tpu.memory_space<vmem>>, %arg10: memref<1x8x8x128xf32, #tpu.memory_space<vmem>>, %arg11: memref<10x10x128xbf16, #tpu.memory_space<vmem>>, %arg12: memref<64x128xf32, #tpu.memory_space<vmem>>) attributes {dimension_semantics = [#tpu.dimension_semantics<parallel>, #tpu.dimension_semantics<parallel>], iteration_bounds = array<i64: 1, 2>, scalar_prefetch = 0 : i64, scratch_operands = 2 : i64, tpu.core_type = #tpu.core_type<tc>, window_params = [{transform_indices = @transform_0, window_bounds = array<i64: 1, 8, 8, 128>}, {transform_indices = @transform_1, window_bounds = array<i64: 9, 128, 128>}, {pipeline_mode = #tpu.pipeline_mode<synchronous>, transform_indices = @transform_2, window_bounds = array<i64: 1, 128>}, {pipeline_mode = #tpu.pipeline_mode<synchronous>, transform_indices = @transform_3, window_bounds = array<i64: 1, 128>}, {transform_indices = @transform_4, window_bounds = array<i64: 1, 8, 8, 128>}, {pipeline_mode = #tpu.pipeline_mode<synchronous>, transform_indices = @transform_5, window_bounds = array<i64: 1, 128>}, {pipeline_mode = #tpu.pipeline_mode<synchronous>, transform_indices = @transform_6, window_bounds = array<i64: 1, 128>}, {transform_indices = @transform_7, window_bounds = array<i64: 128, 128>}, {transform_indices = @transform_8, window_bounds = array<i64: 1, 8, 8, 128>}]} {
    %c0 = arith.constant 0 : index
    %c0_0 = arith.constant 0 : index
    %0 = vector.load %arg4[%c0, %c0_0] : memref<1x128xf32, #tpu.memory_space<vmem>>, vector<1x128xf32>
    %1 = vector.shape_cast %0 : vector<1x128xf32> to vector<1x1x128xf32>
    %c0_1 = arith.constant 0 : index
    %c0_2 = arith.constant 0 : index
    %2 = vector.load %arg5[%c0_1, %c0_2] : memref<1x128xf32, #tpu.memory_space<vmem>>, vector<1x128xf32>
    %3 = vector.shape_cast %2 : vector<1x128xf32> to vector<1x1x128xf32>
    %cst = arith.constant 0.000000e+00 : bf16
    %4 = vector.broadcast %cst : bf16 to vector<10x10x128xbf16>
    %c0_3 = arith.constant 0 : index
    %c0_4 = arith.constant 0 : index
    %c0_5 = arith.constant 0 : index
    %5 = vector.load %arg11[%c0_3, %c0_4, %c0_5] : memref<10x10x128xbf16, #tpu.memory_space<vmem>>, vector<10x10x128xbf16>
    tpu.vector_store %arg11[%c0_3, %c0_4, %c0_5], %4 {strides = array<i32>} : memref<10x10x128xbf16, #tpu.memory_space<vmem>>, vector<10x10x128xbf16>,
    %c0_6 = arith.constant 0 : index
    %c0_7 = arith.constant 0 : index
    %c0_8 = arith.constant 0 : index
    %c0_9 = arith.constant 0 : index
    %6 = vector.load %arg2[%c0_6, %c0_7, %c0_8, %c0_9] : memref<1x8x8x128xbf16, #tpu.memory_space<vmem>>, vector<1x8x8x128xbf16>
    %7 = vector.shape_cast %6 : vector<1x8x8x128xbf16> to vector<8x8x128xbf16>
    %8 = arith.extf %7 : vector<8x8x128xbf16> to vector<8x8x128xf32>
    %9 = vector.broadcast %1 : vector<1x1x128xf32> to vector<8x8x128xf32>
    %10 = arith.mulf %8, %9 : vector<8x8x128xf32>
    %11 = vector.broadcast %3 : vector<1x1x128xf32> to vector<8x8x128xf32>
    %12 = arith.addf %10, %11 : vector<8x8x128xf32>
    %cst_10 = arith.constant 0.000000e+00 : f32
    %13 = vector.broadcast %cst_10 : f32 to vector<8x8x128xf32>
    %14 = arith.maximumf %12, %13 : vector<8x8x128xf32>
    %15 = arith.truncf %14 : vector<8x8x128xf32> to vector<8x8x128xbf16>
    %c1 = arith.constant 1 : index
    %c1_11 = arith.constant 1 : index
    %c0_12 = arith.constant 0 : index
    %16 = vector.load %arg11[%c1, %c1_11, %c0_12] : memref<10x10x128xbf16, #tpu.memory_space<vmem>>, vector<8x8x128xbf16>
    tpu.vector_store %arg11[%c1, %c1_11, %c0_12], %15 {strides = array<i32>} : memref<10x10x128xbf16, #tpu.memory_space<vmem>>, vector<8x8x128xbf16>,
    %cst_13 = arith.constant 0.000000e+00 : f32
    %17 = vector.broadcast %cst_13 : f32 to vector<64x128xf32>
    %c0_14 = arith.constant 0 : index
    %c0_15 = arith.constant 0 : index
    %18 = vector.load %arg12[%c0_14, %c0_15] : memref<64x128xf32, #tpu.memory_space<vmem>>, vector<64x128xf32>
    tpu.vector_store %arg12[%c0_14, %c0_15], %17 {strides = array<i32>} : memref<64x128xf32, #tpu.memory_space<vmem>>, vector<64x128xf32>,
    %c0_16 = arith.constant 0 : index
    %c0_17 = arith.constant 0 : index
    %c0_18 = arith.constant 0 : index
    %19 = vector.load %arg11[%c0_16, %c0_17, %c0_18] : memref<10x10x128xbf16, #tpu.memory_space<vmem>>, vector<8x8x128xbf16>
    %20 = vector.shape_cast %19 : vector<8x8x128xbf16> to vector<64x128xbf16>
    %c0_19 = arith.constant 0 : index
    %c0_20 = arith.constant 0 : index
    %21 = vector.load %arg12[%c0_19, %c0_20] : memref<64x128xf32, #tpu.memory_space<vmem>>, vector<64x128xf32>
    %c0_21 = arith.constant 0 : index
    %c0_22 = arith.constant 0 : index
    %c0_23 = arith.constant 0 : index
    %22 = vector.load %arg3[%c0_21, %c0_22, %c0_23] : memref<9x128x128xbf16, #tpu.memory_space<vmem>>, vector<1x128x128xbf16>
    %23 = vector.shape_cast %22 : vector<1x128x128xbf16> to vector<128x128xbf16>
    %cst_24 = arith.constant dense<0.000000e+00> : vector<64x128xf32>
    %24 = tpu.matmul %20, %23, %cst_24 {dimension_numbers = #tpu.dot_dimension_numbers<[1], [0], [0], [1], [0, 0, 1, 1], [], []>} : vector<64x128xbf16>, vector<128x128xbf16>, vector<64x128xf32> -> vector<64x128xf32>
    %25 = arith.addf %21, %24 : vector<64x128xf32>
    %c0_25 = arith.constant 0 : index
    %c0_26 = arith.constant 0 : index
    %26 = vector.load %arg12[%c0_25, %c0_26] : memref<64x128xf32, #tpu.memory_space<vmem>>, vector<64x128xf32>
    tpu.vector_store %arg12[%c0_25, %c0_26], %25 {strides = array<i32>} : memref<64x128xf32, #tpu.memory_space<vmem>>, vector<64x128xf32>,
    %c0_27 = arith.constant 0 : index
    %c1_28 = arith.constant 1 : index
    %c0_29 = arith.constant 0 : index
    %27 = vector.load %arg11[%c0_27, %c1_28, %c0_29] : memref<10x10x128xbf16, #tpu.memory_space<vmem>>, vector<8x8x128xbf16>
    %28 = vector.shape_cast %27 : vector<8x8x128xbf16> to vector<64x128xbf16>
    %c0_30 = arith.constant 0 : index
    %c0_31 = arith.constant 0 : index
    %29 = vector.load %arg12[%c0_30, %c0_31] : memref<64x128xf32, #tpu.memory_space<vmem>>, vector<64x128xf32>
    %c1_32 = arith.constant 1 : index
    %c0_33 = arith.constant 0 : index
    %c0_34 = arith.constant 0 : index
    %30 = vector.load %arg3[%c1_32, %c0_33, %c0_34] : memref<9x128x128xbf16, #tpu.memory_space<vmem>>, vector<1x128x128xbf16>
    %31 = vector.shape_cast %30 : vector<1x128x128xbf16> to vector<128x128xbf16>
    %cst_35 = arith.constant dense<0.000000e+00> : vector<64x128xf32>
    %32 = tpu.matmul %28, %31, %cst_35 {dimension_numbers = #tpu.dot_dimension_numbers<[1], [0], [0], [1], [0, 0, 1, 1], [], []>} : vector<64x128xbf16>, vector<128x128xbf16>, vector<64x128xf32> -> vector<64x128xf32>
    %33 = arith.addf %29, %32 : vector<64x128xf32>
    %c0_36 = arith.constant 0 : index
    %c0_37 = arith.constant 0 : index
    %34 = vector.load %arg12[%c0_36, %c0_37] : memref<64x128xf32, #tpu.memory_space<vmem>>, vector<64x128xf32>
    tpu.vector_store %arg12[%c0_36, %c0_37], %33 {strides = array<i32>} : memref<64x128xf32, #tpu.memory_space<vmem>>, vector<64x128xf32>,
    %c0_38 = arith.constant 0 : index
    %c2 = arith.constant 2 : index
    %c0_39 = arith.constant 0 : index
    %35 = vector.load %arg11[%c0_38, %c2, %c0_39] : memref<10x10x128xbf16, #tpu.memory_space<vmem>>, vector<8x8x128xbf16>
    %36 = vector.shape_cast %35 : vector<8x8x128xbf16> to vector<64x128xbf16>
    %c0_40 = arith.constant 0 : index
    %c0_41 = arith.constant 0 : index
    %37 = vector.load %arg12[%c0_40, %c0_41] : memref<64x128xf32, #tpu.memory_space<vmem>>, vector<64x128xf32>
    %c2_42 = arith.constant 2 : index
    %c0_43 = arith.constant 0 : index
    %c0_44 = arith.constant 0 : index
    %38 = vector.load %arg3[%c2_42, %c0_43, %c0_44] : memref<9x128x128xbf16, #tpu.memory_space<vmem>>, vector<1x128x128xbf16>
    %39 = vector.shape_cast %38 : vector<1x128x128xbf16> to vector<128x128xbf16>
    %cst_45 = arith.constant dense<0.000000e+00> : vector<64x128xf32>
    %40 = tpu.matmul %36, %39, %cst_45 {dimension_numbers = #tpu.dot_dimension_numbers<[1], [0], [0], [1], [0, 0, 1, 1], [], []>} : vector<64x128xbf16>, vector<128x128xbf16>, vector<64x128xf32> -> vector<64x128xf32>
    %41 = arith.addf %37, %40 : vector<64x128xf32>
    %c0_46 = arith.constant 0 : index
    %c0_47 = arith.constant 0 : index
    %42 = vector.load %arg12[%c0_46, %c0_47] : memref<64x128xf32, #tpu.memory_space<vmem>>, vector<64x128xf32>
    tpu.vector_store %arg12[%c0_46, %c0_47], %41 {strides = array<i32>} : memref<64x128xf32, #tpu.memory_space<vmem>>, vector<64x128xf32>,
    %c1_48 = arith.constant 1 : index
    %c0_49 = arith.constant 0 : index
    %c0_50 = arith.constant 0 : index
    %43 = vector.load %arg11[%c1_48, %c0_49, %c0_50] : memref<10x10x128xbf16, #tpu.memory_space<vmem>>, vector<8x8x128xbf16>
    %44 = vector.shape_cast %43 : vector<8x8x128xbf16> to vector<64x128xbf16>
    %c0_51 = arith.constant 0 : index
    %c0_52 = arith.constant 0 : index
    %45 = vector.load %arg12[%c0_51, %c0_52] : memref<64x128xf32, #tpu.memory_space<vmem>>, vector<64x128xf32>
    %c3 = arith.constant 3 : index
    %c0_53 = arith.constant 0 : index
    %c0_54 = arith.constant 0 : index
    %46 = vector.load %arg3[%c3, %c0_53, %c0_54] : memref<9x128x128xbf16, #tpu.memory_space<vmem>>, vector<1x128x128xbf16>
    %47 = vector.shape_cast %46 : vector<1x128x128xbf16> to vector<128x128xbf16>
    %cst_55 = arith.constant dense<0.000000e+00> : vector<64x128xf32>
    %48 = tpu.matmul %44, %47, %cst_55 {dimension_numbers = #tpu.dot_dimension_numbers<[1], [0], [0], [1], [0, 0, 1, 1], [], []>} : vector<64x128xbf16>, vector<128x128xbf16>, vector<64x128xf32> -> vector<64x128xf32>
    %49 = arith.addf %45, %48 : vector<64x128xf32>
    %c0_56 = arith.constant 0 : index
    %c0_57 = arith.constant 0 : index
    %50 = vector.load %arg12[%c0_56, %c0_57] : memref<64x128xf32, #tpu.memory_space<vmem>>, vector<64x128xf32>
    tpu.vector_store %arg12[%c0_56, %c0_57], %49 {strides = array<i32>} : memref<64x128xf32, #tpu.memory_space<vmem>>, vector<64x128xf32>,
    %c1_58 = arith.constant 1 : index
    %c1_59 = arith.constant 1 : index
    %c0_60 = arith.constant 0 : index
    %51 = vector.load %arg11[%c1_58, %c1_59, %c0_60] : memref<10x10x128xbf16, #tpu.memory_space<vmem>>, vector<8x8x128xbf16>
    %52 = vector.shape_cast %51 : vector<8x8x128xbf16> to vector<64x128xbf16>
    %c0_61 = arith.constant 0 : index
    %c0_62 = arith.constant 0 : index
    %53 = vector.load %arg12[%c0_61, %c0_62] : memref<64x128xf32, #tpu.memory_space<vmem>>, vector<64x128xf32>
    %c4 = arith.constant 4 : index
    %c0_63 = arith.constant 0 : index
    %c0_64 = arith.constant 0 : index
    %54 = vector.load %arg3[%c4, %c0_63, %c0_64] : memref<9x128x128xbf16, #tpu.memory_space<vmem>>, vector<1x128x128xbf16>
    %55 = vector.shape_cast %54 : vector<1x128x128xbf16> to vector<128x128xbf16>
    %cst_65 = arith.constant dense<0.000000e+00> : vector<64x128xf32>
    %56 = tpu.matmul %52, %55, %cst_65 {dimension_numbers = #tpu.dot_dimension_numbers<[1], [0], [0], [1], [0, 0, 1, 1], [], []>} : vector<64x128xbf16>, vector<128x128xbf16>, vector<64x128xf32> -> vector<64x128xf32>
    %57 = arith.addf %53, %56 : vector<64x128xf32>
    %c0_66 = arith.constant 0 : index
    %c0_67 = arith.constant 0 : index
    %58 = vector.load %arg12[%c0_66, %c0_67] : memref<64x128xf32, #tpu.memory_space<vmem>>, vector<64x128xf32>
    tpu.vector_store %arg12[%c0_66, %c0_67], %57 {strides = array<i32>} : memref<64x128xf32, #tpu.memory_space<vmem>>, vector<64x128xf32>,
    %c1_68 = arith.constant 1 : index
    %c2_69 = arith.constant 2 : index
    %c0_70 = arith.constant 0 : index
    %59 = vector.load %arg11[%c1_68, %c2_69, %c0_70] : memref<10x10x128xbf16, #tpu.memory_space<vmem>>, vector<8x8x128xbf16>
    %60 = vector.shape_cast %59 : vector<8x8x128xbf16> to vector<64x128xbf16>
    %c0_71 = arith.constant 0 : index
    %c0_72 = arith.constant 0 : index
    %61 = vector.load %arg12[%c0_71, %c0_72] : memref<64x128xf32, #tpu.memory_space<vmem>>, vector<64x128xf32>
    %c5 = arith.constant 5 : index
    %c0_73 = arith.constant 0 : index
    %c0_74 = arith.constant 0 : index
    %62 = vector.load %arg3[%c5, %c0_73, %c0_74] : memref<9x128x128xbf16, #tpu.memory_space<vmem>>, vector<1x128x128xbf16>
    %63 = vector.shape_cast %62 : vector<1x128x128xbf16> to vector<128x128xbf16>
    %cst_75 = arith.constant dense<0.000000e+00> : vector<64x128xf32>
    %64 = tpu.matmul %60, %63, %cst_75 {dimension_numbers = #tpu.dot_dimension_numbers<[1], [0], [0], [1], [0, 0, 1, 1], [], []>} : vector<64x128xbf16>, vector<128x128xbf16>, vector<64x128xf32> -> vector<64x128xf32>
    %65 = arith.addf %61, %64 : vector<64x128xf32>
    %c0_76 = arith.constant 0 : index
    %c0_77 = arith.constant 0 : index
    %66 = vector.load %arg12[%c0_76, %c0_77] : memref<64x128xf32, #tpu.memory_space<vmem>>, vector<64x128xf32>
    tpu.vector_store %arg12[%c0_76, %c0_77], %65 {strides = array<i32>} : memref<64x128xf32, #tpu.memory_space<vmem>>, vector<64x128xf32>,
    %c2_78 = arith.constant 2 : index
    %c0_79 = arith.constant 0 : index
    %c0_80 = arith.constant 0 : index
    %67 = vector.load %arg11[%c2_78, %c0_79, %c0_80] : memref<10x10x128xbf16, #tpu.memory_space<vmem>>, vector<8x8x128xbf16>
    %68 = vector.shape_cast %67 : vector<8x8x128xbf16> to vector<64x128xbf16>
    %c0_81 = arith.constant 0 : index
    %c0_82 = arith.constant 0 : index
    %69 = vector.load %arg12[%c0_81, %c0_82] : memref<64x128xf32, #tpu.memory_space<vmem>>, vector<64x128xf32>
    %c6 = arith.constant 6 : index
    %c0_83 = arith.constant 0 : index
    %c0_84 = arith.constant 0 : index
    %70 = vector.load %arg3[%c6, %c0_83, %c0_84] : memref<9x128x128xbf16, #tpu.memory_space<vmem>>, vector<1x128x128xbf16>
    %71 = vector.shape_cast %70 : vector<1x128x128xbf16> to vector<128x128xbf16>
    %cst_85 = arith.constant dense<0.000000e+00> : vector<64x128xf32>
    %72 = tpu.matmul %68, %71, %cst_85 {dimension_numbers = #tpu.dot_dimension_numbers<[1], [0], [0], [1], [0, 0, 1, 1], [], []>} : vector<64x128xbf16>, vector<128x128xbf16>, vector<64x128xf32> -> vector<64x128xf32>
    %73 = arith.addf %69, %72 : vector<64x128xf32>
    %c0_86 = arith.constant 0 : index
    %c0_87 = arith.constant 0 : index
    %74 = vector.load %arg12[%c0_86, %c0_87] : memref<64x128xf32, #tpu.memory_space<vmem>>, vector<64x128xf32>
    tpu.vector_store %arg12[%c0_86, %c0_87], %73 {strides = array<i32>} : memref<64x128xf32, #tpu.memory_space<vmem>>, vector<64x128xf32>,
    %c2_88 = arith.constant 2 : index
    %c1_89 = arith.constant 1 : index
    %c0_90 = arith.constant 0 : index
    %75 = vector.load %arg11[%c2_88, %c1_89, %c0_90] : memref<10x10x128xbf16, #tpu.memory_space<vmem>>, vector<8x8x128xbf16>
    %76 = vector.shape_cast %75 : vector<8x8x128xbf16> to vector<64x128xbf16>
    %c0_91 = arith.constant 0 : index
    %c0_92 = arith.constant 0 : index
    %77 = vector.load %arg12[%c0_91, %c0_92] : memref<64x128xf32, #tpu.memory_space<vmem>>, vector<64x128xf32>
    %c7 = arith.constant 7 : index
    %c0_93 = arith.constant 0 : index
    %c0_94 = arith.constant 0 : index
    %78 = vector.load %arg3[%c7, %c0_93, %c0_94] : memref<9x128x128xbf16, #tpu.memory_space<vmem>>, vector<1x128x128xbf16>
    %79 = vector.shape_cast %78 : vector<1x128x128xbf16> to vector<128x128xbf16>
    %cst_95 = arith.constant dense<0.000000e+00> : vector<64x128xf32>
    %80 = tpu.matmul %76, %79, %cst_95 {dimension_numbers = #tpu.dot_dimension_numbers<[1], [0], [0], [1], [0, 0, 1, 1], [], []>} : vector<64x128xbf16>, vector<128x128xbf16>, vector<64x128xf32> -> vector<64x128xf32>
    %81 = arith.addf %77, %80 : vector<64x128xf32>
    %c0_96 = arith.constant 0 : index
    %c0_97 = arith.constant 0 : index
    %82 = vector.load %arg12[%c0_96, %c0_97] : memref<64x128xf32, #tpu.memory_space<vmem>>, vector<64x128xf32>
    tpu.vector_store %arg12[%c0_96, %c0_97], %81 {strides = array<i32>} : memref<64x128xf32, #tpu.memory_space<vmem>>, vector<64x128xf32>,
    %c2_98 = arith.constant 2 : index
    %c2_99 = arith.constant 2 : index
    %c0_100 = arith.constant 0 : index
    %83 = vector.load %arg11[%c2_98, %c2_99, %c0_100] : memref<10x10x128xbf16, #tpu.memory_space<vmem>>, vector<8x8x128xbf16>
    %84 = vector.shape_cast %83 : vector<8x8x128xbf16> to vector<64x128xbf16>
    %c0_101 = arith.constant 0 : index
    %c0_102 = arith.constant 0 : index
    %85 = vector.load %arg12[%c0_101, %c0_102] : memref<64x128xf32, #tpu.memory_space<vmem>>, vector<64x128xf32>
    %c8 = arith.constant 8 : index
    %c0_103 = arith.constant 0 : index
    %c0_104 = arith.constant 0 : index
    %86 = vector.load %arg3[%c8, %c0_103, %c0_104] : memref<9x128x128xbf16, #tpu.memory_space<vmem>>, vector<1x128x128xbf16>
    %87 = vector.shape_cast %86 : vector<1x128x128xbf16> to vector<128x128xbf16>
    %cst_105 = arith.constant dense<0.000000e+00> : vector<64x128xf32>
    %88 = tpu.matmul %84, %87, %cst_105 {dimension_numbers = #tpu.dot_dimension_numbers<[1], [0], [0], [1], [0, 0, 1, 1], [], []>} : vector<64x128xbf16>, vector<128x128xbf16>, vector<64x128xf32> -> vector<64x128xf32>
    %89 = arith.addf %85, %88 : vector<64x128xf32>
    %c0_106 = arith.constant 0 : index
    %c0_107 = arith.constant 0 : index
    %90 = vector.load %arg12[%c0_106, %c0_107] : memref<64x128xf32, #tpu.memory_space<vmem>>, vector<64x128xf32>
    tpu.vector_store %arg12[%c0_106, %c0_107], %89 {strides = array<i32>} : memref<64x128xf32, #tpu.memory_space<vmem>>, vector<64x128xf32>,
    %c0_108 = arith.constant 0 : index
    %c0_109 = arith.constant 0 : index
    %91 = vector.load %arg12[%c0_108, %c0_109] : memref<64x128xf32, #tpu.memory_space<vmem>>, vector<64x128xf32>
    %c0_110 = arith.constant 0 : index
    %c0_111 = arith.constant 0 : index
    %c0_112 = arith.constant 0 : index
    %c0_113 = arith.constant 0 : index
    %92 = vector.load %arg6[%c0_110, %c0_111, %c0_112, %c0_113] : memref<1x8x8x128xbf16, #tpu.memory_space<vmem>>, vector<1x8x8x128xbf16>
    %93 = vector.shape_cast %92 : vector<1x8x8x128xbf16> to vector<64x128xbf16>
    %94 = arith.extf %93 : vector<64x128xbf16> to vector<64x128xf32>
    %c0_114 = arith.constant 0 : index
    %c0_115 = arith.constant 0 : index
    %95 = vector.load %arg7[%c0_114, %c0_115] : memref<1x128xf32, #tpu.memory_space<vmem>>, vector<1x128xf32>
    %96 = vector.broadcast %95 : vector<1x128xf32> to vector<64x128xf32>
    %97 = arith.mulf %94, %96 : vector<64x128xf32>
    %c0_116 = arith.constant 0 : index
    %c0_117 = arith.constant 0 : index
    %98 = vector.load %arg8[%c0_116, %c0_117] : memref<1x128xf32, #tpu.memory_space<vmem>>, vector<1x128xf32>
    %99 = vector.broadcast %98 : vector<1x128xf32> to vector<64x128xf32>
    %100 = arith.addf %97, %99 : vector<64x128xf32>
    %cst_118 = arith.constant 0.000000e+00 : f32
    %101 = vector.broadcast %cst_118 : f32 to vector<64x128xf32>
    %102 = arith.maximumf %100, %101 : vector<64x128xf32>
    %103 = arith.truncf %102 : vector<64x128xf32> to vector<64x128xbf16>
    %c0_119 = arith.constant 0 : index
    %c0_120 = arith.constant 0 : index
    %104 = vector.load %arg9[%c0_119, %c0_120] : memref<128x128xbf16, #tpu.memory_space<vmem>>, vector<128x128xbf16>
    %cst_121 = arith.constant dense<0.000000e+00> : vector<64x128xf32>
    %105 = tpu.matmul %103, %104, %cst_121 {dimension_numbers = #tpu.dot_dimension_numbers<[1], [0], [0], [1], [0, 0, 1, 1], [], []>} : vector<64x128xbf16>, vector<128x128xbf16>, vector<64x128xf32> -> vector<64x128xf32>
    %106 = arith.addf %91, %105 : vector<64x128xf32>
    %107 = vector.shape_cast %106 : vector<64x128xf32> to vector<1x8x8x128xf32>
    %c0_122 = arith.constant 0 : index
    %c0_123 = arith.constant 0 : index
    %c0_124 = arith.constant 0 : index
    %c0_125 = arith.constant 0 : index
    %108 = vector.load %arg10[%c0_122, %c0_123, %c0_124, %c0_125] : memref<1x8x8x128xf32, #tpu.memory_space<vmem>>, vector<1x8x8x128xf32>
    tpu.vector_store %arg10[%c0_122, %c0_123, %c0_124, %c0_125], %107 {strides = array<i32>} : memref<1x8x8x128xf32, #tpu.memory_space<vmem>>, vector<1x8x8x128xf32>,
    return
  }
  func.func @transform_0(%arg0: i32, %arg1: i32) -> (i32, i32, i32, i32) {
    %c0_i32 = arith.constant 0 : i32
    %c0_i32_0 = arith.constant 0 : i32
    %c0_i32_1 = arith.constant 0 : i32
    %c0_i32_2 = arith.constant 0 : i32
    return %arg1, %c0_i32, %c0_i32_0, %c0_i32_1 : i32, i32, i32, i32
  }
  func.func @transform_1(%arg0: i32, %arg1: i32) -> (i32, i32, i32) {
    %c0_i32 = arith.constant 0 : i32
    %c0_i32_0 = arith.constant 0 : i32
    %c0_i32_1 = arith.constant 0 : i32
    return %c0_i32, %c0_i32_0, %arg0 : i32, i32, i32
  }
  func.func @transform_2(%arg0: i32, %arg1: i32) -> (i32, i32) {
    %c0_i32 = arith.constant 0 : i32
    %c0_i32_0 = arith.constant 0 : i32
    %c0_i32_1 = arith.constant 0 : i32
    return %c0_i32, %c0_i32_0 : i32, i32
  }
  func.func @transform_3(%arg0: i32, %arg1: i32) -> (i32, i32) {
    %c0_i32 = arith.constant 0 : i32
    %c0_i32_0 = arith.constant 0 : i32
    %c0_i32_1 = arith.constant 0 : i32
    return %c0_i32, %c0_i32_0 : i32, i32
  }
  func.func @transform_4(%arg0: i32, %arg1: i32) -> (i32, i32, i32, i32) {
    %c0_i32 = arith.constant 0 : i32
    %c0_i32_0 = arith.constant 0 : i32
    %c0_i32_1 = arith.constant 0 : i32
    %c0_i32_2 = arith.constant 0 : i32
    return %arg1, %c0_i32, %c0_i32_0, %c0_i32_1 : i32, i32, i32, i32
  }
  func.func @transform_5(%arg0: i32, %arg1: i32) -> (i32, i32) {
    %c0_i32 = arith.constant 0 : i32
    %c0_i32_0 = arith.constant 0 : i32
    %c0_i32_1 = arith.constant 0 : i32
    return %c0_i32, %c0_i32_0 : i32, i32
  }
  func.func @transform_6(%arg0: i32, %arg1: i32) -> (i32, i32) {
    %c0_i32 = arith.constant 0 : i32
    %c0_i32_0 = arith.constant 0 : i32
    %c0_i32_1 = arith.constant 0 : i32
    return %c0_i32, %c0_i32_0 : i32, i32
  }
  func.func @transform_7(%arg0: i32, %arg1: i32) -> (i32, i32) {
    %c0_i32 = arith.constant 0 : i32
    %c0_i32_0 = arith.constant 0 : i32
    return %c0_i32, %arg0 : i32, i32
  }
  func.func @transform_8(%arg0: i32, %arg1: i32) -> (i32, i32, i32, i32) {
    %c0_i32 = arith.constant 0 : i32
    %c0_i32_0 = arith.constant 0 : i32
    %c0_i32_1 = arith.constant 0 : i32
    return %arg1, %c0_i32, %c0_i32_0, %arg0 : i32, i32, i32, i32
  }
}

</mosaic_0001>

<llo_original>
// kernel: basic_block_forward.3
$region0: #{basic_block_forward.3}
  #allocation0 [shape = 'u32[]', space=smem, size = 0x4, offset = 0x4, fixed_abs, tag = 'smem constant byte address 0x4 - core index']
  #allocation1 [shape = 'u32[72,128]{1,0:T(1,128)}', space=vmem, size = 0x9000, scoped, tag = 'internal scratch']
  %s0 = inlined_call_operand.vmem [shape: bf16[648,128], index: 0, kind: input, shape index: {}]
  %s1 = inlined_call_operand.vmem [shape: f32[1,128], index: 1, kind: output, shape index: {0}]
  %s2 = inlined_call_operand.vmem [shape: f32[1,128], index: 2, kind: output, shape index: {1}]
  %3 = xla_tuple %s1, %s2
  %s4 = sld [smem:[#allocation0]]
  $region26: #{basic_block_forward.3} parent=0
    _
  %s6 = ssub.s32 1, %s4
  %s7 = scalar_select 0, %s6, %s4
  // Predicated region
  $region2: #{basic_block_forward.3} parent=0 // pred_check
    _
  $region3: #{basic_block_forward.3} parent=0 // pred_check_branch
    %9 = sbr.rel (0) target = $region5
  $region4: #{basic_block_forward.3} parent=0 // pred_region
    _
  $region5: #{basic_block_forward.3} parent=0 // pred_fallthru
    _
  %p10 = scmp.eq.s32.totalorder 0, 0
  // Predicated region
  $region6: #{basic_block_forward.3} parent=0 // pred_check
    %p11 = pneg %p10
  $region7: #{basic_block_forward.3} parent=0 // pred_check_branch
    %13 = sbr.rel (%p11) target = $region9
  $region8: #{basic_block_forward.3} parent=0 // pred_region
    %14 = vst [vmem:[%s1] sm:$0x1] 0.0
    %15 = vst [vmem:[%s2] sm:$0x1] 0.0
  $region9: #{basic_block_forward.3} parent=0 // pred_fallthru
    _
  %v16 = vld [vmem:[%s0] sm:$0xf]
  %v17 = vld [vmem:[%s0 + $0x4] sm:$0xf]
  %v18 = vld [vmem:[%s0 + $0x8] sm:$0xf]
  %v19 = vld [vmem:[%s0 + $0xc] sm:$0xf]
  %v20 = vld [vmem:[%s0 + $0x10] sm:$0xf]
  %v21 = vld [vmem:[%s0 + $0x14] sm:$0xf]
  %v22 = vld [vmem:[%s0 + $0x18] sm:$0xf]
  %v23 = vld [vmem:[%s0 + $0x1c] sm:$0xf]
  %v24 = vld [vmem:[%s0 + $0x20] sm:$0xf]
  %v25 = vld [vmem:[%s0 + $0x24] sm:$0xf]
  %v26 = vld [vmem:[%s0 + $0x28] sm:$0xf]
  %v27 = vld [vmem:[%s0 + $0x2c] sm:$0xf]
  %v28 = vld [vmem:[%s0 + $0x30] sm:$0xf]
  %v29 = vld [vmem:[%s0 + $0x34] sm:$0xf]
  %v30 = vld [vmem:[%s0 + $0x38] sm:$0xf]
  %v31 = vld [vmem:[%s0 + $0x3c] sm:$0xf]
  %v32 = vld [vmem:[%s0 + $0x40] sm:$0xf]
  %v33 = vld [vmem:[%s0 + $0x44] sm:$0xf]
  %v34 = vld [vmem:[%s0 + $0x48] sm:$0xf]
  %v35 = vld [vmem:[%s0 + $0x4c] sm:$0xf]
  %v36 = vld [vmem:[%s0 + $0x50] sm:$0xf]
  %v37 = vld [vmem:[%s0 + $0x54] sm:$0xf]
  %v38 = vld [vmem:[%s0 + $0x58] sm:$0xf]
  %v39 = vld [vmem:[%s0 + $0x5c] sm:$0xf]
  %v40 = vld [vmem:[%s0 + $0x60] sm:$0xf]
  %v41 = vld [vmem:[%s0 + $0x64] sm:$0xf]
  %v42 = vld [vmem:[%s0 + $0x68] sm:$0xf]
  %v43 = vld [vmem:[%s0 + $0x6c] sm:$0xf]
  %v44 = vld [vmem:[%s0 + $0x70] sm:$0xf]
  %v45 = vld [vmem:[%s0 + $0x74] sm:$0xf]
  %v46 = vld [vmem:[%s0 + $0x78] sm:$0xf]
  %v47 = vld [vmem:[%s0 + $0x7c] sm:$0xf]
  %v48 = vld [vmem:[%s0 + $0x80] sm:$0xf]
  %v49 = vld [vmem:[%s0 + $0x84] sm:$0xf]
  %v50 = vld [vmem:[%s0 + $0x88] sm:$0xf]
  %v51 = vld [vmem:[%s0 + $0x8c] sm:$0xf]
  %v52 = vld [vmem:[%s0 + $0x90] sm:$0xf]
  %v53 = vld [vmem:[%s0 + $0x94] sm:$0xf]
  %v54 = vld [vmem:[%s0 + $0x98] sm:$0xf]
  %v55 = vld [vmem:[%s0 + $0x9c] sm:$0xf]
  %v56 = vld [vmem:[%s0 + $0xa0] sm:$0xf]
  %v57 = vld [vmem:[%s0 + $0xa4] sm:$0xf]
  %v58 = vld [vmem:[%s0 + $0xa8] sm:$0xf]
  %v59 = vld [vmem:[%s0 + $0xac] sm:$0xf]
  %v60 = vld [vmem:[%s0 + $0xb0] sm:$0xf]
  %v61 = vld [vmem:[%s0 + $0xb4] sm:$0xf]
  %v62 = vld [vmem:[%s0 + $0xb8] sm:$0xf]
  %v63 = vld [vmem:[%s0 + $0xbc] sm:$0xf]
  %v64 = vld [vmem:[%s0 + $0xc0] sm:$0xf]
  %v65 = vld [vmem:[%s0 + $0xc4] sm:$0xf]
  %v66 = vld [vmem:[%s0 + $0xc8] sm:$0xf]
  %v67 = vld [vmem:[%s0 + $0xcc] sm:$0xf]
  %v68 = vld [vmem:[%s0 + $0xd0] sm:$0xf]
  %v69 = vld [vmem:[%s0 + $0xd4] sm:$0xf]
  %v70 = vld [vmem:[%s0 + $0xd8] sm:$0xf]
  %v71 = vld [vmem:[%s0 + $0xdc] sm:$0xf]
  %v72 = vld [vmem:[%s0 + $0xe0] sm:$0xf]
  %v73 = vld [vmem:[%s0 + $0xe4] sm:$0xf]
  %v74 = vld [vmem:[%s0 + $0xe8] sm:$0xf]
  %v75 = vld [vmem:[%s0 + $0xec] sm:$0xf]
  %v76 = vld [vmem:[%s0 + $0xf0] sm:$0xf]
  %v77 = vld [vmem:[%s0 + $0xf4] sm:$0xf]
  %v78 = vld [vmem:[%s0 + $0xf8] sm:$0xf]
  %v79 = vld [vmem:[%s0 + $0xfc] sm:$0xf]
  %v80 = vld [vmem:[%s0 + $0x100] sm:$0xf]
  %v81 = vld [vmem:[%s0 + $0x104] sm:$0xf]
  %v82 = vld [vmem:[%s0 + $0x108] sm:$0xf]
  %v83 = vld [vmem:[%s0 + $0x10c] sm:$0xf]
  %v84 = vld [vmem:[%s0 + $0x110] sm:$0xf]
  %v85 = vld [vmem:[%s0 + $0x114] sm:$0xf]
  %v86 = vld [vmem:[%s0 + $0x118] sm:$0xf]
  %v87 = vld [vmem:[%s0 + $0x11c] sm:$0xf]
  %v88 = vld [vmem:[%s0 + $0x120] sm:$0xf]
  %v89 = vld [vmem:[%s0 + $0x124] sm:$0xf]
  %v90 = vld [vmem:[%s0 + $0x128] sm:$0xf]
  %v91 = vld [vmem:[%s0 + $0x12c] sm:$0xf]
  %v92 = vld [vmem:[%s0 + $0x130] sm:$0xf]
  %v93 = vld [vmem:[%s0 + $0x134] sm:$0xf]
  %v94 = vld [vmem:[%s0 + $0x138] sm:$0xf]
  %v95 = vld [vmem:[%s0 + $0x13c] sm:$0xf]
  %v96 = vld [vmem:[%s0 + $0x140] sm:$0xf]
  %v97 = vunpack.c.l.bf16 %v16
  %v98 = vunpack.c.l.bf16 %v17
  %v99 = vunpack.c.l.bf16 %v18
  %v100 = vunpack.c.l.bf16 %v19
  %v101 = vunpack.c.l.bf16 %v20
  %v102 = vunpack.c.l.bf16 %v21
  %v103 = vunpack.c.l.bf16 %v22
  %v104 = vunpack.c.l.bf16 %v23
  %v105 = vunpack.c.l.bf16 %v24
  %v106 = vunpack.c.l.bf16 %v25
  %v107 = vunpack.c.l.bf16 %v26
  %v108 = vunpack.c.l.bf16 %v27
  %v109 = vunpack.c.l.bf16 %v28
  %v110 = vunpack.c.l.bf16 %v29
  %v111 = vunpack.c.l.bf16 %v30
  %v112 = vunpack.c.l.bf16 %v31
  %v113 = vunpack.c.l.bf16 %v32
  %v114 = vunpack.c.l.bf16 %v33
  %v115 = vunpack.c.l.bf16 %v34
  %v116 = vunpack.c.l.bf16 %v35
  %v117 = vunpack.c.l.bf16 %v36
  %v118 = vunpack.c.l.bf16 %v37
  %v119 = vunpack.c.l.bf16 %v38
  %v120 = vunpack.c.l.bf16 %v39
  %v121 = vunpack.c.l.bf16 %v40
  %v122 = vunpack.c.l.bf16 %v41
  %v123 = vunpack.c.l.bf16 %v42
  %v124 = vunpack.c.l.bf16 %v43
  %v125 = vunpack.c.l.bf16 %v44
  %v126 = vunpack.c.l.bf16 %v45
  %v127 = vunpack.c.l.bf16 %v46
  %v128 = vunpack.c.l.bf16 %v47
  %v129 = vunpack.c.l.bf16 %v48
  %v130 = vunpack.c.l.bf16 %v49
  %v131 = vunpack.c.l.bf16 %v50
  %v132 = vunpack.c.l.bf16 %v51
  %v133 = vunpack.c.l.bf16 %v52
  %v134 = vunpack.c.l.bf16 %v53
  %v135 = vunpack.c.l.bf16 %v54
  %v136 = vunpack.c.l.bf16 %v55
  %v137 = vunpack.c.l.bf16 %v56
  %v138 = vunpack.c.l.bf16 %v57
  %v139 = vunpack.c.l.bf16 %v58
  %v140 = vunpack.c.l.bf16 %v59
  %v141 = vunpack.c.l.bf16 %v60
  %v142 = vunpack.c.l.bf16 %v61
  %v143 = vunpack.c.l.bf16 %v62
  %v144 = vunpack.c.l.bf16 %v63
  %v145 = vunpack.c.l.bf16 %v64
  %v146 = vunpack.c.l.bf16 %v65
  %v147 = vunpack.c.l.bf16 %v66
  %v148 = vunpack.c.l.bf16 %v67
  %v149 = vunpack.c.l.bf16 %v68
  %v150 = vunpack.c.l.bf16 %v69
  %v151 = vunpack.c.l.bf16 %v70
  %v152 = vunpack.c.l.bf16 %v71
  %v153 = vunpack.c.l.bf16 %v72
  %v154 = vunpack.c.l.bf16 %v73
  %v155 = vunpack.c.l.bf16 %v74
  %v156 = vunpack.c.l.bf16 %v75
  %v157 = vunpack.c.l.bf16 %v76
  %v158 = vunpack.c.l.bf16 %v77
  %v159 = vunpack.c.l.bf16 %v78
  %v160 = vunpack.c.l.bf16 %v79
  %v161 = vunpack.c.l.bf16 %v80
  %v162 = vunpack.c.l.bf16 %v81
  %v163 = vunpack.c.l.bf16 %v82
  %v164 = vunpack.c.l.bf16 %v83
  %v165 = vunpack.c.l.bf16 %v84
  %v166 = vunpack.c.l.bf16 %v85
  %v167 = vunpack.c.l.bf16 %v86
  %v168 = vunpack.c.l.bf16 %v87
  %v169 = vunpack.c.l.bf16 %v88
  %v170 = vunpack.c.l.bf16 %v89
  %v171 = vunpack.c.l.bf16 %v90
  %v172 = vunpack.c.l.bf16 %v91
  %v173 = vunpack.c.l.bf16 %v92
  %v174 = vunpack.c.l.bf16 %v93
  %v175 = vunpack.c.l.bf16 %v94
  %v176 = vunpack.c.l.bf16 %v95
  %v177 = vunpack.c.l.bf16 %v96
  %v178 = vld [vmem:[%s1] sm:$0x1]
  %v179 = vadd.f32 %v97, %v98
  %v180 = vadd.f32 %v179, %v99
  %v181 = vadd.f32 %v180, %v100
  %v182 = vadd.f32 %v181, %v101
  %v183 = vadd.f32 %v182, %v102
  %v184 = vadd.f32 %v183, %v103
  %v185 = vadd.f32 %v184, %v104
  %v186 = vadd.f32 %v185, %v105
  %v187 = vadd.f32 %v186, %v106
  %v188 = vadd.f32 %v187, %v107
  %v189 = vadd.f32 %v188, %v108
  %v190 = vadd.f32 %v189, %v109
  %v191 = vadd.f32 %v190, %v110
  %v192 = vadd.f32 %v191, %v111
  %v193 = vadd.f32 %v192, %v112
  %v194 = vadd.f32 %v193, %v113
  %v195 = vadd.f32 %v194, %v114
  %v196 = vadd.f32 %v195, %v115
  %v197 = vadd.f32 %v196, %v116
  %v198 = vadd.f32 %v197, %v117
  %v199 = vadd.f32 %v198, %v118
  %v200 = vadd.f32 %v199, %v119
  %v201 = vadd.f32 %v200, %v120
  %v202 = vadd.f32 %v201, %v121
  %v203 = vadd.f32 %v202, %v122
  %v204 = vadd.f32 %v203, %v123
  %v205 = vadd.f32 %v204, %v124
  %v206 = vadd.f32 %v205, %v125
  %v207 = vadd.f32 %v206, %v126
  %v208 = vadd.f32 %v207, %v127
  %v209 = vadd.f32 %v208, %v128
  %v210 = vadd.f32 %v209, %v129
  %v211 = vadd.f32 %v210, %v130
  %v212 = vadd.f32 %v211, %v131
  %v213 = vadd.f32 %v212, %v132
  %v214 = vadd.f32 %v213, %v133
  %v215 = vadd.f32 %v214, %v134
  %v216 = vadd.f32 %v215, %v135
  %v217 = vadd.f32 %v216, %v136
  %v218 = vadd.f32 %v217, %v137
  %v219 = vadd.f32 %v218, %v138
  %v220 = vadd.f32 %v219, %v139
  %v221 = vadd.f32 %v220, %v140
  %v222 = vadd.f32 %v221, %v141
  %v223 = vadd.f32 %v222, %v142
  %v224 = vadd.f32 %v223, %v143
  %v225 = vadd.f32 %v224, %v144
  %v226 = vadd.f32 %v225, %v145
  %v227 = vadd.f32 %v226, %v146
  %v228 = vadd.f32 %v227, %v147
  %v229 = vadd.f32 %v228, %v148
  %v230 = vadd.f32 %v229, %v149
  %v231 = vadd.f32 %v230, %v150
  %v232 = vadd.f32 %v231, %v151
  %v233 = vadd.f32 %v232, %v152
  %v234 = vadd.f32 %v233, %v153
  %v235 = vadd.f32 %v234, %v154
  %v236 = vadd.f32 %v235, %v155
  %v237 = vadd.f32 %v236, %v156
  %v238 = vadd.f32 %v237, %v157
  %v239 = vadd.f32 %v238, %v158
  %v240 = vadd.f32 %v239, %v159
  %v241 = vadd.f32 %v240, %v160
  %v242 = vadd.f32 %v241, %v161
  %v243 = vadd.f32 %v242, %v162
  %v244 = vadd.f32 %v243, %v163
  %v245 = vadd.f32 %v244, %v164
  %v246 = vadd.f32 %v245, %v165
  %v247 = vadd.f32 %v246, %v166
  %v248 = vadd.f32 %v247, %v167
  %v249 = vadd.f32 %v248, %v168
  %v250 = vadd.f32 %v249, %v169
  %v251 = vadd.f32 %v250, %v170
  %v252 = vadd.f32 %v251, %v171
  %v253 = vadd.f32 %v252, %v172
  %v254 = vadd.f32 %v253, %v173
  %v255 = vadd.f32 %v254, %v174
  %v256 = vadd.f32 %v255, %v175
  %v257 = vadd.f32 %v256, %v176
  %v258 = vadd.f32 %v257, %v177
  %v259 = vrot.slane %v258, 4
  %v260 = vadd.f32 %v258, %v259
  %v261 = vrot.slane %v260, 2
  %v262 = vadd.f32 %v260, %v261
  %v263 = vrot.slane %v262, 1
  %v264 = vadd.f32 %v262, %v263
  %v265 = vadd.f32 %v178, %v264
  %266 = vst [vmem:[%s1] sm:$0x1] %v265
  %v267 = vld [vmem:[%s2] sm:$0x1]
  %v268 = vmul.f32 %v97, %v97
  %v269 = vmul.f32 %v98, %v98
  %v270 = vmul.f32 %v99, %v99
  %v271 = vmul.f32 %v100, %v100
  %v272 = vmul.f32 %v101, %v101
  %v273 = vmul.f32 %v102, %v102
  %v274 = vmul.f32 %v103, %v103
  %v275 = vmul.f32 %v104, %v104
  %v276 = vmul.f32 %v105, %v105
  %v277 = vmul.f32 %v106, %v106
  %v278 = vmul.f32 %v107, %v107
  %v279 = vmul.f32 %v108, %v108
  %v280 = vmul.f32 %v109, %v109
  %v281 = vmul.f32 %v110, %v110
  %v282 = vmul.f32 %v111, %v111
  %v283 = vmul.f32 %v112, %v112
  %v284 = vmul.f32 %v113, %v113
  %v285 = vmul.f32 %v114, %v114
  %v286 = vmul.f32 %v115, %v115
  %v287 = vmul.f32 %v116, %v116
  %v288 = vmul.f32 %v117, %v117
  %v289 = vmul.f32 %v118, %v118
  %v290 = vmul.f32 %v119, %v119
  %v291 = vmul.f32 %v120, %v120
  %v292 = vmul.f32 %v121, %v121
  %v293 = vmul.f32 %v122, %v122
  %v294 = vmul.f32 %v123, %v123
  %v295 = vmul.f32 %v124, %v124
  %v296 = vmul.f32 %v125, %v125
  %v297 = vmul.f32 %v126, %v126
  %v298 = vmul.f32 %v127, %v127
  %v299 = vmul.f32 %v128, %v128
  %v300 = vmul.f32 %v129, %v129
  %v301 = vmul.f32 %v130, %v130
  %v302 = vmul.f32 %v131, %v131
  %v303 = vmul.f32 %v132, %v132
  %v304 = vmul.f32 %v133, %v133
  %v305 = vmul.f32 %v134, %v134
  %v306 = vmul.f32 %v135, %v135
  %v307 = vmul.f32 %v136, %v136
  %v308 = vmul.f32 %v137, %v137
  %v309 = vmul.f32 %v138, %v138
  %v310 = vmul.f32 %v139, %v139
  %v311 = vmul.f32 %v140, %v140
  %v312 = vmul.f32 %v141, %v141
  %v313 = vmul.f32 %v142, %v142
  %v314 = vmul.f32 %v143, %v143
  %v315 = vmul.f32 %v144, %v144
  %v316 = vmul.f32 %v145, %v145
  %v317 = vmul.f32 %v146, %v146
  %v318 = vmul.f32 %v147, %v147
  %v319 = vmul.f32 %v148, %v148
  %v320 = vmul.f32 %v149, %v149
  %v321 = vmul.f32 %v150, %v150
  %v322 = vmul.f32 %v151, %v151
  %v323 = vmul.f32 %v152, %v152
  %v324 = vmul.f32 %v153, %v153
  %v325 = vmul.f32 %v154, %v154
  %v326 = vmul.f32 %v155, %v155
  %v327 = vmul.f32 %v156, %v156
  %v328 = vmul.f32 %v157, %v157
  %v329 = vmul.f32 %v158, %v158
  %v330 = vmul.f32 %v159, %v159
  %v331 = vmul.f32 %v160, %v160
  %v332 = vmul.f32 %v161, %v161
  %v333 = vmul.f32 %v162, %v162
  %v334 = vmul.f32 %v163, %v163
  %v335 = vmul.f32 %v164, %v164
  %v336 = vmul.f32 %v165, %v165
  %v337 = vmul.f32 %v166, %v166
  %v338 = vmul.f32 %v167, %v167
  %v339 = vmul.f32 %v168, %v168
  %v340 = vmul.f32 %v169, %v169
  %v341 = vmul.f32 %v170, %v170
  %v342 = vmul.f32 %v171, %v171
  %v343 = vmul.f32 %v172, %v172
  %v344 = vmul.f32 %v173, %v173
  %v345 = vmul.f32 %v174, %v174
  %v346 = vmul.f32 %v175, %v175
  %v347 = vmul.f32 %v176, %v176
  %v348 = vmul.f32 %v177, %v177
  %v349 = vadd.f32 %v268, %v269
  %v350 = vadd.f32 %v349, %v270
  %v351 = vadd.f32 %v350, %v271
  %v352 = vadd.f32 %v351, %v272
  %v353 = vadd.f32 %v352, %v273
  %v354 = vadd.f32 %v353, %v274
  %v355 = vadd.f32 %v354, %v275
  %v356 = vadd.f32 %v355, %v276
  %v357 = vadd.f32 %v356, %v277
  %v358 = vadd.f32 %v357, %v278
  %v359 = vadd.f32 %v358, %v279
  %v360 = vadd.f32 %v359, %v280
  %v361 = vadd.f32 %v360, %v281
  %v362 = vadd.f32 %v361, %v282
  %v363 = vadd.f32 %v362, %v283
  %v364 = vadd.f32 %v363, %v284
  %v365 = vadd.f32 %v364, %v285
  %v366 = vadd.f32 %v365, %v286
  %v367 = vadd.f32 %v366, %v287
  %v368 = vadd.f32 %v367, %v288
  %v369 = vadd.f32 %v368, %v289
  %v370 = vadd.f32 %v369, %v290
  %v371 = vadd.f32 %v370, %v291
  %v372 = vadd.f32 %v371, %v292
  %v373 = vadd.f32 %v372, %v293
  %v374 = vadd.f32 %v373, %v294
  %v375 = vadd.f32 %v374, %v295
  %v376 = vadd.f32 %v375, %v296
  %v377 = vadd.f32 %v376, %v297
  %v378 = vadd.f32 %v377, %v298
  %v379 = vadd.f32 %v378, %v299
  %v380 = vadd.f32 %v379, %v300
  %v381 = vadd.f32 %v380, %v301
  %v382 = vadd.f32 %v381, %v302
  %v383 = vadd.f32 %v382, %v303
  %v384 = vadd.f32 %v383, %v304
  %v385 = vadd.f32 %v384, %v305
  %v386 = vadd.f32 %v385, %v306
  %v387 = vadd.f32 %v386, %v307
  %v388 = vadd.f32 %v387, %v308
  %v389 = vadd.f32 %v388, %v309
  %v390 = vadd.f32 %v389, %v310
  %v391 = vadd.f32 %v390, %v311
  %v392 = vadd.f32 %v391, %v312
  %v393 = vadd.f32 %v392, %v313
  %v394 = vadd.f32 %v393, %v314
  %v395 = vadd.f32 %v394, %v315
  %v396 = vadd.f32 %v395, %v316
  %v397 = vadd.f32 %v396, %v317
  %v398 = vadd.f32 %v397, %v318
  %v399 = vadd.f32 %v398, %v319
  %v400 = vadd.f32 %v399, %v320
  %v401 = vadd.f32 %v400, %v321
  %v402 = vadd.f32 %v401, %v322
  %v403 = vadd.f32 %v402, %v323
  %v404 = vadd.f32 %v403, %v324
  %v405 = vadd.f32 %v404, %v325
  %v406 = vadd.f32 %v405, %v326
  %v407 = vadd.f32 %v406, %v327
  %v408 = vadd.f32 %v407, %v328
  %v409 = vadd.f32 %v408, %v329
  %v410 = vadd.f32 %v409, %v330
  %v411 = vadd.f32 %v410, %v331
  %v412 = vadd.f32 %v411, %v332
  %v413 = vadd.f32 %v412, %v333
  %v414 = vadd.f32 %v413, %v334
  %v415 = vadd.f32 %v414, %v335
  %v416 = vadd.f32 %v415, %v336
  %v417 = vadd.f32 %v416, %v337
  %v418 = vadd.f32 %v417, %v338
  %v419 = vadd.f32 %v418, %v339
  %v420 = vadd.f32 %v419, %v340
  %v421 = vadd.f32 %v420, %v341
  %v422 = vadd.f32 %v421, %v342
  %v423 = vadd.f32 %v422, %v343
  %v424 = vadd.f32 %v423, %v344
  %v425 = vadd.f32 %v424, %v345
  %v426 = vadd.f32 %v425, %v346
  %v427 = vadd.f32 %v426, %v347
  %v428 = vadd.f32 %v427, %v348
  %v429 = vrot.slane %v428, 4
  %v430 = vadd.f32 %v428, %v429
  %v431 = vrot.slane %v430, 2
  %v432 = vadd.f32 %v430, %v431
  %v433 = vrot.slane %v432, 1
  %v434 = vadd.f32 %v432, %v433
  %v435 = vadd.f32 %v267, %v434
  %436 = vst [vmem:[%s2] sm:$0x1] %v435
  // Predicated region
  $region10: #{basic_block_forward.3} parent=0 // pred_check
    _
  $region11: #{basic_block_forward.3} parent=0 // pred_check_branch
    %438 = sbr.rel (0) target = $region13
  $region12: #{basic_block_forward.3} parent=0 // pred_region
    _
  $region13: #{basic_block_forward.3} parent=0 // pred_fallthru
    _
  // Predicated region
  $region14: #{basic_block_forward.3} parent=0 // pred_check
    _
  $region15: #{basic_block_forward.3} parent=0 // pred_check_branch
    %440 = sbr.rel (0) target = $region17
  $region16: #{basic_block_forward.3} parent=0 // pred_region
    _
  $region17: #{basic_block_forward.3} parent=0 // pred_fallthru
    _
  // Predicated region
  $region18: #{basic_block_forward.3} parent=0 // pred_check
    _
  $region19: #{basic_block_forward.3} parent=0 // pred_check_branch
    %442 = sbr.rel (0) target = $region21
  $region20: #{basic_block_forward.3} parent=0 // pred_region
    _
  $region21: #{basic_block_forward.3} parent=0 // pred_fallthru
    _
  // Predicated region
  $region22: #{basic_block_forward.3} parent=0 // pred_check
    _
  $region23: #{basic_block_forward.3} parent=0 // pred_check_branch
    %444 = sbr.rel (0) target = $region25
  $region24: #{basic_block_forward.3} parent=0 // pred_region
    _
  $region25: #{basic_block_forward.3} parent=0 // pred_fallthru
    _

// kernel: basic_block_forward.4
$region0: #{basic_block_forward.4}
  #allocation0 [shape = 'u32[]', space=smem, size = 0x4, offset = 0x4, fixed_abs, tag = 'smem constant byte address 0x4 - core index']
  #allocation1 [shape = 'u32[72,128]{1,0:T(1,128)}', space=vmem, size = 0x9000, scoped, tag = 'internal scratch']
  #allocation2 [shape = 'bf16[4,9,9,128]{3,2,1,0:T(8,128)(2,1)}', space=vmem, size = 0x24000, scoped, tag = 'scratch operand']
  #allocation3 [shape = 'f32[64,128]{1,0:T(8,128)}', space=vmem, size = 0x8000, scoped, tag = 'scratch operand']
  %s0 = inlined_call_operand.vmem [shape: bf16[8,9,9,128], index: 0, kind: input, shape index: {}]
  %s1 = inlined_call_operand.vmem [shape: bf16[9,128,128], index: 1, kind: input, shape index: {}]
  %s2 = inlined_call_operand.vmem [shape: f32[1,128], index: 2, kind: input, shape index: {}]
  %s3 = inlined_call_operand.vmem [shape: f32[1,128], index: 3, kind: input, shape index: {}]
  %s4 = inlined_call_operand.vmem [shape: bf16[2,8,8,128], index: 4, kind: output, shape index: {0}]
  %s5 = inlined_call_operand.vmem [shape: f32[1,128], index: 5, kind: output, shape index: {1}]
  %s6 = inlined_call_operand.vmem [shape: f32[1,128], index: 6, kind: output, shape index: {2}]
  %7 = xla_tuple %s4, %s5, %s6
  %s8 = sld [smem:[#allocation0]]
  $region69: #{basic_block_forward.4} parent=0
    _
  %s10 = ssub.s32 1, %s8
  %s11 = scalar_select 0, %s10, %s8
  loop: start=0, step=1, limit=4
  $region2: #{basic_block_forward.4} parent=0 // loop_pre_header
    _
  $region3: #{basic_block_forward.4} parent=0 // loop_header
    %s13 = sphi 0, %s17
    %p14 = scmp.ge.s32.totalorder %s13, 4
    %s20 = sphi 0, %s32
    %s21 = sphi 0, %s28
    %s22 = sphi 0, %s20
    %s23 = sphi 0, %s21
    %s24 = sphi 0, %s22
    %s25 = sphi 0, %s23
    %s35 = sphi 0, %s37
    %s38 = sphi 0, %s35
    %s39 = sphi 0, %s38
    %s55 = sphi 0, %s39
    %s61 = sphi 0, %s63
    %s64 = sphi 0, %s61
    %s65 = sphi 0, %s64
    %s81 = sphi 0, %s65
    %s85 = sphi 0, %s85
    %s87 = sphi 0, %s85
    %s88 = sphi 0, %s87
    %s102 = sphi 0, %s88
    %s106 = sphi 0, %s106
    %s108 = sphi 0, %s106
    %s109 = sphi 0, %s108
    %s123 = sphi 0, %s109
    %s131 = sphi 0, %s133
    %s134 = sphi 0, %s131
    %s135 = sphi 0, %s134
    %s151 = sphi 0, %s135
    %s157 = sphi 0, %s159
    %s160 = sphi 0, %s157
    %s161 = sphi 0, %s160
    %s177 = sphi 0, %s161
    %s183 = sphi 0, %s185
    %s186 = sphi 0, %s183
    %s187 = sphi 0, %s186
    %s203 = sphi 0, %s187
  $region4: #{basic_block_forward.4} parent=0 // loop_header_branch
    %16 = sbr.rel (%p14) target = $region8
  $region5: #{basic_block_forward.4} parent=0 // loop_body
    %s18 = ssub.s32 %s13, 1
    %s19 = ssub.s32 %s13, 2
    %s26 = sadd.s32 1, %s21
    %p27 = scmp.ge.s32.totalorder %s26, 2
    %s28 = scalar_select %p27, 0, %s26
    %s29 = sadd.s32 1, %s20
    %s30 = scalar_select %p27, %s29, %s20
    %p31 = scmp.ge.s32.totalorder %s30, 1
    %s32 = scalar_select %p31, 0, %s30
    %s33 = ssub.s32 %s21, %s28
    %p34 = scmp.eq.s32.totalorder %s33, 0
    %s36 = sadd.s32 %s35, 1
    %s37 = scalar_select %p34, %s35, %s36
    %p40 = pneg %p34
    %p41 = scmp.eq.s32.totalorder %s13, 1
    %p42 = por %p40, %p41
    %p43 = scmp.ne.s32.totalorder %s35, %s38
    %p44 = scmp.eq.s32.totalorder %s13, 0
    %p45 = por %p43, %p44
    %p46 = scmp.ne.s32.totalorder %s35, %s38
    %p47 = scmp.eq.s32.totalorder %s18, 1
    %p48 = por %p46, %p47
    %p49 = scmp.ne.s32.totalorder %s38, %s39
    %p50 = scmp.eq.s32.totalorder %s18, 0
    %p51 = por %p49, %p50
    %p52 = scmp.ne.s32.totalorder %s38, %s39
    %p53 = scmp.eq.s32.totalorder %s19, 1
    %p54 = por %p52, %p53
    %p56 = scmp.ne.s32.totalorder %s39, %s55
    %p57 = scmp.eq.s32.totalorder %s19, 0
    %p58 = por %p56, %p57
    %s59 = ssub.s32 %s20, %s32
    %p60 = scmp.eq.s32.totalorder %s59, 0
    %s62 = sadd.s32 %s61, 1
    %s63 = scalar_select %p60, %s61, %s62
    %p66 = pneg %p60
    %p67 = scmp.eq.s32.totalorder %s13, 1
    %p68 = por %p66, %p67
    %p69 = scmp.ne.s32.totalorder %s61, %s64
    %p70 = scmp.eq.s32.totalorder %s13, 0
    %p71 = por %p69, %p70
    %p72 = scmp.ne.s32.totalorder %s61, %s64
    %p73 = scmp.eq.s32.totalorder %s18, 1
    %p74 = por %p72, %p73
    %p75 = scmp.ne.s32.totalorder %s64, %s65
    %p76 = scmp.eq.s32.totalorder %s18, 0
    %p77 = por %p75, %p76
    %p78 = scmp.ne.s32.totalorder %s64, %s65
    %p79 = scmp.eq.s32.totalorder %s19, 1
    %p80 = por %p78, %p79
    %p82 = scmp.ne.s32.totalorder %s65, %s81
    %p83 = scmp.eq.s32.totalorder %s19, 0
    %p84 = por %p82, %p83
    %s86 = sadd.s32 %s85, 1
    %p89 = scmp.eq.s32.totalorder %s13, 1
    %p90 = scmp.ne.s32.totalorder %s85, %s87
    %p91 = scmp.eq.s32.totalorder %s13, 0
    %p92 = por %p90, %p91
    %p93 = scmp.ne.s32.totalorder %s85, %s87
    %p94 = scmp.eq.s32.totalorder %s18, 1
    %p95 = por %p93, %p94
    %p96 = scmp.ne.s32.totalorder %s87, %s88
    %p97 = scmp.eq.s32.totalorder %s18, 0
    %p98 = por %p96, %p97
    %p99 = scmp.ne.s32.totalorder %s87, %s88
    %p100 = scmp.eq.s32.totalorder %s19, 1
    %p101 = por %p99, %p100
    %p103 = scmp.ne.s32.totalorder %s88, %s102
    %p104 = scmp.eq.s32.totalorder %s19, 0
    %p105 = por %p103, %p104
    %s107 = sadd.s32 %s106, 1
    %p110 = scmp.eq.s32.totalorder %s13, 1
    %p111 = scmp.ne.s32.totalorder %s106, %s108
    %p112 = scmp.eq.s32.totalorder %s13, 0
    %p113 = por %p111, %p112
    %p114 = scmp.ne.s32.totalorder %s106, %s108
    %p115 = scmp.eq.s32.totalorder %s18, 1
    %p116 = por %p114, %p115
    %p117 = scmp.ne.s32.totalorder %s108, %s109
    %p118 = scmp.eq.s32.totalorder %s18, 0
    %p119 = por %p117, %p118
    %p120 = scmp.ne.s32.totalorder %s108, %s109
    %p121 = scmp.eq.s32.totalorder %s19, 1
    %p122 = por %p120, %p121
    %p124 = scmp.ne.s32.totalorder %s109, %s123
    %p125 = scmp.eq.s32.totalorder %s19, 0
    %p126 = por %p124, %p125
    %s127 = ssub.s32 %s21, %s28
    %s128 = ssub.s32 %s20, %s32
    %s129 = sor.u32 %s127, %s128
    %p130 = scmp.eq.s32.totalorder %s129, 0
    %s132 = sadd.s32 %s131, 1
    %s133 = scalar_select %p130, %s131, %s132
    %p136 = pneg %p130
    %p137 = scmp.eq.s32.totalorder %s13, 1
    %p138 = por %p136, %p137
    %p139 = scmp.ne.s32.totalorder %s131, %s134
    %p140 = scmp.eq.s32.totalorder %s13, 0
    %p141 = por %p139, %p140
    %p142 = scmp.ne.s32.totalorder %s131, %s134
    %p143 = scmp.eq.s32.totalorder %s18, 1
    %p144 = por %p142, %p143
    %p145 = scmp.ne.s32.totalorder %s134, %s135
    %p146 = scmp.eq.s32.totalorder %s18, 0
    %p147 = por %p145, %p146
    %p148 = scmp.ne.s32.totalorder %s134, %s135
    %p149 = scmp.eq.s32.totalorder %s19, 1
    %p150 = por %p148, %p149
    %p152 = scmp.ne.s32.totalorder %s135, %s151
    %p153 = scmp.eq.s32.totalorder %s19, 0
    %p154 = por %p152, %p153
    %s155 = ssub.s32 %s20, %s32
    %p156 = scmp.eq.s32.totalorder %s155, 0
    %s158 = sadd.s32 %s157, 1
    %s159 = scalar_select %p156, %s157, %s158
    %p162 = pneg %p156
    %p163 = scmp.eq.s32.totalorder %s13, 1
    %p164 = por %p162, %p163
    %p165 = scmp.ne.s32.totalorder %s157, %s160
    %p166 = scmp.eq.s32.totalorder %s13, 0
    %p167 = por %p165, %p166
    %p168 = scmp.ne.s32.totalorder %s157, %s160
    %p169 = scmp.eq.s32.totalorder %s18, 1
    %p170 = por %p168, %p169
    %p171 = scmp.ne.s32.totalorder %s160, %s161
    %p172 = scmp.eq.s32.totalorder %s18, 0
    %p173 = por %p171, %p172
    %p174 = scmp.ne.s32.totalorder %s160, %s161
    %p175 = scmp.eq.s32.totalorder %s19, 1
    %p176 = por %p174, %p175
    %p178 = scmp.ne.s32.totalorder %s161, %s177
    %p179 = scmp.eq.s32.totalorder %s19, 0
    %p180 = por %p178, %p179
    %s181 = ssub.s32 %s20, %s32
    %p182 = scmp.eq.s32.totalorder %s181, 0
    %s184 = sadd.s32 %s183, 1
    %s185 = scalar_select %p182, %s183, %s184
    %p188 = pneg %p182
    %p189 = scmp.eq.s32.totalorder %s13, 1
    %p190 = por %p188, %p189
    %p191 = scmp.ne.s32.totalorder %s183, %s186
    %p192 = scmp.eq.s32.totalorder %s13, 0
    %p193 = por %p191, %p192
    %p194 = scmp.ne.s32.totalorder %s183, %s186
    %p195 = scmp.eq.s32.totalorder %s18, 1
    %p196 = por %p194, %p195
    %p197 = scmp.ne.s32.totalorder %s186, %s187
    %p198 = scmp.eq.s32.totalorder %s18, 0
    %p199 = por %p197, %p198
    %p200 = scmp.ne.s32.totalorder %s186, %s187
    %p201 = scmp.eq.s32.totalorder %s19, 1
    %p202 = por %p200, %p201
    %p204 = scmp.ne.s32.totalorder %s187, %s203
    %p205 = scmp.eq.s32.totalorder %s19, 0
    %p206 = por %p204, %p205
    %p207 = scmp.le.s32.totalorder 1, %s13
    %p208 = scmp.lt.s32.totalorder %s13, 3
    %p209 = pnand %p207, %p208
    %p210 = pneg %p209
    // Predicated region
    $region9: #{basic_block_forward.4} parent=5 // pred_check
      _
    $region10: #{basic_block_forward.4} parent=5 // pred_check_branch
      %212 = sbr.rel (%p209) target = $region12
    $region11: #{basic_block_forward.4} parent=5 // pred_region
      %s213 = ssub.s32 %s13, 1
      // Predicated region
      $region13: #{basic_block_forward.4} parent=11 // pred_check
        %p214 = pneg %p77
      $region14: #{basic_block_forward.4} parent=11 // pred_check_branch
        %216 = sbr.rel (%p214) target = $region16
      $region15: #{basic_block_forward.4} parent=11 // pred_region
        %p217 = scmp.lt.s32.totalorder %s22, 0
        %s218 = scalar_select %p217, %s22, 0
        %s219 = smul.addr %s218, 4
        %s220 = scalar_lea.vmem %s1, %s219
      $region16: #{basic_block_forward.4} parent=11 // pred_fallthru
        _
      // Predicated region
      $region17: #{basic_block_forward.4} parent=11 // pred_check
        %p221 = pneg %p98
      $region18: #{basic_block_forward.4} parent=11 // pred_check_branch
        %223 = sbr.rel (%p221) target = $region20
      $region19: #{basic_block_forward.4} parent=11 // pred_region
        _
      $region20: #{basic_block_forward.4} parent=11 // pred_fallthru
        _
      // Predicated region
      $region21: #{basic_block_forward.4} parent=11 // pred_check
        %p224 = pneg %p119
      $region22: #{basic_block_forward.4} parent=11 // pred_check_branch
        %226 = sbr.rel (%p224) target = $region24
      $region23: #{basic_block_forward.4} parent=11 // pred_region
        _
      $region24: #{basic_block_forward.4} parent=11 // pred_fallthru
        _
    $region12: #{basic_block_forward.4} parent=5 // pred_fallthru
      _
    %p227 = scmp.lt.s32.totalorder %s13, 2
    // Predicated region
    $region25: #{basic_block_forward.4} parent=5 // pred_check
      %p228 = pneg %p227
    $region26: #{basic_block_forward.4} parent=5 // pred_check_branch
      %230 = sbr.rel (%p228) target = $region28
    $region27: #{basic_block_forward.4} parent=5 // pred_region
      // Predicated region
      $region29: #{basic_block_forward.4} parent=27 // pred_check
        %p231 = pneg %p45
      $region30: #{basic_block_forward.4} parent=27 // pred_check_branch
        %233 = sbr.rel (%p231) target = $region32
      $region31: #{basic_block_forward.4} parent=27 // pred_region
        %s234 = smul.u32 4, %s21
        %p235 = scmp.lt.s32.totalorder %s234, 7
        %s236 = scalar_select %p235, %s234, 7
        %s237 = smul.addr %s236, 18
        %s238 = smul.addr %s237, 4
        %s239 = scalar_lea.vmem %s0, %s238
        %s240 = smul.u32 4, %s21
      $region32: #{basic_block_forward.4} parent=27 // pred_fallthru
        _
    $region28: #{basic_block_forward.4} parent=5 // pred_fallthru
      _
    %p241 = scmp.le.s32.totalorder 1, %s13
    %p242 = scmp.lt.s32.totalorder %s13, 3
    %p243 = pnand %p241, %p242
    %p244 = pneg %p243
    // Predicated region
    $region33: #{basic_block_forward.4} parent=5 // pred_check
      _
    $region34: #{basic_block_forward.4} parent=5 // pred_check_branch
      %246 = sbr.rel (%p243) target = $region36
    $region35: #{basic_block_forward.4} parent=5 // pred_region
      %s247 = ssub.s32 %s13, 1
      %s248 = smul.u32 4, %s23
      %p249 = scmp.lt.s32.totalorder %s248, 7
      %s250 = scalar_select %p249, %s248, 7
      %s251 = smul.addr %s250, 18
      %s252 = smul.addr %s251, 4
      %s253 = scalar_lea.vmem %s0, %s252
      %p254 = pneg %p51
      %p255 = pneg %p48
      %p256 = scmp.lt.s32.totalorder %s22, 0
      %s257 = scalar_select %p256, %s22, 0
      %s258 = smul.addr %s257, 4
      %s259 = scalar_lea.vmem %s1, %s258
      %p260 = pneg %p77
      %p261 = pneg %p74
      %p262 = pneg %p98
      %p263 = pneg %p95
      %p264 = pneg %p119
      %p265 = pneg %p116
      %p266 = pneg %p147
      %p267 = pneg %p144
      %p268 = scmp.lt.s32.totalorder %s23, 1
      %s269 = scalar_select %p268, %s23, 1
      %p270 = scmp.lt.s32.totalorder %s22, 0
      %s271 = scalar_select %p270, %s22, 0
      %s272 = smul.addr %s269, 8
      %s273 = sadd.s32 %s271, %s272
      %s274 = smul.addr %s273, 4
      %s275 = scalar_lea.vmem %s4, %s274
      %p276 = pneg %p173
      %p277 = pneg %p170
      %p278 = scmp.lt.s32.totalorder %s22, 0
      %s279 = scalar_select %p278, %s22, 0
      %s280 = scalar_lea.vmem %s5, %s279
      %p281 = pneg %p199
      %p282 = pneg %p196
      %p283 = scmp.lt.s32.totalorder %s22, 0
      %s284 = scalar_select %p283, %s22, 0
      %s285 = scalar_lea.vmem %s6, %s284
      %s286 = smul.u32 4, %s23
      %p287 = scmp.lt.s32.totalorder %s286, 7
      %s288 = scalar_select %p287, %s286, 7
      %s289 = smul.addr %s288, 18
      %s290 = smul.addr %s289, 4
      %s291 = scalar_lea.vmem %s0, %s290
      %s292 = smul.u32 4, %s23
      %p293 = scmp.lt.s32.totalorder %s22, 0
      %s294 = scalar_select %p293, %s22, 0
      %s295 = smul.addr %s294, 4
      %s296 = scalar_lea.vmem %s1, %s295
      %p297 = scmp.lt.s32.totalorder %s23, 1
      %s298 = scalar_select %p297, %s23, 1
      %p299 = scmp.lt.s32.totalorder %s22, 0
      %s300 = scalar_select %p299, %s22, 0
      %s301 = smul.addr %s298, 8
      %s302 = sadd.s32 %s300, %s301
      %s303 = smul.addr %s302, 4
      %s304 = scalar_lea.vmem %s4, %s303
      %p305 = scmp.lt.s32.totalorder %s22, 0
      %s306 = scalar_select %p305, %s22, 0
      %s307 = scalar_lea.vmem %s5, %s306
      %p308 = scmp.lt.s32.totalorder %s22, 0
      %s309 = scalar_select %p308, %s22, 0
      %s310 = scalar_lea.vmem %s6, %s309
      %p312 = scmp.eq.s32.totalorder %s23, 0
      // Predicated region
      $region37: #{basic_block_forward.4} parent=35 // pred_check
        %p313 = pneg %p312
      $region38: #{basic_block_forward.4} parent=35 // pred_check_branch
        %315 = sbr.rel (%p313) target = $region40
      $region39: #{basic_block_forward.4} parent=35 // pred_region
        %316 = vst [vmem:[%s307] sm:$0x1] 0.0
        %317 = vst [vmem:[%s310] sm:$0x1] 0.0
      $region40: #{basic_block_forward.4} parent=35 // pred_fallthru
        _
      %v318 = vld [vmem:[%s2] sm:$0x1]
      %v319 = vld [vmem:[%s3] sm:$0x1]
      %320 = vst [vmem:[#allocation2] sm:$0xf] 0
      %vm321 = vcmask 1040384
      %vm322 = vsmask.f32 256
      %vm323 = vmand %vm321, %vm322
      %v324 = vld [vmem:[#allocation2 + $0x4] sm:$0x1]
      %v325 = vsel %vm323, 0, %v324
      %326 = vst [vmem:[#allocation2 + $0x4] sm:$0x1] %v325
      %327 = vst [vmem:[#allocation2 + $0x8] sm:$0xf] 0
      %v328 = vld [vmem:[#allocation2 + $0xc] sm:$0x1]
      %v329 = vsel %vm323, 0, %v328
      %330 = vst [vmem:[#allocation2 + $0xc] sm:$0x1] %v329
      %331 = vst [vmem:[#allocation2 + $0x10] sm:$0xf] 0
      %v332 = vld [vmem:[#allocation2 + $0x14] sm:$0x1]
      %v333 = vsel %vm323, 0, %v332
      %334 = vst [vmem:[#allocation2 + $0x14] sm:$0x1] %v333
      %335 = vst [vmem:[#allocation2 + $0x18] sm:$0xf] 0
      %v336 = vld [vmem:[#allocation2 + $0x1c] sm:$0x1]
      %v337 = vsel %vm323, 0, %v336
      %338 = vst [vmem:[#allocation2 + $0x1c] sm:$0x1] %v337
      %339 = vst [vmem:[#allocation2 + $0x20] sm:$0xf] 0
      %v340 = vld [vmem:[#allocation2 + $0x24] sm:$0x1]
      %v341 = vsel %vm323, 0, %v340
      %342 = vst [vmem:[#allocation2 + $0x24] sm:$0x1] %v341
      %343 = vst [vmem:[#allocation2 + $0x28] sm:$0xf] 0
      %v344 = vld [vmem:[#allocation2 + $0x2c] sm:$0x1]
      %v345 = vsel %vm323, 0, %v344
      %346 = vst [vmem:[#allocation2 + $0x2c] sm:$0x1] %v345
      %347 = vst [vmem:[#allocation2 + $0x30] sm:$0xf] 0
      %v348 = vld [vmem:[#allocation2 + $0x34] sm:$0x1]
      %v349 = vsel %vm323, 0, %v348
      %350 = vst [vmem:[#allocation2 + $0x34] sm:$0x1] %v349
      %351 = vst [vmem:[#allocation2 + $0x38] sm:$0xf] 0
      %v352 = vld [vmem:[#allocation2 + $0x3c] sm:$0x1]
      %v353 = vsel %vm323, 0, %v352
      %354 = vst [vmem:[#allocation2 + $0x3c] sm:$0x1] %v353
      %355 = vst [vmem:[#allocation2 + $0x40] sm:$0xf] 0
      %v356 = vld [vmem:[#allocation2 + $0x44] sm:$0x1]
      %v357 = vsel %vm323, 0, %v356
      %358 = vst [vmem:[#allocation2 + $0x44] sm:$0x1] %v357
      %359 = vst [vmem:[#allocation2 + $0x48] sm:$0xf] 0
      %v360 = vld [vmem:[#allocation2 + $0x4c] sm:$0x1]
      %v361 = vsel %vm323, 0, %v360
      %362 = vst [vmem:[#allocation2 + $0x4c] sm:$0x1] %v361
      %363 = vst [vmem:[#allocation2 + $0x50] sm:$0xf] 0
      %v364 = vld [vmem:[#allocation2 + $0x54] sm:$0x1]
      %v365 = vsel %vm323, 0, %v364
      %366 = vst [vmem:[#allocation2 + $0x54] sm:$0x1] %v365
      %367 = vst [vmem:[#allocation2 + $0x58] sm:$0xf] 0
      %v368 = vld [vmem:[#allocation2 + $0x5c] sm:$0x1]
      %v369 = vsel %vm323, 0, %v368
      %370 = vst [vmem:[#allocation2 + $0x5c] sm:$0x1] %v369
      %371 = vst [vmem:[#allocation2 + $0x60] sm:$0xf] 0
      %v372 = vld [vmem:[#allocation2 + $0x64] sm:$0x1]
      %v373 = vsel %vm323, 0, %v372
      %374 = vst [vmem:[#allocation2 + $0x64] sm:$0x1] %v373
      %375 = vst [vmem:[#allocation2 + $0x68] sm:$0xf] 0
      %v376 = vld [vmem:[#allocation2 + $0x6c] sm:$0x1]
      %v377 = vsel %vm323, 0, %v376
      %378 = vst [vmem:[#allocation2 + $0x6c] sm:$0x1] %v377
      %379 = vst [vmem:[#allocation2 + $0x70] sm:$0xf] 0
      %v380 = vld [vmem:[#allocation2 + $0x74] sm:$0x1]
      %v381 = vsel %vm323, 0, %v380
      %382 = vst [vmem:[#allocation2 + $0x74] sm:$0x1] %v381
      %383 = vst [vmem:[#allocation2 + $0x78] sm:$0xf] 0
      %v384 = vld [vmem:[#allocation2 + $0x7c] sm:$0x1]
      %v385 = vsel %vm323, 0, %v384
      %386 = vst [vmem:[#allocation2 + $0x7c] sm:$0x1] %v385
      %387 = vst [vmem:[#allocation2 + $0x80] sm:$0xf] 0
      %v388 = vld [vmem:[#allocation2 + $0x84] sm:$0x1]
      %v389 = vsel %vm323, 0, %v388
      %390 = vst [vmem:[#allocation2 + $0x84] sm:$0x1] %v389
      %391 = vst [vmem:[#allocation2 + $0x88] sm:$0xf] 0
      %v392 = vld [vmem:[#allocation2 + $0x8c] sm:$0x1]
      %v393 = vsel %vm323, 0, %v392
      %394 = vst [vmem:[#allocation2 + $0x8c] sm:$0x1] %v393
      %395 = vst [vmem:[#allocation2 + $0x90] sm:$0xf] 0
      %v396 = vld [vmem:[#allocation2 + $0x94] sm:$0x1]
      %v397 = vsel %vm323, 0, %v396
      %398 = vst [vmem:[#allocation2 + $0x94] sm:$0x1] %v397
      %399 = vst [vmem:[#allocation2 + $0x98] sm:$0xf] 0
      %v400 = vld [vmem:[#allocation2 + $0x9c] sm:$0x1]
      %v401 = vsel %vm323, 0, %v400
      %402 = vst [vmem:[#allocation2 + $0x9c] sm:$0x1] %v401
      %403 = vst [vmem:[#allocation2 + $0xa0] sm:$0xf] 0
      %v404 = vld [vmem:[#allocation2 + $0xa4] sm:$0x1]
      %v405 = vsel %vm323, 0, %v404
      %406 = vst [vmem:[#allocation2 + $0xa4] sm:$0x1] %v405
      %407 = vst [vmem:[#allocation2 + $0xa8] sm:$0xf] 0
      %v408 = vld [vmem:[#allocation2 + $0xac] sm:$0x1]
      %v409 = vsel %vm323, 0, %v408
      %410 = vst [vmem:[#allocation2 + $0xac] sm:$0x1] %v409
      %411 = vst [vmem:[#allocation2 + $0xb0] sm:$0xf] 0
      %v412 = vld [vmem:[#allocation2 + $0xb4] sm:$0x1]
      %v413 = vsel %vm323, 0, %v412
      %414 = vst [vmem:[#allocation2 + $0xb4] sm:$0x1] %v413
      %415 = vst [vmem:[#allocation2 + $0xb8] sm:$0xf] 0
      %v416 = vld [vmem:[#allocation2 + $0xbc] sm:$0x1]
      %v417 = vsel %vm323, 0, %v416
      %418 = vst [vmem:[#allocation2 + $0xbc] sm:$0x1] %v417
      %419 = vst [vmem:[#allocation2 + $0xc0] sm:$0xf] 0
      %v420 = vld [vmem:[#allocation2 + $0xc4] sm:$0x1]
      %v421 = vsel %vm323, 0, %v420
      %422 = vst [vmem:[#allocation2 + $0xc4] sm:$0x1] %v421
      %423 = vst [vmem:[#allocation2 + $0xc8] sm:$0xf] 0
      %v424 = vld [vmem:[#allocation2 + $0xcc] sm:$0x1]
      %v425 = vsel %vm323, 0, %v424
      %426 = vst [vmem:[#allocation2 + $0xcc] sm:$0x1] %v425
      %427 = vst [vmem:[#allocation2 + $0xd0] sm:$0xf] 0
      %v428 = vld [vmem:[#allocation2 + $0xd4] sm:$0x1]
      %v429 = vsel %vm323, 0, %v428
      %430 = vst [vmem:[#allocation2 + $0xd4] sm:$0x1] %v429
      %431 = vst [vmem:[#allocation2 + $0xd8] sm:$0xf] 0
      %v432 = vld [vmem:[#allocation2 + $0xdc] sm:$0x1]
      %v433 = vsel %vm323, 0, %v432
      %434 = vst [vmem:[#allocation2 + $0xdc] sm:$0x1] %v433
      %435 = vst [vmem:[#allocation2 + $0xe0] sm:$0xf] 0
      %v436 = vld [vmem:[#allocation2 + $0xe4] sm:$0x1]
      %v437 = vsel %vm323, 0, %v436
      %438 = vst [vmem:[#allocation2 + $0xe4] sm:$0x1] %v437
      %439 = vst [vmem:[#allocation2 + $0xe8] sm:$0xf] 0
      %v440 = vld [vmem:[#allocation2 + $0xec] sm:$0x1]
      %v441 = vsel %vm323, 0, %v440
      %442 = vst [vmem:[#allocation2 + $0xec] sm:$0x1] %v441
      %443 = vst [vmem:[#allocation2 + $0xf0] sm:$0xf] 0
      %v444 = vld [vmem:[#allocation2 + $0xf4] sm:$0x1]
      %v445 = vsel %vm323, 0, %v444
      %446 = vst [vmem:[#allocation2 + $0xf4] sm:$0x1] %v445
      %447 = vst [vmem:[#allocation2 + $0xf8] sm:$0xf] 0
      %v448 = vld [vmem:[#allocation2 + $0xfc] sm:$0x1]
      %v449 = vsel %vm323, 0, %v448
      %450 = vst [vmem:[#allocation2 + $0xfc] sm:$0x1] %v449
      %451 = vst [vmem:[#allocation2 + $0x100] sm:$0xf] 0
      %v452 = vld [vmem:[#allocation2 + $0x104] sm:$0x1]
      %v453 = vsel %vm323, 0, %v452
      %454 = vst [vmem:[#allocation2 + $0x104] sm:$0x1] %v453
      %455 = vst [vmem:[#allocation2 + $0x108] sm:$0xf] 0
      %v456 = vld [vmem:[#allocation2 + $0x10c] sm:$0x1]
      %v457 = vsel %vm323, 0, %v456
      %458 = vst [vmem:[#allocation2 + $0x10c] sm:$0x1] %v457
      %459 = vst [vmem:[#allocation2 + $0x110] sm:$0xf] 0
      %v460 = vld [vmem:[#allocation2 + $0x114] sm:$0x1]
      %v461 = vsel %vm323, 0, %v460
      %462 = vst [vmem:[#allocation2 + $0x114] sm:$0x1] %v461
      %463 = vst [vmem:[#allocation2 + $0x118] sm:$0xf] 0
      %v464 = vld [vmem:[#allocation2 + $0x11c] sm:$0x1]
      %v465 = vsel %vm323, 0, %v464
      %466 = vst [vmem:[#allocation2 + $0x11c] sm:$0x1] %v465
      %s467 = scalar_lea.vmem %s291, 8
      %v468 = vld [vmem:[%s467] sm:$0xf]
      %v469 = vld [vmem:[%s467 + $0x4] sm:$0x1]
      %v470 = vld [vmem:[%s467 + $0x8] sm:$0xf]
      %v471 = vld [vmem:[%s467 + $0xc] sm:$0x1]
      %v472 = vld [vmem:[%s467 + $0x10] sm:$0xf]
      %v473 = vld [vmem:[%s467 + $0x14] sm:$0x1]
      %v474 = vld [vmem:[%s467 + $0x18] sm:$0xf]
      %v475 = vld [vmem:[%s467 + $0x1c] sm:$0x1]
      %v476 = vld [vmem:[%s467 + $0x20] sm:$0xf]
      %v477 = vld [vmem:[%s467 + $0x24] sm:$0x1]
      %v478 = vld [vmem:[%s467 + $0x28] sm:$0xf]
      %v479 = vld [vmem:[%s467 + $0x2c] sm:$0x1]
      %v480 = vld [vmem:[%s467 + $0x30] sm:$0xf]
      %v481 = vld [vmem:[%s467 + $0x34] sm:$0x1]
      %v482 = vld [vmem:[%s467 + $0x38] sm:$0xf]
      %v483 = vld [vmem:[%s467 + $0x3c] sm:$0x1]
      %v484 = vunpack.c.l.bf16 %v468
      %v485 = vunpack.c.l.bf16 %v469
      %v486 = vunpack.c.l.bf16 %v470
      %v487 = vunpack.c.l.bf16 %v471
      %v488 = vunpack.c.l.bf16 %v472
      %v489 = vunpack.c.l.bf16 %v473
      %v490 = vunpack.c.l.bf16 %v474
      %v491 = vunpack.c.l.bf16 %v475
      %v492 = vunpack.c.l.bf16 %v476
      %v493 = vunpack.c.l.bf16 %v477
      %v494 = vunpack.c.l.bf16 %v478
      %v495 = vunpack.c.l.bf16 %v479
      %v496 = vunpack.c.l.bf16 %v480
      %v497 = vunpack.c.l.bf16 %v481
      %v498 = vunpack.c.l.bf16 %v482
      %v499 = vunpack.c.l.bf16 %v483
      %v501 = vperm.slane %v318, 0
      %v503 = vmul.f32 %v484, %v501
      %v504 = vmul.f32 %v485, %v501
      %v505 = vmul.f32 %v486, %v501
      %v506 = vmul.f32 %v487, %v501
      %v507 = vmul.f32 %v488, %v501
      %v508 = vmul.f32 %v489, %v501
      %v509 = vmul.f32 %v490, %v501
      %v510 = vmul.f32 %v491, %v501
      %v511 = vmul.f32 %v492, %v501
      %v512 = vmul.f32 %v493, %v501
      %v513 = vmul.f32 %v494, %v501
      %v514 = vmul.f32 %v495, %v501
      %v515 = vmul.f32 %v496, %v501
      %v516 = vmul.f32 %v497, %v501
      %v517 = vmul.f32 %v498, %v501
      %v518 = vmul.f32 %v499, %v501
      %v520 = vperm.slane %v319, 0
      %v522 = vadd.f32 %v503, %v520
      %v523 = vadd.f32 %v504, %v520
      %v524 = vadd.f32 %v505, %v520
      %v525 = vadd.f32 %v506, %v520
      %v526 = vadd.f32 %v507, %v520
      %v527 = vadd.f32 %v508, %v520
      %v528 = vadd.f32 %v509, %v520
      %v529 = vadd.f32 %v510, %v520
      %v530 = vadd.f32 %v511, %v520
      %v531 = vadd.f32 %v512, %v520
      %v532 = vadd.f32 %v513, %v520
      %v533 = vadd.f32 %v514, %v520
      %v534 = vadd.f32 %v515, %v520
      %v535 = vadd.f32 %v516, %v520
      %v536 = vadd.f32 %v517, %v520
      %v537 = vadd.f32 %v518, %v520
      %v538 = vmax.f32 %v522, 0.0
      %v539 = vmax.f32 %v523, 0.0
      %v540 = vmax.f32 %v524, 0.0
      %v541 = vmax.f32 %v525, 0.0
      %v542 = vmax.f32 %v526, 0.0
      %v543 = vmax.f32 %v527, 0.0
      %v544 = vmax.f32 %v528, 0.0
      %v545 = vmax.f32 %v529, 0.0
      %v546 = vmax.f32 %v530, 0.0
      %v547 = vmax.f32 %v531, 0.0
      %v548 = vmax.f32 %v532, 0.0
      %v549 = vmax.f32 %v533, 0.0
      %v550 = vmax.f32 %v534, 0.0
      %v551 = vmax.f32 %v535, 0.0
      %v552 = vmax.f32 %v536, 0.0
      %v553 = vmax.f32 %v537, 0.0
      %v554 = vpack.c.bf16 %v538, %v538
      %v555 = vpack.c.bf16 %v539, %v539
      %v556 = vpack.c.bf16 %v540, %v540
      %v557 = vpack.c.bf16 %v541, %v541
      %v558 = vpack.c.bf16 %v542, %v542
      %v559 = vpack.c.bf16 %v543, %v543
      %v560 = vpack.c.bf16 %v544, %v544
      %v561 = vpack.c.bf16 %v545, %v545
      %v562 = vpack.c.bf16 %v546, %v546
      %v563 = vpack.c.bf16 %v547, %v547
      %v564 = vpack.c.bf16 %v548, %v548
      %v565 = vpack.c.bf16 %v549, %v549
      %v566 = vpack.c.bf16 %v550, %v550
      %v567 = vpack.c.bf16 %v551, %v551
      %v568 = vpack.c.bf16 %v552, %v552
      %v569 = vpack.c.bf16 %v553, %v553
      %s570 = scalar_lea.vmem [#allocation2], 8
      %vm571 = vcmask 1043456
      %vm572 = vsmask.f32 7938
      %vm573 = vmand %vm571, %vm572
      %v574 = vld [vmem:[%s570] sm:$0xf]
      %v575 = vsel %vm573, %v554, %v574
      %576 = vst [vmem:[%s570] sm:$0xf] %v575
      %v577 = vld [vmem:[%s570 + $0x4] sm:$0x1]
      %v578 = vsel %vm323, %v555, %v577
      %579 = vst [vmem:[%s570 + $0x4] sm:$0x1] %v578
      %v580 = vld [vmem:[%s570 + $0x8] sm:$0xf]
      %v581 = vsel %vm573, %v556, %v580
      %582 = vst [vmem:[%s570 + $0x8] sm:$0xf] %v581
      %v583 = vld [vmem:[%s570 + $0xc] sm:$0x1]
      %v584 = vsel %vm323, %v557, %v583
      %585 = vst [vmem:[%s570 + $0xc] sm:$0x1] %v584
      %v586 = vld [vmem:[%s570 + $0x10] sm:$0xf]
      %v587 = vsel %vm573, %v558, %v586
      %588 = vst [vmem:[%s570 + $0x10] sm:$0xf] %v587
      %v589 = vld [vmem:[%s570 + $0x14] sm:$0x1]
      %v590 = vsel %vm323, %v559, %v589
      %591 = vst [vmem:[%s570 + $0x14] sm:$0x1] %v590
      %v592 = vld [vmem:[%s570 + $0x18] sm:$0xf]
      %v593 = vsel %vm573, %v560, %v592
      %594 = vst [vmem:[%s570 + $0x18] sm:$0xf] %v593
      %v595 = vld [vmem:[%s570 + $0x1c] sm:$0x1]
      %v596 = vsel %vm323, %v561, %v595
      %597 = vst [vmem:[%s570 + $0x1c] sm:$0x1] %v596
      %v598 = vld [vmem:[%s570 + $0x20] sm:$0xf]
      %v599 = vsel %vm573, %v562, %v598
      %600 = vst [vmem:[%s570 + $0x20] sm:$0xf] %v599
      %v601 = vld [vmem:[%s570 + $0x24] sm:$0x1]
      %v602 = vsel %vm323, %v563, %v601
      %603 = vst [vmem:[%s570 + $0x24] sm:$0x1] %v602
      %v604 = vld [vmem:[%s570 + $0x28] sm:$0xf]
      %v605 = vsel %vm573, %v564, %v604
      %606 = vst [vmem:[%s570 + $0x28] sm:$0xf] %v605
      %v607 = vld [vmem:[%s570 + $0x2c] sm:$0x1]
      %v608 = vsel %vm323, %v565, %v607
      %609 = vst [vmem:[%s570 + $0x2c] sm:$0x1] %v608
      %v610 = vld [vmem:[%s570 + $0x30] sm:$0xf]
      %v611 = vsel %vm573, %v566, %v610
      %612 = vst [vmem:[%s570 + $0x30] sm:$0xf] %v611
      %v613 = vld [vmem:[%s570 + $0x34] sm:$0x1]
      %v614 = vsel %vm323, %v567, %v613
      %615 = vst [vmem:[%s570 + $0x34] sm:$0x1] %v614
      %v616 = vld [vmem:[%s570 + $0x38] sm:$0xf]
      %v617 = vsel %vm573, %v568, %v616
      %618 = vst [vmem:[%s570 + $0x38] sm:$0xf] %v617
      %v619 = vld [vmem:[%s570 + $0x3c] sm:$0x1]
      %v620 = vsel %vm323, %v569, %v619
      %621 = vst [vmem:[%s570 + $0x3c] sm:$0x1] %v620
      %s622 = scalar_lea.vmem %s291, 80
      %v623 = vld [vmem:[%s622] sm:$0xf]
      %v624 = vld [vmem:[%s622 + $0x8] sm:$0xf]
      %v625 = vld [vmem:[%s622 + $0x10] sm:$0xf]
      %v626 = vld [vmem:[%s622 + $0x18] sm:$0xf]
      %v627 = vld [vmem:[%s622 + $0x20] sm:$0xf]
      %v628 = vld [vmem:[%s622 + $0x28] sm:$0xf]
      %v629 = vld [vmem:[%s622 + $0x30] sm:$0xf]
      %v630 = vld [vmem:[%s622 + $0x38] sm:$0xf]
      %v631 = vunpack.c.l.bf16 %v623
      %v632 = vunpack.c.l.bf16 %v624
      %v633 = vunpack.c.l.bf16 %v625
      %v634 = vunpack.c.l.bf16 %v626
      %v635 = vunpack.c.l.bf16 %v627
      %v636 = vunpack.c.l.bf16 %v628
      %v637 = vunpack.c.l.bf16 %v629
      %v638 = vunpack.c.l.bf16 %v630
      %v639 = vmul.f32 %v631, %v501
      %v640 = vmul.f32 %v632, %v501
      %v641 = vmul.f32 %v633, %v501
      %v642 = vmul.f32 %v634, %v501
      %v643 = vmul.f32 %v635, %v501
      %v644 = vmul.f32 %v636, %v501
      %v645 = vmul.f32 %v637, %v501
      %v646 = vmul.f32 %v638, %v501
      %v647 = vadd.f32 %v639, %v520
      %v648 = vadd.f32 %v640, %v520
      %v649 = vadd.f32 %v641, %v520
      %v650 = vadd.f32 %v642, %v520
      %v651 = vadd.f32 %v643, %v520
      %v652 = vadd.f32 %v644, %v520
      %v653 = vadd.f32 %v645, %v520
      %v654 = vadd.f32 %v646, %v520
      %v655 = vmax.f32 %v647, 0.0
      %v656 = vmax.f32 %v648, 0.0
      %v657 = vmax.f32 %v649, 0.0
      %v658 = vmax.f32 %v650, 0.0
      %v659 = vmax.f32 %v651, 0.0
      %v660 = vmax.f32 %v652, 0.0
      %v661 = vmax.f32 %v653, 0.0
      %v662 = vmax.f32 %v654, 0.0
      %v663 = vpack.c.bf16 %v655, %v655
      %v664 = vpack.c.bf16 %v656, %v656
      %v665 = vpack.c.bf16 %v657, %v657
      %v666 = vpack.c.bf16 %v658, %v658
      %v667 = vpack.c.bf16 %v659, %v659
      %v668 = vpack.c.bf16 %v660, %v660
      %v669 = vpack.c.bf16 %v661, %v661
      %v670 = vpack.c.bf16 %v662, %v662
      %s671 = scalar_lea.vmem [#allocation2], 80
      %672 = vst [vmem:[%s671] sm:$0xf] %v663
      %673 = vst [vmem:[%s671 + $0x8] sm:$0xf] %v664
      %674 = vst [vmem:[%s671 + $0x10] sm:$0xf] %v665
      %675 = vst [vmem:[%s671 + $0x18] sm:$0xf] %v666
      %676 = vst [vmem:[%s671 + $0x20] sm:$0xf] %v667
      %677 = vst [vmem:[%s671 + $0x28] sm:$0xf] %v668
      %678 = vst [vmem:[%s671 + $0x30] sm:$0xf] %v669
      %679 = vst [vmem:[%s671 + $0x38] sm:$0xf] %v670
      %s680 = scalar_lea.vmem %s291, 144
      %v681 = vld [vmem:[%s680] sm:$0xf]
      %v682 = vld [vmem:[%s680 + $0x4] sm:$0x1]
      %v683 = vld [vmem:[%s680 + $0x8] sm:$0xf]
      %v684 = vld [vmem:[%s680 + $0xc] sm:$0x1]
      %v685 = vld [vmem:[%s680 + $0x10] sm:$0xf]
      %v686 = vld [vmem:[%s680 + $0x14] sm:$0x1]
      %v687 = vld [vmem:[%s680 + $0x18] sm:$0xf]
      %v688 = vld [vmem:[%s680 + $0x1c] sm:$0x1]
      %v689 = vld [vmem:[%s680 + $0x20] sm:$0xf]
      %v690 = vld [vmem:[%s680 + $0x24] sm:$0x1]
      %v691 = vld [vmem:[%s680 + $0x28] sm:$0xf]
      %v692 = vld [vmem:[%s680 + $0x2c] sm:$0x1]
      %v693 = vld [vmem:[%s680 + $0x30] sm:$0xf]
      %v694 = vld [vmem:[%s680 + $0x34] sm:$0x1]
      %v695 = vld [vmem:[%s680 + $0x38] sm:$0xf]
      %v696 = vld [vmem:[%s680 + $0x3c] sm:$0x1]
      %v697 = vunpack.c.l.bf16 %v681
      %v698 = vunpack.c.l.bf16 %v682
      %v699 = vunpack.c.l.bf16 %v683
      %v700 = vunpack.c.l.bf16 %v684
      %v701 = vunpack.c.l.bf16 %v685
      %v702 = vunpack.c.l.bf16 %v686
      %v703 = vunpack.c.l.bf16 %v687
      %v704 = vunpack.c.l.bf16 %v688
      %v705 = vunpack.c.l.bf16 %v689
      %v706 = vunpack.c.l.bf16 %v690
      %v707 = vunpack.c.l.bf16 %v691
      %v708 = vunpack.c.l.bf16 %v692
      %v709 = vunpack.c.l.bf16 %v693
      %v710 = vunpack.c.l.bf16 %v694
      %v711 = vunpack.c.l.bf16 %v695
      %v712 = vunpack.c.l.bf16 %v696
      %v713 = vmul.f32 %v697, %v501
      %v714 = vmul.f32 %v698, %v501
      %v715 = vmul.f32 %v699, %v501
      %v716 = vmul.f32 %v700, %v501
      %v717 = vmul.f32 %v701, %v501
      %v718 = vmul.f32 %v702, %v501
      %v719 = vmul.f32 %v703, %v501
      %v720 = vmul.f32 %v704, %v501
      %v721 = vmul.f32 %v705, %v501
      %v722 = vmul.f32 %v706, %v501
      %v723 = vmul.f32 %v707, %v501
      %v724 = vmul.f32 %v708, %v501
      %v725 = vmul.f32 %v709, %v501
      %v726 = vmul.f32 %v710, %v501
      %v727 = vmul.f32 %v711, %v501
      %v728 = vmul.f32 %v712, %v501
      %v729 = vadd.f32 %v713, %v520
      %v730 = vadd.f32 %v714, %v520
      %v731 = vadd.f32 %v715, %v520
      %v732 = vadd.f32 %v716, %v520
      %v733 = vadd.f32 %v717, %v520
      %v734 = vadd.f32 %v718, %v520
      %v735 = vadd.f32 %v719, %v520
      %v736 = vadd.f32 %v720, %v520
      %v737 = vadd.f32 %v721, %v520
      %v738 = vadd.f32 %v722, %v520
      %v739 = vadd.f32 %v723, %v520
      %v740 = vadd.f32 %v724, %v520
      %v741 = vadd.f32 %v725, %v520
      %v742 = vadd.f32 %v726, %v520
      %v743 = vadd.f32 %v727, %v520
      %v744 = vadd.f32 %v728, %v520
      %v745 = vmax.f32 %v729, 0.0
      %v746 = vmax.f32 %v730, 0.0
      %v747 = vmax.f32 %v731, 0.0
      %v748 = vmax.f32 %v732, 0.0
      %v749 = vmax.f32 %v733, 0.0
      %v750 = vmax.f32 %v734, 0.0
      %v751 = vmax.f32 %v735, 0.0
      %v752 = vmax.f32 %v736, 0.0
      %v753 = vmax.f32 %v737, 0.0
      %v754 = vmax.f32 %v738, 0.0
      %v755 = vmax.f32 %v739, 0.0
      %v756 = vmax.f32 %v740, 0.0
      %v757 = vmax.f32 %v741, 0.0
      %v758 = vmax.f32 %v742, 0.0
      %v759 = vmax.f32 %v743, 0.0
      %v760 = vmax.f32 %v744, 0.0
      %v761 = vpack.c.bf16 %v745, %v745
      %v762 = vpack.c.bf16 %v746, %v746
      %v763 = vpack.c.bf16 %v747, %v747
      %v764 = vpack.c.bf16 %v748, %v748
      %v765 = vpack.c.bf16 %v749, %v749
      %v766 = vpack.c.bf16 %v750, %v750
      %v767 = vpack.c.bf16 %v751, %v751
      %v768 = vpack.c.bf16 %v752, %v752
      %v769 = vpack.c.bf16 %v753, %v753
      %v770 = vpack.c.bf16 %v754, %v754
      %v771 = vpack.c.bf16 %v755, %v755
      %v772 = vpack.c.bf16 %v756, %v756
      %v773 = vpack.c.bf16 %v757, %v757
      %v774 = vpack.c.bf16 %v758, %v758
      %v775 = vpack.c.bf16 %v759, %v759
      %v776 = vpack.c.bf16 %v760, %v760
      %s777 = scalar_lea.vmem [#allocation2], 144
      %v778 = vld [vmem:[%s777] sm:$0xf]
      %v779 = vsel %vm573, %v761, %v778
      %780 = vst [vmem:[%s777] sm:$0xf] %v779
      %v781 = vld [vmem:[%s777 + $0x4] sm:$0x1]
      %v782 = vsel %vm323, %v762, %v781
      %783 = vst [vmem:[%s777 + $0x4] sm:$0x1] %v782
      %v784 = vld [vmem:[%s777 + $0x8] sm:$0xf]
      %v785 = vsel %vm573, %v763, %v784
      %786 = vst [vmem:[%s777 + $0x8] sm:$0xf] %v785
      %v787 = vld [vmem:[%s777 + $0xc] sm:$0x1]
      %v788 = vsel %vm323, %v764, %v787
      %789 = vst [vmem:[%s777 + $0xc] sm:$0x1] %v788
      %v790 = vld [vmem:[%s777 + $0x10] sm:$0xf]
      %v791 = vsel %vm573, %v765, %v790
      %792 = vst [vmem:[%s777 + $0x10] sm:$0xf] %v791
      %v793 = vld [vmem:[%s777 + $0x14] sm:$0x1]
      %v794 = vsel %vm323, %v766, %v793
      %795 = vst [vmem:[%s777 + $0x14] sm:$0x1] %v794
      %v796 = vld [vmem:[%s777 + $0x18] sm:$0xf]
      %v797 = vsel %vm573, %v767, %v796
      %798 = vst [vmem:[%s777 + $0x18] sm:$0xf] %v797
      %v799 = vld [vmem:[%s777 + $0x1c] sm:$0x1]
      %v800 = vsel %vm323, %v768, %v799
      %801 = vst [vmem:[%s777 + $0x1c] sm:$0x1] %v800
      %v802 = vld [vmem:[%s777 + $0x20] sm:$0xf]
      %v803 = vsel %vm573, %v769, %v802
      %804 = vst [vmem:[%s777 + $0x20] sm:$0xf] %v803
      %v805 = vld [vmem:[%s777 + $0x24] sm:$0x1]
      %v806 = vsel %vm323, %v770, %v805
      %807 = vst [vmem:[%s777 + $0x24] sm:$0x1] %v806
      %v808 = vld [vmem:[%s777 + $0x28] sm:$0xf]
      %v809 = vsel %vm573, %v771, %v808
      %810 = vst [vmem:[%s777 + $0x28] sm:$0xf] %v809
      %v811 = vld [vmem:[%s777 + $0x2c] sm:$0x1]
      %v812 = vsel %vm323, %v772, %v811
      %813 = vst [vmem:[%s777 + $0x2c] sm:$0x1] %v812
      %v814 = vld [vmem:[%s777 + $0x30] sm:$0xf]
      %v815 = vsel %vm573, %v773, %v814
      %816 = vst [vmem:[%s777 + $0x30] sm:$0xf] %v815
      %v817 = vld [vmem:[%s777 + $0x34] sm:$0x1]
      %v818 = vsel %vm323, %v774, %v817
      %819 = vst [vmem:[%s777 + $0x34] sm:$0x1] %v818
      %v820 = vld [vmem:[%s777 + $0x38] sm:$0xf]
      %v821 = vsel %vm573, %v775, %v820
      %822 = vst [vmem:[%s777 + $0x38] sm:$0xf] %v821
      %v823 = vld [vmem:[%s777 + $0x3c] sm:$0x1]
      %v824 = vsel %vm323, %v776, %v823
      %825 = vst [vmem:[%s777 + $0x3c] sm:$0x1] %v824
      %s826 = scalar_lea.vmem %s291, 216
      %v827 = vld [vmem:[%s826] sm:$0xf]
      %v828 = vld [vmem:[%s826 + $0x8] sm:$0xf]
      %v829 = vld [vmem:[%s826 + $0x10] sm:$0xf]
      %v830 = vld [vmem:[%s826 + $0x18] sm:$0xf]
      %v831 = vld [vmem:[%s826 + $0x20] sm:$0xf]
      %v832 = vld [vmem:[%s826 + $0x28] sm:$0xf]
      %v833 = vld [vmem:[%s826 + $0x30] sm:$0xf]
      %v834 = vld [vmem:[%s826 + $0x38] sm:$0xf]
      %v835 = vunpack.c.l.bf16 %v827
      %v836 = vunpack.c.l.bf16 %v828
      %v837 = vunpack.c.l.bf16 %v829
      %v838 = vunpack.c.l.bf16 %v830
      %v839 = vunpack.c.l.bf16 %v831
      %v840 = vunpack.c.l.bf16 %v832
      %v841 = vunpack.c.l.bf16 %v833
      %v842 = vunpack.c.l.bf16 %v834
      %v843 = vmul.f32 %v835, %v501
      %v844 = vmul.f32 %v836, %v501
      %v845 = vmul.f32 %v837, %v501
      %v846 = vmul.f32 %v838, %v501
      %v847 = vmul.f32 %v839, %v501
      %v848 = vmul.f32 %v840, %v501
      %v849 = vmul.f32 %v841, %v501
      %v850 = vmul.f32 %v842, %v501
      %v851 = vadd.f32 %v843, %v520
      %v852 = vadd.f32 %v844, %v520
      %v853 = vadd.f32 %v845, %v520
      %v854 = vadd.f32 %v846, %v520
      %v855 = vadd.f32 %v847, %v520
      %v856 = vadd.f32 %v848, %v520
      %v857 = vadd.f32 %v849, %v520
      %v858 = vadd.f32 %v850, %v520
      %v859 = vmax.f32 %v851, 0.0
      %v860 = vmax.f32 %v852, 0.0
      %v861 = vmax.f32 %v853, 0.0
      %v862 = vmax.f32 %v854, 0.0
      %v863 = vmax.f32 %v855, 0.0
      %v864 = vmax.f32 %v856, 0.0
      %v865 = vmax.f32 %v857, 0.0
      %v866 = vmax.f32 %v858, 0.0
      %v867 = vpack.c.bf16 %v859, %v859
      %v868 = vpack.c.bf16 %v860, %v860
      %v869 = vpack.c.bf16 %v861, %v861
      %v870 = vpack.c.bf16 %v862, %v862
      %v871 = vpack.c.bf16 %v863, %v863
      %v872 = vpack.c.bf16 %v864, %v864
      %v873 = vpack.c.bf16 %v865, %v865
      %v874 = vpack.c.bf16 %v866, %v866
      %s875 = scalar_lea.vmem [#allocation2], 216
      %876 = vst [vmem:[%s875] sm:$0xf] %v867
      %877 = vst [vmem:[%s875 + $0x8] sm:$0xf] %v868
      %878 = vst [vmem:[%s875 + $0x10] sm:$0xf] %v869
      %879 = vst [vmem:[%s875 + $0x18] sm:$0xf] %v870
      %880 = vst [vmem:[%s875 + $0x20] sm:$0xf] %v871
      %881 = vst [vmem:[%s875 + $0x28] sm:$0xf] %v872
      %882 = vst [vmem:[%s875 + $0x30] sm:$0xf] %v873
      %883 = vst [vmem:[%s875 + $0x38] sm:$0xf] %v874
      %884 = vst [vmem:[#allocation3] sm:$0xff] 0.0
      %885 = vst [vmem:[#allocation3 + $0x8] sm:$0xff] 0.0
      %886 = vst [vmem:[#allocation3 + $0x10] sm:$0xff] 0.0
      %887 = vst [vmem:[#allocation3 + $0x18] sm:$0xff] 0.0
      %888 = vst [vmem:[#allocation3 + $0x20] sm:$0xff] 0.0
      %889 = vst [vmem:[#allocation3 + $0x28] sm:$0xff] 0.0
      %890 = vst [vmem:[#allocation3 + $0x30] sm:$0xff] 0.0
      %891 = vst [vmem:[#allocation3 + $0x38] sm:$0xff] 0.0
      %v892 = vld [vmem:[#allocation2] sm:$0xf]
      %v893 = vld [vmem:[#allocation2 + $0x8] sm:$0xf]
      %v894 = vld [vmem:[#allocation2 + $0x10] sm:$0xf]
      %v895 = vld [vmem:[#allocation2 + $0x18] sm:$0xf]
      %v896 = vld [vmem:[#allocation2 + $0x20] sm:$0xf]
      %v897 = vld [vmem:[#allocation2 + $0x28] sm:$0xf]
      %v898 = vld [vmem:[#allocation2 + $0x30] sm:$0xf]
      %v899 = vld [vmem:[#allocation2 + $0x38] sm:$0xf]
      %v900 = vld [vmem:[#allocation3] sm:$0xff]
      %v901 = vld [vmem:[#allocation3 + $0x8] sm:$0xff]
      %v902 = vld [vmem:[#allocation3 + $0x10] sm:$0xff]
      %v903 = vld [vmem:[#allocation3 + $0x18] sm:$0xff]
      %v904 = vld [vmem:[#allocation3 + $0x20] sm:$0xff]
      %v905 = vld [vmem:[#allocation3 + $0x28] sm:$0xff]
      %v906 = vld [vmem:[#allocation3 + $0x30] sm:$0xff]
      %v907 = vld [vmem:[#allocation3 + $0x38] sm:$0xff]
      %v908 = vld [vmem:[%s296] sm:$0xf]
      %v909 = vld [vmem:[%s296 + $0x4] sm:$0xf]
      %v910 = vld [vmem:[%s296 + $0x8] sm:$0xf]
      %v911 = vld [vmem:[%s296 + $0xc] sm:$0xf]
      %v912 = vld [vmem:[%s296 + $0x10] sm:$0xf]
      %v913 = vld [vmem:[%s296 + $0x14] sm:$0xf]
      %v914 = vld [vmem:[%s296 + $0x18] sm:$0xf]
      %v915 = vld [vmem:[%s296 + $0x1c] sm:$0xf]
      %v916 = vld [vmem:[%s296 + $0x20] sm:$0xf]
      %v917 = vld [vmem:[%s296 + $0x24] sm:$0xf]
      %v918 = vld [vmem:[%s296 + $0x28] sm:$0xf]
      %v919 = vld [vmem:[%s296 + $0x2c] sm:$0xf]
      %v920 = vld [vmem:[%s296 + $0x30] sm:$0xf]
      %v921 = vld [vmem:[%s296 + $0x34] sm:$0xf]
      %v922 = vld [vmem:[%s296 + $0x38] sm:$0xf]
      %v923 = vld [vmem:[%s296 + $0x3c] sm:$0xf]
      %v932 = vunpack.c.l.b16 %v892
      %v933 = vunpack.c.l.b16 %v893
      %v934 = vunpack.c.l.b16 %v894
      %v935 = vunpack.c.l.b16 %v895
      %v936 = vunpack.c.l.b16 %v896
      %v937 = vunpack.c.l.b16 %v897
      %v938 = vunpack.c.l.b16 %v898
      %v939 = vunpack.c.l.b16 %v899
      %v940 = vpack.c.b16 %v933, %v932
      %v941 = vpack.c.b16 %v935, %v934
      %v942 = vpack.c.b16 %v937, %v936
      %v943 = vpack.c.b16 %v939, %v938
      %v964 = vunpack.c.l.b16 %v908
      %v965 = vunpack.c.l.b16 %v909
      %v966 = vunpack.c.l.b16 %v910
      %v967 = vunpack.c.l.b16 %v911
      %v968 = vunpack.c.l.b16 %v912
      %v969 = vunpack.c.l.b16 %v913
      %v970 = vunpack.c.l.b16 %v914
      %v971 = vunpack.c.l.b16 %v915
      %v972 = vunpack.c.l.b16 %v916
      %v973 = vunpack.c.l.b16 %v917
      %v974 = vunpack.c.l.b16 %v918
      %v975 = vunpack.c.l.b16 %v919
      %v976 = vunpack.c.l.b16 %v920
      %v977 = vunpack.c.l.b16 %v921
      %v978 = vunpack.c.l.b16 %v922
      %v979 = vunpack.c.l.b16 %v923
      %v980 = vpack.c.b16 %v965, %v964
      %v981 = vpack.c.b16 %v967, %v966
      %v982 = vpack.c.b16 %v969, %v968
      %v983 = vpack.c.b16 %v971, %v970
      %v984 = vpack.c.b16 %v973, %v972
      %v985 = vpack.c.b16 %v975, %v974
      %v986 = vpack.c.b16 %v977, %v976
      %v987 = vpack.c.b16 %v979, %v978
      %996 = vmatpush.bf16.msra.mxu0 %v987
      %997 = vmatpush.bf16.msra.mxu0 %v986
      %998 = vmatpush.bf16.msra.mxu0 %v985
      %999 = vmatpush.bf16.msra.mxu0 %v984
      %1000 = vmatpush.bf16.msra.mxu0 %v983
      %1001 = vmatpush.bf16.msra.mxu0 %v982
      %1002 = vmatpush.bf16.msra.mxu0 %v981
      %1003 = vmatpush.bf16.msra.mxu0 %v980
      %1004 = vmatmul.bf16.gmra.mxu0 %v940
      %v1005 = vpop.f32.mrf.mxu0
      %v1006 = vadd.f32 0.0, %v1005
      %v1007 = vpop.f32.mrf.mxu0
      %v1008 = vadd.f32 0.0, %v1007
      %1009 = vmatmul.bf16.gmra.mxu0 %v941
      %v1010 = vpop.f32.mrf.mxu0
      %v1011 = vadd.f32 0.0, %v1010
      %v1012 = vpop.f32.mrf.mxu0
      %v1013 = vadd.f32 0.0, %v1012
      %1014 = vmatmul.bf16.gmra.mxu0 %v942
      %v1015 = vpop.f32.mrf.mxu0
      %v1016 = vadd.f32 0.0, %v1015
      %v1017 = vpop.f32.mrf.mxu0
      %v1018 = vadd.f32 0.0, %v1017
      %1019 = vmatmul.bf16.gmra.mxu0 %v943
      %v1020 = vpop.f32.mrf.mxu0
      %v1021 = vadd.f32 0.0, %v1020
      %v1022 = vpop.f32.mrf.mxu0
      %v1023 = vadd.f32 0.0, %v1022
      %1024 = vdwg.mxu0
      %v1025 = vadd.f32 %v900, %v1006
      %v1026 = vadd.f32 %v901, %v1008
      %v1027 = vadd.f32 %v902, %v1011
      %v1028 = vadd.f32 %v903, %v1013
      %v1029 = vadd.f32 %v904, %v1016
      %v1030 = vadd.f32 %v905, %v1018
      %v1031 = vadd.f32 %v906, %v1021
      %v1032 = vadd.f32 %v907, %v1023
      %1033 = vst [vmem:[#allocation3] sm:$0xff] %v1025
      %1034 = vst [vmem:[#allocation3 + $0x8] sm:$0xff] %v1026
      %1035 = vst [vmem:[#allocation3 + $0x10] sm:$0xff] %v1027
      %1036 = vst [vmem:[#allocation3 + $0x18] sm:$0xff] %v1028
      %1037 = vst [vmem:[#allocation3 + $0x20] sm:$0xff] %v1029
      %1038 = vst [vmem:[#allocation3 + $0x28] sm:$0xff] %v1030
      %1039 = vst [vmem:[#allocation3 + $0x30] sm:$0xff] %v1031
      %1040 = vst [vmem:[#allocation3 + $0x38] sm:$0xff] %v1032
      %s1041 = scalar_lea.vmem [#allocation2], 72
      %v1042 = vld [vmem:[%s1041] sm:$0xf]
      %v1043 = vld [vmem:[%s1041 + $0x8] sm:$0xf]
      %v1044 = vld [vmem:[%s1041 + $0x10] sm:$0xf]
      %v1045 = vld [vmem:[%s1041 + $0x18] sm:$0xf]
      %v1046 = vld [vmem:[%s1041 + $0x20] sm:$0xf]
      %v1047 = vld [vmem:[%s1041 + $0x28] sm:$0xf]
      %v1048 = vld [vmem:[%s1041 + $0x30] sm:$0xf]
      %v1049 = vld [vmem:[%s1041 + $0x38] sm:$0xf]
      %v1050 = vld [vmem:[#allocation3] sm:$0xff]
      %v1051 = vld [vmem:[#allocation3 + $0x8] sm:$0xff]
      %v1052 = vld [vmem:[#allocation3 + $0x10] sm:$0xff]
      %v1053 = vld [vmem:[#allocation3 + $0x18] sm:$0xff]
      %v1054 = vld [vmem:[#allocation3 + $0x20] sm:$0xff]
      %v1055 = vld [vmem:[#allocation3 + $0x28] sm:$0xff]
      %v1056 = vld [vmem:[#allocation3 + $0x30] sm:$0xff]
      %v1057 = vld [vmem:[#allocation3 + $0x38] sm:$0xff]
      %s1058 = scalar_lea.vmem %s296, 64
      %v1059 = vld [vmem:[%s1058] sm:$0xf]
      %v1060 = vld [vmem:[%s1058 + $0x4] sm:$0xf]
      %v1061 = vld [vmem:[%s1058 + $0x8] sm:$0xf]
      %v1062 = vld [vmem:[%s1058 + $0xc] sm:$0xf]
      %v1063 = vld [vmem:[%s1058 + $0x10] sm:$0xf]
      %v1064 = vld [vmem:[%s1058 + $0x14] sm:$0xf]
      %v1065 = vld [vmem:[%s1058 + $0x18] sm:$0xf]
      %v1066 = vld [vmem:[%s1058 + $0x1c] sm:$0xf]
      %v1067 = vld [vmem:[%s1058 + $0x20] sm:$0xf]
      %v1068 = vld [vmem:[%s1058 + $0x24] sm:$0xf]
      %v1069 = vld [vmem:[%s1058 + $0x28] sm:$0xf]
      %v1070 = vld [vmem:[%s1058 + $0x2c] sm:$0xf]
      %v1071 = vld [vmem:[%s1058 + $0x30] sm:$0xf]
      %v1072 = vld [vmem:[%s1058 + $0x34] sm:$0xf]
      %v1073 = vld [vmem:[%s1058 + $0x38] sm:$0xf]
      %v1074 = vld [vmem:[%s1058 + $0x3c] sm:$0xf]
      %v1083 = vunpack.c.l.b16 %v1042
      %v1084 = vunpack.c.l.b16 %v1043
      %v1085 = vunpack.c.l.b16 %v1044
      %v1086 = vunpack.c.l.b16 %v1045
      %v1087 = vunpack.c.l.b16 %v1046
      %v1088 = vunpack.c.l.b16 %v1047
      %v1089 = vunpack.c.l.b16 %v1048
      %v1090 = vunpack.c.l.b16 %v1049
      %v1091 = vpack.c.b16 %v1084, %v1083
      %v1092 = vpack.c.b16 %v1086, %v1085
      %v1093 = vpack.c.b16 %v1088, %v1087
      %v1094 = vpack.c.b16 %v1090, %v1089
      %v1115 = vunpack.c.l.b16 %v1059
      %v1116 = vunpack.c.l.b16 %v1060
      %v1117 = vunpack.c.l.b16 %v1061
      %v1118 = vunpack.c.l.b16 %v1062
      %v1119 = vunpack.c.l.b16 %v1063
      %v1120 = vunpack.c.l.b16 %v1064
      %v1121 = vunpack.c.l.b16 %v1065
      %v1122 = vunpack.c.l.b16 %v1066
      %v1123 = vunpack.c.l.b16 %v1067
      %v1124 = vunpack.c.l.b16 %v1068
      %v1125 = vunpack.c.l.b16 %v1069
      %v1126 = vunpack.c.l.b16 %v1070
      %v1127 = vunpack.c.l.b16 %v1071
      %v1128 = vunpack.c.l.b16 %v1072
      %v1129 = vunpack.c.l.b16 %v1073
      %v1130 = vunpack.c.l.b16 %v1074
      %v1131 = vpack.c.b16 %v1116, %v1115
      %v1132 = vpack.c.b16 %v1118, %v1117
      %v1133 = vpack.c.b16 %v1120, %v1119
      %v1134 = vpack.c.b16 %v1122, %v1121
      %v1135 = vpack.c.b16 %v1124, %v1123
      %v1136 = vpack.c.b16 %v1126, %v1125
      %v1137 = vpack.c.b16 %v1128, %v1127
      %v1138 = vpack.c.b16 %v1130, %v1129
      %1147 = vmatpush.bf16.msra.mxu0 %v1138
      %1148 = vmatpush.bf16.msra.mxu0 %v1137
      %1149 = vmatpush.bf16.msra.mxu0 %v1136
      %1150 = vmatpush.bf16.msra.mxu0 %v1135
      %1151 = vmatpush.bf16.msra.mxu0 %v1134
      %1152 = vmatpush.bf16.msra.mxu0 %v1133
      %1153 = vmatpush.bf16.msra.mxu0 %v1132
      %1154 = vmatpush.bf16.msra.mxu0 %v1131
      %1155 = vmatmul.bf16.gmra.mxu0 %v1091
      %v1156 = vpop.f32.mrf.mxu0
      %v1157 = vadd.f32 0.0, %v1156
      %v1158 = vpop.f32.mrf.mxu0
      %v1159 = vadd.f32 0.0, %v1158
      %1160 = vmatmul.bf16.gmra.mxu0 %v1092
      %v1161 = vpop.f32.mrf.mxu0
      %v1162 = vadd.f32 0.0, %v1161
      %v1163 = vpop.f32.mrf.mxu0
      %v1164 = vadd.f32 0.0, %v1163
      %1165 = vmatmul.bf16.gmra.mxu0 %v1093
      %v1166 = vpop.f32.mrf.mxu0
      %v1167 = vadd.f32 0.0, %v1166
      %v1168 = vpop.f32.mrf.mxu0
      %v1169 = vadd.f32 0.0, %v1168
      %1170 = vmatmul.bf16.gmra.mxu0 %v1094
      %v1171 = vpop.f32.mrf.mxu0
      %v1172 = vadd.f32 0.0, %v1171
      %v1173 = vpop.f32.mrf.mxu0
      %v1174 = vadd.f32 0.0, %v1173
      %1175 = vdwg.mxu0
      %v1176 = vadd.f32 %v1050, %v1157
      %v1177 = vadd.f32 %v1051, %v1159
      %v1178 = vadd.f32 %v1052, %v1162
      %v1179 = vadd.f32 %v1053, %v1164
      %v1180 = vadd.f32 %v1054, %v1167
      %v1181 = vadd.f32 %v1055, %v1169
      %v1182 = vadd.f32 %v1056, %v1172
      %v1183 = vadd.f32 %v1057, %v1174
      %1184 = vst [vmem:[#allocation3] sm:$0xff] %v1176
      %1185 = vst [vmem:[#allocation3 + $0x8] sm:$0xff] %v1177
      %1186 = vst [vmem:[#allocation3 + $0x10] sm:$0xff] %v1178
      %1187 = vst [vmem:[#allocation3 + $0x18] sm:$0xff] %v1179
      %1188 = vst [vmem:[#allocation3 + $0x20] sm:$0xff] %v1180
      %1189 = vst [vmem:[#allocation3 + $0x28] sm:$0xff] %v1181
      %1190 = vst [vmem:[#allocation3 + $0x30] sm:$0xff] %v1182
      %1191 = vst [vmem:[#allocation3 + $0x38] sm:$0xff] %v1183
      %v1192 = vld [vmem:[#allocation2] sm:$0xf]
      %v1193 = vld [vmem:[#allocation2 + $0x4] sm:$0x1]
      %v1194 = vld [vmem:[#allocation2 + $0x8] sm:$0xf]
      %v1195 = vld [vmem:[#allocation2 + $0xc] sm:$0x1]
      %v1196 = vld [vmem:[#allocation2 + $0x10] sm:$0xf]
      %v1197 = vld [vmem:[#allocation2 + $0x14] sm:$0x1]
      %v1198 = vld [vmem:[#allocation2 + $0x18] sm:$0xf]
      %v1199 = vld [vmem:[#allocation2 + $0x1c] sm:$0x1]
      %v1200 = vld [vmem:[#allocation2 + $0x20] sm:$0xf]
      %v1201 = vld [vmem:[#allocation2 + $0x24] sm:$0x1]
      %v1202 = vld [vmem:[#allocation2 + $0x28] sm:$0xf]
      %v1203 = vld [vmem:[#allocation2 + $0x2c] sm:$0x1]
      %v1204 = vld [vmem:[#allocation2 + $0x30] sm:$0xf]
      %v1205 = vld [vmem:[#allocation2 + $0x34] sm:$0x1]
      %v1206 = vld [vmem:[#allocation2 + $0x38] sm:$0xf]
      %v1207 = vld [vmem:[#allocation2 + $0x3c] sm:$0x1]
      %vm1208 = vsmask.f32 3328
      %vm1209 = vsmask.f32 7440
      %vm1210 = vmor %vm1208, %vm1209
      %v1212 = vshrl.u32 %v1192, 16
      %v1214 = vrot.slane %v1212, 4
      %v1215 = vshll.u32 %v1192, 16
      %v1217 = vrot.slane %v1215, 5
      %v1218 = vor.u32 %v1214, %v1217
      %v1219 = vrot.slane %v1218, 4
      %v1221 = vshll.u32 %v1193, 16
      %v1223 = vrot.slane %v1221, 5
      %v1224 = vsel %vm1210, %v1219, %v1223
      %v1226 = vshrl.u32 %v1194, 16
      %v1228 = vrot.slane %v1226, 4
      %v1229 = vshll.u32 %v1194, 16
      %v1231 = vrot.slane %v1229, 5
      %v1232 = vor.u32 %v1228, %v1231
      %v1233 = vrot.slane %v1232, 4
      %v1235 = vshll.u32 %v1195, 16
      %v1237 = vrot.slane %v1235, 5
      %v1238 = vsel %vm1210, %v1233, %v1237
      %v1240 = vshrl.u32 %v1196, 16
      %v1242 = vrot.slane %v1240, 4
      %v1243 = vshll.u32 %v1196, 16
      %v1245 = vrot.slane %v1243, 5
      %v1246 = vor.u32 %v1242, %v1245
      %v1247 = vrot.slane %v1246, 4
      %v1249 = vshll.u32 %v1197, 16
      %v1251 = vrot.slane %v1249, 5
      %v1252 = vsel %vm1210, %v1247, %v1251
      %v1254 = vshrl.u32 %v1198, 16
      %v1256 = vrot.slane %v1254, 4
      %v1257 = vshll.u32 %v1198, 16
      %v1259 = vrot.slane %v1257, 5
      %v1260 = vor.u32 %v1256, %v1259
      %v1261 = vrot.slane %v1260, 4
      %v1263 = vshll.u32 %v1199, 16
      %v1265 = vrot.slane %v1263, 5
      %v1266 = vsel %vm1210, %v1261, %v1265
      %v1268 = vshrl.u32 %v1200, 16
      %v1270 = vrot.slane %v1268, 4
      %v1271 = vshll.u32 %v1200, 16
      %v1273 = vrot.slane %v1271, 5
      %v1274 = vor.u32 %v1270, %v1273
      %v1275 = vrot.slane %v1274, 4
      %v1277 = vshll.u32 %v1201, 16
      %v1279 = vrot.slane %v1277, 5
      %v1280 = vsel %vm1210, %v1275, %v1279
      %v1282 = vshrl.u32 %v1202, 16
      %v1284 = vrot.slane %v1282, 4
      %v1285 = vshll.u32 %v1202, 16
      %v1287 = vrot.slane %v1285, 5
      %v1288 = vor.u32 %v1284, %v1287
      %v1289 = vrot.slane %v1288, 4
      %v1291 = vshll.u32 %v1203, 16
      %v1293 = vrot.slane %v1291, 5
      %v1294 = vsel %vm1210, %v1289, %v1293
      %v1296 = vshrl.u32 %v1204, 16
      %v1298 = vrot.slane %v1296, 4
      %v1299 = vshll.u32 %v1204, 16
      %v1301 = vrot.slane %v1299, 5
      %v1302 = vor.u32 %v1298, %v1301
      %v1303 = vrot.slane %v1302, 4
      %v1305 = vshll.u32 %v1205, 16
      %v1307 = vrot.slane %v1305, 5
      %v1308 = vsel %vm1210, %v1303, %v1307
      %v1310 = vshrl.u32 %v1206, 16
      %v1312 = vrot.slane %v1310, 4
      %v1313 = vshll.u32 %v1206, 16
      %v1315 = vrot.slane %v1313, 5
      %v1316 = vor.u32 %v1312, %v1315
      %v1317 = vrot.slane %v1316, 4
      %v1319 = vshll.u32 %v1207, 16
      %v1321 = vrot.slane %v1319, 5
      %v1322 = vsel %vm1210, %v1317, %v1321
      %v1323 = vld [vmem:[#allocation3] sm:$0xff]
      %v1324 = vld [vmem:[#allocation3 + $0x8] sm:$0xff]
      %v1325 = vld [vmem:[#allocation3 + $0x10] sm:$0xff]
      %v1326 = vld [vmem:[#allocation3 + $0x18] sm:$0xff]
      %v1327 = vld [vmem:[#allocation3 + $0x20] sm:$0xff]
      %v1328 = vld [vmem:[#allocation3 + $0x28] sm:$0xff]
      %v1329 = vld [vmem:[#allocation3 + $0x30] sm:$0xff]
      %v1330 = vld [vmem:[#allocation3 + $0x38] sm:$0xff]
      %s1331 = scalar_lea.vmem %s296, 128
      %v1332 = vld [vmem:[%s1331] sm:$0xf]
      %v1333 = vld [vmem:[%s1331 + $0x4] sm:$0xf]
      %v1334 = vld [vmem:[%s1331 + $0x8] sm:$0xf]
      %v1335 = vld [vmem:[%s1331 + $0xc] sm:$0xf]
      %v1336 = vld [vmem:[%s1331 + $0x10] sm:$0xf]
      %v1337 = vld [vmem:[%s1331 + $0x14] sm:$0xf]
      %v1338 = vld [vmem:[%s1331 + $0x18] sm:$0xf]
      %v1339 = vld [vmem:[%s1331 + $0x1c] sm:$0xf]
      %v1340 = vld [vmem:[%s1331 + $0x20] sm:$0xf]
      %v1341 = vld [vmem:[%s1331 + $0x24] sm:$0xf]
      %v1342 = vld [vmem:[%s1331 + $0x28] sm:$0xf]
      %v1343 = vld [vmem:[%s1331 + $0x2c] sm:$0xf]
      %v1344 = vld [vmem:[%s1331 + $0x30] sm:$0xf]
      %v1345 = vld [vmem:[%s1331 + $0x34] sm:$0xf]
      %v1346 = vld [vmem:[%s1331 + $0x38] sm:$0xf]
      %v1347 = vld [vmem:[%s1331 + $0x3c] sm:$0xf]
      %v1348 = vunpack.c.l.b16 %v1224
      %v1349 = vunpack.c.l.b16 %v1238
      %v1350 = vunpack.c.l.b16 %v1252
      %v1351 = vunpack.c.l.b16 %v1266
      %v1352 = vunpack.c.l.b16 %v1280
      %v1353 = vunpack.c.l.b16 %v1294
      %v1354 = vunpack.c.l.b16 %v1308
      %v1355 = vunpack.c.l.b16 %v1322
      %v1356 = vpack.c.b16 %v1349, %v1348
      %v1357 = vpack.c.b16 %v1351, %v1350
      %v1358 = vpack.c.b16 %v1353, %v1352
      %v1359 = vpack.c.b16 %v1355, %v1354
      %v1380 = vunpack.c.l.b16 %v1332
      %v1381 = vunpack.c.l.b16 %v1333
      %v1382 = vunpack.c.l.b16 %v1334
      %v1383 = vunpack.c.l.b16 %v1335
      %v1384 = vunpack.c.l.b16 %v1336
      %v1385 = vunpack.c.l.b16 %v1337
      %v1386 = vunpack.c.l.b16 %v1338
      %v1387 = vunpack.c.l.b16 %v1339
      %v1388 = vunpack.c.l.b16 %v1340
      %v1389 = vunpack.c.l.b16 %v1341
      %v1390 = vunpack.c.l.b16 %v1342
      %v1391 = vunpack.c.l.b16 %v1343
      %v1392 = vunpack.c.l.b16 %v1344
      %v1393 = vunpack.c.l.b16 %v1345
      %v1394 = vunpack.c.l.b16 %v1346
      %v1395 = vunpack.c.l.b16 %v1347
      %v1396 = vpack.c.b16 %v1381, %v1380
      %v1397 = vpack.c.b16 %v1383, %v1382
      %v1398 = vpack.c.b16 %v1385, %v1384
      %v1399 = vpack.c.b16 %v1387, %v1386
      %v1400 = vpack.c.b16 %v1389, %v1388
      %v1401 = vpack.c.b16 %v1391, %v1390
      %v1402 = vpack.c.b16 %v1393, %v1392
      %v1403 = vpack.c.b16 %v1395, %v1394
      %1412 = vmatpush.bf16.msra.mxu0 %v1403
      %1413 = vmatpush.bf16.msra.mxu0 %v1402
      %1414 = vmatpush.bf16.msra.mxu0 %v1401
      %1415 = vmatpush.bf16.msra.mxu0 %v1400
      %1416 = vmatpush.bf16.msra.mxu0 %v1399
      %1417 = vmatpush.bf16.msra.mxu0 %v1398
      %1418 = vmatpush.bf16.msra.mxu0 %v1397
      %1419 = vmatpush.bf16.msra.mxu0 %v1396
      %1420 = vmatmul.bf16.gmra.mxu0 %v1356
      %v1421 = vpop.f32.mrf.mxu0
      %v1422 = vadd.f32 0.0, %v1421
      %v1423 = vpop.f32.mrf.mxu0
      %v1424 = vadd.f32 0.0, %v1423
      %1425 = vmatmul.bf16.gmra.mxu0 %v1357
      %v1426 = vpop.f32.mrf.mxu0
      %v1427 = vadd.f32 0.0, %v1426
      %v1428 = vpop.f32.mrf.mxu0
      %v1429 = vadd.f32 0.0, %v1428
      %1430 = vmatmul.bf16.gmra.mxu0 %v1358
      %v1431 = vpop.f32.mrf.mxu0
      %v1432 = vadd.f32 0.0, %v1431
      %v1433 = vpop.f32.mrf.mxu0
      %v1434 = vadd.f32 0.0, %v1433
      %1435 = vmatmul.bf16.gmra.mxu0 %v1359
      %v1436 = vpop.f32.mrf.mxu0
      %v1437 = vadd.f32 0.0, %v1436
      %v1438 = vpop.f32.mrf.mxu0
      %v1439 = vadd.f32 0.0, %v1438
      %1440 = vdwg.mxu0
      %v1441 = vadd.f32 %v1323, %v1422
      %v1442 = vadd.f32 %v1324, %v1424
      %v1443 = vadd.f32 %v1325, %v1427
      %v1444 = vadd.f32 %v1326, %v1429
      %v1445 = vadd.f32 %v1327, %v1432
      %v1446 = vadd.f32 %v1328, %v1434
      %v1447 = vadd.f32 %v1329, %v1437
      %v1448 = vadd.f32 %v1330, %v1439
      %1449 = vst [vmem:[#allocation3] sm:$0xff] %v1441
      %1450 = vst [vmem:[#allocation3 + $0x8] sm:$0xff] %v1442
      %1451 = vst [vmem:[#allocation3 + $0x10] sm:$0xff] %v1443
      %1452 = vst [vmem:[#allocation3 + $0x18] sm:$0xff] %v1444
      %1453 = vst [vmem:[#allocation3 + $0x20] sm:$0xff] %v1445
      %1454 = vst [vmem:[#allocation3 + $0x28] sm:$0xff] %v1446
      %1455 = vst [vmem:[#allocation3 + $0x30] sm:$0xff] %v1447
      %1456 = vst [vmem:[#allocation3 + $0x38] sm:$0xff] %v1448
      %v1457 = vld [vmem:[%s777] sm:$0xf]
      %v1458 = vld [vmem:[%s777 + $0x8] sm:$0xf]
      %v1459 = vld [vmem:[%s777 + $0x10] sm:$0xf]
      %v1460 = vld [vmem:[%s777 + $0x18] sm:$0xf]
      %v1461 = vld [vmem:[%s777 + $0x20] sm:$0xf]
      %v1462 = vld [vmem:[%s777 + $0x28] sm:$0xf]
      %v1463 = vld [vmem:[%s777 + $0x30] sm:$0xf]
      %v1464 = vld [vmem:[%s777 + $0x38] sm:$0xf]
      %v1465 = vld [vmem:[#allocation3] sm:$0xff]
      %v1466 = vld [vmem:[#allocation3 + $0x8] sm:$0xff]
      %v1467 = vld [vmem:[#allocation3 + $0x10] sm:$0xff]
      %v1468 = vld [vmem:[#allocation3 + $0x18] sm:$0xff]
      %v1469 = vld [vmem:[#allocation3 + $0x20] sm:$0xff]
      %v1470 = vld [vmem:[#allocation3 + $0x28] sm:$0xff]
      %v1471 = vld [vmem:[#allocation3 + $0x30] sm:$0xff]
      %v1472 = vld [vmem:[#allocation3 + $0x38] sm:$0xff]
      %s1473 = scalar_lea.vmem %s296, 192
      %v1474 = vld [vmem:[%s1473] sm:$0xf]
      %v1475 = vld [vmem:[%s1473 + $0x4] sm:$0xf]
      %v1476 = vld [vmem:[%s1473 + $0x8] sm:$0xf]
      %v1477 = vld [vmem:[%s1473 + $0xc] sm:$0xf]
      %v1478 = vld [vmem:[%s1473 + $0x10] sm:$0xf]
      %v1479 = vld [vmem:[%s1473 + $0x14] sm:$0xf]
      %v1480 = vld [vmem:[%s1473 + $0x18] sm:$0xf]
      %v1481 = vld [vmem:[%s1473 + $0x1c] sm:$0xf]
      %v1482 = vld [vmem:[%s1473 + $0x20] sm:$0xf]
      %v1483 = vld [vmem:[%s1473 + $0x24] sm:$0xf]
      %v1484 = vld [vmem:[%s1473 + $0x28] sm:$0xf]
      %v1485 = vld [vmem:[%s1473 + $0x2c] sm:$0xf]
      %v1486 = vld [vmem:[%s1473 + $0x30] sm:$0xf]
      %v1487 = vld [vmem:[%s1473 + $0x34] sm:$0xf]
      %v1488 = vld [vmem:[%s1473 + $0x38] sm:$0xf]
      %v1489 = vld [vmem:[%s1473 + $0x3c] sm:$0xf]
      %v1498 = vunpack.c.l.b16 %v1457
      %v1499 = vunpack.c.l.b16 %v1458
      %v1500 = vunpack.c.l.b16 %v1459
      %v1501 = vunpack.c.l.b16 %v1460
      %v1502 = vunpack.c.l.b16 %v1461
      %v1503 = vunpack.c.l.b16 %v1462
      %v1504 = vunpack.c.l.b16 %v1463
      %v1505 = vunpack.c.l.b16 %v1464
      %v1506 = vpack.c.b16 %v1499, %v1498
      %v1507 = vpack.c.b16 %v1501, %v1500
      %v1508 = vpack.c.b16 %v1503, %v1502
      %v1509 = vpack.c.b16 %v1505, %v1504
      %v1530 = vunpack.c.l.b16 %v1474
      %v1531 = vunpack.c.l.b16 %v1475
      %v1532 = vunpack.c.l.b16 %v1476
      %v1533 = vunpack.c.l.b16 %v1477
      %v1534 = vunpack.c.l.b16 %v1478
      %v1535 = vunpack.c.l.b16 %v1479
      %v1536 = vunpack.c.l.b16 %v1480
      %v1537 = vunpack.c.l.b16 %v1481
      %v1538 = vunpack.c.l.b16 %v1482
      %v1539 = vunpack.c.l.b16 %v1483
      %v1540 = vunpack.c.l.b16 %v1484
      %v1541 = vunpack.c.l.b16 %v1485
      %v1542 = vunpack.c.l.b16 %v1486
      %v1543 = vunpack.c.l.b16 %v1487
      %v1544 = vunpack.c.l.b16 %v1488
      %v1545 = vunpack.c.l.b16 %v1489
      %v1546 = vpack.c.b16 %v1531, %v1530
      %v1547 = vpack.c.b16 %v1533, %v1532
      %v1548 = vpack.c.b16 %v1535, %v1534
      %v1549 = vpack.c.b16 %v1537, %v1536
      %v1550 = vpack.c.b16 %v1539, %v1538
      %v1551 = vpack.c.b16 %v1541, %v1540
      %v1552 = vpack.c.b16 %v1543, %v1542
      %v1553 = vpack.c.b16 %v1545, %v1544
      %1562 = vmatpush.bf16.msra.mxu0 %v1553
      %1563 = vmatpush.bf16.msra.mxu0 %v1552
      %1564 = vmatpush.bf16.msra.mxu0 %v1551
      %1565 = vmatpush.bf16.msra.mxu0 %v1550
      %1566 = vmatpush.bf16.msra.mxu0 %v1549
      %1567 = vmatpush.bf16.msra.mxu0 %v1548
      %1568 = vmatpush.bf16.msra.mxu0 %v1547
      %1569 = vmatpush.bf16.msra.mxu0 %v1546
      %1570 = vmatmul.bf16.gmra.mxu0 %v1506
      %v1571 = vpop.f32.mrf.mxu0
      %v1572 = vadd.f32 0.0, %v1571
      %v1573 = vpop.f32.mrf.mxu0
      %v1574 = vadd.f32 0.0, %v1573
      %1575 = vmatmul.bf16.gmra.mxu0 %v1507
      %v1576 = vpop.f32.mrf.mxu0
      %v1577 = vadd.f32 0.0, %v1576
      %v1578 = vpop.f32.mrf.mxu0
      %v1579 = vadd.f32 0.0, %v1578
      %1580 = vmatmul.bf16.gmra.mxu0 %v1508
      %v1581 = vpop.f32.mrf.mxu0
      %v1582 = vadd.f32 0.0, %v1581
      %v1583 = vpop.f32.mrf.mxu0
      %v1584 = vadd.f32 0.0, %v1583
      %1585 = vmatmul.bf16.gmra.mxu0 %v1509
      %v1586 = vpop.f32.mrf.mxu0
      %v1587 = vadd.f32 0.0, %v1586
      %v1588 = vpop.f32.mrf.mxu0
      %v1589 = vadd.f32 0.0, %v1588
      %1590 = vdwg.mxu0
      %v1591 = vadd.f32 %v1465, %v1572
      %v1592 = vadd.f32 %v1466, %v1574
      %v1593 = vadd.f32 %v1467, %v1577
      %v1594 = vadd.f32 %v1468, %v1579
      %v1595 = vadd.f32 %v1469, %v1582
      %v1596 = vadd.f32 %v1470, %v1584
      %v1597 = vadd.f32 %v1471, %v1587
      %v1598 = vadd.f32 %v1472, %v1589
      %1599 = vst [vmem:[#allocation3] sm:$0xff] %v1591
      %1600 = vst [vmem:[#allocation3 + $0x8] sm:$0xff] %v1592
      %1601 = vst [vmem:[#allocation3 + $0x10] sm:$0xff] %v1593
      %1602 = vst [vmem:[#allocation3 + $0x18] sm:$0xff] %v1594
      %1603 = vst [vmem:[#allocation3 + $0x20] sm:$0xff] %v1595
      %1604 = vst [vmem:[#allocation3 + $0x28] sm:$0xff] %v1596
      %1605 = vst [vmem:[#allocation3 + $0x30] sm:$0xff] %v1597
      %1606 = vst [vmem:[#allocation3 + $0x38] sm:$0xff] %v1598
      %v1607 = vld [vmem:[%s875] sm:$0xf]
      %v1608 = vld [vmem:[%s875 + $0x8] sm:$0xf]
      %v1609 = vld [vmem:[%s875 + $0x10] sm:$0xf]
      %v1610 = vld [vmem:[%s875 + $0x18] sm:$0xf]
      %v1611 = vld [vmem:[%s875 + $0x20] sm:$0xf]
      %v1612 = vld [vmem:[%s875 + $0x28] sm:$0xf]
      %v1613 = vld [vmem:[%s875 + $0x30] sm:$0xf]
      %v1614 = vld [vmem:[%s875 + $0x38] sm:$0xf]
      %v1615 = vld [vmem:[#allocation3] sm:$0xff]
      %v1616 = vld [vmem:[#allocation3 + $0x8] sm:$0xff]
      %v1617 = vld [vmem:[#allocation3 + $0x10] sm:$0xff]
      %v1618 = vld [vmem:[#allocation3 + $0x18] sm:$0xff]
      %v1619 = vld [vmem:[#allocation3 + $0x20] sm:$0xff]
      %v1620 = vld [vmem:[#allocation3 + $0x28] sm:$0xff]
      %v1621 = vld [vmem:[#allocation3 + $0x30] sm:$0xff]
      %v1622 = vld [vmem:[#allocation3 + $0x38] sm:$0xff]
      %s1623 = scalar_lea.vmem %s296, 256
      %v1624 = vld [vmem:[%s1623] sm:$0xf]
      %v1625 = vld [vmem:[%s1623 + $0x4] sm:$0xf]
      %v1626 = vld [vmem:[%s1623 + $0x8] sm:$0xf]
      %v1627 = vld [vmem:[%s1623 + $0xc] sm:$0xf]
      %v1628 = vld [vmem:[%s1623 + $0x10] sm:$0xf]
      %v1629 = vld [vmem:[%s1623 + $0x14] sm:$0xf]
      %v1630 = vld [vmem:[%s1623 + $0x18] sm:$0xf]
      %v1631 = vld [vmem:[%s1623 + $0x1c] sm:$0xf]
      %v1632 = vld [vmem:[%s1623 + $0x20] sm:$0xf]
      %v1633 = vld [vmem:[%s1623 + $0x24] sm:$0xf]
      %v1634 = vld [vmem:[%s1623 + $0x28] sm:$0xf]
      %v1635 = vld [vmem:[%s1623 + $0x2c] sm:$0xf]
      %v1636 = vld [vmem:[%s1623 + $0x30] sm:$0xf]
      %v1637 = vld [vmem:[%s1623 + $0x34] sm:$0xf]
      %v1638 = vld [vmem:[%s1623 + $0x38] sm:$0xf]
      %v1639 = vld [vmem:[%s1623 + $0x3c] sm:$0xf]
      %v1648 = vunpack.c.l.b16 %v1607
      %v1649 = vunpack.c.l.b16 %v1608
      %v1650 = vunpack.c.l.b16 %v1609
      %v1651 = vunpack.c.l.b16 %v1610
      %v1652 = vunpack.c.l.b16 %v1611
      %v1653 = vunpack.c.l.b16 %v1612
      %v1654 = vunpack.c.l.b16 %v1613
      %v1655 = vunpack.c.l.b16 %v1614
      %v1656 = vpack.c.b16 %v1649, %v1648
      %v1657 = vpack.c.b16 %v1651, %v1650
      %v1658 = vpack.c.b16 %v1653, %v1652
      %v1659 = vpack.c.b16 %v1655, %v1654
      %v1680 = vunpack.c.l.b16 %v1624
      %v1681 = vunpack.c.l.b16 %v1625
      %v1682 = vunpack.c.l.b16 %v1626
      %v1683 = vunpack.c.l.b16 %v1627
      %v1684 = vunpack.c.l.b16 %v1628
      %v1685 = vunpack.c.l.b16 %v1629
      %v1686 = vunpack.c.l.b16 %v1630
      %v1687 = vunpack.c.l.b16 %v1631
      %v1688 = vunpack.c.l.b16 %v1632
      %v1689 = vunpack.c.l.b16 %v1633
      %v1690 = vunpack.c.l.b16 %v1634
      %v1691 = vunpack.c.l.b16 %v1635
      %v1692 = vunpack.c.l.b16 %v1636
      %v1693 = vunpack.c.l.b16 %v1637
      %v1694 = vunpack.c.l.b16 %v1638
      %v1695 = vunpack.c.l.b16 %v1639
      %v1696 = vpack.c.b16 %v1681, %v1680
      %v1697 = vpack.c.b16 %v1683, %v1682
      %v1698 = vpack.c.b16 %v1685, %v1684
      %v1699 = vpack.c.b16 %v1687, %v1686
      %v1700 = vpack.c.b16 %v1689, %v1688
      %v1701 = vpack.c.b16 %v1691, %v1690
      %v1702 = vpack.c.b16 %v1693, %v1692
      %v1703 = vpack.c.b16 %v1695, %v1694
      %1712 = vmatpush.bf16.msra.mxu0 %v1703
      %1713 = vmatpush.bf16.msra.mxu0 %v1702
      %1714 = vmatpush.bf16.msra.mxu0 %v1701
      %1715 = vmatpush.bf16.msra.mxu0 %v1700
      %1716 = vmatpush.bf16.msra.mxu0 %v1699
      %1717 = vmatpush.bf16.msra.mxu0 %v1698
      %1718 = vmatpush.bf16.msra.mxu0 %v1697
      %1719 = vmatpush.bf16.msra.mxu0 %v1696
      %1720 = vmatmul.bf16.gmra.mxu0 %v1656
      %v1721 = vpop.f32.mrf.mxu0
      %v1722 = vadd.f32 0.0, %v1721
      %v1723 = vpop.f32.mrf.mxu0
      %v1724 = vadd.f32 0.0, %v1723
      %1725 = vmatmul.bf16.gmra.mxu0 %v1657
      %v1726 = vpop.f32.mrf.mxu0
      %v1727 = vadd.f32 0.0, %v1726
      %v1728 = vpop.f32.mrf.mxu0
      %v1729 = vadd.f32 0.0, %v1728
      %1730 = vmatmul.bf16.gmra.mxu0 %v1658
      %v1731 = vpop.f32.mrf.mxu0
      %v1732 = vadd.f32 0.0, %v1731
      %v1733 = vpop.f32.mrf.mxu0
      %v1734 = vadd.f32 0.0, %v1733
      %1735 = vmatmul.bf16.gmra.mxu0 %v1659
      %v1736 = vpop.f32.mrf.mxu0
      %v1737 = vadd.f32 0.0, %v1736
      %v1738 = vpop.f32.mrf.mxu0
      %v1739 = vadd.f32 0.0, %v1738
      %1740 = vdwg.mxu0
      %v1741 = vadd.f32 %v1615, %v1722
      %v1742 = vadd.f32 %v1616, %v1724
      %v1743 = vadd.f32 %v1617, %v1727
      %v1744 = vadd.f32 %v1618, %v1729
      %v1745 = vadd.f32 %v1619, %v1732
      %v1746 = vadd.f32 %v1620, %v1734
      %v1747 = vadd.f32 %v1621, %v1737
      %v1748 = vadd.f32 %v1622, %v1739
      %1749 = vst [vmem:[#allocation3] sm:$0xff] %v1741
      %1750 = vst [vmem:[#allocation3 + $0x8] sm:$0xff] %v1742
      %1751 = vst [vmem:[#allocation3 + $0x10] sm:$0xff] %v1743
      %1752 = vst [vmem:[#allocation3 + $0x18] sm:$0xff] %v1744
      %1753 = vst [vmem:[#allocation3 + $0x20] sm:$0xff] %v1745
      %1754 = vst [vmem:[#allocation3 + $0x28] sm:$0xff] %v1746
      %1755 = vst [vmem:[#allocation3 + $0x30] sm:$0xff] %v1747
      %1756 = vst [vmem:[#allocation3 + $0x38] sm:$0xff] %v1748
      %v1757 = vld [vmem:[%s777] sm:$0xf]
      %v1758 = vld [vmem:[%s777 + $0x4] sm:$0x1]
      %v1759 = vld [vmem:[%s777 + $0x8] sm:$0xf]
      %v1760 = vld [vmem:[%s777 + $0xc] sm:$0x1]
      %v1761 = vld [vmem:[%s777 + $0x10] sm:$0xf]
      %v1762 = vld [vmem:[%s777 + $0x14] sm:$0x1]
      %v1763 = vld [vmem:[%s777 + $0x18] sm:$0xf]
      %v1764 = vld [vmem:[%s777 + $0x1c] sm:$0x1]
      %v1765 = vld [vmem:[%s777 + $0x20] sm:$0xf]
      %v1766 = vld [vmem:[%s777 + $0x24] sm:$0x1]
      %v1767 = vld [vmem:[%s777 + $0x28] sm:$0xf]
      %v1768 = vld [vmem:[%s777 + $0x2c] sm:$0x1]
      %v1769 = vld [vmem:[%s777 + $0x30] sm:$0xf]
      %v1770 = vld [vmem:[%s777 + $0x34] sm:$0x1]
      %v1771 = vld [vmem:[%s777 + $0x38] sm:$0xf]
      %v1772 = vld [vmem:[%s777 + $0x3c] sm:$0x1]
      %v1774 = vshrl.u32 %v1757, 16
      %v1776 = vrot.slane %v1774, 4
      %v1777 = vshll.u32 %v1757, 16
      %v1779 = vrot.slane %v1777, 5
      %v1780 = vor.u32 %v1776, %v1779
      %v1781 = vrot.slane %v1780, 4
      %v1783 = vshll.u32 %v1758, 16
      %v1785 = vrot.slane %v1783, 5
      %v1786 = vsel %vm1210, %v1781, %v1785
      %v1788 = vshrl.u32 %v1759, 16
      %v1790 = vrot.slane %v1788, 4
      %v1791 = vshll.u32 %v1759, 16
      %v1793 = vrot.slane %v1791, 5
      %v1794 = vor.u32 %v1790, %v1793
      %v1795 = vrot.slane %v1794, 4
      %v1797 = vshll.u32 %v1760, 16
      %v1799 = vrot.slane %v1797, 5
      %v1800 = vsel %vm1210, %v1795, %v1799
      %v1802 = vshrl.u32 %v1761, 16
      %v1804 = vrot.slane %v1802, 4
      %v1805 = vshll.u32 %v1761, 16
      %v1807 = vrot.slane %v1805, 5
      %v1808 = vor.u32 %v1804, %v1807
      %v1809 = vrot.slane %v1808, 4
      %v1811 = vshll.u32 %v1762, 16
      %v1813 = vrot.slane %v1811, 5
      %v1814 = vsel %vm1210, %v1809, %v1813
      %v1816 = vshrl.u32 %v1763, 16
      %v1818 = vrot.slane %v1816, 4
      %v1819 = vshll.u32 %v1763, 16
      %v1821 = vrot.slane %v1819, 5
      %v1822 = vor.u32 %v1818, %v1821
      %v1823 = vrot.slane %v1822, 4
      %v1825 = vshll.u32 %v1764, 16
      %v1827 = vrot.slane %v1825, 5
      %v1828 = vsel %vm1210, %v1823, %v1827
      %v1830 = vshrl.u32 %v1765, 16
      %v1832 = vrot.slane %v1830, 4
      %v1833 = vshll.u32 %v1765, 16
      %v1835 = vrot.slane %v1833, 5
      %v1836 = vor.u32 %v1832, %v1835
      %v1837 = vrot.slane %v1836, 4
      %v1839 = vshll.u32 %v1766, 16
      %v1841 = vrot.slane %v1839, 5
      %v1842 = vsel %vm1210, %v1837, %v1841
      %v1844 = vshrl.u32 %v1767, 16
      %v1846 = vrot.slane %v1844, 4
      %v1847 = vshll.u32 %v1767, 16
      %v1849 = vrot.slane %v1847, 5
      %v1850 = vor.u32 %v1846, %v1849
      %v1851 = vrot.slane %v1850, 4
      %v1853 = vshll.u32 %v1768, 16
      %v1855 = vrot.slane %v1853, 5
      %v1856 = vsel %vm1210, %v1851, %v1855
      %v1858 = vshrl.u32 %v1769, 16
      %v1860 = vrot.slane %v1858, 4
      %v1861 = vshll.u32 %v1769, 16
      %v1863 = vrot.slane %v1861, 5
      %v1864 = vor.u32 %v1860, %v1863
      %v1865 = vrot.slane %v1864, 4
      %v1867 = vshll.u32 %v1770, 16
      %v1869 = vrot.slane %v1867, 5
      %v1870 = vsel %vm1210, %v1865, %v1869
      %v1872 = vshrl.u32 %v1771, 16
      %v1874 = vrot.slane %v1872, 4
      %v1875 = vshll.u32 %v1771, 16
      %v1877 = vrot.slane %v1875, 5
      %v1878 = vor.u32 %v1874, %v1877
      %v1879 = vrot.slane %v1878, 4
      %v1881 = vshll.u32 %v1772, 16
      %v1883 = vrot.slane %v1881, 5
      %v1884 = vsel %vm1210, %v1879, %v1883
      %v1885 = vld [vmem:[#allocation3] sm:$0xff]
      %v1886 = vld [vmem:[#allocation3 + $0x8] sm:$0xff]
      %v1887 = vld [vmem:[#allocation3 + $0x10] sm:$0xff]
      %v1888 = vld [vmem:[#allocation3 + $0x18] sm:$0xff]
      %v1889 = vld [vmem:[#allocation3 + $0x20] sm:$0xff]
      %v1890 = vld [vmem:[#allocation3 + $0x28] sm:$0xff]
      %v1891 = vld [vmem:[#allocation3 + $0x30] sm:$0xff]
      %v1892 = vld [vmem:[#allocation3 + $0x38] sm:$0xff]
      %s1893 = scalar_lea.vmem %s296, 320
      %v1894 = vld [vmem:[%s1893] sm:$0xf]
      %v1895 = vld [vmem:[%s1893 + $0x4] sm:$0xf]
      %v1896 = vld [vmem:[%s1893 + $0x8] sm:$0xf]
      %v1897 = vld [vmem:[%s1893 + $0xc] sm:$0xf]
      %v1898 = vld [vmem:[%s1893 + $0x10] sm:$0xf]
      %v1899 = vld [vmem:[%s1893 + $0x14] sm:$0xf]
      %v1900 = vld [vmem:[%s1893 + $0x18] sm:$0xf]
      %v1901 = vld [vmem:[%s1893 + $0x1c] sm:$0xf]
      %v1902 = vld [vmem:[%s1893 + $0x20] sm:$0xf]
      %v1903 = vld [vmem:[%s1893 + $0x24] sm:$0xf]
      %v1904 = vld [vmem:[%s1893 + $0x28] sm:$0xf]
      %v1905 = vld [vmem:[%s1893 + $0x2c] sm:$0xf]
      %v1906 = vld [vmem:[%s1893 + $0x30] sm:$0xf]
      %v1907 = vld [vmem:[%s1893 + $0x34] sm:$0xf]
      %v1908 = vld [vmem:[%s1893 + $0x38] sm:$0xf]
      %v1909 = vld [vmem:[%s1893 + $0x3c] sm:$0xf]
      %v1910 = vunpack.c.l.b16 %v1786
      %v1911 = vunpack.c.l.b16 %v1800
      %v1912 = vunpack.c.l.b16 %v1814
      %v1913 = vunpack.c.l.b16 %v1828
      %v1914 = vunpack.c.l.b16 %v1842
      %v1915 = vunpack.c.l.b16 %v1856
      %v1916 = vunpack.c.l.b16 %v1870
      %v1917 = vunpack.c.l.b16 %v1884
      %v1918 = vpack.c.b16 %v1911, %v1910
      %v1919 = vpack.c.b16 %v1913, %v1912
      %v1920 = vpack.c.b16 %v1915, %v1914
      %v1921 = vpack.c.b16 %v1917, %v1916
      %v1942 = vunpack.c.l.b16 %v1894
      %v1943 = vunpack.c.l.b16 %v1895
      %v1944 = vunpack.c.l.b16 %v1896
      %v1945 = vunpack.c.l.b16 %v1897
      %v1946 = vunpack.c.l.b16 %v1898
      %v1947 = vunpack.c.l.b16 %v1899
      %v1948 = vunpack.c.l.b16 %v1900
      %v1949 = vunpack.c.l.b16 %v1901
      %v1950 = vunpack.c.l.b16 %v1902
      %v1951 = vunpack.c.l.b16 %v1903
      %v1952 = vunpack.c.l.b16 %v1904
      %v1953 = vunpack.c.l.b16 %v1905
      %v1954 = vunpack.c.l.b16 %v1906
      %v1955 = vunpack.c.l.b16 %v1907
      %v1956 = vunpack.c.l.b16 %v1908
      %v1957 = vunpack.c.l.b16 %v1909
      %v1958 = vpack.c.b16 %v1943, %v1942
      %v1959 = vpack.c.b16 %v1945, %v1944
      %v1960 = vpack.c.b16 %v1947, %v1946
      %v1961 = vpack.c.b16 %v1949, %v1948
      %v1962 = vpack.c.b16 %v1951, %v1950
      %v1963 = vpack.c.b16 %v1953, %v1952
      %v1964 = vpack.c.b16 %v1955, %v1954
      %v1965 = vpack.c.b16 %v1957, %v1956
      %1974 = vmatpush.bf16.msra.mxu0 %v1965
      %1975 = vmatpush.bf16.msra.mxu0 %v1964
      %1976 = vmatpush.bf16.msra.mxu0 %v1963
      %1977 = vmatpush.bf16.msra.mxu0 %v1962
      %1978 = vmatpush.bf16.msra.mxu0 %v1961
      %1979 = vmatpush.bf16.msra.mxu0 %v1960
      %1980 = vmatpush.bf16.msra.mxu0 %v1959
      %1981 = vmatpush.bf16.msra.mxu0 %v1958
      %1982 = vmatmul.bf16.gmra.mxu0 %v1918
      %v1983 = vpop.f32.mrf.mxu0
      %v1984 = vadd.f32 0.0, %v1983
      %v1985 = vpop.f32.mrf.mxu0
      %v1986 = vadd.f32 0.0, %v1985
      %1987 = vmatmul.bf16.gmra.mxu0 %v1919
      %v1988 = vpop.f32.mrf.mxu0
      %v1989 = vadd.f32 0.0, %v1988
      %v1990 = vpop.f32.mrf.mxu0
      %v1991 = vadd.f32 0.0, %v1990
      %1992 = vmatmul.bf16.gmra.mxu0 %v1920
      %v1993 = vpop.f32.mrf.mxu0
      %v1994 = vadd.f32 0.0, %v1993
      %v1995 = vpop.f32.mrf.mxu0
      %v1996 = vadd.f32 0.0, %v1995
      %1997 = vmatmul.bf16.gmra.mxu0 %v1921
      %v1998 = vpop.f32.mrf.mxu0
      %v1999 = vadd.f32 0.0, %v1998
      %v2000 = vpop.f32.mrf.mxu0
      %v2001 = vadd.f32 0.0, %v2000
      %2002 = vdwg.mxu0
      %v2003 = vadd.f32 %v1885, %v1984
      %v2004 = vadd.f32 %v1886, %v1986
      %v2005 = vadd.f32 %v1887, %v1989
      %v2006 = vadd.f32 %v1888, %v1991
      %v2007 = vadd.f32 %v1889, %v1994
      %v2008 = vadd.f32 %v1890, %v1996
      %v2009 = vadd.f32 %v1891, %v1999
      %v2010 = vadd.f32 %v1892, %v2001
      %2011 = vst [vmem:[#allocation3] sm:$0xff] %v2003
      %2012 = vst [vmem:[#allocation3 + $0x8] sm:$0xff] %v2004
      %2013 = vst [vmem:[#allocation3 + $0x10] sm:$0xff] %v2005
      %2014 = vst [vmem:[#allocation3 + $0x18] sm:$0xff] %v2006
      %2015 = vst [vmem:[#allocation3 + $0x20] sm:$0xff] %v2007
      %2016 = vst [vmem:[#allocation3 + $0x28] sm:$0xff] %v2008
      %2017 = vst [vmem:[#allocation3 + $0x30] sm:$0xff] %v2009
      %2018 = vst [vmem:[#allocation3 + $0x38] sm:$0xff] %v2010
      %v2019 = vld [vmem:[%s570] sm:$0xf]
      %v2020 = vld [vmem:[%s570 + $0x8] sm:$0xf]
      %v2021 = vld [vmem:[%s570 + $0x10] sm:$0xf]
      %v2022 = vld [vmem:[%s570 + $0x18] sm:$0xf]
      %v2023 = vld [vmem:[%s570 + $0x20] sm:$0xf]
      %v2024 = vld [vmem:[%s570 + $0x28] sm:$0xf]
      %v2025 = vld [vmem:[%s570 + $0x30] sm:$0xf]
      %v2026 = vld [vmem:[%s570 + $0x38] sm:$0xf]
      %v2027 = vld [vmem:[#allocation3] sm:$0xff]
      %v2028 = vld [vmem:[#allocation3 + $0x8] sm:$0xff]
      %v2029 = vld [vmem:[#allocation3 + $0x10] sm:$0xff]
      %v2030 = vld [vmem:[#allocation3 + $0x18] sm:$0xff]
      %v2031 = vld [vmem:[#allocation3 + $0x20] sm:$0xff]
      %v2032 = vld [vmem:[#allocation3 + $0x28] sm:$0xff]
      %v2033 = vld [vmem:[#allocation3 + $0x30] sm:$0xff]
      %v2034 = vld [vmem:[#allocation3 + $0x38] sm:$0xff]
      %s2035 = scalar_lea.vmem %s296, 384
      %v2036 = vld [vmem:[%s2035] sm:$0xf]
      %v2037 = vld [vmem:[%s2035 + $0x4] sm:$0xf]
      %v2038 = vld [vmem:[%s2035 + $0x8] sm:$0xf]
      %v2039 = vld [vmem:[%s2035 + $0xc] sm:$0xf]
      %v2040 = vld [vmem:[%s2035 + $0x10] sm:$0xf]
      %v2041 = vld [vmem:[%s2035 + $0x14] sm:$0xf]
      %v2042 = vld [vmem:[%s2035 + $0x18] sm:$0xf]
      %v2043 = vld [vmem:[%s2035 + $0x1c] sm:$0xf]
      %v2044 = vld [vmem:[%s2035 + $0x20] sm:$0xf]
      %v2045 = vld [vmem:[%s2035 + $0x24] sm:$0xf]
      %v2046 = vld [vmem:[%s2035 + $0x28] sm:$0xf]
      %v2047 = vld [vmem:[%s2035 + $0x2c] sm:$0xf]
      %v2048 = vld [vmem:[%s2035 + $0x30] sm:$0xf]
      %v2049 = vld [vmem:[%s2035 + $0x34] sm:$0xf]
      %v2050 = vld [vmem:[%s2035 + $0x38] sm:$0xf]
      %v2051 = vld [vmem:[%s2035 + $0x3c] sm:$0xf]
      %v2060 = vunpack.c.l.b16 %v2019
      %v2061 = vunpack.c.l.b16 %v2020
      %v2062 = vunpack.c.l.b16 %v2021
      %v2063 = vunpack.c.l.b16 %v2022
      %v2064 = vunpack.c.l.b16 %v2023
      %v2065 = vunpack.c.l.b16 %v2024
      %v2066 = vunpack.c.l.b16 %v2025
      %v2067 = vunpack.c.l.b16 %v2026
      %v2068 = vpack.c.b16 %v2061, %v2060
      %v2069 = vpack.c.b16 %v2063, %v2062
      %v2070 = vpack.c.b16 %v2065, %v2064
      %v2071 = vpack.c.b16 %v2067, %v2066
      %v2092 = vunpack.c.l.b16 %v2036
      %v2093 = vunpack.c.l.b16 %v2037
      %v2094 = vunpack.c.l.b16 %v2038
      %v2095 = vunpack.c.l.b16 %v2039
      %v2096 = vunpack.c.l.b16 %v2040
      %v2097 = vunpack.c.l.b16 %v2041
      %v2098 = vunpack.c.l.b16 %v2042
      %v2099 = vunpack.c.l.b16 %v2043
      %v2100 = vunpack.c.l.b16 %v2044
      %v2101 = vunpack.c.l.b16 %v2045
      %v2102 = vunpack.c.l.b16 %v2046
      %v2103 = vunpack.c.l.b16 %v2047
      %v2104 = vunpack.c.l.b16 %v2048
      %v2105 = vunpack.c.l.b16 %v2049
      %v2106 = vunpack.c.l.b16 %v2050
      %v2107 = vunpack.c.l.b16 %v2051
      %v2108 = vpack.c.b16 %v2093, %v2092
      %v2109 = vpack.c.b16 %v2095, %v2094
      %v2110 = vpack.c.b16 %v2097, %v2096
      %v2111 = vpack.c.b16 %v2099, %v2098
      %v2112 = vpack.c.b16 %v2101, %v2100
      %v2113 = vpack.c.b16 %v2103, %v2102
      %v2114 = vpack.c.b16 %v2105, %v2104
      %v2115 = vpack.c.b16 %v2107, %v2106
      %2124 = vmatpush.bf16.msra.mxu0 %v2115
      %2125 = vmatpush.bf16.msra.mxu0 %v2114
      %2126 = vmatpush.bf16.msra.mxu0 %v2113
      %2127 = vmatpush.bf16.msra.mxu0 %v2112
      %2128 = vmatpush.bf16.msra.mxu0 %v2111
      %2129 = vmatpush.bf16.msra.mxu0 %v2110
      %2130 = vmatpush.bf16.msra.mxu0 %v2109
      %2131 = vmatpush.bf16.msra.mxu0 %v2108
      %2132 = vmatmul.bf16.gmra.mxu0 %v2068
      %v2133 = vpop.f32.mrf.mxu0
      %v2134 = vadd.f32 0.0, %v2133
      %v2135 = vpop.f32.mrf.mxu0
      %v2136 = vadd.f32 0.0, %v2135
      %2137 = vmatmul.bf16.gmra.mxu0 %v2069
      %v2138 = vpop.f32.mrf.mxu0
      %v2139 = vadd.f32 0.0, %v2138
      %v2140 = vpop.f32.mrf.mxu0
      %v2141 = vadd.f32 0.0, %v2140
      %2142 = vmatmul.bf16.gmra.mxu0 %v2070
      %v2143 = vpop.f32.mrf.mxu0
      %v2144 = vadd.f32 0.0, %v2143
      %v2145 = vpop.f32.mrf.mxu0
      %v2146 = vadd.f32 0.0, %v2145
      %2147 = vmatmul.bf16.gmra.mxu0 %v2071
      %v2148 = vpop.f32.mrf.mxu0
      %v2149 = vadd.f32 0.0, %v2148
      %v2150 = vpop.f32.mrf.mxu0
      %v2151 = vadd.f32 0.0, %v2150
      %2152 = vdwg.mxu0
      %v2153 = vadd.f32 %v2027, %v2134
      %v2154 = vadd.f32 %v2028, %v2136
      %v2155 = vadd.f32 %v2029, %v2139
      %v2156 = vadd.f32 %v2030, %v2141
      %v2157 = vadd.f32 %v2031, %v2144
      %v2158 = vadd.f32 %v2032, %v2146
      %v2159 = vadd.f32 %v2033, %v2149
      %v2160 = vadd.f32 %v2034, %v2151
      %2161 = vst [vmem:[#allocation3] sm:$0xff] %v2153
      %2162 = vst [vmem:[#allocation3 + $0x8] sm:$0xff] %v2154
      %2163 = vst [vmem:[#allocation3 + $0x10] sm:$0xff] %v2155
      %2164 = vst [vmem:[#allocation3 + $0x18] sm:$0xff] %v2156
      %2165 = vst [vmem:[#allocation3 + $0x20] sm:$0xff] %v2157
      %2166 = vst [vmem:[#allocation3 + $0x28] sm:$0xff] %v2158
      %2167 = vst [vmem:[#allocation3 + $0x30] sm:$0xff] %v2159
      %2168 = vst [vmem:[#allocation3 + $0x38] sm:$0xff] %v2160
      %v2169 = vld [vmem:[%s671] sm:$0xf]
      %v2170 = vld [vmem:[%s671 + $0x8] sm:$0xf]
      %v2171 = vld [vmem:[%s671 + $0x10] sm:$0xf]
      %v2172 = vld [vmem:[%s671 + $0x18] sm:$0xf]
      %v2173 = vld [vmem:[%s671 + $0x20] sm:$0xf]
      %v2174 = vld [vmem:[%s671 + $0x28] sm:$0xf]
      %v2175 = vld [vmem:[%s671 + $0x30] sm:$0xf]
      %v2176 = vld [vmem:[%s671 + $0x38] sm:$0xf]
      %v2177 = vld [vmem:[#allocation3] sm:$0xff]
      %v2178 = vld [vmem:[#allocation3 + $0x8] sm:$0xff]
      %v2179 = vld [vmem:[#allocation3 + $0x10] sm:$0xff]
      %v2180 = vld [vmem:[#allocation3 + $0x18] sm:$0xff]
      %v2181 = vld [vmem:[#allocation3 + $0x20] sm:$0xff]
      %v2182 = vld [vmem:[#allocation3 + $0x28] sm:$0xff]
      %v2183 = vld [vmem:[#allocation3 + $0x30] sm:$0xff]
      %v2184 = vld [vmem:[#allocation3 + $0x38] sm:$0xff]
      %s2185 = scalar_lea.vmem %s296, 448
      %v2186 = vld [vmem:[%s2185] sm:$0xf]
      %v2187 = vld [vmem:[%s2185 + $0x4] sm:$0xf]
      %v2188 = vld [vmem:[%s2185 + $0x8] sm:$0xf]
      %v2189 = vld [vmem:[%s2185 + $0xc] sm:$0xf]
      %v2190 = vld [vmem:[%s2185 + $0x10] sm:$0xf]
      %v2191 = vld [vmem:[%s2185 + $0x14] sm:$0xf]
      %v2192 = vld [vmem:[%s2185 + $0x18] sm:$0xf]
      %v2193 = vld [vmem:[%s2185 + $0x1c] sm:$0xf]
      %v2194 = vld [vmem:[%s2185 + $0x20] sm:$0xf]
      %v2195 = vld [vmem:[%s2185 + $0x24] sm:$0xf]
      %v2196 = vld [vmem:[%s2185 + $0x28] sm:$0xf]
      %v2197 = vld [vmem:[%s2185 + $0x2c] sm:$0xf]
      %v2198 = vld [vmem:[%s2185 + $0x30] sm:$0xf]
      %v2199 = vld [vmem:[%s2185 + $0x34] sm:$0xf]
      %v2200 = vld [vmem:[%s2185 + $0x38] sm:$0xf]
      %v2201 = vld [vmem:[%s2185 + $0x3c] sm:$0xf]
      %v2210 = vunpack.c.l.b16 %v2169
      %v2211 = vunpack.c.l.b16 %v2170
      %v2212 = vunpack.c.l.b16 %v2171
      %v2213 = vunpack.c.l.b16 %v2172
      %v2214 = vunpack.c.l.b16 %v2173
      %v2215 = vunpack.c.l.b16 %v2174
      %v2216 = vunpack.c.l.b16 %v2175
      %v2217 = vunpack.c.l.b16 %v2176
      %v2218 = vpack.c.b16 %v2211, %v2210
      %v2219 = vpack.c.b16 %v2213, %v2212
      %v2220 = vpack.c.b16 %v2215, %v2214
      %v2221 = vpack.c.b16 %v2217, %v2216
      %v2242 = vunpack.c.l.b16 %v2186
      %v2243 = vunpack.c.l.b16 %v2187
      %v2244 = vunpack.c.l.b16 %v2188
      %v2245 = vunpack.c.l.b16 %v2189
      %v2246 = vunpack.c.l.b16 %v2190
      %v2247 = vunpack.c.l.b16 %v2191
      %v2248 = vunpack.c.l.b16 %v2192
      %v2249 = vunpack.c.l.b16 %v2193
      %v2250 = vunpack.c.l.b16 %v2194
      %v2251 = vunpack.c.l.b16 %v2195
      %v2252 = vunpack.c.l.b16 %v2196
      %v2253 = vunpack.c.l.b16 %v2197
      %v2254 = vunpack.c.l.b16 %v2198
      %v2255 = vunpack.c.l.b16 %v2199
      %v2256 = vunpack.c.l.b16 %v2200
      %v2257 = vunpack.c.l.b16 %v2201
      %v2258 = vpack.c.b16 %v2243, %v2242
      %v2259 = vpack.c.b16 %v2245, %v2244
      %v2260 = vpack.c.b16 %v2247, %v2246
      %v2261 = vpack.c.b16 %v2249, %v2248
      %v2262 = vpack.c.b16 %v2251, %v2250
      %v2263 = vpack.c.b16 %v2253, %v2252
      %v2264 = vpack.c.b16 %v2255, %v2254
      %v2265 = vpack.c.b16 %v2257, %v2256
      %2274 = vmatpush.bf16.msra.mxu0 %v2265
      %2275 = vmatpush.bf16.msra.mxu0 %v2264
      %2276 = vmatpush.bf16.msra.mxu0 %v2263
      %2277 = vmatpush.bf16.msra.mxu0 %v2262
      %2278 = vmatpush.bf16.msra.mxu0 %v2261
      %2279 = vmatpush.bf16.msra.mxu0 %v2260
      %2280 = vmatpush.bf16.msra.mxu0 %v2259
      %2281 = vmatpush.bf16.msra.mxu0 %v2258
      %2282 = vmatmul.bf16.gmra.mxu0 %v2218
      %v2283 = vpop.f32.mrf.mxu0
      %v2284 = vadd.f32 0.0, %v2283
      %v2285 = vpop.f32.mrf.mxu0
      %v2286 = vadd.f32 0.0, %v2285
      %2287 = vmatmul.bf16.gmra.mxu0 %v2219
      %v2288 = vpop.f32.mrf.mxu0
      %v2289 = vadd.f32 0.0, %v2288
      %v2290 = vpop.f32.mrf.mxu0
      %v2291 = vadd.f32 0.0, %v2290
      %2292 = vmatmul.bf16.gmra.mxu0 %v2220
      %v2293 = vpop.f32.mrf.mxu0
      %v2294 = vadd.f32 0.0, %v2293
      %v2295 = vpop.f32.mrf.mxu0
      %v2296 = vadd.f32 0.0, %v2295
      %2297 = vmatmul.bf16.gmra.mxu0 %v2221
      %v2298 = vpop.f32.mrf.mxu0
      %v2299 = vadd.f32 0.0, %v2298
      %v2300 = vpop.f32.mrf.mxu0
      %v2301 = vadd.f32 0.0, %v2300
      %2302 = vdwg.mxu0
      %v2303 = vadd.f32 %v2177, %v2284
      %v2304 = vadd.f32 %v2178, %v2286
      %v2305 = vadd.f32 %v2179, %v2289
      %v2306 = vadd.f32 %v2180, %v2291
      %v2307 = vadd.f32 %v2181, %v2294
      %v2308 = vadd.f32 %v2182, %v2296
      %v2309 = vadd.f32 %v2183, %v2299
      %v2310 = vadd.f32 %v2184, %v2301
      %2311 = vst [vmem:[#allocation3] sm:$0xff] %v2303
      %2312 = vst [vmem:[#allocation3 + $0x8] sm:$0xff] %v2304
      %2313 = vst [vmem:[#allocation3 + $0x10] sm:$0xff] %v2305
      %2314 = vst [vmem:[#allocation3 + $0x18] sm:$0xff] %v2306
      %2315 = vst [vmem:[#allocation3 + $0x20] sm:$0xff] %v2307
      %2316 = vst [vmem:[#allocation3 + $0x28] sm:$0xff] %v2308
      %2317 = vst [vmem:[#allocation3 + $0x30] sm:$0xff] %v2309
      %2318 = vst [vmem:[#allocation3 + $0x38] sm:$0xff] %v2310
      %v2319 = vld [vmem:[%s570] sm:$0xf]
      %v2320 = vld [vmem:[%s570 + $0x4] sm:$0x1]
      %v2321 = vld [vmem:[%s570 + $0x8] sm:$0xf]
      %v2322 = vld [vmem:[%s570 + $0xc] sm:$0x1]
      %v2323 = vld [vmem:[%s570 + $0x10] sm:$0xf]
      %v2324 = vld [vmem:[%s570 + $0x14] sm:$0x1]
      %v2325 = vld [vmem:[%s570 + $0x18] sm:$0xf]
      %v2326 = vld [vmem:[%s570 + $0x1c] sm:$0x1]
      %v2327 = vld [vmem:[%s570 + $0x20] sm:$0xf]
      %v2328 = vld [vmem:[%s570 + $0x24] sm:$0x1]
      %v2329 = vld [vmem:[%s570 + $0x28] sm:$0xf]
      %v2330 = vld [vmem:[%s570 + $0x2c] sm:$0x1]
      %v2331 = vld [vmem:[%s570 + $0x30] sm:$0xf]
      %v2332 = vld [vmem:[%s570 + $0x34] sm:$0x1]
      %v2333 = vld [vmem:[%s570 + $0x38] sm:$0xf]
      %v2334 = vld [vmem:[%s570 + $0x3c] sm:$0x1]
      %v2336 = vshrl.u32 %v2319, 16
      %v2338 = vrot.slane %v2336, 4
      %v2339 = vshll.u32 %v2319, 16
      %v2341 = vrot.slane %v2339, 5
      %v2342 = vor.u32 %v2338, %v2341
      %v2343 = vrot.slane %v2342, 4
      %v2345 = vshll.u32 %v2320, 16
      %v2347 = vrot.slane %v2345, 5
      %v2348 = vsel %vm1210, %v2343, %v2347
      %v2350 = vshrl.u32 %v2321, 16
      %v2352 = vrot.slane %v2350, 4
      %v2353 = vshll.u32 %v2321, 16
      %v2355 = vrot.slane %v2353, 5
      %v2356 = vor.u32 %v2352, %v2355
      %v2357 = vrot.slane %v2356, 4
      %v2359 = vshll.u32 %v2322, 16
      %v2361 = vrot.slane %v2359, 5
      %v2362 = vsel %vm1210, %v2357, %v2361
      %v2364 = vshrl.u32 %v2323, 16
      %v2366 = vrot.slane %v2364, 4
      %v2367 = vshll.u32 %v2323, 16
      %v2369 = vrot.slane %v2367, 5
      %v2370 = vor.u32 %v2366, %v2369
      %v2371 = vrot.slane %v2370, 4
      %v2373 = vshll.u32 %v2324, 16
      %v2375 = vrot.slane %v2373, 5
      %v2376 = vsel %vm1210, %v2371, %v2375
      %v2378 = vshrl.u32 %v2325, 16
      %v2380 = vrot.slane %v2378, 4
      %v2381 = vshll.u32 %v2325, 16
      %v2383 = vrot.slane %v2381, 5
      %v2384 = vor.u32 %v2380, %v2383
      %v2385 = vrot.slane %v2384, 4
      %v2387 = vshll.u32 %v2326, 16
      %v2389 = vrot.slane %v2387, 5
      %v2390 = vsel %vm1210, %v2385, %v2389
      %v2392 = vshrl.u32 %v2327, 16
      %v2394 = vrot.slane %v2392, 4
      %v2395 = vshll.u32 %v2327, 16
      %v2397 = vrot.slane %v2395, 5
      %v2398 = vor.u32 %v2394, %v2397
      %v2399 = vrot.slane %v2398, 4
      %v2401 = vshll.u32 %v2328, 16
      %v2403 = vrot.slane %v2401, 5
      %v2404 = vsel %vm1210, %v2399, %v2403
      %v2406 = vshrl.u32 %v2329, 16
      %v2408 = vrot.slane %v2406, 4
      %v2409 = vshll.u32 %v2329, 16
      %v2411 = vrot.slane %v2409, 5
      %v2412 = vor.u32 %v2408, %v2411
      %v2413 = vrot.slane %v2412, 4
      %v2415 = vshll.u32 %v2330, 16
      %v2417 = vrot.slane %v2415, 5
      %v2418 = vsel %vm1210, %v2413, %v2417
      %v2420 = vshrl.u32 %v2331, 16
      %v2422 = vrot.slane %v2420, 4
      %v2423 = vshll.u32 %v2331, 16
      %v2425 = vrot.slane %v2423, 5
      %v2426 = vor.u32 %v2422, %v2425
      %v2427 = vrot.slane %v2426, 4
      %v2429 = vshll.u32 %v2332, 16
      %v2431 = vrot.slane %v2429, 5
      %v2432 = vsel %vm1210, %v2427, %v2431
      %v2434 = vshrl.u32 %v2333, 16
      %v2436 = vrot.slane %v2434, 4
      %v2437 = vshll.u32 %v2333, 16
      %v2439 = vrot.slane %v2437, 5
      %v2440 = vor.u32 %v2436, %v2439
      %v2441 = vrot.slane %v2440, 4
      %v2443 = vshll.u32 %v2334, 16
      %v2445 = vrot.slane %v2443, 5
      %v2446 = vsel %vm1210, %v2441, %v2445
      %v2447 = vld [vmem:[#allocation3] sm:$0xff]
      %v2448 = vld [vmem:[#allocation3 + $0x8] sm:$0xff]
      %v2449 = vld [vmem:[#allocation3 + $0x10] sm:$0xff]
      %v2450 = vld [vmem:[#allocation3 + $0x18] sm:$0xff]
      %v2451 = vld [vmem:[#allocation3 + $0x20] sm:$0xff]
      %v2452 = vld [vmem:[#allocation3 + $0x28] sm:$0xff]
      %v2453 = vld [vmem:[#allocation3 + $0x30] sm:$0xff]
      %v2454 = vld [vmem:[#allocation3 + $0x38] sm:$0xff]
      %s2455 = scalar_lea.vmem %s296, 512
      %v2456 = vld [vmem:[%s2455] sm:$0xf]
      %v2457 = vld [vmem:[%s2455 + $0x4] sm:$0xf]
      %v2458 = vld [vmem:[%s2455 + $0x8] sm:$0xf]
      %v2459 = vld [vmem:[%s2455 + $0xc] sm:$0xf]
      %v2460 = vld [vmem:[%s2455 + $0x10] sm:$0xf]
      %v2461 = vld [vmem:[%s2455 + $0x14] sm:$0xf]
      %v2462 = vld [vmem:[%s2455 + $0x18] sm:$0xf]
      %v2463 = vld [vmem:[%s2455 + $0x1c] sm:$0xf]
      %v2464 = vld [vmem:[%s2455 + $0x20] sm:$0xf]
      %v2465 = vld [vmem:[%s2455 + $0x24] sm:$0xf]
      %v2466 = vld [vmem:[%s2455 + $0x28] sm:$0xf]
      %v2467 = vld [vmem:[%s2455 + $0x2c] sm:$0xf]
      %v2468 = vld [vmem:[%s2455 + $0x30] sm:$0xf]
      %v2469 = vld [vmem:[%s2455 + $0x34] sm:$0xf]
      %v2470 = vld [vmem:[%s2455 + $0x38] sm:$0xf]
      %v2471 = vld [vmem:[%s2455 + $0x3c] sm:$0xf]
      %v2472 = vunpack.c.l.b16 %v2348
      %v2473 = vunpack.c.l.b16 %v2362
      %v2474 = vunpack.c.l.b16 %v2376
      %v2475 = vunpack.c.l.b16 %v2390
      %v2476 = vunpack.c.l.b16 %v2404
      %v2477 = vunpack.c.l.b16 %v2418
      %v2478 = vunpack.c.l.b16 %v2432
      %v2479 = vunpack.c.l.b16 %v2446
      %v2480 = vpack.c.b16 %v2473, %v2472
      %v2481 = vpack.c.b16 %v2475, %v2474
      %v2482 = vpack.c.b16 %v2477, %v2476
      %v2483 = vpack.c.b16 %v2479, %v2478
      %v2504 = vunpack.c.l.b16 %v2456
      %v2505 = vunpack.c.l.b16 %v2457
      %v2506 = vunpack.c.l.b16 %v2458
      %v2507 = vunpack.c.l.b16 %v2459
      %v2508 = vunpack.c.l.b16 %v2460
      %v2509 = vunpack.c.l.b16 %v2461
      %v2510 = vunpack.c.l.b16 %v2462
      %v2511 = vunpack.c.l.b16 %v2463
      %v2512 = vunpack.c.l.b16 %v2464
      %v2513 = vunpack.c.l.b16 %v2465
      %v2514 = vunpack.c.l.b16 %v2466
      %v2515 = vunpack.c.l.b16 %v2467
      %v2516 = vunpack.c.l.b16 %v2468
      %v2517 = vunpack.c.l.b16 %v2469
      %v2518 = vunpack.c.l.b16 %v2470
      %v2519 = vunpack.c.l.b16 %v2471
      %v2520 = vpack.c.b16 %v2505, %v2504
      %v2521 = vpack.c.b16 %v2507, %v2506
      %v2522 = vpack.c.b16 %v2509, %v2508
      %v2523 = vpack.c.b16 %v2511, %v2510
      %v2524 = vpack.c.b16 %v2513, %v2512
      %v2525 = vpack.c.b16 %v2515, %v2514
      %v2526 = vpack.c.b16 %v2517, %v2516
      %v2527 = vpack.c.b16 %v2519, %v2518
      %2536 = vmatpush.bf16.msra.mxu0 %v2527
      %2537 = vmatpush.bf16.msra.mxu0 %v2526
      %2538 = vmatpush.bf16.msra.mxu0 %v2525
      %2539 = vmatpush.bf16.msra.mxu0 %v2524
      %2540 = vmatpush.bf16.msra.mxu0 %v2523
      %2541 = vmatpush.bf16.msra.mxu0 %v2522
      %2542 = vmatpush.bf16.msra.mxu0 %v2521
      %2543 = vmatpush.bf16.msra.mxu0 %v2520
      %2544 = vmatmul.bf16.gmra.mxu0 %v2480
      %v2545 = vpop.f32.mrf.mxu0
      %v2546 = vadd.f32 0.0, %v2545
      %v2547 = vpop.f32.mrf.mxu0
      %v2548 = vadd.f32 0.0, %v2547
      %2549 = vmatmul.bf16.gmra.mxu0 %v2481
      %v2550 = vpop.f32.mrf.mxu0
      %v2551 = vadd.f32 0.0, %v2550
      %v2552 = vpop.f32.mrf.mxu0
      %v2553 = vadd.f32 0.0, %v2552
      %2554 = vmatmul.bf16.gmra.mxu0 %v2482
      %v2555 = vpop.f32.mrf.mxu0
      %v2556 = vadd.f32 0.0, %v2555
      %v2557 = vpop.f32.mrf.mxu0
      %v2558 = vadd.f32 0.0, %v2557
      %2559 = vmatmul.bf16.gmra.mxu0 %v2483
      %v2560 = vpop.f32.mrf.mxu0
      %v2561 = vadd.f32 0.0, %v2560
      %v2562 = vpop.f32.mrf.mxu0
      %v2563 = vadd.f32 0.0, %v2562
      %2564 = vdwg.mxu0
      %v2565 = vadd.f32 %v2447, %v2546
      %v2566 = vadd.f32 %v2448, %v2548
      %v2567 = vadd.f32 %v2449, %v2551
      %v2568 = vadd.f32 %v2450, %v2553
      %v2569 = vadd.f32 %v2451, %v2556
      %v2570 = vadd.f32 %v2452, %v2558
      %v2571 = vadd.f32 %v2453, %v2561
      %v2572 = vadd.f32 %v2454, %v2563
      %2573 = vst [vmem:[#allocation3] sm:$0xff] %v2565
      %2574 = vst [vmem:[#allocation3 + $0x8] sm:$0xff] %v2566
      %2575 = vst [vmem:[#allocation3 + $0x10] sm:$0xff] %v2567
      %2576 = vst [vmem:[#allocation3 + $0x18] sm:$0xff] %v2568
      %2577 = vst [vmem:[#allocation3 + $0x20] sm:$0xff] %v2569
      %2578 = vst [vmem:[#allocation3 + $0x28] sm:$0xff] %v2570
      %2579 = vst [vmem:[#allocation3 + $0x30] sm:$0xff] %v2571
      %2580 = vst [vmem:[#allocation3 + $0x38] sm:$0xff] %v2572
      %v2581 = vld [vmem:[#allocation3] sm:$0xff]
      %v2582 = vld [vmem:[#allocation3 + $0x8] sm:$0xff]
      %v2583 = vld [vmem:[#allocation3 + $0x10] sm:$0xff]
      %v2584 = vld [vmem:[#allocation3 + $0x18] sm:$0xff]
      %v2585 = vld [vmem:[#allocation3 + $0x20] sm:$0xff]
      %v2586 = vld [vmem:[#allocation3 + $0x28] sm:$0xff]
      %v2587 = vld [vmem:[#allocation3 + $0x30] sm:$0xff]
      %v2588 = vld [vmem:[#allocation3 + $0x38] sm:$0xff]
      %v2589 = vld [vmem:[%s307] sm:$0x1]
      %v2590 = vadd.f32 %v2581, %v2582
      %v2591 = vadd.f32 %v2590, %v2583
      %v2592 = vadd.f32 %v2591, %v2584
      %v2593 = vadd.f32 %v2592, %v2585
      %v2594 = vadd.f32 %v2593, %v2586
      %v2595 = vadd.f32 %v2594, %v2587
      %v2596 = vadd.f32 %v2595, %v2588
      %v2597 = vrot.slane %v2596, 4
      %v2598 = vadd.f32 %v2596, %v2597
      %v2599 = vrot.slane %v2598, 2
      %v2600 = vadd.f32 %v2598, %v2599
      %v2601 = vrot.slane %v2600, 1
      %v2602 = vadd.f32 %v2600, %v2601
      %v2603 = vadd.f32 %v2589, %v2602
      %2604 = vst [vmem:[%s307] sm:$0x1] %v2603
      %v2605 = vld [vmem:[%s310] sm:$0x1]
      %v2606 = vmul.f32 %v2581, %v2581
      %v2607 = vmul.f32 %v2582, %v2582
      %v2608 = vmul.f32 %v2583, %v2583
      %v2609 = vmul.f32 %v2584, %v2584
      %v2610 = vmul.f32 %v2585, %v2585
      %v2611 = vmul.f32 %v2586, %v2586
      %v2612 = vmul.f32 %v2587, %v2587
      %v2613 = vmul.f32 %v2588, %v2588
      %v2614 = vadd.f32 %v2606, %v2607
      %v2615 = vadd.f32 %v2614, %v2608
      %v2616 = vadd.f32 %v2615, %v2609
      %v2617 = vadd.f32 %v2616, %v2610
      %v2618 = vadd.f32 %v2617, %v2611
      %v2619 = vadd.f32 %v2618, %v2612
      %v2620 = vadd.f32 %v2619, %v2613
      %v2621 = vrot.slane %v2620, 4
      %v2622 = vadd.f32 %v2620, %v2621
      %v2623 = vrot.slane %v2622, 2
      %v2624 = vadd.f32 %v2622, %v2623
      %v2625 = vrot.slane %v2624, 1
      %v2626 = vadd.f32 %v2624, %v2625
      %v2627 = vadd.f32 %v2605, %v2626
      %2628 = vst [vmem:[%s310] sm:$0x1] %v2627
      %v2629 = vpack.c.bf16 %v2581, %v2581
      %v2630 = vpack.c.bf16 %v2582, %v2582
      %v2631 = vpack.c.bf16 %v2583, %v2583
      %v2632 = vpack.c.bf16 %v2584, %v2584
      %v2633 = vpack.c.bf16 %v2585, %v2585
      %v2634 = vpack.c.bf16 %v2586, %v2586
      %v2635 = vpack.c.bf16 %v2587, %v2587
      %v2636 = vpack.c.bf16 %v2588, %v2588
      %2637 = vst [vmem:[%s304] sm:$0xf] %v2629
      %2638 = vst [vmem:[%s304 + $0x4] sm:$0xf] %v2630
      %2639 = vst [vmem:[%s304 + $0x8] sm:$0xf] %v2631
      %2640 = vst [vmem:[%s304 + $0xc] sm:$0xf] %v2632
      %2641 = vst [vmem:[%s304 + $0x10] sm:$0xf] %v2633
      %2642 = vst [vmem:[%s304 + $0x14] sm:$0xf] %v2634
      %2643 = vst [vmem:[%s304 + $0x18] sm:$0xf] %v2635
      %2644 = vst [vmem:[%s304 + $0x1c] sm:$0xf] %v2636
      %p2645 = scmp.lt.s32.totalorder %s23, 1
      %s2646 = scalar_select %p2645, %s23, 1
      %p2647 = scmp.lt.s32.totalorder %s22, 0
      %s2648 = scalar_select %p2647, %s22, 0
      %s2649 = smul.addr %s2646, 8
      %s2650 = sadd.s32 %s2648, %s2649
      %s2651 = smul.addr %s2650, 4
      %s2652 = scalar_lea.vmem %s4, %s2651
      %p2653 = scmp.lt.s32.totalorder %s22, 0
      %s2654 = scalar_select %p2653, %s22, 0
      %s2655 = scalar_lea.vmem %s5, %s2654
      %p2656 = scmp.lt.s32.totalorder %s22, 0
      %s2657 = scalar_select %p2656, %s22, 0
      %s2658 = scalar_lea.vmem %s6, %s2657
      // Predicated region
      $region41: #{basic_block_forward.4} parent=35 // pred_check
        %p2659 = pneg %p144
      $region42: #{basic_block_forward.4} parent=35 // pred_check_branch
        %2661 = sbr.rel (%p2659) target = $region44
      $region43: #{basic_block_forward.4} parent=35 // pred_region
        _
      $region44: #{basic_block_forward.4} parent=35 // pred_fallthru
        _
      // Predicated region
      $region45: #{basic_block_forward.4} parent=35 // pred_check
        %p2662 = pneg %p170
      $region46: #{basic_block_forward.4} parent=35 // pred_check_branch
        %2664 = sbr.rel (%p2662) target = $region48
      $region47: #{basic_block_forward.4} parent=35 // pred_region
        _
      $region48: #{basic_block_forward.4} parent=35 // pred_fallthru
        _
      // Predicated region
      $region49: #{basic_block_forward.4} parent=35 // pred_check
        %p2665 = pneg %p196
      $region50: #{basic_block_forward.4} parent=35 // pred_check_branch
        %2667 = sbr.rel (%p2665) target = $region52
      $region51: #{basic_block_forward.4} parent=35 // pred_region
        _
      $region52: #{basic_block_forward.4} parent=35 // pred_fallthru
        _
      // Predicated region
      $region53: #{basic_block_forward.4} parent=35 // pred_check
        %p2668 = pneg %p170
      $region54: #{basic_block_forward.4} parent=35 // pred_check_branch
        %2670 = sbr.rel (%p2668) target = $region56
      $region55: #{basic_block_forward.4} parent=35 // pred_region
        %p2671 = scmp.lt.s32.totalorder %s22, 0
        %s2672 = scalar_select %p2671, %s22, 0
        %s2673 = scalar_lea.vmem %s5, %s2672
      $region56: #{basic_block_forward.4} parent=35 // pred_fallthru
        _
      // Predicated region
      $region57: #{basic_block_forward.4} parent=35 // pred_check
        %p2674 = pneg %p196
      $region58: #{basic_block_forward.4} parent=35 // pred_check_branch
        %2676 = sbr.rel (%p2674) target = $region60
      $region59: #{basic_block_forward.4} parent=35 // pred_region
        %p2677 = scmp.lt.s32.totalorder %s22, 0
        %s2678 = scalar_select %p2677, %s22, 0
        %s2679 = scalar_lea.vmem %s6, %s2678
      $region60: #{basic_block_forward.4} parent=35 // pred_fallthru
        _
    $region36: #{basic_block_forward.4} parent=5 // pred_fallthru
      _
    %p2680 = scmp.le.s32.totalorder 2, %s13
    // Predicated region
    $region61: #{basic_block_forward.4} parent=5 // pred_check
      %p2681 = pneg %p2680
    $region62: #{basic_block_forward.4} parent=5 // pred_check_branch
      %2683 = sbr.rel (%p2681) target = $region64
    $region63: #{basic_block_forward.4} parent=5 // pred_region
      %s2684 = ssub.s32 %s13, 2
      // Predicated region
      $region65: #{basic_block_forward.4} parent=63 // pred_check
        %p2685 = pneg %p150
      $region66: #{basic_block_forward.4} parent=63 // pred_check_branch
        %2687 = sbr.rel (%p2685) target = $region68
      $region67: #{basic_block_forward.4} parent=63 // pred_region
        %p2688 = scmp.lt.s32.totalorder %s25, 1
        %s2689 = scalar_select %p2688, %s25, 1
        %p2690 = scmp.lt.s32.totalorder %s24, 0
        %s2691 = scalar_select %p2690, %s24, 0
        %s2692 = smul.addr %s2689, 8
        %s2693 = sadd.s32 %s2691, %s2692
        %s2694 = smul.addr %s2693, 4
        %s2695 = scalar_lea.vmem %s4, %s2694
      $region68: #{basic_block_forward.4} parent=63 // pred_fallthru
        _
    $region64: #{basic_block_forward.4} parent=5 // pred_fallthru
      _
  $region6: #{basic_block_forward.4} parent=0 // loop_footer
    %s17 = sadd.s32 1, %s13
  $region7: #{basic_block_forward.4} parent=0 // loop_footer_branch
    %12 = sbr.rel target = $region3
  $region8: #{basic_block_forward.4} parent=0 // loop_exit
    _

// kernel: basic_block_forward.5
$region0: #{basic_block_forward.5}
  #allocation0 [shape = 'u32[]', space=smem, size = 0x4, offset = 0x4, fixed_abs, tag = 'smem constant byte address 0x4 - core index']
  #allocation1 [shape = 'u32[72,128]{1,0:T(1,128)}', space=vmem, size = 0x9000, scoped, tag = 'internal scratch']
  #allocation2 [shape = 'bf16[10,10,128]{2,1,0:T(8,128)(2,1)}', space=vmem, size = 0xa000, scoped, tag = 'scratch operand']
  #allocation3 [shape = 'f32[64,128]{1,0:T(8,128)}', space=vmem, size = 0x8000, scoped, tag = 'scratch operand']
  %s0 = inlined_call_operand.vmem [shape: bf16[2,8,8,128], index: 0, kind: input, shape index: {}]
  %s1 = inlined_call_operand.vmem [shape: bf16[9,128,128], index: 1, kind: input, shape index: {}]
  %s2 = inlined_call_operand.vmem [shape: f32[1,128], index: 2, kind: input, shape index: {}]
  %s3 = inlined_call_operand.vmem [shape: f32[1,128], index: 3, kind: input, shape index: {}]
  %s4 = inlined_call_operand.vmem [shape: bf16[2,8,8,128], index: 4, kind: input, shape index: {}]
  %s5 = inlined_call_operand.vmem [shape: f32[1,128], index: 5, kind: input, shape index: {}]
  %s6 = inlined_call_operand.vmem [shape: f32[1,128], index: 6, kind: input, shape index: {}]
  %s7 = inlined_call_operand.vmem [shape: bf16[128,128], index: 7, kind: input, shape index: {}]
  %s8 = inlined_call_operand.vmem [shape: f32[2,8,8,128], index: 8, kind: output, shape index: {}]
  %s9 = sld [smem:[#allocation0]]
  $region65: #{basic_block_forward.5} parent=0
    _
  %s11 = ssub.s32 1, %s9
  %s12 = scalar_select 0, %s11, %s9
  loop: start=0, step=1, limit=4
  $region2: #{basic_block_forward.5} parent=0 // loop_pre_header
    _
  $region3: #{basic_block_forward.5} parent=0 // loop_header
    %s14 = sphi 0, %s18
    %p15 = scmp.ge.s32.totalorder %s14, 4
    %s21 = sphi 0, %s33
    %s22 = sphi 0, %s29
    %s23 = sphi 0, %s21
    %s24 = sphi 0, %s22
    %s25 = sphi 0, %s23
    %s26 = sphi 0, %s24
    %s36 = sphi 0, %s38
    %s39 = sphi 0, %s36
    %s40 = sphi 0, %s39
    %s56 = sphi 0, %s40
    %s62 = sphi 0, %s64
    %s65 = sphi 0, %s62
    %s66 = sphi 0, %s65
    %s82 = sphi 0, %s66
    %s86 = sphi 0, %s86
    %s88 = sphi 0, %s86
    %s89 = sphi 0, %s88
    %s103 = sphi 0, %s89
    %s107 = sphi 0, %s107
    %s109 = sphi 0, %s107
    %s110 = sphi 0, %s109
    %s124 = sphi 0, %s110
    %s130 = sphi 0, %s132
    %s133 = sphi 0, %s130
    %s134 = sphi 0, %s133
    %s150 = sphi 0, %s134
    %s154 = sphi 0, %s154
    %s156 = sphi 0, %s154
    %s157 = sphi 0, %s156
    %s171 = sphi 0, %s157
    %s175 = sphi 0, %s175
    %s177 = sphi 0, %s175
    %s178 = sphi 0, %s177
    %s192 = sphi 0, %s178
    %s198 = sphi 0, %s200
    %s201 = sphi 0, %s198
    %s202 = sphi 0, %s201
    %s218 = sphi 0, %s202
    %s226 = sphi 0, %s228
    %s229 = sphi 0, %s226
    %s230 = sphi 0, %s229
    %s246 = sphi 0, %s230
  $region4: #{basic_block_forward.5} parent=0 // loop_header_branch
    %17 = sbr.rel (%p15) target = $region8
  $region5: #{basic_block_forward.5} parent=0 // loop_body
    %s19 = ssub.s32 %s14, 1
    %s20 = ssub.s32 %s14, 2
    %s27 = sadd.s32 1, %s22
    %p28 = scmp.ge.s32.totalorder %s27, 2
    %s29 = scalar_select %p28, 0, %s27
    %s30 = sadd.s32 1, %s21
    %s31 = scalar_select %p28, %s30, %s21
    %p32 = scmp.ge.s32.totalorder %s31, 1
    %s33 = scalar_select %p32, 0, %s31
    %s34 = ssub.s32 %s22, %s29
    %p35 = scmp.eq.s32.totalorder %s34, 0
    %s37 = sadd.s32 %s36, 1
    %s38 = scalar_select %p35, %s36, %s37
    %p41 = pneg %p35
    %p42 = scmp.eq.s32.totalorder %s14, 1
    %p43 = por %p41, %p42
    %p44 = scmp.ne.s32.totalorder %s36, %s39
    %p45 = scmp.eq.s32.totalorder %s14, 0
    %p46 = por %p44, %p45
    %p47 = scmp.ne.s32.totalorder %s36, %s39
    %p48 = scmp.eq.s32.totalorder %s19, 1
    %p49 = por %p47, %p48
    %p50 = scmp.ne.s32.totalorder %s39, %s40
    %p51 = scmp.eq.s32.totalorder %s19, 0
    %p52 = por %p50, %p51
    %p53 = scmp.ne.s32.totalorder %s39, %s40
    %p54 = scmp.eq.s32.totalorder %s20, 1
    %p55 = por %p53, %p54
    %p57 = scmp.ne.s32.totalorder %s40, %s56
    %p58 = scmp.eq.s32.totalorder %s20, 0
    %p59 = por %p57, %p58
    %s60 = ssub.s32 %s21, %s33
    %p61 = scmp.eq.s32.totalorder %s60, 0
    %s63 = sadd.s32 %s62, 1
    %s64 = scalar_select %p61, %s62, %s63
    %p67 = pneg %p61
    %p68 = scmp.eq.s32.totalorder %s14, 1
    %p69 = por %p67, %p68
    %p70 = scmp.ne.s32.totalorder %s62, %s65
    %p71 = scmp.eq.s32.totalorder %s14, 0
    %p72 = por %p70, %p71
    %p73 = scmp.ne.s32.totalorder %s62, %s65
    %p74 = scmp.eq.s32.totalorder %s19, 1
    %p75 = por %p73, %p74
    %p76 = scmp.ne.s32.totalorder %s65, %s66
    %p77 = scmp.eq.s32.totalorder %s19, 0
    %p78 = por %p76, %p77
    %p79 = scmp.ne.s32.totalorder %s65, %s66
    %p80 = scmp.eq.s32.totalorder %s20, 1
    %p81 = por %p79, %p80
    %p83 = scmp.ne.s32.totalorder %s66, %s82
    %p84 = scmp.eq.s32.totalorder %s20, 0
    %p85 = por %p83, %p84
    %s87 = sadd.s32 %s86, 1
    %p90 = scmp.eq.s32.totalorder %s14, 1
    %p91 = scmp.ne.s32.totalorder %s86, %s88
    %p92 = scmp.eq.s32.totalorder %s14, 0
    %p93 = por %p91, %p92
    %p94 = scmp.ne.s32.totalorder %s86, %s88
    %p95 = scmp.eq.s32.totalorder %s19, 1
    %p96 = por %p94, %p95
    %p97 = scmp.ne.s32.totalorder %s88, %s89
    %p98 = scmp.eq.s32.totalorder %s19, 0
    %p99 = por %p97, %p98
    %p100 = scmp.ne.s32.totalorder %s88, %s89
    %p101 = scmp.eq.s32.totalorder %s20, 1
    %p102 = por %p100, %p101
    %p104 = scmp.ne.s32.totalorder %s89, %s103
    %p105 = scmp.eq.s32.totalorder %s20, 0
    %p106 = por %p104, %p105
    %s108 = sadd.s32 %s107, 1
    %p111 = scmp.eq.s32.totalorder %s14, 1
    %p112 = scmp.ne.s32.totalorder %s107, %s109
    %p113 = scmp.eq.s32.totalorder %s14, 0
    %p114 = por %p112, %p113
    %p115 = scmp.ne.s32.totalorder %s107, %s109
    %p116 = scmp.eq.s32.totalorder %s19, 1
    %p117 = por %p115, %p116
    %p118 = scmp.ne.s32.totalorder %s109, %s110
    %p119 = scmp.eq.s32.totalorder %s19, 0
    %p120 = por %p118, %p119
    %p121 = scmp.ne.s32.totalorder %s109, %s110
    %p122 = scmp.eq.s32.totalorder %s20, 1
    %p123 = por %p121, %p122
    %p125 = scmp.ne.s32.totalorder %s110, %s124
    %p126 = scmp.eq.s32.totalorder %s20, 0
    %p127 = por %p125, %p126
    %s128 = ssub.s32 %s22, %s29
    %p129 = scmp.eq.s32.totalorder %s128, 0
    %s131 = sadd.s32 %s130, 1
    %s132 = scalar_select %p129, %s130, %s131
    %p135 = pneg %p129
    %p136 = scmp.eq.s32.totalorder %s14, 1
    %p137 = por %p135, %p136
    %p138 = scmp.ne.s32.totalorder %s130, %s133
    %p139 = scmp.eq.s32.totalorder %s14, 0
    %p140 = por %p138, %p139
    %p141 = scmp.ne.s32.totalorder %s130, %s133
    %p142 = scmp.eq.s32.totalorder %s19, 1
    %p143 = por %p141, %p142
    %p144 = scmp.ne.s32.totalorder %s133, %s134
    %p145 = scmp.eq.s32.totalorder %s19, 0
    %p146 = por %p144, %p145
    %p147 = scmp.ne.s32.totalorder %s133, %s134
    %p148 = scmp.eq.s32.totalorder %s20, 1
    %p149 = por %p147, %p148
    %p151 = scmp.ne.s32.totalorder %s134, %s150
    %p152 = scmp.eq.s32.totalorder %s20, 0
    %p153 = por %p151, %p152
    %s155 = sadd.s32 %s154, 1
    %p158 = scmp.eq.s32.totalorder %s14, 1
    %p159 = scmp.ne.s32.totalorder %s154, %s156
    %p160 = scmp.eq.s32.totalorder %s14, 0
    %p161 = por %p159, %p160
    %p162 = scmp.ne.s32.totalorder %s154, %s156
    %p163 = scmp.eq.s32.totalorder %s19, 1
    %p164 = por %p162, %p163
    %p165 = scmp.ne.s32.totalorder %s156, %s157
    %p166 = scmp.eq.s32.totalorder %s19, 0
    %p167 = por %p165, %p166
    %p168 = scmp.ne.s32.totalorder %s156, %s157
    %p169 = scmp.eq.s32.totalorder %s20, 1
    %p170 = por %p168, %p169
    %p172 = scmp.ne.s32.totalorder %s157, %s171
    %p173 = scmp.eq.s32.totalorder %s20, 0
    %p174 = por %p172, %p173
    %s176 = sadd.s32 %s175, 1
    %p179 = scmp.eq.s32.totalorder %s14, 1
    %p180 = scmp.ne.s32.totalorder %s175, %s177
    %p181 = scmp.eq.s32.totalorder %s14, 0
    %p182 = por %p180, %p181
    %p183 = scmp.ne.s32.totalorder %s175, %s177
    %p184 = scmp.eq.s32.totalorder %s19, 1
    %p185 = por %p183, %p184
    %p186 = scmp.ne.s32.totalorder %s177, %s178
    %p187 = scmp.eq.s32.totalorder %s19, 0
    %p188 = por %p186, %p187
    %p189 = scmp.ne.s32.totalorder %s177, %s178
    %p190 = scmp.eq.s32.totalorder %s20, 1
    %p191 = por %p189, %p190
    %p193 = scmp.ne.s32.totalorder %s178, %s192
    %p194 = scmp.eq.s32.totalorder %s20, 0
    %p195 = por %p193, %p194
    %s196 = ssub.s32 %s21, %s33
    %p197 = scmp.eq.s32.totalorder %s196, 0
    %s199 = sadd.s32 %s198, 1
    %s200 = scalar_select %p197, %s198, %s199
    %p203 = pneg %p197
    %p204 = scmp.eq.s32.totalorder %s14, 1
    %p205 = por %p203, %p204
    %p206 = scmp.ne.s32.totalorder %s198, %s201
    %p207 = scmp.eq.s32.totalorder %s14, 0
    %p208 = por %p206, %p207
    %p209 = scmp.ne.s32.totalorder %s198, %s201
    %p210 = scmp.eq.s32.totalorder %s19, 1
    %p211 = por %p209, %p210
    %p212 = scmp.ne.s32.totalorder %s201, %s202
    %p213 = scmp.eq.s32.totalorder %s19, 0
    %p214 = por %p212, %p213
    %p215 = scmp.ne.s32.totalorder %s201, %s202
    %p216 = scmp.eq.s32.totalorder %s20, 1
    %p217 = por %p215, %p216
    %p219 = scmp.ne.s32.totalorder %s202, %s218
    %p220 = scmp.eq.s32.totalorder %s20, 0
    %p221 = por %p219, %p220
    %s222 = ssub.s32 %s22, %s29
    %s223 = ssub.s32 %s21, %s33
    %s224 = sor.u32 %s222, %s223
    %p225 = scmp.eq.s32.totalorder %s224, 0
    %s227 = sadd.s32 %s226, 1
    %s228 = scalar_select %p225, %s226, %s227
    %p231 = pneg %p225
    %p232 = scmp.eq.s32.totalorder %s14, 1
    %p233 = por %p231, %p232
    %p234 = scmp.ne.s32.totalorder %s226, %s229
    %p235 = scmp.eq.s32.totalorder %s14, 0
    %p236 = por %p234, %p235
    %p237 = scmp.ne.s32.totalorder %s226, %s229
    %p238 = scmp.eq.s32.totalorder %s19, 1
    %p239 = por %p237, %p238
    %p240 = scmp.ne.s32.totalorder %s229, %s230
    %p241 = scmp.eq.s32.totalorder %s19, 0
    %p242 = por %p240, %p241
    %p243 = scmp.ne.s32.totalorder %s229, %s230
    %p244 = scmp.eq.s32.totalorder %s20, 1
    %p245 = por %p243, %p244
    %p247 = scmp.ne.s32.totalorder %s230, %s246
    %p248 = scmp.eq.s32.totalorder %s20, 0
    %p249 = por %p247, %p248
    %p250 = scmp.le.s32.totalorder 1, %s14
    %p251 = scmp.lt.s32.totalorder %s14, 3
    %p252 = pnand %p250, %p251
    %p253 = pneg %p252
    // Predicated region
    $region9: #{basic_block_forward.5} parent=5 // pred_check
      _
    $region10: #{basic_block_forward.5} parent=5 // pred_check_branch
      %255 = sbr.rel (%p252) target = $region12
    $region11: #{basic_block_forward.5} parent=5 // pred_region
      %s256 = ssub.s32 %s14, 1
      // Predicated region
      $region13: #{basic_block_forward.5} parent=11 // pred_check
        %p257 = pneg %p78
      $region14: #{basic_block_forward.5} parent=11 // pred_check_branch
        %259 = sbr.rel (%p257) target = $region16
      $region15: #{basic_block_forward.5} parent=11 // pred_region
        %p260 = scmp.lt.s32.totalorder %s23, 0
        %s261 = scalar_select %p260, %s23, 0
        %s262 = smul.addr %s261, 4
        %s263 = scalar_lea.vmem %s1, %s262
      $region16: #{basic_block_forward.5} parent=11 // pred_fallthru
        _
      // Predicated region
      $region17: #{basic_block_forward.5} parent=11 // pred_check
        %p264 = pneg %p99
      $region18: #{basic_block_forward.5} parent=11 // pred_check_branch
        %266 = sbr.rel (%p264) target = $region20
      $region19: #{basic_block_forward.5} parent=11 // pred_region
        _
      $region20: #{basic_block_forward.5} parent=11 // pred_fallthru
        _
      // Predicated region
      $region21: #{basic_block_forward.5} parent=11 // pred_check
        %p267 = pneg %p120
      $region22: #{basic_block_forward.5} parent=11 // pred_check_branch
        %269 = sbr.rel (%p267) target = $region24
      $region23: #{basic_block_forward.5} parent=11 // pred_region
        _
      $region24: #{basic_block_forward.5} parent=11 // pred_fallthru
        _
      // Predicated region
      $region25: #{basic_block_forward.5} parent=11 // pred_check
        %p270 = pneg %p167
      $region26: #{basic_block_forward.5} parent=11 // pred_check_branch
        %272 = sbr.rel (%p270) target = $region28
      $region27: #{basic_block_forward.5} parent=11 // pred_region
        _
      $region28: #{basic_block_forward.5} parent=11 // pred_fallthru
        _
      // Predicated region
      $region29: #{basic_block_forward.5} parent=11 // pred_check
        %p273 = pneg %p188
      $region30: #{basic_block_forward.5} parent=11 // pred_check_branch
        %275 = sbr.rel (%p273) target = $region32
      $region31: #{basic_block_forward.5} parent=11 // pred_region
        _
      $region32: #{basic_block_forward.5} parent=11 // pred_fallthru
        _
      // Predicated region
      $region33: #{basic_block_forward.5} parent=11 // pred_check
        %p276 = pneg %p214
      $region34: #{basic_block_forward.5} parent=11 // pred_check_branch
        %278 = sbr.rel (%p276) target = $region36
      $region35: #{basic_block_forward.5} parent=11 // pred_region
        %p279 = scmp.lt.s32.totalorder %s23, 0
        %s280 = scalar_select %p279, %s23, 0
        %s281 = smul.addr %s280, 4
        %s282 = scalar_lea.vmem %s7, %s281
      $region36: #{basic_block_forward.5} parent=11 // pred_fallthru
        _
    $region12: #{basic_block_forward.5} parent=5 // pred_fallthru
      _
    %p283 = scmp.lt.s32.totalorder %s14, 2
    // Predicated region
    $region37: #{basic_block_forward.5} parent=5 // pred_check
      %p284 = pneg %p283
    $region38: #{basic_block_forward.5} parent=5 // pred_check_branch
      %286 = sbr.rel (%p284) target = $region40
    $region39: #{basic_block_forward.5} parent=5 // pred_region
      // Predicated region
      $region41: #{basic_block_forward.5} parent=39 // pred_check
        %p287 = pneg %p46
      $region42: #{basic_block_forward.5} parent=39 // pred_check_branch
        %289 = sbr.rel (%p287) target = $region44
      $region43: #{basic_block_forward.5} parent=39 // pred_region
        %p290 = scmp.lt.s32.totalorder %s22, 1
        %s291 = scalar_select %p290, %s22, 1
        %s292 = smul.addr %s291, 8
        %s293 = smul.addr %s292, 4
        %s294 = scalar_lea.vmem %s0, %s293
      $region44: #{basic_block_forward.5} parent=39 // pred_fallthru
        _
      // Predicated region
      $region45: #{basic_block_forward.5} parent=39 // pred_check
        %p295 = pneg %p140
      $region46: #{basic_block_forward.5} parent=39 // pred_check_branch
        %297 = sbr.rel (%p295) target = $region48
      $region47: #{basic_block_forward.5} parent=39 // pred_region
        %p298 = scmp.lt.s32.totalorder %s22, 1
        %s299 = scalar_select %p298, %s22, 1
        %s300 = smul.addr %s299, 8
        %s301 = smul.addr %s300, 4
        %s302 = scalar_lea.vmem %s4, %s301
      $region48: #{basic_block_forward.5} parent=39 // pred_fallthru
        _
    $region40: #{basic_block_forward.5} parent=5 // pred_fallthru
      _
    %p303 = scmp.le.s32.totalorder 1, %s14
    %p304 = scmp.lt.s32.totalorder %s14, 3
    %p305 = pnand %p303, %p304
    %p306 = pneg %p305
    // Predicated region
    $region49: #{basic_block_forward.5} parent=5 // pred_check
      _
    $region50: #{basic_block_forward.5} parent=5 // pred_check_branch
      %308 = sbr.rel (%p305) target = $region52
    $region51: #{basic_block_forward.5} parent=5 // pred_region
      %s309 = ssub.s32 %s14, 1
      %p310 = scmp.lt.s32.totalorder %s24, 1
      %s311 = scalar_select %p310, %s24, 1
      %s312 = smul.addr %s311, 8
      %s313 = smul.addr %s312, 4
      %s314 = scalar_lea.vmem %s0, %s313
      %p315 = pneg %p52
      %p316 = pneg %p49
      %p317 = scmp.lt.s32.totalorder %s23, 0
      %s318 = scalar_select %p317, %s23, 0
      %s319 = smul.addr %s318, 4
      %s320 = scalar_lea.vmem %s1, %s319
      %p321 = pneg %p78
      %p322 = pneg %p75
      %p323 = pneg %p99
      %p324 = pneg %p96
      %p325 = pneg %p120
      %p326 = pneg %p117
      %p327 = scmp.lt.s32.totalorder %s24, 1
      %s328 = scalar_select %p327, %s24, 1
      %s329 = smul.addr %s328, 8
      %s330 = smul.addr %s329, 4
      %s331 = scalar_lea.vmem %s4, %s330
      %p332 = pneg %p146
      %p333 = pneg %p143
      %p334 = pneg %p167
      %p335 = pneg %p164
      %p336 = pneg %p188
      %p337 = pneg %p185
      %p338 = scmp.lt.s32.totalorder %s23, 0
      %s339 = scalar_select %p338, %s23, 0
      %s340 = smul.addr %s339, 4
      %s341 = scalar_lea.vmem %s7, %s340
      %p342 = pneg %p214
      %p343 = pneg %p211
      %p344 = pneg %p242
      %p345 = pneg %p239
      %p346 = scmp.lt.s32.totalorder %s24, 1
      %s347 = scalar_select %p346, %s24, 1
      %p348 = scmp.lt.s32.totalorder %s23, 0
      %s349 = scalar_select %p348, %s23, 0
      %s350 = smul.addr %s347, 8
      %s351 = sadd.s32 %s349, %s350
      %s352 = smul.addr %s351, 8
      %s353 = scalar_lea.vmem %s8, %s352
      %p354 = scmp.lt.s32.totalorder %s24, 1
      %s355 = scalar_select %p354, %s24, 1
      %s356 = smul.addr %s355, 8
      %s357 = smul.addr %s356, 4
      %s358 = scalar_lea.vmem %s0, %s357
      %p359 = scmp.lt.s32.totalorder %s23, 0
      %s360 = scalar_select %p359, %s23, 0
      %s361 = smul.addr %s360, 4
      %s362 = scalar_lea.vmem %s1, %s361
      %p363 = scmp.lt.s32.totalorder %s24, 1
      %s364 = scalar_select %p363, %s24, 1
      %s365 = smul.addr %s364, 8
      %s366 = smul.addr %s365, 4
      %s367 = scalar_lea.vmem %s4, %s366
      %p368 = scmp.lt.s32.totalorder %s23, 0
      %s369 = scalar_select %p368, %s23, 0
      %s370 = smul.addr %s369, 4
      %s371 = scalar_lea.vmem %s7, %s370
      %p372 = scmp.lt.s32.totalorder %s24, 1
      %s373 = scalar_select %p372, %s24, 1
      %p374 = scmp.lt.s32.totalorder %s23, 0
      %s375 = scalar_select %p374, %s23, 0
      %s376 = smul.addr %s373, 8
      %s377 = sadd.s32 %s375, %s376
      %s378 = smul.addr %s377, 8
      %s379 = scalar_lea.vmem %s8, %s378
      %v381 = vld [vmem:[%s2] sm:$0x1]
      %v382 = vld [vmem:[%s3] sm:$0x1]
      %383 = vst [vmem:[#allocation2] sm:$0xf] 0
      %384 = vst [vmem:[#allocation2 + $0x4] sm:$0x1] 0
      %385 = vst [vmem:[#allocation2 + $0x8] sm:$0xf] 0
      %386 = vst [vmem:[#allocation2 + $0xc] sm:$0x1] 0
      %387 = vst [vmem:[#allocation2 + $0x10] sm:$0xf] 0
      %388 = vst [vmem:[#allocation2 + $0x14] sm:$0x1] 0
      %389 = vst [vmem:[#allocation2 + $0x18] sm:$0xf] 0
      %390 = vst [vmem:[#allocation2 + $0x1c] sm:$0x1] 0
      %391 = vst [vmem:[#allocation2 + $0x20] sm:$0xf] 0
      %392 = vst [vmem:[#allocation2 + $0x24] sm:$0x1] 0
      %393 = vst [vmem:[#allocation2 + $0x28] sm:$0xf] 0
      %394 = vst [vmem:[#allocation2 + $0x2c] sm:$0x1] 0
      %395 = vst [vmem:[#allocation2 + $0x30] sm:$0xf] 0
      %396 = vst [vmem:[#allocation2 + $0x34] sm:$0x1] 0
      %397 = vst [vmem:[#allocation2 + $0x38] sm:$0xf] 0
      %398 = vst [vmem:[#allocation2 + $0x3c] sm:$0x1] 0
      %399 = vst [vmem:[#allocation2 + $0x40] sm:$0xf] 0
      %400 = vst [vmem:[#allocation2 + $0x44] sm:$0x1] 0
      %401 = vst [vmem:[#allocation2 + $0x48] sm:$0xf] 0
      %402 = vst [vmem:[#allocation2 + $0x4c] sm:$0x1] 0
      %v403 = vld [vmem:[%s358] sm:$0xf]
      %v404 = vld [vmem:[%s358 + $0x4] sm:$0xf]
      %v405 = vld [vmem:[%s358 + $0x8] sm:$0xf]
      %v406 = vld [vmem:[%s358 + $0xc] sm:$0xf]
      %v407 = vld [vmem:[%s358 + $0x10] sm:$0xf]
      %v408 = vld [vmem:[%s358 + $0x14] sm:$0xf]
      %v409 = vld [vmem:[%s358 + $0x18] sm:$0xf]
      %v410 = vld [vmem:[%s358 + $0x1c] sm:$0xf]
      %v411 = vunpack.c.l.bf16 %v403
      %v412 = vunpack.c.l.bf16 %v404
      %v413 = vunpack.c.l.bf16 %v405
      %v414 = vunpack.c.l.bf16 %v406
      %v415 = vunpack.c.l.bf16 %v407
      %v416 = vunpack.c.l.bf16 %v408
      %v417 = vunpack.c.l.bf16 %v409
      %v418 = vunpack.c.l.bf16 %v410
      %v420 = vperm.slane %v381, 0
      %v422 = vmul.f32 %v411, %v420
      %v423 = vmul.f32 %v412, %v420
      %v424 = vmul.f32 %v413, %v420
      %v425 = vmul.f32 %v414, %v420
      %v426 = vmul.f32 %v415, %v420
      %v427 = vmul.f32 %v416, %v420
      %v428 = vmul.f32 %v417, %v420
      %v429 = vmul.f32 %v418, %v420
      %v431 = vperm.slane %v382, 0
      %v433 = vadd.f32 %v422, %v431
      %v434 = vadd.f32 %v423, %v431
      %v435 = vadd.f32 %v424, %v431
      %v436 = vadd.f32 %v425, %v431
      %v437 = vadd.f32 %v426, %v431
      %v438 = vadd.f32 %v427, %v431
      %v439 = vadd.f32 %v428, %v431
      %v440 = vadd.f32 %v429, %v431
      %v441 = vmax.f32 %v433, 0.0
      %v442 = vmax.f32 %v434, 0.0
      %v443 = vmax.f32 %v435, 0.0
      %v444 = vmax.f32 %v436, 0.0
      %v445 = vmax.f32 %v437, 0.0
      %v446 = vmax.f32 %v438, 0.0
      %v447 = vmax.f32 %v439, 0.0
      %v448 = vmax.f32 %v440, 0.0
      %v449 = vpack.c.bf16 %v441, %v441
      %v450 = vpack.c.bf16 %v442, %v442
      %v451 = vpack.c.bf16 %v443, %v443
      %v452 = vpack.c.bf16 %v444, %v444
      %v453 = vpack.c.bf16 %v445, %v445
      %v454 = vpack.c.bf16 %v446, %v446
      %v455 = vpack.c.bf16 %v447, %v447
      %v456 = vpack.c.bf16 %v448, %v448
      %v458 = vshrl.u32 %v449, 16
      %v460 = vrot.slane %v458, 7
      %v461 = vshll.u32 %v449, 16
      %v463 = vor.u32 %v460, %v461
      %v464 = vrot.slane %v460, 4
      %v466 = vshrl.u32 %v450, 16
      %v468 = vrot.slane %v466, 7
      %v469 = vshll.u32 %v450, 16
      %v471 = vor.u32 %v468, %v469
      %v472 = vrot.slane %v468, 4
      %v474 = vshrl.u32 %v451, 16
      %v476 = vrot.slane %v474, 7
      %v477 = vshll.u32 %v451, 16
      %v479 = vor.u32 %v476, %v477
      %v480 = vrot.slane %v476, 4
      %v482 = vshrl.u32 %v452, 16
      %v484 = vrot.slane %v482, 7
      %v485 = vshll.u32 %v452, 16
      %v487 = vor.u32 %v484, %v485
      %v488 = vrot.slane %v484, 4
      %v490 = vshrl.u32 %v453, 16
      %v492 = vrot.slane %v490, 7
      %v493 = vshll.u32 %v453, 16
      %v495 = vor.u32 %v492, %v493
      %v496 = vrot.slane %v492, 4
      %v498 = vshrl.u32 %v454, 16
      %v500 = vrot.slane %v498, 7
      %v501 = vshll.u32 %v454, 16
      %v503 = vor.u32 %v500, %v501
      %v504 = vrot.slane %v500, 4
      %v506 = vshrl.u32 %v455, 16
      %v508 = vrot.slane %v506, 7
      %v509 = vshll.u32 %v455, 16
      %v511 = vor.u32 %v508, %v509
      %v512 = vrot.slane %v508, 4
      %v514 = vshrl.u32 %v456, 16
      %v516 = vrot.slane %v514, 7
      %v517 = vshll.u32 %v456, 16
      %v519 = vor.u32 %v516, %v517
      %v520 = vrot.slane %v516, 4
      %s537 = scalar_lea.vmem [#allocation2], 8
      %vm538 = vcmask 1043456
      %vm539 = vsmask.f32 7938
      %vm540 = vmand %vm538, %vm539
      %v541 = vld [vmem:[%s537] sm:$0xf]
      %v542 = vsel %vm540, %v463, %v541
      %543 = vst [vmem:[%s537] sm:$0xf] %v542
      %vm544 = vcmask 1040384
      %vm545 = vsmask.f32 256
      %vm546 = vmand %vm544, %vm545
      %v547 = vld [vmem:[%s537 + $0x4] sm:$0x1]
      %v548 = vsel %vm546, %v464, %v547
      %549 = vst [vmem:[%s537 + $0x4] sm:$0x1] %v548
      %v550 = vld [vmem:[%s537 + $0x8] sm:$0xf]
      %v551 = vsel %vm540, %v471, %v550
      %552 = vst [vmem:[%s537 + $0x8] sm:$0xf] %v551
      %v553 = vld [vmem:[%s537 + $0xc] sm:$0x1]
      %v554 = vsel %vm546, %v472, %v553
      %555 = vst [vmem:[%s537 + $0xc] sm:$0x1] %v554
      %v556 = vld [vmem:[%s537 + $0x10] sm:$0xf]
      %v557 = vsel %vm540, %v479, %v556
      %558 = vst [vmem:[%s537 + $0x10] sm:$0xf] %v557
      %v559 = vld [vmem:[%s537 + $0x14] sm:$0x1]
      %v560 = vsel %vm546, %v480, %v559
      %561 = vst [vmem:[%s537 + $0x14] sm:$0x1] %v560
      %v562 = vld [vmem:[%s537 + $0x18] sm:$0xf]
      %v563 = vsel %vm540, %v487, %v562
      %564 = vst [vmem:[%s537 + $0x18] sm:$0xf] %v563
      %v565 = vld [vmem:[%s537 + $0x1c] sm:$0x1]
      %v566 = vsel %vm546, %v488, %v565
      %567 = vst [vmem:[%s537 + $0x1c] sm:$0x1] %v566
      %v568 = vld [vmem:[%s537 + $0x20] sm:$0xf]
      %v569 = vsel %vm540, %v495, %v568
      %570 = vst [vmem:[%s537 + $0x20] sm:$0xf] %v569
      %v571 = vld [vmem:[%s537 + $0x24] sm:$0x1]
      %v572 = vsel %vm546, %v496, %v571
      %573 = vst [vmem:[%s537 + $0x24] sm:$0x1] %v572
      %v574 = vld [vmem:[%s537 + $0x28] sm:$0xf]
      %v575 = vsel %vm540, %v503, %v574
      %576 = vst [vmem:[%s537 + $0x28] sm:$0xf] %v575
      %v577 = vld [vmem:[%s537 + $0x2c] sm:$0x1]
      %v578 = vsel %vm546, %v504, %v577
      %579 = vst [vmem:[%s537 + $0x2c] sm:$0x1] %v578
      %v580 = vld [vmem:[%s537 + $0x30] sm:$0xf]
      %v581 = vsel %vm540, %v511, %v580
      %582 = vst [vmem:[%s537 + $0x30] sm:$0xf] %v581
      %v583 = vld [vmem:[%s537 + $0x34] sm:$0x1]
      %v584 = vsel %vm546, %v512, %v583
      %585 = vst [vmem:[%s537 + $0x34] sm:$0x1] %v584
      %v586 = vld [vmem:[%s537 + $0x38] sm:$0xf]
      %v587 = vsel %vm540, %v519, %v586
      %588 = vst [vmem:[%s537 + $0x38] sm:$0xf] %v587
      %v589 = vld [vmem:[%s537 + $0x3c] sm:$0x1]
      %v590 = vsel %vm546, %v520, %v589
      %591 = vst [vmem:[%s537 + $0x3c] sm:$0x1] %v590
      %592 = vst [vmem:[#allocation3] sm:$0xff] 0.0
      %593 = vst [vmem:[#allocation3 + $0x8] sm:$0xff] 0.0
      %594 = vst [vmem:[#allocation3 + $0x10] sm:$0xff] 0.0
      %595 = vst [vmem:[#allocation3 + $0x18] sm:$0xff] 0.0
      %596 = vst [vmem:[#allocation3 + $0x20] sm:$0xff] 0.0
      %597 = vst [vmem:[#allocation3 + $0x28] sm:$0xff] 0.0
      %598 = vst [vmem:[#allocation3 + $0x30] sm:$0xff] 0.0
      %599 = vst [vmem:[#allocation3 + $0x38] sm:$0xff] 0.0
      %v600 = vld [vmem:[#allocation2] sm:$0xf]
      %v601 = vld [vmem:[#allocation2 + $0x8] sm:$0xf]
      %v602 = vld [vmem:[#allocation2 + $0x10] sm:$0xf]
      %v603 = vld [vmem:[#allocation2 + $0x18] sm:$0xf]
      %v604 = vld [vmem:[#allocation2 + $0x20] sm:$0xf]
      %v605 = vld [vmem:[#allocation2 + $0x28] sm:$0xf]
      %v606 = vld [vmem:[#allocation2 + $0x30] sm:$0xf]
      %v607 = vld [vmem:[#allocation2 + $0x38] sm:$0xf]
      %v608 = vld [vmem:[#allocation3] sm:$0xff]
      %v609 = vld [vmem:[#allocation3 + $0x8] sm:$0xff]
      %v610 = vld [vmem:[#allocation3 + $0x10] sm:$0xff]
      %v611 = vld [vmem:[#allocation3 + $0x18] sm:$0xff]
      %v612 = vld [vmem:[#allocation3 + $0x20] sm:$0xff]
      %v613 = vld [vmem:[#allocation3 + $0x28] sm:$0xff]
      %v614 = vld [vmem:[#allocation3 + $0x30] sm:$0xff]
      %v615 = vld [vmem:[#allocation3 + $0x38] sm:$0xff]
      %v616 = vld [vmem:[%s362] sm:$0xf]
      %v617 = vld [vmem:[%s362 + $0x4] sm:$0xf]
      %v618 = vld [vmem:[%s362 + $0x8] sm:$0xf]
      %v619 = vld [vmem:[%s362 + $0xc] sm:$0xf]
      %v620 = vld [vmem:[%s362 + $0x10] sm:$0xf]
      %v621 = vld [vmem:[%s362 + $0x14] sm:$0xf]
      %v622 = vld [vmem:[%s362 + $0x18] sm:$0xf]
      %v623 = vld [vmem:[%s362 + $0x1c] sm:$0xf]
      %v624 = vld [vmem:[%s362 + $0x20] sm:$0xf]
      %v625 = vld [vmem:[%s362 + $0x24] sm:$0xf]
      %v626 = vld [vmem:[%s362 + $0x28] sm:$0xf]
      %v627 = vld [vmem:[%s362 + $0x2c] sm:$0xf]
      %v628 = vld [vmem:[%s362 + $0x30] sm:$0xf]
      %v629 = vld [vmem:[%s362 + $0x34] sm:$0xf]
      %v630 = vld [vmem:[%s362 + $0x38] sm:$0xf]
      %v631 = vld [vmem:[%s362 + $0x3c] sm:$0xf]
      %v640 = vunpack.c.l.b16 %v600
      %v641 = vunpack.c.l.b16 %v601
      %v642 = vunpack.c.l.b16 %v602
      %v643 = vunpack.c.l.b16 %v603
      %v644 = vunpack.c.l.b16 %v604
      %v645 = vunpack.c.l.b16 %v605
      %v646 = vunpack.c.l.b16 %v606
      %v647 = vunpack.c.l.b16 %v607
      %v648 = vpack.c.b16 %v641, %v640
      %v649 = vpack.c.b16 %v643, %v642
      %v650 = vpack.c.b16 %v645, %v644
      %v651 = vpack.c.b16 %v647, %v646
      %v672 = vunpack.c.l.b16 %v616
      %v673 = vunpack.c.l.b16 %v617
      %v674 = vunpack.c.l.b16 %v618
      %v675 = vunpack.c.l.b16 %v619
      %v676 = vunpack.c.l.b16 %v620
      %v677 = vunpack.c.l.b16 %v621
      %v678 = vunpack.c.l.b16 %v622
      %v679 = vunpack.c.l.b16 %v623
      %v680 = vunpack.c.l.b16 %v624
      %v681 = vunpack.c.l.b16 %v625
      %v682 = vunpack.c.l.b16 %v626
      %v683 = vunpack.c.l.b16 %v627
      %v684 = vunpack.c.l.b16 %v628
      %v685 = vunpack.c.l.b16 %v629
      %v686 = vunpack.c.l.b16 %v630
      %v687 = vunpack.c.l.b16 %v631
      %v688 = vpack.c.b16 %v673, %v672
      %v689 = vpack.c.b16 %v675, %v674
      %v690 = vpack.c.b16 %v677, %v676
      %v691 = vpack.c.b16 %v679, %v678
      %v692 = vpack.c.b16 %v681, %v680
      %v693 = vpack.c.b16 %v683, %v682
      %v694 = vpack.c.b16 %v685, %v684
      %v695 = vpack.c.b16 %v687, %v686
      %704 = vmatpush.bf16.msra.mxu0 %v695
      %705 = vmatpush.bf16.msra.mxu0 %v694
      %706 = vmatpush.bf16.msra.mxu0 %v693
      %707 = vmatpush.bf16.msra.mxu0 %v692
      %708 = vmatpush.bf16.msra.mxu0 %v691
      %709 = vmatpush.bf16.msra.mxu0 %v690
      %710 = vmatpush.bf16.msra.mxu0 %v689
      %711 = vmatpush.bf16.msra.mxu0 %v688
      %712 = vmatmul.bf16.gmra.mxu0 %v648
      %v713 = vpop.f32.mrf.mxu0
      %v714 = vadd.f32 0.0, %v713
      %v715 = vpop.f32.mrf.mxu0
      %v716 = vadd.f32 0.0, %v715
      %717 = vmatmul.bf16.gmra.mxu0 %v649
      %v718 = vpop.f32.mrf.mxu0
      %v719 = vadd.f32 0.0, %v718
      %v720 = vpop.f32.mrf.mxu0
      %v721 = vadd.f32 0.0, %v720
      %722 = vmatmul.bf16.gmra.mxu0 %v650
      %v723 = vpop.f32.mrf.mxu0
      %v724 = vadd.f32 0.0, %v723
      %v725 = vpop.f32.mrf.mxu0
      %v726 = vadd.f32 0.0, %v725
      %727 = vmatmul.bf16.gmra.mxu0 %v651
      %v728 = vpop.f32.mrf.mxu0
      %v729 = vadd.f32 0.0, %v728
      %v730 = vpop.f32.mrf.mxu0
      %v731 = vadd.f32 0.0, %v730
      %732 = vdwg.mxu0
      %v733 = vadd.f32 %v608, %v714
      %v734 = vadd.f32 %v609, %v716
      %v735 = vadd.f32 %v610, %v719
      %v736 = vadd.f32 %v611, %v721
      %v737 = vadd.f32 %v612, %v724
      %v738 = vadd.f32 %v613, %v726
      %v739 = vadd.f32 %v614, %v729
      %v740 = vadd.f32 %v615, %v731
      %741 = vst [vmem:[#allocation3] sm:$0xff] %v733
      %742 = vst [vmem:[#allocation3 + $0x8] sm:$0xff] %v734
      %743 = vst [vmem:[#allocation3 + $0x10] sm:$0xff] %v735
      %744 = vst [vmem:[#allocation3 + $0x18] sm:$0xff] %v736
      %745 = vst [vmem:[#allocation3 + $0x20] sm:$0xff] %v737
      %746 = vst [vmem:[#allocation3 + $0x28] sm:$0xff] %v738
      %747 = vst [vmem:[#allocation3 + $0x30] sm:$0xff] %v739
      %748 = vst [vmem:[#allocation3 + $0x38] sm:$0xff] %v740
      %v749 = vld [vmem:[#allocation2] sm:$0xf]
      %v750 = vld [vmem:[#allocation2 + $0x4] sm:$0x1]
      %v751 = vld [vmem:[#allocation2 + $0x8] sm:$0xf]
      %v752 = vld [vmem:[#allocation2 + $0xc] sm:$0x1]
      %v753 = vld [vmem:[#allocation2 + $0x10] sm:$0xf]
      %v754 = vld [vmem:[#allocation2 + $0x14] sm:$0x1]
      %v755 = vld [vmem:[#allocation2 + $0x18] sm:$0xf]
      %v756 = vld [vmem:[#allocation2 + $0x1c] sm:$0x1]
      %v757 = vld [vmem:[#allocation2 + $0x20] sm:$0xf]
      %v758 = vld [vmem:[#allocation2 + $0x24] sm:$0x1]
      %v759 = vld [vmem:[#allocation2 + $0x28] sm:$0xf]
      %v760 = vld [vmem:[#allocation2 + $0x2c] sm:$0x1]
      %v761 = vld [vmem:[#allocation2 + $0x30] sm:$0xf]
      %v762 = vld [vmem:[#allocation2 + $0x34] sm:$0x1]
      %v763 = vld [vmem:[#allocation2 + $0x38] sm:$0xf]
      %v764 = vld [vmem:[#allocation2 + $0x3c] sm:$0x1]
      %vm765 = vsmask.f32 3328
      %vm766 = vsmask.f32 7440
      %vm767 = vmor %vm765, %vm766
      %v769 = vshrl.u32 %v749, 16
      %v771 = vrot.slane %v769, 4
      %v772 = vshll.u32 %v749, 16
      %v774 = vrot.slane %v772, 5
      %v775 = vor.u32 %v771, %v774
      %v776 = vrot.slane %v775, 4
      %v778 = vshll.u32 %v750, 16
      %v780 = vrot.slane %v778, 5
      %v781 = vsel %vm767, %v776, %v780
      %v783 = vshrl.u32 %v751, 16
      %v785 = vrot.slane %v783, 4
      %v786 = vshll.u32 %v751, 16
      %v788 = vrot.slane %v786, 5
      %v789 = vor.u32 %v785, %v788
      %v790 = vrot.slane %v789, 4
      %v792 = vshll.u32 %v752, 16
      %v794 = vrot.slane %v792, 5
      %v795 = vsel %vm767, %v790, %v794
      %v797 = vshrl.u32 %v753, 16
      %v799 = vrot.slane %v797, 4
      %v800 = vshll.u32 %v753, 16
      %v802 = vrot.slane %v800, 5
      %v803 = vor.u32 %v799, %v802
      %v804 = vrot.slane %v803, 4
      %v806 = vshll.u32 %v754, 16
      %v808 = vrot.slane %v806, 5
      %v809 = vsel %vm767, %v804, %v808
      %v811 = vshrl.u32 %v755, 16
      %v813 = vrot.slane %v811, 4
      %v814 = vshll.u32 %v755, 16
      %v816 = vrot.slane %v814, 5
      %v817 = vor.u32 %v813, %v816
      %v818 = vrot.slane %v817, 4
      %v820 = vshll.u32 %v756, 16
      %v822 = vrot.slane %v820, 5
      %v823 = vsel %vm767, %v818, %v822
      %v825 = vshrl.u32 %v757, 16
      %v827 = vrot.slane %v825, 4
      %v828 = vshll.u32 %v757, 16
      %v830 = vrot.slane %v828, 5
      %v831 = vor.u32 %v827, %v830
      %v832 = vrot.slane %v831, 4
      %v834 = vshll.u32 %v758, 16
      %v836 = vrot.slane %v834, 5
      %v837 = vsel %vm767, %v832, %v836
      %v839 = vshrl.u32 %v759, 16
      %v841 = vrot.slane %v839, 4
      %v842 = vshll.u32 %v759, 16
      %v844 = vrot.slane %v842, 5
      %v845 = vor.u32 %v841, %v844
      %v846 = vrot.slane %v845, 4
      %v848 = vshll.u32 %v760, 16
      %v850 = vrot.slane %v848, 5
      %v851 = vsel %vm767, %v846, %v850
      %v853 = vshrl.u32 %v761, 16
      %v855 = vrot.slane %v853, 4
      %v856 = vshll.u32 %v761, 16
      %v858 = vrot.slane %v856, 5
      %v859 = vor.u32 %v855, %v858
      %v860 = vrot.slane %v859, 4
      %v862 = vshll.u32 %v762, 16
      %v864 = vrot.slane %v862, 5
      %v865 = vsel %vm767, %v860, %v864
      %v867 = vshrl.u32 %v763, 16
      %v869 = vrot.slane %v867, 4
      %v870 = vshll.u32 %v763, 16
      %v872 = vrot.slane %v870, 5
      %v873 = vor.u32 %v869, %v872
      %v874 = vrot.slane %v873, 4
      %v876 = vshll.u32 %v764, 16
      %v878 = vrot.slane %v876, 5
      %v879 = vsel %vm767, %v874, %v878
      %v880 = vld [vmem:[#allocation3] sm:$0xff]
      %v881 = vld [vmem:[#allocation3 + $0x8] sm:$0xff]
      %v882 = vld [vmem:[#allocation3 + $0x10] sm:$0xff]
      %v883 = vld [vmem:[#allocation3 + $0x18] sm:$0xff]
      %v884 = vld [vmem:[#allocation3 + $0x20] sm:$0xff]
      %v885 = vld [vmem:[#allocation3 + $0x28] sm:$0xff]
      %v886 = vld [vmem:[#allocation3 + $0x30] sm:$0xff]
      %v887 = vld [vmem:[#allocation3 + $0x38] sm:$0xff]
      %s888 = scalar_lea.vmem %s362, 64
      %v889 = vld [vmem:[%s888] sm:$0xf]
      %v890 = vld [vmem:[%s888 + $0x4] sm:$0xf]
      %v891 = vld [vmem:[%s888 + $0x8] sm:$0xf]
      %v892 = vld [vmem:[%s888 + $0xc] sm:$0xf]
      %v893 = vld [vmem:[%s888 + $0x10] sm:$0xf]
      %v894 = vld [vmem:[%s888 + $0x14] sm:$0xf]
      %v895 = vld [vmem:[%s888 + $0x18] sm:$0xf]
      %v896 = vld [vmem:[%s888 + $0x1c] sm:$0xf]
      %v897 = vld [vmem:[%s888 + $0x20] sm:$0xf]
      %v898 = vld [vmem:[%s888 + $0x24] sm:$0xf]
      %v899 = vld [vmem:[%s888 + $0x28] sm:$0xf]
      %v900 = vld [vmem:[%s888 + $0x2c] sm:$0xf]
      %v901 = vld [vmem:[%s888 + $0x30] sm:$0xf]
      %v902 = vld [vmem:[%s888 + $0x34] sm:$0xf]
      %v903 = vld [vmem:[%s888 + $0x38] sm:$0xf]
      %v904 = vld [vmem:[%s888 + $0x3c] sm:$0xf]
      %v905 = vunpack.c.l.b16 %v781
      %v906 = vunpack.c.l.b16 %v795
      %v907 = vunpack.c.l.b16 %v809
      %v908 = vunpack.c.l.b16 %v823
      %v909 = vunpack.c.l.b16 %v837
      %v910 = vunpack.c.l.b16 %v851
      %v911 = vunpack.c.l.b16 %v865
      %v912 = vunpack.c.l.b16 %v879
      %v913 = vpack.c.b16 %v906, %v905
      %v914 = vpack.c.b16 %v908, %v907
      %v915 = vpack.c.b16 %v910, %v909
      %v916 = vpack.c.b16 %v912, %v911
      %v937 = vunpack.c.l.b16 %v889
      %v938 = vunpack.c.l.b16 %v890
      %v939 = vunpack.c.l.b16 %v891
      %v940 = vunpack.c.l.b16 %v892
      %v941 = vunpack.c.l.b16 %v893
      %v942 = vunpack.c.l.b16 %v894
      %v943 = vunpack.c.l.b16 %v895
      %v944 = vunpack.c.l.b16 %v896
      %v945 = vunpack.c.l.b16 %v897
      %v946 = vunpack.c.l.b16 %v898
      %v947 = vunpack.c.l.b16 %v899
      %v948 = vunpack.c.l.b16 %v900
      %v949 = vunpack.c.l.b16 %v901
      %v950 = vunpack.c.l.b16 %v902
      %v951 = vunpack.c.l.b16 %v903
      %v952 = vunpack.c.l.b16 %v904
      %v953 = vpack.c.b16 %v938, %v937
      %v954 = vpack.c.b16 %v940, %v939
      %v955 = vpack.c.b16 %v942, %v941
      %v956 = vpack.c.b16 %v944, %v943
      %v957 = vpack.c.b16 %v946, %v945
      %v958 = vpack.c.b16 %v948, %v947
      %v959 = vpack.c.b16 %v950, %v949
      %v960 = vpack.c.b16 %v952, %v951
      %969 = vmatpush.bf16.msra.mxu0 %v960
      %970 = vmatpush.bf16.msra.mxu0 %v959
      %971 = vmatpush.bf16.msra.mxu0 %v958
      %972 = vmatpush.bf16.msra.mxu0 %v957
      %973 = vmatpush.bf16.msra.mxu0 %v956
      %974 = vmatpush.bf16.msra.mxu0 %v955
      %975 = vmatpush.bf16.msra.mxu0 %v954
      %976 = vmatpush.bf16.msra.mxu0 %v953
      %977 = vmatmul.bf16.gmra.mxu0 %v913
      %v978 = vpop.f32.mrf.mxu0
      %v979 = vadd.f32 0.0, %v978
      %v980 = vpop.f32.mrf.mxu0
      %v981 = vadd.f32 0.0, %v980
      %982 = vmatmul.bf16.gmra.mxu0 %v914
      %v983 = vpop.f32.mrf.mxu0
      %v984 = vadd.f32 0.0, %v983
      %v985 = vpop.f32.mrf.mxu0
      %v986 = vadd.f32 0.0, %v985
      %987 = vmatmul.bf16.gmra.mxu0 %v915
      %v988 = vpop.f32.mrf.mxu0
      %v989 = vadd.f32 0.0, %v988
      %v990 = vpop.f32.mrf.mxu0
      %v991 = vadd.f32 0.0, %v990
      %992 = vmatmul.bf16.gmra.mxu0 %v916
      %v993 = vpop.f32.mrf.mxu0
      %v994 = vadd.f32 0.0, %v993
      %v995 = vpop.f32.mrf.mxu0
      %v996 = vadd.f32 0.0, %v995
      %997 = vdwg.mxu0
      %v998 = vadd.f32 %v880, %v979
      %v999 = vadd.f32 %v881, %v981
      %v1000 = vadd.f32 %v882, %v984
      %v1001 = vadd.f32 %v883, %v986
      %v1002 = vadd.f32 %v884, %v989
      %v1003 = vadd.f32 %v885, %v991
      %v1004 = vadd.f32 %v886, %v994
      %v1005 = vadd.f32 %v887, %v996
      %1006 = vst [vmem:[#allocation3] sm:$0xff] %v998
      %1007 = vst [vmem:[#allocation3 + $0x8] sm:$0xff] %v999
      %1008 = vst [vmem:[#allocation3 + $0x10] sm:$0xff] %v1000
      %1009 = vst [vmem:[#allocation3 + $0x18] sm:$0xff] %v1001
      %1010 = vst [vmem:[#allocation3 + $0x20] sm:$0xff] %v1002
      %1011 = vst [vmem:[#allocation3 + $0x28] sm:$0xff] %v1003
      %1012 = vst [vmem:[#allocation3 + $0x30] sm:$0xff] %v1004
      %1013 = vst [vmem:[#allocation3 + $0x38] sm:$0xff] %v1005
      %v1014 = vld [vmem:[#allocation2] sm:$0xe]
      %v1015 = vld [vmem:[#allocation2 + $0x4] sm:$0x1]
      %v1016 = vld [vmem:[#allocation2 + $0x8] sm:$0xe]
      %v1017 = vld [vmem:[#allocation2 + $0xc] sm:$0x1]
      %v1018 = vld [vmem:[#allocation2 + $0x10] sm:$0xe]
      %v1019 = vld [vmem:[#allocation2 + $0x14] sm:$0x1]
      %v1020 = vld [vmem:[#allocation2 + $0x18] sm:$0xe]
      %v1021 = vld [vmem:[#allocation2 + $0x1c] sm:$0x1]
      %v1022 = vld [vmem:[#allocation2 + $0x20] sm:$0xe]
      %v1023 = vld [vmem:[#allocation2 + $0x24] sm:$0x1]
      %v1024 = vld [vmem:[#allocation2 + $0x28] sm:$0xe]
      %v1025 = vld [vmem:[#allocation2 + $0x2c] sm:$0x1]
      %v1026 = vld [vmem:[#allocation2 + $0x30] sm:$0xe]
      %v1027 = vld [vmem:[#allocation2 + $0x34] sm:$0x1]
      %v1028 = vld [vmem:[#allocation2 + $0x38] sm:$0xe]
      %v1029 = vld [vmem:[#allocation2 + $0x3c] sm:$0x1]
      %vm1046 = vcmask 1042432
      %vm1047 = vcmask 1046532
      %vm1048 = vmor %vm1046, %vm1047
      %v1049 = vrot.slane %v1014, 5
      %v1050 = vrot.slane %v1049, 4
      %v1051 = vrot.slane %v1015, 5
      %v1052 = vsel %vm1048, %v1050, %v1051
      %v1053 = vrot.slane %v1016, 5
      %v1054 = vrot.slane %v1053, 4
      %v1055 = vrot.slane %v1017, 5
      %v1056 = vsel %vm1048, %v1054, %v1055
      %v1057 = vrot.slane %v1018, 5
      %v1058 = vrot.slane %v1057, 4
      %v1059 = vrot.slane %v1019, 5
      %v1060 = vsel %vm1048, %v1058, %v1059
      %v1061 = vrot.slane %v1020, 5
      %v1062 = vrot.slane %v1061, 4
      %v1063 = vrot.slane %v1021, 5
      %v1064 = vsel %vm1048, %v1062, %v1063
      %v1065 = vrot.slane %v1022, 5
      %v1066 = vrot.slane %v1065, 4
      %v1067 = vrot.slane %v1023, 5
      %v1068 = vsel %vm1048, %v1066, %v1067
      %v1069 = vrot.slane %v1024, 5
      %v1070 = vrot.slane %v1069, 4
      %v1071 = vrot.slane %v1025, 5
      %v1072 = vsel %vm1048, %v1070, %v1071
      %v1073 = vrot.slane %v1026, 5
      %v1074 = vrot.slane %v1073, 4
      %v1075 = vrot.slane %v1027, 5
      %v1076 = vsel %vm1048, %v1074, %v1075
      %v1077 = vrot.slane %v1028, 5
      %v1078 = vrot.slane %v1077, 4
      %v1079 = vrot.slane %v1029, 5
      %v1080 = vsel %vm1048, %v1078, %v1079
      %v1081 = vld [vmem:[#allocation3] sm:$0xff]
      %v1082 = vld [vmem:[#allocation3 + $0x8] sm:$0xff]
      %v1083 = vld [vmem:[#allocation3 + $0x10] sm:$0xff]
      %v1084 = vld [vmem:[#allocation3 + $0x18] sm:$0xff]
      %v1085 = vld [vmem:[#allocation3 + $0x20] sm:$0xff]
      %v1086 = vld [vmem:[#allocation3 + $0x28] sm:$0xff]
      %v1087 = vld [vmem:[#allocation3 + $0x30] sm:$0xff]
      %v1088 = vld [vmem:[#allocation3 + $0x38] sm:$0xff]
      %s1089 = scalar_lea.vmem %s362, 128
      %v1090 = vld [vmem:[%s1089] sm:$0xf]
      %v1091 = vld [vmem:[%s1089 + $0x4] sm:$0xf]
      %v1092 = vld [vmem:[%s1089 + $0x8] sm:$0xf]
      %v1093 = vld [vmem:[%s1089 + $0xc] sm:$0xf]
      %v1094 = vld [vmem:[%s1089 + $0x10] sm:$0xf]
      %v1095 = vld [vmem:[%s1089 + $0x14] sm:$0xf]
      %v1096 = vld [vmem:[%s1089 + $0x18] sm:$0xf]
      %v1097 = vld [vmem:[%s1089 + $0x1c] sm:$0xf]
      %v1098 = vld [vmem:[%s1089 + $0x20] sm:$0xf]
      %v1099 = vld [vmem:[%s1089 + $0x24] sm:$0xf]
      %v1100 = vld [vmem:[%s1089 + $0x28] sm:$0xf]
      %v1101 = vld [vmem:[%s1089 + $0x2c] sm:$0xf]
      %v1102 = vld [vmem:[%s1089 + $0x30] sm:$0xf]
      %v1103 = vld [vmem:[%s1089 + $0x34] sm:$0xf]
      %v1104 = vld [vmem:[%s1089 + $0x38] sm:$0xf]
      %v1105 = vld [vmem:[%s1089 + $0x3c] sm:$0xf]
      %v1106 = vunpack.c.l.b16 %v1052
      %v1107 = vunpack.c.l.b16 %v1056
      %v1108 = vunpack.c.l.b16 %v1060
      %v1109 = vunpack.c.l.b16 %v1064
      %v1110 = vunpack.c.l.b16 %v1068
      %v1111 = vunpack.c.l.b16 %v1072
      %v1112 = vunpack.c.l.b16 %v1076
      %v1113 = vunpack.c.l.b16 %v1080
      %v1114 = vpack.c.b16 %v1107, %v1106
      %v1115 = vpack.c.b16 %v1109, %v1108
      %v1116 = vpack.c.b16 %v1111, %v1110
      %v1117 = vpack.c.b16 %v1113, %v1112
      %v1138 = vunpack.c.l.b16 %v1090
      %v1139 = vunpack.c.l.b16 %v1091
      %v1140 = vunpack.c.l.b16 %v1092
      %v1141 = vunpack.c.l.b16 %v1093
      %v1142 = vunpack.c.l.b16 %v1094
      %v1143 = vunpack.c.l.b16 %v1095
      %v1144 = vunpack.c.l.b16 %v1096
      %v1145 = vunpack.c.l.b16 %v1097
      %v1146 = vunpack.c.l.b16 %v1098
      %v1147 = vunpack.c.l.b16 %v1099
      %v1148 = vunpack.c.l.b16 %v1100
      %v1149 = vunpack.c.l.b16 %v1101
      %v1150 = vunpack.c.l.b16 %v1102
      %v1151 = vunpack.c.l.b16 %v1103
      %v1152 = vunpack.c.l.b16 %v1104
      %v1153 = vunpack.c.l.b16 %v1105
      %v1154 = vpack.c.b16 %v1139, %v1138
      %v1155 = vpack.c.b16 %v1141, %v1140
      %v1156 = vpack.c.b16 %v1143, %v1142
      %v1157 = vpack.c.b16 %v1145, %v1144
      %v1158 = vpack.c.b16 %v1147, %v1146
      %v1159 = vpack.c.b16 %v1149, %v1148
      %v1160 = vpack.c.b16 %v1151, %v1150
      %v1161 = vpack.c.b16 %v1153, %v1152
      %1170 = vmatpush.bf16.msra.mxu0 %v1161
      %1171 = vmatpush.bf16.msra.mxu0 %v1160
      %1172 = vmatpush.bf16.msra.mxu0 %v1159
      %1173 = vmatpush.bf16.msra.mxu0 %v1158
      %1174 = vmatpush.bf16.msra.mxu0 %v1157
      %1175 = vmatpush.bf16.msra.mxu0 %v1156
      %1176 = vmatpush.bf16.msra.mxu0 %v1155
      %1177 = vmatpush.bf16.msra.mxu0 %v1154
      %1178 = vmatmul.bf16.gmra.mxu0 %v1114
      %v1179 = vpop.f32.mrf.mxu0
      %v1180 = vadd.f32 0.0, %v1179
      %v1181 = vpop.f32.mrf.mxu0
      %v1182 = vadd.f32 0.0, %v1181
      %1183 = vmatmul.bf16.gmra.mxu0 %v1115
      %v1184 = vpop.f32.mrf.mxu0
      %v1185 = vadd.f32 0.0, %v1184
      %v1186 = vpop.f32.mrf.mxu0
      %v1187 = vadd.f32 0.0, %v1186
      %1188 = vmatmul.bf16.gmra.mxu0 %v1116
      %v1189 = vpop.f32.mrf.mxu0
      %v1190 = vadd.f32 0.0, %v1189
      %v1191 = vpop.f32.mrf.mxu0
      %v1192 = vadd.f32 0.0, %v1191
      %1193 = vmatmul.bf16.gmra.mxu0 %v1117
      %v1194 = vpop.f32.mrf.mxu0
      %v1195 = vadd.f32 0.0, %v1194
      %v1196 = vpop.f32.mrf.mxu0
      %v1197 = vadd.f32 0.0, %v1196
      %1198 = vdwg.mxu0
      %v1199 = vadd.f32 %v1081, %v1180
      %v1200 = vadd.f32 %v1082, %v1182
      %v1201 = vadd.f32 %v1083, %v1185
      %v1202 = vadd.f32 %v1084, %v1187
      %v1203 = vadd.f32 %v1085, %v1190
      %v1204 = vadd.f32 %v1086, %v1192
      %v1205 = vadd.f32 %v1087, %v1195
      %v1206 = vadd.f32 %v1088, %v1197
      %1207 = vst [vmem:[#allocation3] sm:$0xff] %v1199
      %1208 = vst [vmem:[#allocation3 + $0x8] sm:$0xff] %v1200
      %1209 = vst [vmem:[#allocation3 + $0x10] sm:$0xff] %v1201
      %1210 = vst [vmem:[#allocation3 + $0x18] sm:$0xff] %v1202
      %1211 = vst [vmem:[#allocation3 + $0x20] sm:$0xff] %v1203
      %1212 = vst [vmem:[#allocation3 + $0x28] sm:$0xff] %v1204
      %1213 = vst [vmem:[#allocation3 + $0x30] sm:$0xff] %v1205
      %1214 = vst [vmem:[#allocation3 + $0x38] sm:$0xff] %v1206
      %v1215 = vld [vmem:[%s537] sm:$0xf]
      %v1216 = vld [vmem:[%s537 + $0x8] sm:$0xf]
      %v1217 = vld [vmem:[%s537 + $0x10] sm:$0xf]
      %v1218 = vld [vmem:[%s537 + $0x18] sm:$0xf]
      %v1219 = vld [vmem:[%s537 + $0x20] sm:$0xf]
      %v1220 = vld [vmem:[%s537 + $0x28] sm:$0xf]
      %v1221 = vld [vmem:[%s537 + $0x30] sm:$0xf]
      %v1222 = vld [vmem:[%s537 + $0x38] sm:$0xf]
      %v1223 = vld [vmem:[#allocation3] sm:$0xff]
      %v1224 = vld [vmem:[#allocation3 + $0x8] sm:$0xff]
      %v1225 = vld [vmem:[#allocation3 + $0x10] sm:$0xff]
      %v1226 = vld [vmem:[#allocation3 + $0x18] sm:$0xff]
      %v1227 = vld [vmem:[#allocation3 + $0x20] sm:$0xff]
      %v1228 = vld [vmem:[#allocation3 + $0x28] sm:$0xff]
      %v1229 = vld [vmem:[#allocation3 + $0x30] sm:$0xff]
      %v1230 = vld [vmem:[#allocation3 + $0x38] sm:$0xff]
      %s1231 = scalar_lea.vmem %s362, 192
      %v1232 = vld [vmem:[%s1231] sm:$0xf]
      %v1233 = vld [vmem:[%s1231 + $0x4] sm:$0xf]
      %v1234 = vld [vmem:[%s1231 + $0x8] sm:$0xf]
      %v1235 = vld [vmem:[%s1231 + $0xc] sm:$0xf]
      %v1236 = vld [vmem:[%s1231 + $0x10] sm:$0xf]
      %v1237 = vld [vmem:[%s1231 + $0x14] sm:$0xf]
      %v1238 = vld [vmem:[%s1231 + $0x18] sm:$0xf]
      %v1239 = vld [vmem:[%s1231 + $0x1c] sm:$0xf]
      %v1240 = vld [vmem:[%s1231 + $0x20] sm:$0xf]
      %v1241 = vld [vmem:[%s1231 + $0x24] sm:$0xf]
      %v1242 = vld [vmem:[%s1231 + $0x28] sm:$0xf]
      %v1243 = vld [vmem:[%s1231 + $0x2c] sm:$0xf]
      %v1244 = vld [vmem:[%s1231 + $0x30] sm:$0xf]
      %v1245 = vld [vmem:[%s1231 + $0x34] sm:$0xf]
      %v1246 = vld [vmem:[%s1231 + $0x38] sm:$0xf]
      %v1247 = vld [vmem:[%s1231 + $0x3c] sm:$0xf]
      %v1256 = vunpack.c.l.b16 %v1215
      %v1257 = vunpack.c.l.b16 %v1216
      %v1258 = vunpack.c.l.b16 %v1217
      %v1259 = vunpack.c.l.b16 %v1218
      %v1260 = vunpack.c.l.b16 %v1219
      %v1261 = vunpack.c.l.b16 %v1220
      %v1262 = vunpack.c.l.b16 %v1221
      %v1263 = vunpack.c.l.b16 %v1222
      %v1264 = vpack.c.b16 %v1257, %v1256
      %v1265 = vpack.c.b16 %v1259, %v1258
      %v1266 = vpack.c.b16 %v1261, %v1260
      %v1267 = vpack.c.b16 %v1263, %v1262
      %v1288 = vunpack.c.l.b16 %v1232
      %v1289 = vunpack.c.l.b16 %v1233
      %v1290 = vunpack.c.l.b16 %v1234
      %v1291 = vunpack.c.l.b16 %v1235
      %v1292 = vunpack.c.l.b16 %v1236
      %v1293 = vunpack.c.l.b16 %v1237
      %v1294 = vunpack.c.l.b16 %v1238
      %v1295 = vunpack.c.l.b16 %v1239
      %v1296 = vunpack.c.l.b16 %v1240
      %v1297 = vunpack.c.l.b16 %v1241
      %v1298 = vunpack.c.l.b16 %v1242
      %v1299 = vunpack.c.l.b16 %v1243
      %v1300 = vunpack.c.l.b16 %v1244
      %v1301 = vunpack.c.l.b16 %v1245
      %v1302 = vunpack.c.l.b16 %v1246
      %v1303 = vunpack.c.l.b16 %v1247
      %v1304 = vpack.c.b16 %v1289, %v1288
      %v1305 = vpack.c.b16 %v1291, %v1290
      %v1306 = vpack.c.b16 %v1293, %v1292
      %v1307 = vpack.c.b16 %v1295, %v1294
      %v1308 = vpack.c.b16 %v1297, %v1296
      %v1309 = vpack.c.b16 %v1299, %v1298
      %v1310 = vpack.c.b16 %v1301, %v1300
      %v1311 = vpack.c.b16 %v1303, %v1302
      %1320 = vmatpush.bf16.msra.mxu0 %v1311
      %1321 = vmatpush.bf16.msra.mxu0 %v1310
      %1322 = vmatpush.bf16.msra.mxu0 %v1309
      %1323 = vmatpush.bf16.msra.mxu0 %v1308
      %1324 = vmatpush.bf16.msra.mxu0 %v1307
      %1325 = vmatpush.bf16.msra.mxu0 %v1306
      %1326 = vmatpush.bf16.msra.mxu0 %v1305
      %1327 = vmatpush.bf16.msra.mxu0 %v1304
      %1328 = vmatmul.bf16.gmra.mxu0 %v1264
      %v1329 = vpop.f32.mrf.mxu0
      %v1330 = vadd.f32 0.0, %v1329
      %v1331 = vpop.f32.mrf.mxu0
      %v1332 = vadd.f32 0.0, %v1331
      %1333 = vmatmul.bf16.gmra.mxu0 %v1265
      %v1334 = vpop.f32.mrf.mxu0
      %v1335 = vadd.f32 0.0, %v1334
      %v1336 = vpop.f32.mrf.mxu0
      %v1337 = vadd.f32 0.0, %v1336
      %1338 = vmatmul.bf16.gmra.mxu0 %v1266
      %v1339 = vpop.f32.mrf.mxu0
      %v1340 = vadd.f32 0.0, %v1339
      %v1341 = vpop.f32.mrf.mxu0
      %v1342 = vadd.f32 0.0, %v1341
      %1343 = vmatmul.bf16.gmra.mxu0 %v1267
      %v1344 = vpop.f32.mrf.mxu0
      %v1345 = vadd.f32 0.0, %v1344
      %v1346 = vpop.f32.mrf.mxu0
      %v1347 = vadd.f32 0.0, %v1346
      %1348 = vdwg.mxu0
      %v1349 = vadd.f32 %v1223, %v1330
      %v1350 = vadd.f32 %v1224, %v1332
      %v1351 = vadd.f32 %v1225, %v1335
      %v1352 = vadd.f32 %v1226, %v1337
      %v1353 = vadd.f32 %v1227, %v1340
      %v1354 = vadd.f32 %v1228, %v1342
      %v1355 = vadd.f32 %v1229, %v1345
      %v1356 = vadd.f32 %v1230, %v1347
      %1357 = vst [vmem:[#allocation3] sm:$0xff] %v1349
      %1358 = vst [vmem:[#allocation3 + $0x8] sm:$0xff] %v1350
      %1359 = vst [vmem:[#allocation3 + $0x10] sm:$0xff] %v1351
      %1360 = vst [vmem:[#allocation3 + $0x18] sm:$0xff] %v1352
      %1361 = vst [vmem:[#allocation3 + $0x20] sm:$0xff] %v1353
      %1362 = vst [vmem:[#allocation3 + $0x28] sm:$0xff] %v1354
      %1363 = vst [vmem:[#allocation3 + $0x30] sm:$0xff] %v1355
      %1364 = vst [vmem:[#allocation3 + $0x38] sm:$0xff] %v1356
      %v1365 = vld [vmem:[%s537] sm:$0xf]
      %v1366 = vld [vmem:[%s537 + $0x4] sm:$0x1]
      %v1367 = vld [vmem:[%s537 + $0x8] sm:$0xf]
      %v1368 = vld [vmem:[%s537 + $0xc] sm:$0x1]
      %v1369 = vld [vmem:[%s537 + $0x10] sm:$0xf]
      %v1370 = vld [vmem:[%s537 + $0x14] sm:$0x1]
      %v1371 = vld [vmem:[%s537 + $0x18] sm:$0xf]
      %v1372 = vld [vmem:[%s537 + $0x1c] sm:$0x1]
      %v1373 = vld [vmem:[%s537 + $0x20] sm:$0xf]
      %v1374 = vld [vmem:[%s537 + $0x24] sm:$0x1]
      %v1375 = vld [vmem:[%s537 + $0x28] sm:$0xf]
      %v1376 = vld [vmem:[%s537 + $0x2c] sm:$0x1]
      %v1377 = vld [vmem:[%s537 + $0x30] sm:$0xf]
      %v1378 = vld [vmem:[%s537 + $0x34] sm:$0x1]
      %v1379 = vld [vmem:[%s537 + $0x38] sm:$0xf]
      %v1380 = vld [vmem:[%s537 + $0x3c] sm:$0x1]
      %v1382 = vshrl.u32 %v1365, 16
      %v1384 = vrot.slane %v1382, 4
      %v1385 = vshll.u32 %v1365, 16
      %v1387 = vrot.slane %v1385, 5
      %v1388 = vor.u32 %v1384, %v1387
      %v1389 = vrot.slane %v1388, 4
      %v1391 = vshll.u32 %v1366, 16
      %v1393 = vrot.slane %v1391, 5
      %v1394 = vsel %vm767, %v1389, %v1393
      %v1396 = vshrl.u32 %v1367, 16
      %v1398 = vrot.slane %v1396, 4
      %v1399 = vshll.u32 %v1367, 16
      %v1401 = vrot.slane %v1399, 5
      %v1402 = vor.u32 %v1398, %v1401
      %v1403 = vrot.slane %v1402, 4
      %v1405 = vshll.u32 %v1368, 16
      %v1407 = vrot.slane %v1405, 5
      %v1408 = vsel %vm767, %v1403, %v1407
      %v1410 = vshrl.u32 %v1369, 16
      %v1412 = vrot.slane %v1410, 4
      %v1413 = vshll.u32 %v1369, 16
      %v1415 = vrot.slane %v1413, 5
      %v1416 = vor.u32 %v1412, %v1415
      %v1417 = vrot.slane %v1416, 4
      %v1419 = vshll.u32 %v1370, 16
      %v1421 = vrot.slane %v1419, 5
      %v1422 = vsel %vm767, %v1417, %v1421
      %v1424 = vshrl.u32 %v1371, 16
      %v1426 = vrot.slane %v1424, 4
      %v1427 = vshll.u32 %v1371, 16
      %v1429 = vrot.slane %v1427, 5
      %v1430 = vor.u32 %v1426, %v1429
      %v1431 = vrot.slane %v1430, 4
      %v1433 = vshll.u32 %v1372, 16
      %v1435 = vrot.slane %v1433, 5
      %v1436 = vsel %vm767, %v1431, %v1435
      %v1438 = vshrl.u32 %v1373, 16
      %v1440 = vrot.slane %v1438, 4
      %v1441 = vshll.u32 %v1373, 16
      %v1443 = vrot.slane %v1441, 5
      %v1444 = vor.u32 %v1440, %v1443
      %v1445 = vrot.slane %v1444, 4
      %v1447 = vshll.u32 %v1374, 16
      %v1449 = vrot.slane %v1447, 5
      %v1450 = vsel %vm767, %v1445, %v1449
      %v1452 = vshrl.u32 %v1375, 16
      %v1454 = vrot.slane %v1452, 4
      %v1455 = vshll.u32 %v1375, 16
      %v1457 = vrot.slane %v1455, 5
      %v1458 = vor.u32 %v1454, %v1457
      %v1459 = vrot.slane %v1458, 4
      %v1461 = vshll.u32 %v1376, 16
      %v1463 = vrot.slane %v1461, 5
      %v1464 = vsel %vm767, %v1459, %v1463
      %v1466 = vshrl.u32 %v1377, 16
      %v1468 = vrot.slane %v1466, 4
      %v1469 = vshll.u32 %v1377, 16
      %v1471 = vrot.slane %v1469, 5
      %v1472 = vor.u32 %v1468, %v1471
      %v1473 = vrot.slane %v1472, 4
      %v1475 = vshll.u32 %v1378, 16
      %v1477 = vrot.slane %v1475, 5
      %v1478 = vsel %vm767, %v1473, %v1477
      %v1480 = vshrl.u32 %v1379, 16
      %v1482 = vrot.slane %v1480, 4
      %v1483 = vshll.u32 %v1379, 16
      %v1485 = vrot.slane %v1483, 5
      %v1486 = vor.u32 %v1482, %v1485
      %v1487 = vrot.slane %v1486, 4
      %v1489 = vshll.u32 %v1380, 16
      %v1491 = vrot.slane %v1489, 5
      %v1492 = vsel %vm767, %v1487, %v1491
      %v1493 = vld [vmem:[#allocation3] sm:$0xff]
      %v1494 = vld [vmem:[#allocation3 + $0x8] sm:$0xff]
      %v1495 = vld [vmem:[#allocation3 + $0x10] sm:$0xff]
      %v1496 = vld [vmem:[#allocation3 + $0x18] sm:$0xff]
      %v1497 = vld [vmem:[#allocation3 + $0x20] sm:$0xff]
      %v1498 = vld [vmem:[#allocation3 + $0x28] sm:$0xff]
      %v1499 = vld [vmem:[#allocation3 + $0x30] sm:$0xff]
      %v1500 = vld [vmem:[#allocation3 + $0x38] sm:$0xff]
      %s1501 = scalar_lea.vmem %s362, 256
      %v1502 = vld [vmem:[%s1501] sm:$0xf]
      %v1503 = vld [vmem:[%s1501 + $0x4] sm:$0xf]
      %v1504 = vld [vmem:[%s1501 + $0x8] sm:$0xf]
      %v1505 = vld [vmem:[%s1501 + $0xc] sm:$0xf]
      %v1506 = vld [vmem:[%s1501 + $0x10] sm:$0xf]
      %v1507 = vld [vmem:[%s1501 + $0x14] sm:$0xf]
      %v1508 = vld [vmem:[%s1501 + $0x18] sm:$0xf]
      %v1509 = vld [vmem:[%s1501 + $0x1c] sm:$0xf]
      %v1510 = vld [vmem:[%s1501 + $0x20] sm:$0xf]
      %v1511 = vld [vmem:[%s1501 + $0x24] sm:$0xf]
      %v1512 = vld [vmem:[%s1501 + $0x28] sm:$0xf]
      %v1513 = vld [vmem:[%s1501 + $0x2c] sm:$0xf]
      %v1514 = vld [vmem:[%s1501 + $0x30] sm:$0xf]
      %v1515 = vld [vmem:[%s1501 + $0x34] sm:$0xf]
      %v1516 = vld [vmem:[%s1501 + $0x38] sm:$0xf]
      %v1517 = vld [vmem:[%s1501 + $0x3c] sm:$0xf]
      %v1518 = vunpack.c.l.b16 %v1394
      %v1519 = vunpack.c.l.b16 %v1408
      %v1520 = vunpack.c.l.b16 %v1422
      %v1521 = vunpack.c.l.b16 %v1436
      %v1522 = vunpack.c.l.b16 %v1450
      %v1523 = vunpack.c.l.b16 %v1464
      %v1524 = vunpack.c.l.b16 %v1478
      %v1525 = vunpack.c.l.b16 %v1492
      %v1526 = vpack.c.b16 %v1519, %v1518
      %v1527 = vpack.c.b16 %v1521, %v1520
      %v1528 = vpack.c.b16 %v1523, %v1522
      %v1529 = vpack.c.b16 %v1525, %v1524
      %v1550 = vunpack.c.l.b16 %v1502
      %v1551 = vunpack.c.l.b16 %v1503
      %v1552 = vunpack.c.l.b16 %v1504
      %v1553 = vunpack.c.l.b16 %v1505
      %v1554 = vunpack.c.l.b16 %v1506
      %v1555 = vunpack.c.l.b16 %v1507
      %v1556 = vunpack.c.l.b16 %v1508
      %v1557 = vunpack.c.l.b16 %v1509
      %v1558 = vunpack.c.l.b16 %v1510
      %v1559 = vunpack.c.l.b16 %v1511
      %v1560 = vunpack.c.l.b16 %v1512
      %v1561 = vunpack.c.l.b16 %v1513
      %v1562 = vunpack.c.l.b16 %v1514
      %v1563 = vunpack.c.l.b16 %v1515
      %v1564 = vunpack.c.l.b16 %v1516
      %v1565 = vunpack.c.l.b16 %v1517
      %v1566 = vpack.c.b16 %v1551, %v1550
      %v1567 = vpack.c.b16 %v1553, %v1552
      %v1568 = vpack.c.b16 %v1555, %v1554
      %v1569 = vpack.c.b16 %v1557, %v1556
      %v1570 = vpack.c.b16 %v1559, %v1558
      %v1571 = vpack.c.b16 %v1561, %v1560
      %v1572 = vpack.c.b16 %v1563, %v1562
      %v1573 = vpack.c.b16 %v1565, %v1564
      %1582 = vmatpush.bf16.msra.mxu0 %v1573
      %1583 = vmatpush.bf16.msra.mxu0 %v1572
      %1584 = vmatpush.bf16.msra.mxu0 %v1571
      %1585 = vmatpush.bf16.msra.mxu0 %v1570
      %1586 = vmatpush.bf16.msra.mxu0 %v1569
      %1587 = vmatpush.bf16.msra.mxu0 %v1568
      %1588 = vmatpush.bf16.msra.mxu0 %v1567
      %1589 = vmatpush.bf16.msra.mxu0 %v1566
      %1590 = vmatmul.bf16.gmra.mxu0 %v1526
      %v1591 = vpop.f32.mrf.mxu0
      %v1592 = vadd.f32 0.0, %v1591
      %v1593 = vpop.f32.mrf.mxu0
      %v1594 = vadd.f32 0.0, %v1593
      %1595 = vmatmul.bf16.gmra.mxu0 %v1527
      %v1596 = vpop.f32.mrf.mxu0
      %v1597 = vadd.f32 0.0, %v1596
      %v1598 = vpop.f32.mrf.mxu0
      %v1599 = vadd.f32 0.0, %v1598
      %1600 = vmatmul.bf16.gmra.mxu0 %v1528
      %v1601 = vpop.f32.mrf.mxu0
      %v1602 = vadd.f32 0.0, %v1601
      %v1603 = vpop.f32.mrf.mxu0
      %v1604 = vadd.f32 0.0, %v1603
      %1605 = vmatmul.bf16.gmra.mxu0 %v1529
      %v1606 = vpop.f32.mrf.mxu0
      %v1607 = vadd.f32 0.0, %v1606
      %v1608 = vpop.f32.mrf.mxu0
      %v1609 = vadd.f32 0.0, %v1608
      %1610 = vdwg.mxu0
      %v1611 = vadd.f32 %v1493, %v1592
      %v1612 = vadd.f32 %v1494, %v1594
      %v1613 = vadd.f32 %v1495, %v1597
      %v1614 = vadd.f32 %v1496, %v1599
      %v1615 = vadd.f32 %v1497, %v1602
      %v1616 = vadd.f32 %v1498, %v1604
      %v1617 = vadd.f32 %v1499, %v1607
      %v1618 = vadd.f32 %v1500, %v1609
      %1619 = vst [vmem:[#allocation3] sm:$0xff] %v1611
      %1620 = vst [vmem:[#allocation3 + $0x8] sm:$0xff] %v1612
      %1621 = vst [vmem:[#allocation3 + $0x10] sm:$0xff] %v1613
      %1622 = vst [vmem:[#allocation3 + $0x18] sm:$0xff] %v1614
      %1623 = vst [vmem:[#allocation3 + $0x20] sm:$0xff] %v1615
      %1624 = vst [vmem:[#allocation3 + $0x28] sm:$0xff] %v1616
      %1625 = vst [vmem:[#allocation3 + $0x30] sm:$0xff] %v1617
      %1626 = vst [vmem:[#allocation3 + $0x38] sm:$0xff] %v1618
      %v1627 = vld [vmem:[%s537] sm:$0xe]
      %v1628 = vld [vmem:[%s537 + $0x4] sm:$0x1]
      %v1629 = vld [vmem:[%s537 + $0x8] sm:$0xe]
      %v1630 = vld [vmem:[%s537 + $0xc] sm:$0x1]
      %v1631 = vld [vmem:[%s537 + $0x10] sm:$0xe]
      %v1632 = vld [vmem:[%s537 + $0x14] sm:$0x1]
      %v1633 = vld [vmem:[%s537 + $0x18] sm:$0xe]
      %v1634 = vld [vmem:[%s537 + $0x1c] sm:$0x1]
      %v1635 = vld [vmem:[%s537 + $0x20] sm:$0xe]
      %v1636 = vld [vmem:[%s537 + $0x24] sm:$0x1]
      %v1637 = vld [vmem:[%s537 + $0x28] sm:$0xe]
      %v1638 = vld [vmem:[%s537 + $0x2c] sm:$0x1]
      %v1639 = vld [vmem:[%s537 + $0x30] sm:$0xe]
      %v1640 = vld [vmem:[%s537 + $0x34] sm:$0x1]
      %v1641 = vld [vmem:[%s537 + $0x38] sm:$0xe]
      %v1642 = vld [vmem:[%s537 + $0x3c] sm:$0x1]
      %v1659 = vrot.slane %v1627, 5
      %v1660 = vrot.slane %v1659, 4
      %v1661 = vrot.slane %v1628, 5
      %v1662 = vsel %vm1048, %v1660, %v1661
      %v1663 = vrot.slane %v1629, 5
      %v1664 = vrot.slane %v1663, 4
      %v1665 = vrot.slane %v1630, 5
      %v1666 = vsel %vm1048, %v1664, %v1665
      %v1667 = vrot.slane %v1631, 5
      %v1668 = vrot.slane %v1667, 4
      %v1669 = vrot.slane %v1632, 5
      %v1670 = vsel %vm1048, %v1668, %v1669
      %v1671 = vrot.slane %v1633, 5
      %v1672 = vrot.slane %v1671, 4
      %v1673 = vrot.slane %v1634, 5
      %v1674 = vsel %vm1048, %v1672, %v1673
      %v1675 = vrot.slane %v1635, 5
      %v1676 = vrot.slane %v1675, 4
      %v1677 = vrot.slane %v1636, 5
      %v1678 = vsel %vm1048, %v1676, %v1677
      %v1679 = vrot.slane %v1637, 5
      %v1680 = vrot.slane %v1679, 4
      %v1681 = vrot.slane %v1638, 5
      %v1682 = vsel %vm1048, %v1680, %v1681
      %v1683 = vrot.slane %v1639, 5
      %v1684 = vrot.slane %v1683, 4
      %v1685 = vrot.slane %v1640, 5
      %v1686 = vsel %vm1048, %v1684, %v1685
      %v1687 = vrot.slane %v1641, 5
      %v1688 = vrot.slane %v1687, 4
      %v1689 = vrot.slane %v1642, 5
      %v1690 = vsel %vm1048, %v1688, %v1689
      %v1691 = vld [vmem:[#allocation3] sm:$0xff]
      %v1692 = vld [vmem:[#allocation3 + $0x8] sm:$0xff]
      %v1693 = vld [vmem:[#allocation3 + $0x10] sm:$0xff]
      %v1694 = vld [vmem:[#allocation3 + $0x18] sm:$0xff]
      %v1695 = vld [vmem:[#allocation3 + $0x20] sm:$0xff]
      %v1696 = vld [vmem:[#allocation3 + $0x28] sm:$0xff]
      %v1697 = vld [vmem:[#allocation3 + $0x30] sm:$0xff]
      %v1698 = vld [vmem:[#allocation3 + $0x38] sm:$0xff]
      %s1699 = scalar_lea.vmem %s362, 320
      %v1700 = vld [vmem:[%s1699] sm:$0xf]
      %v1701 = vld [vmem:[%s1699 + $0x4] sm:$0xf]
      %v1702 = vld [vmem:[%s1699 + $0x8] sm:$0xf]
      %v1703 = vld [vmem:[%s1699 + $0xc] sm:$0xf]
      %v1704 = vld [vmem:[%s1699 + $0x10] sm:$0xf]
      %v1705 = vld [vmem:[%s1699 + $0x14] sm:$0xf]
      %v1706 = vld [vmem:[%s1699 + $0x18] sm:$0xf]
      %v1707 = vld [vmem:[%s1699 + $0x1c] sm:$0xf]
      %v1708 = vld [vmem:[%s1699 + $0x20] sm:$0xf]
      %v1709 = vld [vmem:[%s1699 + $0x24] sm:$0xf]
      %v1710 = vld [vmem:[%s1699 + $0x28] sm:$0xf]
      %v1711 = vld [vmem:[%s1699 + $0x2c] sm:$0xf]
      %v1712 = vld [vmem:[%s1699 + $0x30] sm:$0xf]
      %v1713 = vld [vmem:[%s1699 + $0x34] sm:$0xf]
      %v1714 = vld [vmem:[%s1699 + $0x38] sm:$0xf]
      %v1715 = vld [vmem:[%s1699 + $0x3c] sm:$0xf]
      %v1716 = vunpack.c.l.b16 %v1662
      %v1717 = vunpack.c.l.b16 %v1666
      %v1718 = vunpack.c.l.b16 %v1670
      %v1719 = vunpack.c.l.b16 %v1674
      %v1720 = vunpack.c.l.b16 %v1678
      %v1721 = vunpack.c.l.b16 %v1682
      %v1722 = vunpack.c.l.b16 %v1686
      %v1723 = vunpack.c.l.b16 %v1690
      %v1724 = vpack.c.b16 %v1717, %v1716
      %v1725 = vpack.c.b16 %v1719, %v1718
      %v1726 = vpack.c.b16 %v1721, %v1720
      %v1727 = vpack.c.b16 %v1723, %v1722
      %v1748 = vunpack.c.l.b16 %v1700
      %v1749 = vunpack.c.l.b16 %v1701
      %v1750 = vunpack.c.l.b16 %v1702
      %v1751 = vunpack.c.l.b16 %v1703
      %v1752 = vunpack.c.l.b16 %v1704
      %v1753 = vunpack.c.l.b16 %v1705
      %v1754 = vunpack.c.l.b16 %v1706
      %v1755 = vunpack.c.l.b16 %v1707
      %v1756 = vunpack.c.l.b16 %v1708
      %v1757 = vunpack.c.l.b16 %v1709
      %v1758 = vunpack.c.l.b16 %v1710
      %v1759 = vunpack.c.l.b16 %v1711
      %v1760 = vunpack.c.l.b16 %v1712
      %v1761 = vunpack.c.l.b16 %v1713
      %v1762 = vunpack.c.l.b16 %v1714
      %v1763 = vunpack.c.l.b16 %v1715
      %v1764 = vpack.c.b16 %v1749, %v1748
      %v1765 = vpack.c.b16 %v1751, %v1750
      %v1766 = vpack.c.b16 %v1753, %v1752
      %v1767 = vpack.c.b16 %v1755, %v1754
      %v1768 = vpack.c.b16 %v1757, %v1756
      %v1769 = vpack.c.b16 %v1759, %v1758
      %v1770 = vpack.c.b16 %v1761, %v1760
      %v1771 = vpack.c.b16 %v1763, %v1762
      %1780 = vmatpush.bf16.msra.mxu0 %v1771
      %1781 = vmatpush.bf16.msra.mxu0 %v1770
      %1782 = vmatpush.bf16.msra.mxu0 %v1769
      %1783 = vmatpush.bf16.msra.mxu0 %v1768
      %1784 = vmatpush.bf16.msra.mxu0 %v1767
      %1785 = vmatpush.bf16.msra.mxu0 %v1766
      %1786 = vmatpush.bf16.msra.mxu0 %v1765
      %1787 = vmatpush.bf16.msra.mxu0 %v1764
      %1788 = vmatmul.bf16.gmra.mxu0 %v1724
      %v1789 = vpop.f32.mrf.mxu0
      %v1790 = vadd.f32 0.0, %v1789
      %v1791 = vpop.f32.mrf.mxu0
      %v1792 = vadd.f32 0.0, %v1791
      %1793 = vmatmul.bf16.gmra.mxu0 %v1725
      %v1794 = vpop.f32.mrf.mxu0
      %v1795 = vadd.f32 0.0, %v1794
      %v1796 = vpop.f32.mrf.mxu0
      %v1797 = vadd.f32 0.0, %v1796
      %1798 = vmatmul.bf16.gmra.mxu0 %v1726
      %v1799 = vpop.f32.mrf.mxu0
      %v1800 = vadd.f32 0.0, %v1799
      %v1801 = vpop.f32.mrf.mxu0
      %v1802 = vadd.f32 0.0, %v1801
      %1803 = vmatmul.bf16.gmra.mxu0 %v1727
      %v1804 = vpop.f32.mrf.mxu0
      %v1805 = vadd.f32 0.0, %v1804
      %v1806 = vpop.f32.mrf.mxu0
      %v1807 = vadd.f32 0.0, %v1806
      %1808 = vdwg.mxu0
      %v1809 = vadd.f32 %v1691, %v1790
      %v1810 = vadd.f32 %v1692, %v1792
      %v1811 = vadd.f32 %v1693, %v1795
      %v1812 = vadd.f32 %v1694, %v1797
      %v1813 = vadd.f32 %v1695, %v1800
      %v1814 = vadd.f32 %v1696, %v1802
      %v1815 = vadd.f32 %v1697, %v1805
      %v1816 = vadd.f32 %v1698, %v1807
      %1817 = vst [vmem:[#allocation3] sm:$0xff] %v1809
      %1818 = vst [vmem:[#allocation3 + $0x8] sm:$0xff] %v1810
      %1819 = vst [vmem:[#allocation3 + $0x10] sm:$0xff] %v1811
      %1820 = vst [vmem:[#allocation3 + $0x18] sm:$0xff] %v1812
      %1821 = vst [vmem:[#allocation3 + $0x20] sm:$0xff] %v1813
      %1822 = vst [vmem:[#allocation3 + $0x28] sm:$0xff] %v1814
      %1823 = vst [vmem:[#allocation3 + $0x30] sm:$0xff] %v1815
      %1824 = vst [vmem:[#allocation3 + $0x38] sm:$0xff] %v1816
      %s1825 = scalar_lea.vmem [#allocation2], 16
      %v1826 = vld [vmem:[%s1825] sm:$0xf]
      %v1827 = vld [vmem:[%s1825 + $0x8] sm:$0xf]
      %v1828 = vld [vmem:[%s1825 + $0x10] sm:$0xf]
      %v1829 = vld [vmem:[%s1825 + $0x18] sm:$0xf]
      %v1830 = vld [vmem:[%s1825 + $0x20] sm:$0xf]
      %v1831 = vld [vmem:[%s1825 + $0x28] sm:$0xf]
      %v1832 = vld [vmem:[%s1825 + $0x30] sm:$0xf]
      %v1833 = vld [vmem:[%s1825 + $0x38] sm:$0xf]
      %v1834 = vld [vmem:[#allocation3] sm:$0xff]
      %v1835 = vld [vmem:[#allocation3 + $0x8] sm:$0xff]
      %v1836 = vld [vmem:[#allocation3 + $0x10] sm:$0xff]
      %v1837 = vld [vmem:[#allocation3 + $0x18] sm:$0xff]
      %v1838 = vld [vmem:[#allocation3 + $0x20] sm:$0xff]
      %v1839 = vld [vmem:[#allocation3 + $0x28] sm:$0xff]
      %v1840 = vld [vmem:[#allocation3 + $0x30] sm:$0xff]
      %v1841 = vld [vmem:[#allocation3 + $0x38] sm:$0xff]
      %s1842 = scalar_lea.vmem %s362, 384
      %v1843 = vld [vmem:[%s1842] sm:$0xf]
      %v1844 = vld [vmem:[%s1842 + $0x4] sm:$0xf]
      %v1845 = vld [vmem:[%s1842 + $0x8] sm:$0xf]
      %v1846 = vld [vmem:[%s1842 + $0xc] sm:$0xf]
      %v1847 = vld [vmem:[%s1842 + $0x10] sm:$0xf]
      %v1848 = vld [vmem:[%s1842 + $0x14] sm:$0xf]
      %v1849 = vld [vmem:[%s1842 + $0x18] sm:$0xf]
      %v1850 = vld [vmem:[%s1842 + $0x1c] sm:$0xf]
      %v1851 = vld [vmem:[%s1842 + $0x20] sm:$0xf]
      %v1852 = vld [vmem:[%s1842 + $0x24] sm:$0xf]
      %v1853 = vld [vmem:[%s1842 + $0x28] sm:$0xf]
      %v1854 = vld [vmem:[%s1842 + $0x2c] sm:$0xf]
      %v1855 = vld [vmem:[%s1842 + $0x30] sm:$0xf]
      %v1856 = vld [vmem:[%s1842 + $0x34] sm:$0xf]
      %v1857 = vld [vmem:[%s1842 + $0x38] sm:$0xf]
      %v1858 = vld [vmem:[%s1842 + $0x3c] sm:$0xf]
      %v1867 = vunpack.c.l.b16 %v1826
      %v1868 = vunpack.c.l.b16 %v1827
      %v1869 = vunpack.c.l.b16 %v1828
      %v1870 = vunpack.c.l.b16 %v1829
      %v1871 = vunpack.c.l.b16 %v1830
      %v1872 = vunpack.c.l.b16 %v1831
      %v1873 = vunpack.c.l.b16 %v1832
      %v1874 = vunpack.c.l.b16 %v1833
      %v1875 = vpack.c.b16 %v1868, %v1867
      %v1876 = vpack.c.b16 %v1870, %v1869
      %v1877 = vpack.c.b16 %v1872, %v1871
      %v1878 = vpack.c.b16 %v1874, %v1873
      %v1899 = vunpack.c.l.b16 %v1843
      %v1900 = vunpack.c.l.b16 %v1844
      %v1901 = vunpack.c.l.b16 %v1845
      %v1902 = vunpack.c.l.b16 %v1846
      %v1903 = vunpack.c.l.b16 %v1847
      %v1904 = vunpack.c.l.b16 %v1848
      %v1905 = vunpack.c.l.b16 %v1849
      %v1906 = vunpack.c.l.b16 %v1850
      %v1907 = vunpack.c.l.b16 %v1851
      %v1908 = vunpack.c.l.b16 %v1852
      %v1909 = vunpack.c.l.b16 %v1853
      %v1910 = vunpack.c.l.b16 %v1854
      %v1911 = vunpack.c.l.b16 %v1855
      %v1912 = vunpack.c.l.b16 %v1856
      %v1913 = vunpack.c.l.b16 %v1857
      %v1914 = vunpack.c.l.b16 %v1858
      %v1915 = vpack.c.b16 %v1900, %v1899
      %v1916 = vpack.c.b16 %v1902, %v1901
      %v1917 = vpack.c.b16 %v1904, %v1903
      %v1918 = vpack.c.b16 %v1906, %v1905
      %v1919 = vpack.c.b16 %v1908, %v1907
      %v1920 = vpack.c.b16 %v1910, %v1909
      %v1921 = vpack.c.b16 %v1912, %v1911
      %v1922 = vpack.c.b16 %v1914, %v1913
      %1931 = vmatpush.bf16.msra.mxu0 %v1922
      %1932 = vmatpush.bf16.msra.mxu0 %v1921
      %1933 = vmatpush.bf16.msra.mxu0 %v1920
      %1934 = vmatpush.bf16.msra.mxu0 %v1919
      %1935 = vmatpush.bf16.msra.mxu0 %v1918
      %1936 = vmatpush.bf16.msra.mxu0 %v1917
      %1937 = vmatpush.bf16.msra.mxu0 %v1916
      %1938 = vmatpush.bf16.msra.mxu0 %v1915
      %1939 = vmatmul.bf16.gmra.mxu0 %v1875
      %v1940 = vpop.f32.mrf.mxu0
      %v1941 = vadd.f32 0.0, %v1940
      %v1942 = vpop.f32.mrf.mxu0
      %v1943 = vadd.f32 0.0, %v1942
      %1944 = vmatmul.bf16.gmra.mxu0 %v1876
      %v1945 = vpop.f32.mrf.mxu0
      %v1946 = vadd.f32 0.0, %v1945
      %v1947 = vpop.f32.mrf.mxu0
      %v1948 = vadd.f32 0.0, %v1947
      %1949 = vmatmul.bf16.gmra.mxu0 %v1877
      %v1950 = vpop.f32.mrf.mxu0
      %v1951 = vadd.f32 0.0, %v1950
      %v1952 = vpop.f32.mrf.mxu0
      %v1953 = vadd.f32 0.0, %v1952
      %1954 = vmatmul.bf16.gmra.mxu0 %v1878
      %v1955 = vpop.f32.mrf.mxu0
      %v1956 = vadd.f32 0.0, %v1955
      %v1957 = vpop.f32.mrf.mxu0
      %v1958 = vadd.f32 0.0, %v1957
      %1959 = vdwg.mxu0
      %v1960 = vadd.f32 %v1834, %v1941
      %v1961 = vadd.f32 %v1835, %v1943
      %v1962 = vadd.f32 %v1836, %v1946
      %v1963 = vadd.f32 %v1837, %v1948
      %v1964 = vadd.f32 %v1838, %v1951
      %v1965 = vadd.f32 %v1839, %v1953
      %v1966 = vadd.f32 %v1840, %v1956
      %v1967 = vadd.f32 %v1841, %v1958
      %1968 = vst [vmem:[#allocation3] sm:$0xff] %v1960
      %1969 = vst [vmem:[#allocation3 + $0x8] sm:$0xff] %v1961
      %1970 = vst [vmem:[#allocation3 + $0x10] sm:$0xff] %v1962
      %1971 = vst [vmem:[#allocation3 + $0x18] sm:$0xff] %v1963
      %1972 = vst [vmem:[#allocation3 + $0x20] sm:$0xff] %v1964
      %1973 = vst [vmem:[#allocation3 + $0x28] sm:$0xff] %v1965
      %1974 = vst [vmem:[#allocation3 + $0x30] sm:$0xff] %v1966
      %1975 = vst [vmem:[#allocation3 + $0x38] sm:$0xff] %v1967
      %v1976 = vld [vmem:[%s1825] sm:$0xf]
      %v1977 = vld [vmem:[%s1825 + $0x4] sm:$0x1]
      %v1978 = vld [vmem:[%s1825 + $0x8] sm:$0xf]
      %v1979 = vld [vmem:[%s1825 + $0xc] sm:$0x1]
      %v1980 = vld [vmem:[%s1825 + $0x10] sm:$0xf]
      %v1981 = vld [vmem:[%s1825 + $0x14] sm:$0x1]
      %v1982 = vld [vmem:[%s1825 + $0x18] sm:$0xf]
      %v1983 = vld [vmem:[%s1825 + $0x1c] sm:$0x1]
      %v1984 = vld [vmem:[%s1825 + $0x20] sm:$0xf]
      %v1985 = vld [vmem:[%s1825 + $0x24] sm:$0x1]
      %v1986 = vld [vmem:[%s1825 + $0x28] sm:$0xf]
      %v1987 = vld [vmem:[%s1825 + $0x2c] sm:$0x1]
      %v1988 = vld [vmem:[%s1825 + $0x30] sm:$0xf]
      %v1989 = vld [vmem:[%s1825 + $0x34] sm:$0x1]
      %v1990 = vld [vmem:[%s1825 + $0x38] sm:$0xf]
      %v1991 = vld [vmem:[%s1825 + $0x3c] sm:$0x1]
      %v1993 = vshrl.u32 %v1976, 16
      %v1995 = vrot.slane %v1993, 4
      %v1996 = vshll.u32 %v1976, 16
      %v1998 = vrot.slane %v1996, 5
      %v1999 = vor.u32 %v1995, %v1998
      %v2000 = vrot.slane %v1999, 4
      %v2002 = vshll.u32 %v1977, 16
      %v2004 = vrot.slane %v2002, 5
      %v2005 = vsel %vm767, %v2000, %v2004
      %v2007 = vshrl.u32 %v1978, 16
      %v2009 = vrot.slane %v2007, 4
      %v2010 = vshll.u32 %v1978, 16
      %v2012 = vrot.slane %v2010, 5
      %v2013 = vor.u32 %v2009, %v2012
      %v2014 = vrot.slane %v2013, 4
      %v2016 = vshll.u32 %v1979, 16
      %v2018 = vrot.slane %v2016, 5
      %v2019 = vsel %vm767, %v2014, %v2018
      %v2021 = vshrl.u32 %v1980, 16
      %v2023 = vrot.slane %v2021, 4
      %v2024 = vshll.u32 %v1980, 16
      %v2026 = vrot.slane %v2024, 5
      %v2027 = vor.u32 %v2023, %v2026
      %v2028 = vrot.slane %v2027, 4
      %v2030 = vshll.u32 %v1981, 16
      %v2032 = vrot.slane %v2030, 5
      %v2033 = vsel %vm767, %v2028, %v2032
      %v2035 = vshrl.u32 %v1982, 16
      %v2037 = vrot.slane %v2035, 4
      %v2038 = vshll.u32 %v1982, 16
      %v2040 = vrot.slane %v2038, 5
      %v2041 = vor.u32 %v2037, %v2040
      %v2042 = vrot.slane %v2041, 4
      %v2044 = vshll.u32 %v1983, 16
      %v2046 = vrot.slane %v2044, 5
      %v2047 = vsel %vm767, %v2042, %v2046
      %v2049 = vshrl.u32 %v1984, 16
      %v2051 = vrot.slane %v2049, 4
      %v2052 = vshll.u32 %v1984, 16
      %v2054 = vrot.slane %v2052, 5
      %v2055 = vor.u32 %v2051, %v2054
      %v2056 = vrot.slane %v2055, 4
      %v2058 = vshll.u32 %v1985, 16
      %v2060 = vrot.slane %v2058, 5
      %v2061 = vsel %vm767, %v2056, %v2060
      %v2063 = vshrl.u32 %v1986, 16
      %v2065 = vrot.slane %v2063, 4
      %v2066 = vshll.u32 %v1986, 16
      %v2068 = vrot.slane %v2066, 5
      %v2069 = vor.u32 %v2065, %v2068
      %v2070 = vrot.slane %v2069, 4
      %v2072 = vshll.u32 %v1987, 16
      %v2074 = vrot.slane %v2072, 5
      %v2075 = vsel %vm767, %v2070, %v2074
      %v2077 = vshrl.u32 %v1988, 16
      %v2079 = vrot.slane %v2077, 4
      %v2080 = vshll.u32 %v1988, 16
      %v2082 = vrot.slane %v2080, 5
      %v2083 = vor.u32 %v2079, %v2082
      %v2084 = vrot.slane %v2083, 4
      %v2086 = vshll.u32 %v1989, 16
      %v2088 = vrot.slane %v2086, 5
      %v2089 = vsel %vm767, %v2084, %v2088
      %v2091 = vshrl.u32 %v1990, 16
      %v2093 = vrot.slane %v2091, 4
      %v2094 = vshll.u32 %v1990, 16
      %v2096 = vrot.slane %v2094, 5
      %v2097 = vor.u32 %v2093, %v2096
      %v2098 = vrot.slane %v2097, 4
      %v2100 = vshll.u32 %v1991, 16
      %v2102 = vrot.slane %v2100, 5
      %v2103 = vsel %vm767, %v2098, %v2102
      %v2104 = vld [vmem:[#allocation3] sm:$0xff]
      %v2105 = vld [vmem:[#allocation3 + $0x8] sm:$0xff]
      %v2106 = vld [vmem:[#allocation3 + $0x10] sm:$0xff]
      %v2107 = vld [vmem:[#allocation3 + $0x18] sm:$0xff]
      %v2108 = vld [vmem:[#allocation3 + $0x20] sm:$0xff]
      %v2109 = vld [vmem:[#allocation3 + $0x28] sm:$0xff]
      %v2110 = vld [vmem:[#allocation3 + $0x30] sm:$0xff]
      %v2111 = vld [vmem:[#allocation3 + $0x38] sm:$0xff]
      %s2112 = scalar_lea.vmem %s362, 448
      %v2113 = vld [vmem:[%s2112] sm:$0xf]
      %v2114 = vld [vmem:[%s2112 + $0x4] sm:$0xf]
      %v2115 = vld [vmem:[%s2112 + $0x8] sm:$0xf]
      %v2116 = vld [vmem:[%s2112 + $0xc] sm:$0xf]
      %v2117 = vld [vmem:[%s2112 + $0x10] sm:$0xf]
      %v2118 = vld [vmem:[%s2112 + $0x14] sm:$0xf]
      %v2119 = vld [vmem:[%s2112 + $0x18] sm:$0xf]
      %v2120 = vld [vmem:[%s2112 + $0x1c] sm:$0xf]
      %v2121 = vld [vmem:[%s2112 + $0x20] sm:$0xf]
      %v2122 = vld [vmem:[%s2112 + $0x24] sm:$0xf]
      %v2123 = vld [vmem:[%s2112 + $0x28] sm:$0xf]
      %v2124 = vld [vmem:[%s2112 + $0x2c] sm:$0xf]
      %v2125 = vld [vmem:[%s2112 + $0x30] sm:$0xf]
      %v2126 = vld [vmem:[%s2112 + $0x34] sm:$0xf]
      %v2127 = vld [vmem:[%s2112 + $0x38] sm:$0xf]
      %v2128 = vld [vmem:[%s2112 + $0x3c] sm:$0xf]
      %v2129 = vunpack.c.l.b16 %v2005
      %v2130 = vunpack.c.l.b16 %v2019
      %v2131 = vunpack.c.l.b16 %v2033
      %v2132 = vunpack.c.l.b16 %v2047
      %v2133 = vunpack.c.l.b16 %v2061
      %v2134 = vunpack.c.l.b16 %v2075
      %v2135 = vunpack.c.l.b16 %v2089
      %v2136 = vunpack.c.l.b16 %v2103
      %v2137 = vpack.c.b16 %v2130, %v2129
      %v2138 = vpack.c.b16 %v2132, %v2131
      %v2139 = vpack.c.b16 %v2134, %v2133
      %v2140 = vpack.c.b16 %v2136, %v2135
      %v2161 = vunpack.c.l.b16 %v2113
      %v2162 = vunpack.c.l.b16 %v2114
      %v2163 = vunpack.c.l.b16 %v2115
      %v2164 = vunpack.c.l.b16 %v2116
      %v2165 = vunpack.c.l.b16 %v2117
      %v2166 = vunpack.c.l.b16 %v2118
      %v2167 = vunpack.c.l.b16 %v2119
      %v2168 = vunpack.c.l.b16 %v2120
      %v2169 = vunpack.c.l.b16 %v2121
      %v2170 = vunpack.c.l.b16 %v2122
      %v2171 = vunpack.c.l.b16 %v2123
      %v2172 = vunpack.c.l.b16 %v2124
      %v2173 = vunpack.c.l.b16 %v2125
      %v2174 = vunpack.c.l.b16 %v2126
      %v2175 = vunpack.c.l.b16 %v2127
      %v2176 = vunpack.c.l.b16 %v2128
      %v2177 = vpack.c.b16 %v2162, %v2161
      %v2178 = vpack.c.b16 %v2164, %v2163
      %v2179 = vpack.c.b16 %v2166, %v2165
      %v2180 = vpack.c.b16 %v2168, %v2167
      %v2181 = vpack.c.b16 %v2170, %v2169
      %v2182 = vpack.c.b16 %v2172, %v2171
      %v2183 = vpack.c.b16 %v2174, %v2173
      %v2184 = vpack.c.b16 %v2176, %v2175
      %2193 = vmatpush.bf16.msra.mxu0 %v2184
      %2194 = vmatpush.bf16.msra.mxu0 %v2183
      %2195 = vmatpush.bf16.msra.mxu0 %v2182
      %2196 = vmatpush.bf16.msra.mxu0 %v2181
      %2197 = vmatpush.bf16.msra.mxu0 %v2180
      %2198 = vmatpush.bf16.msra.mxu0 %v2179
      %2199 = vmatpush.bf16.msra.mxu0 %v2178
      %2200 = vmatpush.bf16.msra.mxu0 %v2177
      %2201 = vmatmul.bf16.gmra.mxu0 %v2137
      %v2202 = vpop.f32.mrf.mxu0
      %v2203 = vadd.f32 0.0, %v2202
      %v2204 = vpop.f32.mrf.mxu0
      %v2205 = vadd.f32 0.0, %v2204
      %2206 = vmatmul.bf16.gmra.mxu0 %v2138
      %v2207 = vpop.f32.mrf.mxu0
      %v2208 = vadd.f32 0.0, %v2207
      %v2209 = vpop.f32.mrf.mxu0
      %v2210 = vadd.f32 0.0, %v2209
      %2211 = vmatmul.bf16.gmra.mxu0 %v2139
      %v2212 = vpop.f32.mrf.mxu0
      %v2213 = vadd.f32 0.0, %v2212
      %v2214 = vpop.f32.mrf.mxu0
      %v2215 = vadd.f32 0.0, %v2214
      %2216 = vmatmul.bf16.gmra.mxu0 %v2140
      %v2217 = vpop.f32.mrf.mxu0
      %v2218 = vadd.f32 0.0, %v2217
      %v2219 = vpop.f32.mrf.mxu0
      %v2220 = vadd.f32 0.0, %v2219
      %2221 = vdwg.mxu0
      %v2222 = vadd.f32 %v2104, %v2203
      %v2223 = vadd.f32 %v2105, %v2205
      %v2224 = vadd.f32 %v2106, %v2208
      %v2225 = vadd.f32 %v2107, %v2210
      %v2226 = vadd.f32 %v2108, %v2213
      %v2227 = vadd.f32 %v2109, %v2215
      %v2228 = vadd.f32 %v2110, %v2218
      %v2229 = vadd.f32 %v2111, %v2220
      %2230 = vst [vmem:[#allocation3] sm:$0xff] %v2222
      %2231 = vst [vmem:[#allocation3 + $0x8] sm:$0xff] %v2223
      %2232 = vst [vmem:[#allocation3 + $0x10] sm:$0xff] %v2224
      %2233 = vst [vmem:[#allocation3 + $0x18] sm:$0xff] %v2225
      %2234 = vst [vmem:[#allocation3 + $0x20] sm:$0xff] %v2226
      %2235 = vst [vmem:[#allocation3 + $0x28] sm:$0xff] %v2227
      %2236 = vst [vmem:[#allocation3 + $0x30] sm:$0xff] %v2228
      %2237 = vst [vmem:[#allocation3 + $0x38] sm:$0xff] %v2229
      %v2238 = vld [vmem:[%s1825] sm:$0xe]
      %v2239 = vld [vmem:[%s1825 + $0x4] sm:$0x1]
      %v2240 = vld [vmem:[%s1825 + $0x8] sm:$0xe]
      %v2241 = vld [vmem:[%s1825 + $0xc] sm:$0x1]
      %v2242 = vld [vmem:[%s1825 + $0x10] sm:$0xe]
      %v2243 = vld [vmem:[%s1825 + $0x14] sm:$0x1]
      %v2244 = vld [vmem:[%s1825 + $0x18] sm:$0xe]
      %v2245 = vld [vmem:[%s1825 + $0x1c] sm:$0x1]
      %v2246 = vld [vmem:[%s1825 + $0x20] sm:$0xe]
      %v2247 = vld [vmem:[%s1825 + $0x24] sm:$0x1]
      %v2248 = vld [vmem:[%s1825 + $0x28] sm:$0xe]
      %v2249 = vld [vmem:[%s1825 + $0x2c] sm:$0x1]
      %v2250 = vld [vmem:[%s1825 + $0x30] sm:$0xe]
      %v2251 = vld [vmem:[%s1825 + $0x34] sm:$0x1]
      %v2252 = vld [vmem:[%s1825 + $0x38] sm:$0xe]
      %v2253 = vld [vmem:[%s1825 + $0x3c] sm:$0x1]
      %v2270 = vrot.slane %v2238, 5
      %v2271 = vrot.slane %v2270, 4
      %v2272 = vrot.slane %v2239, 5
      %v2273 = vsel %vm1048, %v2271, %v2272
      %v2274 = vrot.slane %v2240, 5
      %v2275 = vrot.slane %v2274, 4
      %v2276 = vrot.slane %v2241, 5
      %v2277 = vsel %vm1048, %v2275, %v2276
      %v2278 = vrot.slane %v2242, 5
      %v2279 = vrot.slane %v2278, 4
      %v2280 = vrot.slane %v2243, 5
      %v2281 = vsel %vm1048, %v2279, %v2280
      %v2282 = vrot.slane %v2244, 5
      %v2283 = vrot.slane %v2282, 4
      %v2284 = vrot.slane %v2245, 5
      %v2285 = vsel %vm1048, %v2283, %v2284
      %v2286 = vrot.slane %v2246, 5
      %v2287 = vrot.slane %v2286, 4
      %v2288 = vrot.slane %v2247, 5
      %v2289 = vsel %vm1048, %v2287, %v2288
      %v2290 = vrot.slane %v2248, 5
      %v2291 = vrot.slane %v2290, 4
      %v2292 = vrot.slane %v2249, 5
      %v2293 = vsel %vm1048, %v2291, %v2292
      %v2294 = vrot.slane %v2250, 5
      %v2295 = vrot.slane %v2294, 4
      %v2296 = vrot.slane %v2251, 5
      %v2297 = vsel %vm1048, %v2295, %v2296
      %v2298 = vrot.slane %v2252, 5
      %v2299 = vrot.slane %v2298, 4
      %v2300 = vrot.slane %v2253, 5
      %v2301 = vsel %vm1048, %v2299, %v2300
      %v2302 = vld [vmem:[#allocation3] sm:$0xff]
      %v2303 = vld [vmem:[#allocation3 + $0x8] sm:$0xff]
      %v2304 = vld [vmem:[#allocation3 + $0x10] sm:$0xff]
      %v2305 = vld [vmem:[#allocation3 + $0x18] sm:$0xff]
      %v2306 = vld [vmem:[#allocation3 + $0x20] sm:$0xff]
      %v2307 = vld [vmem:[#allocation3 + $0x28] sm:$0xff]
      %v2308 = vld [vmem:[#allocation3 + $0x30] sm:$0xff]
      %v2309 = vld [vmem:[#allocation3 + $0x38] sm:$0xff]
      %s2310 = scalar_lea.vmem %s362, 512
      %v2311 = vld [vmem:[%s2310] sm:$0xf]
      %v2312 = vld [vmem:[%s2310 + $0x4] sm:$0xf]
      %v2313 = vld [vmem:[%s2310 + $0x8] sm:$0xf]
      %v2314 = vld [vmem:[%s2310 + $0xc] sm:$0xf]
      %v2315 = vld [vmem:[%s2310 + $0x10] sm:$0xf]
      %v2316 = vld [vmem:[%s2310 + $0x14] sm:$0xf]
      %v2317 = vld [vmem:[%s2310 + $0x18] sm:$0xf]
      %v2318 = vld [vmem:[%s2310 + $0x1c] sm:$0xf]
      %v2319 = vld [vmem:[%s2310 + $0x20] sm:$0xf]
      %v2320 = vld [vmem:[%s2310 + $0x24] sm:$0xf]
      %v2321 = vld [vmem:[%s2310 + $0x28] sm:$0xf]
      %v2322 = vld [vmem:[%s2310 + $0x2c] sm:$0xf]
      %v2323 = vld [vmem:[%s2310 + $0x30] sm:$0xf]
      %v2324 = vld [vmem:[%s2310 + $0x34] sm:$0xf]
      %v2325 = vld [vmem:[%s2310 + $0x38] sm:$0xf]
      %v2326 = vld [vmem:[%s2310 + $0x3c] sm:$0xf]
      %v2327 = vunpack.c.l.b16 %v2273
      %v2328 = vunpack.c.l.b16 %v2277
      %v2329 = vunpack.c.l.b16 %v2281
      %v2330 = vunpack.c.l.b16 %v2285
      %v2331 = vunpack.c.l.b16 %v2289
      %v2332 = vunpack.c.l.b16 %v2293
      %v2333 = vunpack.c.l.b16 %v2297
      %v2334 = vunpack.c.l.b16 %v2301
      %v2335 = vpack.c.b16 %v2328, %v2327
      %v2336 = vpack.c.b16 %v2330, %v2329
      %v2337 = vpack.c.b16 %v2332, %v2331
      %v2338 = vpack.c.b16 %v2334, %v2333
      %v2359 = vunpack.c.l.b16 %v2311
      %v2360 = vunpack.c.l.b16 %v2312
      %v2361 = vunpack.c.l.b16 %v2313
      %v2362 = vunpack.c.l.b16 %v2314
      %v2363 = vunpack.c.l.b16 %v2315
      %v2364 = vunpack.c.l.b16 %v2316
      %v2365 = vunpack.c.l.b16 %v2317
      %v2366 = vunpack.c.l.b16 %v2318
      %v2367 = vunpack.c.l.b16 %v2319
      %v2368 = vunpack.c.l.b16 %v2320
      %v2369 = vunpack.c.l.b16 %v2321
      %v2370 = vunpack.c.l.b16 %v2322
      %v2371 = vunpack.c.l.b16 %v2323
      %v2372 = vunpack.c.l.b16 %v2324
      %v2373 = vunpack.c.l.b16 %v2325
      %v2374 = vunpack.c.l.b16 %v2326
      %v2375 = vpack.c.b16 %v2360, %v2359
      %v2376 = vpack.c.b16 %v2362, %v2361
      %v2377 = vpack.c.b16 %v2364, %v2363
      %v2378 = vpack.c.b16 %v2366, %v2365
      %v2379 = vpack.c.b16 %v2368, %v2367
      %v2380 = vpack.c.b16 %v2370, %v2369
      %v2381 = vpack.c.b16 %v2372, %v2371
      %v2382 = vpack.c.b16 %v2374, %v2373
      %2391 = vmatpush.bf16.msra.mxu0 %v2382
      %2392 = vmatpush.bf16.msra.mxu0 %v2381
      %2393 = vmatpush.bf16.msra.mxu0 %v2380
      %2394 = vmatpush.bf16.msra.mxu0 %v2379
      %2395 = vmatpush.bf16.msra.mxu0 %v2378
      %2396 = vmatpush.bf16.msra.mxu0 %v2377
      %2397 = vmatpush.bf16.msra.mxu0 %v2376
      %2398 = vmatpush.bf16.msra.mxu0 %v2375
      %2399 = vmatmul.bf16.gmra.mxu0 %v2335
      %v2400 = vpop.f32.mrf.mxu0
      %v2401 = vadd.f32 0.0, %v2400
      %v2402 = vpop.f32.mrf.mxu0
      %v2403 = vadd.f32 0.0, %v2402
      %2404 = vmatmul.bf16.gmra.mxu0 %v2336
      %v2405 = vpop.f32.mrf.mxu0
      %v2406 = vadd.f32 0.0, %v2405
      %v2407 = vpop.f32.mrf.mxu0
      %v2408 = vadd.f32 0.0, %v2407
      %2409 = vmatmul.bf16.gmra.mxu0 %v2337
      %v2410 = vpop.f32.mrf.mxu0
      %v2411 = vadd.f32 0.0, %v2410
      %v2412 = vpop.f32.mrf.mxu0
      %v2413 = vadd.f32 0.0, %v2412
      %2414 = vmatmul.bf16.gmra.mxu0 %v2338
      %v2415 = vpop.f32.mrf.mxu0
      %v2416 = vadd.f32 0.0, %v2415
      %v2417 = vpop.f32.mrf.mxu0
      %v2418 = vadd.f32 0.0, %v2417
      %2419 = vdwg.mxu0
      %v2420 = vadd.f32 %v2302, %v2401
      %v2421 = vadd.f32 %v2303, %v2403
      %v2422 = vadd.f32 %v2304, %v2406
      %v2423 = vadd.f32 %v2305, %v2408
      %v2424 = vadd.f32 %v2306, %v2411
      %v2425 = vadd.f32 %v2307, %v2413
      %v2426 = vadd.f32 %v2308, %v2416
      %v2427 = vadd.f32 %v2309, %v2418
      %2428 = vst [vmem:[#allocation3] sm:$0xff] %v2420
      %2429 = vst [vmem:[#allocation3 + $0x8] sm:$0xff] %v2421
      %2430 = vst [vmem:[#allocation3 + $0x10] sm:$0xff] %v2422
      %2431 = vst [vmem:[#allocation3 + $0x18] sm:$0xff] %v2423
      %2432 = vst [vmem:[#allocation3 + $0x20] sm:$0xff] %v2424
      %2433 = vst [vmem:[#allocation3 + $0x28] sm:$0xff] %v2425
      %2434 = vst [vmem:[#allocation3 + $0x30] sm:$0xff] %v2426
      %2435 = vst [vmem:[#allocation3 + $0x38] sm:$0xff] %v2427
      %v2436 = vld [vmem:[#allocation3] sm:$0xff]
      %v2437 = vld [vmem:[#allocation3 + $0x8] sm:$0xff]
      %v2438 = vld [vmem:[#allocation3 + $0x10] sm:$0xff]
      %v2439 = vld [vmem:[#allocation3 + $0x18] sm:$0xff]
      %v2440 = vld [vmem:[#allocation3 + $0x20] sm:$0xff]
      %v2441 = vld [vmem:[#allocation3 + $0x28] sm:$0xff]
      %v2442 = vld [vmem:[#allocation3 + $0x30] sm:$0xff]
      %v2443 = vld [vmem:[#allocation3 + $0x38] sm:$0xff]
      %v2444 = vld [vmem:[%s367] sm:$0xf]
      %v2445 = vld [vmem:[%s367 + $0x4] sm:$0xf]
      %v2446 = vld [vmem:[%s367 + $0x8] sm:$0xf]
      %v2447 = vld [vmem:[%s367 + $0xc] sm:$0xf]
      %v2448 = vld [vmem:[%s367 + $0x10] sm:$0xf]
      %v2449 = vld [vmem:[%s367 + $0x14] sm:$0xf]
      %v2450 = vld [vmem:[%s367 + $0x18] sm:$0xf]
      %v2451 = vld [vmem:[%s367 + $0x1c] sm:$0xf]
      %v2452 = vunpack.c.l.bf16 %v2444
      %v2453 = vunpack.c.l.bf16 %v2445
      %v2454 = vunpack.c.l.bf16 %v2446
      %v2455 = vunpack.c.l.bf16 %v2447
      %v2456 = vunpack.c.l.bf16 %v2448
      %v2457 = vunpack.c.l.bf16 %v2449
      %v2458 = vunpack.c.l.bf16 %v2450
      %v2459 = vunpack.c.l.bf16 %v2451
      %v2460 = vld [vmem:[%s5] sm:$0x1]
      %v2462 = vperm.slane %v2460, 0
      %v2464 = vmul.f32 %v2452, %v2462
      %v2465 = vmul.f32 %v2453, %v2462
      %v2466 = vmul.f32 %v2454, %v2462
      %v2467 = vmul.f32 %v2455, %v2462
      %v2468 = vmul.f32 %v2456, %v2462
      %v2469 = vmul.f32 %v2457, %v2462
      %v2470 = vmul.f32 %v2458, %v2462
      %v2471 = vmul.f32 %v2459, %v2462
      %v2472 = vld [vmem:[%s6] sm:$0x1]
      %v2474 = vperm.slane %v2472, 0
      %v2476 = vadd.f32 %v2464, %v2474
      %v2477 = vadd.f32 %v2465, %v2474
      %v2478 = vadd.f32 %v2466, %v2474
      %v2479 = vadd.f32 %v2467, %v2474
      %v2480 = vadd.f32 %v2468, %v2474
      %v2481 = vadd.f32 %v2469, %v2474
      %v2482 = vadd.f32 %v2470, %v2474
      %v2483 = vadd.f32 %v2471, %v2474
      %v2484 = vmax.f32 %v2476, 0.0
      %v2485 = vmax.f32 %v2477, 0.0
      %v2486 = vmax.f32 %v2478, 0.0
      %v2487 = vmax.f32 %v2479, 0.0
      %v2488 = vmax.f32 %v2480, 0.0
      %v2489 = vmax.f32 %v2481, 0.0
      %v2490 = vmax.f32 %v2482, 0.0
      %v2491 = vmax.f32 %v2483, 0.0
      %v2492 = vpack.c.bf16 %v2485, %v2484
      %v2493 = vpack.c.bf16 %v2487, %v2486
      %v2494 = vpack.c.bf16 %v2489, %v2488
      %v2495 = vpack.c.bf16 %v2491, %v2490
      %v2496 = vld [vmem:[%s371] sm:$0xf]
      %v2497 = vld [vmem:[%s371 + $0x4] sm:$0xf]
      %v2498 = vld [vmem:[%s371 + $0x8] sm:$0xf]
      %v2499 = vld [vmem:[%s371 + $0xc] sm:$0xf]
      %v2500 = vld [vmem:[%s371 + $0x10] sm:$0xf]
      %v2501 = vld [vmem:[%s371 + $0x14] sm:$0xf]
      %v2502 = vld [vmem:[%s371 + $0x18] sm:$0xf]
      %v2503 = vld [vmem:[%s371 + $0x1c] sm:$0xf]
      %v2504 = vld [vmem:[%s371 + $0x20] sm:$0xf]
      %v2505 = vld [vmem:[%s371 + $0x24] sm:$0xf]
      %v2506 = vld [vmem:[%s371 + $0x28] sm:$0xf]
      %v2507 = vld [vmem:[%s371 + $0x2c] sm:$0xf]
      %v2508 = vld [vmem:[%s371 + $0x30] sm:$0xf]
      %v2509 = vld [vmem:[%s371 + $0x34] sm:$0xf]
      %v2510 = vld [vmem:[%s371 + $0x38] sm:$0xf]
      %v2511 = vld [vmem:[%s371 + $0x3c] sm:$0xf]
      %v2528 = vunpack.c.l.b16 %v2496
      %v2529 = vunpack.c.l.b16 %v2497
      %v2530 = vunpack.c.l.b16 %v2498
      %v2531 = vunpack.c.l.b16 %v2499
      %v2532 = vunpack.c.l.b16 %v2500
      %v2533 = vunpack.c.l.b16 %v2501
      %v2534 = vunpack.c.l.b16 %v2502
      %v2535 = vunpack.c.l.b16 %v2503
      %v2536 = vunpack.c.l.b16 %v2504
      %v2537 = vunpack.c.l.b16 %v2505
      %v2538 = vunpack.c.l.b16 %v2506
      %v2539 = vunpack.c.l.b16 %v2507
      %v2540 = vunpack.c.l.b16 %v2508
      %v2541 = vunpack.c.l.b16 %v2509
      %v2542 = vunpack.c.l.b16 %v2510
      %v2543 = vunpack.c.l.b16 %v2511
      %v2544 = vpack.c.b16 %v2529, %v2528
      %v2545 = vpack.c.b16 %v2531, %v2530
      %v2546 = vpack.c.b16 %v2533, %v2532
      %v2547 = vpack.c.b16 %v2535, %v2534
      %v2548 = vpack.c.b16 %v2537, %v2536
      %v2549 = vpack.c.b16 %v2539, %v2538
      %v2550 = vpack.c.b16 %v2541, %v2540
      %v2551 = vpack.c.b16 %v2543, %v2542
      %2560 = vmatpush.bf16.msra.mxu0 %v2551
      %2561 = vmatpush.bf16.msra.mxu0 %v2550
      %2562 = vmatpush.bf16.msra.mxu0 %v2549
      %2563 = vmatpush.bf16.msra.mxu0 %v2548
      %2564 = vmatpush.bf16.msra.mxu0 %v2547
      %2565 = vmatpush.bf16.msra.mxu0 %v2546
      %2566 = vmatpush.bf16.msra.mxu0 %v2545
      %2567 = vmatpush.bf16.msra.mxu0 %v2544
      %2568 = vmatmul.bf16.gmra.mxu0 %v2492
      %v2569 = vpop.f32.mrf.mxu0
      %v2570 = vadd.f32 0.0, %v2569
      %v2571 = vpop.f32.mrf.mxu0
      %v2572 = vadd.f32 0.0, %v2571
      %2573 = vmatmul.bf16.gmra.mxu0 %v2493
      %v2574 = vpop.f32.mrf.mxu0
      %v2575 = vadd.f32 0.0, %v2574
      %v2576 = vpop.f32.mrf.mxu0
      %v2577 = vadd.f32 0.0, %v2576
      %2578 = vmatmul.bf16.gmra.mxu0 %v2494
      %v2579 = vpop.f32.mrf.mxu0
      %v2580 = vadd.f32 0.0, %v2579
      %v2581 = vpop.f32.mrf.mxu0
      %v2582 = vadd.f32 0.0, %v2581
      %2583 = vmatmul.bf16.gmra.mxu0 %v2495
      %v2584 = vpop.f32.mrf.mxu0
      %v2585 = vadd.f32 0.0, %v2584
      %v2586 = vpop.f32.mrf.mxu0
      %v2587 = vadd.f32 0.0, %v2586
      %2588 = vdwg.mxu0
      %v2589 = vadd.f32 %v2436, %v2570
      %v2590 = vadd.f32 %v2437, %v2572
      %v2591 = vadd.f32 %v2438, %v2575
      %v2592 = vadd.f32 %v2439, %v2577
      %v2593 = vadd.f32 %v2440, %v2580
      %v2594 = vadd.f32 %v2441, %v2582
      %v2595 = vadd.f32 %v2442, %v2585
      %v2596 = vadd.f32 %v2443, %v2587
      %2597 = vst [vmem:[%s379] sm:$0xff] %v2589
      %2598 = vst [vmem:[%s379 + $0x8] sm:$0xff] %v2590
      %2599 = vst [vmem:[%s379 + $0x10] sm:$0xff] %v2591
      %2600 = vst [vmem:[%s379 + $0x18] sm:$0xff] %v2592
      %2601 = vst [vmem:[%s379 + $0x20] sm:$0xff] %v2593
      %2602 = vst [vmem:[%s379 + $0x28] sm:$0xff] %v2594
      %2603 = vst [vmem:[%s379 + $0x30] sm:$0xff] %v2595
      %2604 = vst [vmem:[%s379 + $0x38] sm:$0xff] %v2596
      %p2605 = scmp.lt.s32.totalorder %s24, 1
      %s2606 = scalar_select %p2605, %s24, 1
      %p2607 = scmp.lt.s32.totalorder %s23, 0
      %s2608 = scalar_select %p2607, %s23, 0
      %s2609 = smul.addr %s2606, 8
      %s2610 = sadd.s32 %s2608, %s2609
      %s2611 = smul.addr %s2610, 8
      %s2612 = scalar_lea.vmem %s8, %s2611
      // Predicated region
      $region53: #{basic_block_forward.5} parent=51 // pred_check
        %p2613 = pneg %p239
      $region54: #{basic_block_forward.5} parent=51 // pred_check_branch
        %2615 = sbr.rel (%p2613) target = $region56
      $region55: #{basic_block_forward.5} parent=51 // pred_region
        _
      $region56: #{basic_block_forward.5} parent=51 // pred_fallthru
        _
    $region52: #{basic_block_forward.5} parent=5 // pred_fallthru
      _
    %p2616 = scmp.le.s32.totalorder 2, %s14
    // Predicated region
    $region57: #{basic_block_forward.5} parent=5 // pred_check
      %p2617 = pneg %p2616
    $region58: #{basic_block_forward.5} parent=5 // pred_check_branch
      %2619 = sbr.rel (%p2617) target = $region60
    $region59: #{basic_block_forward.5} parent=5 // pred_region
      %s2620 = ssub.s32 %s14, 2
      // Predicated region
      $region61: #{basic_block_forward.5} parent=59 // pred_check
        %p2621 = pneg %p245
      $region62: #{basic_block_forward.5} parent=59 // pred_check_branch
        %2623 = sbr.rel (%p2621) target = $region64
      $region63: #{basic_block_forward.5} parent=59 // pred_region
        %p2624 = scmp.lt.s32.totalorder %s26, 1
        %s2625 = scalar_select %p2624, %s26, 1
        %p2626 = scmp.lt.s32.totalorder %s25, 0
        %s2627 = scalar_select %p2626, %s25, 0
        %s2628 = smul.addr %s2625, 8
        %s2629 = sadd.s32 %s2627, %s2628
        %s2630 = smul.addr %s2629, 8
        %s2631 = scalar_lea.vmem %s8, %s2630
      $region64: #{basic_block_forward.5} parent=59 // pred_fallthru
        _
    $region60: #{basic_block_forward.5} parent=5 // pred_fallthru
      _
  $region6: #{basic_block_forward.5} parent=0 // loop_footer
    %s18 = sadd.s32 1, %s14
  $region7: #{basic_block_forward.5} parent=0 // loop_footer_branch
    %13 = sbr.rel target = $region3
  $region8: #{basic_block_forward.5} parent=0 // loop_exit
    _

</llo_original>
